<compile_context>
chip_gen: v7x
topology: tpu7x:2x2x1
jax: 0.10.0
libtpu: 0.0.40
codegen_flags: <defaults>
</compile_context>

<pallas_src>
import numpy as np
import jax
import jax.numpy as jnp
from jax import lax
from jax.experimental import pallas as pl
from jax.experimental.pallas import tpu as pltpu

_LSTM_BATCH_TILE = 8   # sublane-aligned batch tile for the serial LSTM loop


def _vmem_limit_bytes():
    cap = 128 * 1024 * 1024
    try:
        info = pltpu.get_tpu_info()
        cap = int(getattr(info, "vmem_capacity_bytes", cap) or cap)
    except Exception:
        pass
    # leave ~25% headroom for compiler-internal scratch / double buffering (v7x: 48 MiB)
    return int(min(64 * 1024 * 1024, cap * 3 // 4))


# ----------------------------------------------------------------------------------
# Kernel 1: packed conv1d stack -> head/tail, batched biaffine, streamed label
#           planes (lane-dense store) + per-plane logsumexp.
# ----------------------------------------------------------------------------------
def biaffine_kernel(seq_ref, ep_ref,
                    w12p_ref, b1_ref, b2_ref,
                    w3p_ref, b3_ref,
                    w4p_ref, b4_ref,
                    wbi_ref,
                    lm_ref, lres_ref):
    x = seq_ref[0]                         # (L, H)  f32
    ep = ep_ref[0]                         # (L, L)  f32
    L = x.shape[0]
    label_num = lm_ref.shape[1]
    C = wbi_ref.shape[1]                   # 200
    cout = b1_ref.shape[1]                 # 200
    chunk1 = w12p_ref.shape[1] // 7        # 512 = [conv1 pad 256 | conv2 pad 256]
    chunk2 = w3p_ref.shape[1] // 7         # 256
    c_half = chunk1 // 2

    # hoisted per-tap validity masks (shared by all three packed conv matmuls)
    row = lax.broadcasted_iota(jnp.int32, (L, 1), 0)
    masks = {d: jnp.logical_and(row + d >= 0, row + d < L)
             for d in (-3, -2, -1, 1, 2, 3)}

    def conv_taps(inp_b, wp_ref, chunk):
        # One packed (L, Cin) x (Cin, 7*chunk) bf16 matmul; the +/- tap offsets are
        # applied post-matmul with an XLU roll + (L,1) edge mask on lane-aligned
        # (multiple-of-128) chunks.  out[l] = sum_k z_k[l + k - 3].
        z = jnp.dot(inp_b, wp_ref[...], preferred_element_type=jnp.float32)  # (L, 7*chunk)
        acc = z[:, 3 * chunk:4 * chunk]                                      # d == 0 tap
        for k in range(7):
            d = k - 3
            if d == 0:
                continue
            zk = z[:, k * chunk:(k + 1) * chunk]
            zs = pltpu.roll(zk, shift=(-d) % L, axis=0)                      # zs[l] = zk[l+d]
            acc = acc + jnp.where(masks[d], zs, 0.0)
        return acc                                                           # (L, chunk) f32

    xb = x.astype(jnp.bfloat16)
    # conv1 & conv2 share the input -> one fused packed matmul for both.
    acc12 = conv_taps(xb, w12p_ref, chunk1)                                  # (L, 512)
    a1 = jax.nn.relu(acc12[:, 0:cout] + b1_ref[...]).astype(jnp.bfloat16)
    a2 = jax.nn.relu(acc12[:, c_half:c_half + cout] + b2_ref[...]).astype(jnp.bfloat16)

    head = conv_taps(a1, w3p_ref, chunk2)[:, 0:cout] + b3_ref[...]           # (L, 200) f32
    tail = conv_taps(a2, w4p_ref, chunk2)[:, 0:cout] + b4_ref[...]           # (L, 200) f32

    head_b = head.astype(jnp.bfloat16)
    tail_b = tail.astype(jnp.bfloat16)

    # Biaffine stage 1 (batched over labels, contract TAIL with W over m):
    #   tw[p*C + n, j] = sum_m W[p, n, m] * tail[j, m]
    tw = lax.dot_general(wbi_ref[...], tail_b, (((1,), (1,)), ((), ())),
                         preferred_element_type=jnp.float32)                 # (label*C, L)
    tw_b = tw.reshape(label_num, C, L).astype(jnp.bfloat16)                  # one bf16 cast

    # Stage 2, streamed per label (no (label, L, L) stack kept live -> bounded VMEM):
    #   plane_p[i, j] = head[i, :] @ tw_b[p][:, j]  (+ ep, no transpose needed)
    lres_parts = []
    for p in range(label_num):
        plane = jnp.dot(head_b, tw_b[p], preferred_element_type=jnp.float32) + ep  # (L, L)
        lm_ref[0, p] = plane                                                 # lane-dense store
        m = jnp.max(jnp.max(plane, axis=1, keepdims=True), axis=0, keepdims=True)  # (1, 1)
        e = jnp.exp(plane - m)
        s = jnp.sum(jnp.sum(e, axis=1, keepdims=True), axis=0, keepdims=True)
        lres_parts.append(m + jnp.log(s))                                    # (1, 1)
    lres_ref[...] = jnp.concatenate(lres_parts, axis=1).reshape(1, 1, 1, label_num)


# ----------------------------------------------------------------------------------
# Kernel 2: bidirectional LSTM (only the t=0 outputs are needed) + fused final Linear.
# Fused gate weights ([i|f|g|o]), bf16 matmul operands, time-major bf16 xproj scratch,
# batch tiled by 8 on a parallel grid axis.
# ----------------------------------------------------------------------------------
def lstm_kernel(seq_ref, wihf4_ref, bf4_ref,
                wihb4_ref, whhb4_ref, bb4_ref,
                wlin_ref, blin_ref,
                out_ref, xproj_ref):
    L, Bt, H = seq_ref.shape                  # time-major input block
    Hh = whhb4_ref.shape[0]
    G = 4 * Hh

    # Backward direction: the x @ W_ih projection for ALL timesteps is hoisted out of
    # the serial loop into ONE bf16 matmul; stored time-major so per-step reads are
    # free leading-axis views.
    x2 = seq_ref[...].reshape(L * Bt, H).astype(jnp.bfloat16)   # layout-trivial (Bt == 8)
    proj = jnp.dot(x2, wihb4_ref[...], preferred_element_type=jnp.float32) + bb4_ref[...]
    xproj_ref[...] = proj.reshape(L, Bt, G).astype(xproj_ref.dtype)

    whhb = whhb4_ref[...]                                       # (Hh, 4Hh) bf16

    def body(s, carry):
        h, c = carry
        t = L - 1 - s
        pre = (xproj_ref[t].astype(jnp.float32)
               + jnp.dot(h.astype(jnp.bfloat16), whhb, preferred_element_type=jnp.float32))
        i = jax.nn.sigmoid(pre[:, 0:Hh])
        f = jax.nn.sigmoid(pre[:, Hh:2 * Hh])
        g = jnp.tanh(pre[:, 2 * Hh:3 * Hh])
        o = jax.nn.sigmoid(pre[:, 3 * Hh:4 * Hh])
        c_new = f * c + i * g
        h_new = o * jnp.tanh(c_new)
        return (h_new, c_new)

    zeros = jnp.zeros((Bt, Hh), jnp.float32)
    h_b, _ = lax.fori_loop(0, L, body, (zeros, zeros))

    # Forward direction: only t = 0 is needed and h_{-1} = c_{-1} = 0, so the recurrent
    # matmul and the f-gate vanish.
    x0 = seq_ref[0].astype(jnp.bfloat16)                        # (Bt, H)
    pre0 = jnp.dot(x0, wihf4_ref[...], preferred_element_type=jnp.float32) + bf4_ref[...]
    i0 = jax.nn.sigmoid(pre0[:, 0:Hh])
    g0 = jnp.tanh(pre0[:, 2 * Hh:3 * Hh])
    o0 = jax.nn.sigmoid(pre0[:, 3 * Hh:4 * Hh])
    h_f = o0 * jnp.tanh(i0 * g0)

    # Fused final Linear: one (Bt, H) x (H, label) matmul on concat(h_f, h_b).
    hcat = jnp.concatenate([h_f, h_b], axis=1).astype(jnp.bfloat16)
    out_ref[...] = (jnp.dot(hcat, wlin_ref[...], preferred_element_type=jnp.float32)
                    + blin_ref[...])


# ----------------------------------------------------------------------------------
# Wrapper: one-time weight relayout, pallas_call plumbing.
# ----------------------------------------------------------------------------------
def _full_spec(a):
    zeros = (0,) * a.ndim
    return pl.BlockSpec(a.shape, lambda *_: zeros)


def prepare_params(params):
    """One-time relayout of module parameters into kernel-friendly packed/fused bf16 layouts."""
    label_num, C, _ = params["w_bi"].shape
    pad_c = ((C + 127) // 128) * 128                    # 256: lane-aligned per-tap chunk

    def pad_cout(w):
        return jnp.pad(w, ((0, 0), (0, 0), (0, pad_c - w.shape[2])))

    def pack_taps(w):                                   # (7, Cin, Co) -> (Cin, 7*Co) bf16
        k, cin, co = w.shape
        return jnp.transpose(w, (1, 0, 2)).reshape(cin, k * co).astype(jnp.bfloat16)

    def fuse_w(w):                                      # (4, In, Hh) -> (In, 4*Hh) bf16
        return jnp.transpose(w, (1, 0, 2)).reshape(w.shape[1], 4 * w.shape[2]).astype(jnp.bfloat16)

    def fuse_b(b):                                      # (4, 1, Hh) -> (1, 4*Hh) f32
        return jnp.transpose(b, (1, 0, 2)).reshape(1, 4 * b.shape[2])

    return dict(
        # conv1 & conv2 share their input -> fused along Cout; all 7 taps packed along lanes
        w12p=pack_taps(jnp.concatenate([pad_cout(params["w1"]), pad_cout(params["w2"])], axis=2)),
        w3p=pack_taps(pad_cout(params["w3"])),
        w4p=pack_taps(pad_cout(params["w4"])),
        b1=params["b1"], b2=params["b2"], b3=params["b3"], b4=params["b4"],
        # wbi[p*C + n, m] corresponds to module.weight[n, p*C + m] (Parameter(200, label*200));
        # verify this ordering when porting real PyTorch weights.
        wbi=params["w_bi"].reshape(label_num * C, C).astype(jnp.bfloat16),
        wihf4=fuse_w(params["w_ih_f"]), bf4=fuse_b(params["b_f"]),
        wihb4=fuse_w(params["w_ih_b"]), whhb4=fuse_w(params["w_hh_b"]), bb4=fuse_b(params["b_b"]),
        wlin=params["w_lin"].astype(jnp.bfloat16), blin=params["b_lin"],
    )


def local_matrix_to_pytorch_layout(lm_bpij):
    """(B, label, L, L) -> (B, L, L, label).  Costs a full extra HBM round trip over the
    largest tensor; only use when a consumer really needs the PyTorch layout."""
    return jnp.transpose(lm_bpij, (0, 2, 3, 1))


@jax.jit
def biaffine_pairwise_forward(seq, ep_dist, kp):
    B, L, H = seq.shape
    C = kp["wbi"].shape[1]
    label_num = kp["wbi"].shape[0] // C
    Hh = kp["whhb4"].shape[0]
    vmem_limit = _vmem_limit_bytes()

    lm, lres4 = pl.pallas_call(
        biaffine_kernel,
        out_shape=(jax.ShapeDtypeStruct((B, label_num, L, L), jnp.float32),
                   jax.ShapeDtypeStruct((B, 1, 1, label_num), jnp.float32)),
        grid_spec=pltpu.PrefetchScalarGridSpec(
            num_scalar_prefetch=0,
            grid=(B,),
            in_specs=[
                pl.BlockSpec((1, L, H), lambda b: (b, 0, 0)),
                pl.BlockSpec((1, L, L), lambda b: (b, 0, 0)),
                _full_spec(kp["w12p"]), _full_spec(kp["b1"]), _full_spec(kp["b2"]),
                _full_spec(kp["w3p"]), _full_spec(kp["b3"]),
                _full_spec(kp["w4p"]), _full_spec(kp["b4"]),
                _full_spec(kp["wbi"]),
            ],
            out_specs=(pl.BlockSpec((1, label_num, L, L), lambda b: (b, 0, 0, 0)),
                       pl.BlockSpec((1, 1, 1, label_num), lambda b: (b, 0, 0, 0))),
        ),
        compiler_params=pltpu.CompilerParams(
            dimension_semantics=("parallel",),          # batch shards across cores
            vmem_limit_bytes=vmem_limit,
        ),
    )(seq, ep_dist, kp["w12p"], kp["b1"], kp["b2"], kp["w3p"], kp["b3"],
      kp["w4p"], kp["b4"], kp["wbi"])

    lres = lres4.reshape(B, label_num)

    # --- bidirectional LSTM (only position 0 of its output is used) + final Linear ---
    Bt = _LSTM_BATCH_TILE
    B_pad = ((B + Bt - 1) // Bt) * Bt
    seq_t = jnp.transpose(seq, (1, 0, 2))               # (L, B, H) time-major
    if B_pad != B:
        seq_t = jnp.pad(seq_t, ((0, 0), (0, B_pad - B), (0, 0)))

    glob = pl.pallas_call(
        lstm_kernel,
        out_shape=jax.ShapeDtypeStruct((B_pad, label_num), jnp.float32),
        grid_spec=pltpu.PrefetchScalarGridSpec(
            num_scalar_prefetch=0,
            grid=(B_pad // Bt,),
            in_specs=[
                pl.BlockSpec((L, Bt, H), lambda i: (0, i, 0)),
                _full_spec(kp["wihf4"]), _full_spec(kp["bf4"]),
                _full_spec(kp["wihb4"]), _full_spec(kp["whhb4"]), _full_spec(kp["bb4"]),
                _full_spec(kp["wlin"]), _full_spec(kp["blin"]),
            ],
            out_specs=pl.BlockSpec((Bt, label_num), lambda i: (i, 0)),
            scratch_shapes=[pltpu.VMEM((L, Bt, 4 * Hh), jnp.bfloat16)],
        ),
        compiler_params=pltpu.CompilerParams(
            dimension_semantics=("parallel",),
            vmem_limit_bytes=vmem_limit,
        ),
    )(seq_t, kp["wihf4"], kp["bf4"], kp["wihb4"], kp["whhb4"], kp["bb4"],
      kp["wlin"], kp["blin"])

    output = lres + glob[:B]
    # local_matrix is returned in the kernel-native lane-dense (B, label, L, L) layout;
    # same data as PyTorch's (B, L, L, label) -- see local_matrix_to_pytorch_layout().
    return output, lm


# ----------------------------------------------------------------------------------
# Deterministic parameter init (shapes implied by the PyTorch module __init__).
# Conv weights stored as (7, Cin, Cout); biaffine weight as (label, 200, 200);
# LSTM weights per-gate as (4, in, Hh) with gate order [i, f, g, o]; LSTM bias is
# bias_ih + bias_hh combined; Linear weight stored transposed (H, label).
# ----------------------------------------------------------------------------------
def init_params(key, hidden_size, label_num):
    H = hidden_size
    Hh = H // 2
    ks = jax.random.split(key, 17)

    def u(k, shape, fan_in):
        bound = 1.0 / np.sqrt(fan_in)
        return jax.random.uniform(k, shape, jnp.float32, -bound, bound)

    return dict(
        w1=u(ks[0], (7, H, 200), 7 * H),      b1=u(ks[1], (1, 200), 7 * H),
        w2=u(ks[2], (7, H, 200), 7 * H),      b2=u(ks[3], (1, 200), 7 * H),
        w3=u(ks[4], (7, 200, 200), 7 * 200),  b3=u(ks[5], (1, 200), 7 * 200),
        w4=u(ks[6], (7, 200, 200), 7 * 200),  b4=u(ks[7], (1, 200), 7 * 200),
        w_bi=u(ks[8], (label_num, 200, 200), 200),
        w_ih_f=u(ks[9], (4, H, Hh), Hh),  w_hh_f=u(ks[10], (4, Hh, Hh), Hh),
        b_f=u(ks[11], (4, 1, Hh), Hh),
        w_ih_b=u(ks[12], (4, H, Hh), Hh), w_hh_b=u(ks[13], (4, Hh, Hh), Hh),
        b_b=u(ks[14], (4, 1, Hh), Hh),
        w_lin=u(ks[15], (H, label_num), H),
        b_lin=u(ks[16], (1, label_num), H),
    )


# ----------------------------------------------------------------------------------
# Pure-JAX reference (semantics of the PyTorch forward) for verification.
# ----------------------------------------------------------------------------------
def reference_forward(seq, ep_dist, params):
    B, L, H = seq.shape
    Hh = H // 2

    def conv(x, w, b):  # x (B, L, Cin)
        xp = jnp.pad(x, ((0, 0), (3, 3), (0, 0)))
        acc = jnp.zeros((B, L, w.shape[-1]), jnp.float32) + b[None]
        for k in range(7):
            acc = acc + jnp.einsum("blc,co->blo", xp[:, k:k + L, :], w[k])
        return acc

    head = conv(jax.nn.relu(conv(seq, params["w1"], params["b1"])), params["w3"], params["b3"])
    tail = conv(jax.nn.relu(conv(seq, params["w2"], params["b2"])), params["w4"], params["b4"])
    bi = jnp.einsum("bin,pnm,bjm->bijp", head, params["w_bi"], tail)
    local_matrix = bi + ep_dist[..., None]
    lres = jax.scipy.special.logsumexp(
        local_matrix.reshape(B, L * L, local_matrix.shape[-1]), axis=1)

    def cell(xt, h, c, wih, whh, b):
        pre = [xt @ wih[g] + h @ whh[g] + b[g] for g in range(4)]
        i = jax.nn.sigmoid(pre[0]); f = jax.nn.sigmoid(pre[1])
        g_ = jnp.tanh(pre[2]); o = jax.nn.sigmoid(pre[3])
        c = f * c + i * g_
        return o * jnp.tanh(c), c

    z = jnp.zeros((B, Hh), jnp.float32)
    h_f, _ = cell(seq[:, 0, :], z, z, params["w_ih_f"], params["w_hh_f"], params["b_f"])

    def step(carry, xt):
        h, c = carry
        h, c = cell(xt, h, c, params["w_ih_b"], params["w_hh_b"], params["b_b"])
        return (h, c), None

    (h_b, _), _ = lax.scan(step, (z, z), jnp.flip(seq, axis=1).transpose(1, 0, 2))
    glob = jnp.concatenate([h_f, h_b], axis=1) @ params["w_lin"] + params["b_lin"]
    return lres + glob, local_matrix


if __name__ == "__main__":
    B, L, H, LABEL = 2, 8, 32, 4
    key = jax.random.PRNGKey(0)
    kseq, kep, kp_key = jax.random.split(key, 3)
    seq = jax.random.normal(kseq, (B, L, H), jnp.float32)
    ep_dist = jax.random.normal(kep, (B, L, L), jnp.float32)
    params = init_params(kp_key, H, LABEL)
    kparams = prepare_params(params)

    output, local_matrix = jax.block_until_ready(
        biaffine_pairwise_forward(seq, ep_dist, kparams))

    ref_out, ref_lm = reference_forward(seq, ep_dist, params)
    # kernel stores local_matrix lane-dense as (B, label, L, L); reference is (B, L, L, label)
    ref_lm_k = jnp.transpose(ref_lm, (0, 3, 1, 2))
    # bf16 MXU operands with f32 accumulation -> slightly looser tolerance than pure f32
    np.testing.assert_allclose(np.asarray(local_matrix), np.asarray(ref_lm_k),
                               rtol=5e-2, atol=5e-2)
    np.testing.assert_allclose(np.asarray(output), np.asarray(ref_out),
                               rtol=5e-2, atol=5e-2)
    assert output.shape == (B, LABEL) and local_matrix.shape == (B, LABEL, L, L)
    print("KERNEL_OK")
</pallas_src>

<mosaic_0001>
module attributes {stable_mosaic.version = 11 : i64} {
  func.func @biaffine_kernel(%arg0: i32, %arg1: memref<1x8x32xf32, #tpu.memory_space<vmem>>, %arg2: memref<1x8x8xf32, #tpu.memory_space<vmem>>, %arg3: memref<32x3584xbf16, #tpu.memory_space<vmem>>, %arg4: memref<1x200xf32, #tpu.memory_space<vmem>>, %arg5: memref<1x200xf32, #tpu.memory_space<vmem>>, %arg6: memref<200x1792xbf16, #tpu.memory_space<vmem>>, %arg7: memref<1x200xf32, #tpu.memory_space<vmem>>, %arg8: memref<200x1792xbf16, #tpu.memory_space<vmem>>, %arg9: memref<1x200xf32, #tpu.memory_space<vmem>>, %arg10: memref<800x200xbf16, #tpu.memory_space<vmem>>, %arg11: memref<1x4x8x8xf32, #tpu.memory_space<vmem>>, %arg12: memref<1x1x1x4xf32, #tpu.memory_space<vmem>>) attributes {dimension_semantics = [#tpu.dimension_semantics<parallel>], iteration_bounds = array<i64: 2>, scalar_prefetch = 0 : i64, scratch_operands = 0 : i64, tpu.core_type = #tpu.core_type<tc>, window_params = [{transform_indices = @transform_0, window_bounds = array<i64: 1, 8, 32>}, {transform_indices = @transform_1, window_bounds = array<i64: 1, 8, 8>}, {pipeline_mode = #tpu.pipeline_mode<synchronous>, transform_indices = @transform_2, window_bounds = array<i64: 32, 3584>}, {pipeline_mode = #tpu.pipeline_mode<synchronous>, transform_indices = @transform_3, window_bounds = array<i64: 1, 200>}, {pipeline_mode = #tpu.pipeline_mode<synchronous>, transform_indices = @transform_4, window_bounds = array<i64: 1, 200>}, {pipeline_mode = #tpu.pipeline_mode<synchronous>, transform_indices = @transform_5, window_bounds = array<i64: 200, 1792>}, {pipeline_mode = #tpu.pipeline_mode<synchronous>, transform_indices = @transform_6, window_bounds = array<i64: 1, 200>}, {pipeline_mode = #tpu.pipeline_mode<synchronous>, transform_indices = @transform_7, window_bounds = array<i64: 200, 1792>}, {pipeline_mode = #tpu.pipeline_mode<synchronous>, transform_indices = @transform_8, window_bounds = array<i64: 1, 200>}, {pipeline_mode = #tpu.pipeline_mode<synchronous>, transform_indices = @transform_9, window_bounds = array<i64: 800, 200>}, {transform_indices = @transform_10, window_bounds = array<i64: 1, 4, 8, 8>}, {transform_indices = @transform_11, window_bounds = array<i64: 1, 1, 1, 4>}]} {
    %c0 = arith.constant 0 : index
    %c0_0 = arith.constant 0 : index
    %c0_1 = arith.constant 0 : index
    %0 = vector.load %arg1[%c0, %c0_0, %c0_1] : memref<1x8x32xf32, #tpu.memory_space<vmem>>, vector<1x8x32xf32>
    %1 = vector.shape_cast %0 : vector<1x8x32xf32> to vector<8x32xf32>
    %c0_2 = arith.constant 0 : index
    %c0_3 = arith.constant 0 : index
    %c0_4 = arith.constant 0 : index
    %2 = vector.load %arg2[%c0_2, %c0_3, %c0_4] : memref<1x8x8xf32, #tpu.memory_space<vmem>>, vector<1x8x8xf32>
    %3 = vector.shape_cast %2 : vector<1x8x8xf32> to vector<8x8xf32>
    %4 = tpu.iota {dimensions = array<i32: 0>} : vector<8x1xi32>
    %c-3_i32 = arith.constant -3 : i32
    %5 = vector.broadcast %c-3_i32 : i32 to vector<8x1xi32>
    %6 = arith.addi %4, %5 : vector<8x1xi32>
    %c0_i32 = arith.constant 0 : i32
    %7 = vector.broadcast %c0_i32 : i32 to vector<8x1xi32>
    %8 = arith.cmpi sge, %6, %7 : vector<8x1xi32>
    %c-3_i32_5 = arith.constant -3 : i32
    %9 = vector.broadcast %c-3_i32_5 : i32 to vector<8x1xi32>
    %10 = arith.addi %4, %9 : vector<8x1xi32>
    %c8_i32 = arith.constant 8 : i32
    %11 = vector.broadcast %c8_i32 : i32 to vector<8x1xi32>
    %12 = arith.cmpi slt, %10, %11 : vector<8x1xi32>
    %13 = arith.andi %8, %12 : vector<8x1xi1>
    %c-2_i32 = arith.constant -2 : i32
    %14 = vector.broadcast %c-2_i32 : i32 to vector<8x1xi32>
    %15 = arith.addi %4, %14 : vector<8x1xi32>
    %c0_i32_6 = arith.constant 0 : i32
    %16 = vector.broadcast %c0_i32_6 : i32 to vector<8x1xi32>
    %17 = arith.cmpi sge, %15, %16 : vector<8x1xi32>
    %c-2_i32_7 = arith.constant -2 : i32
    %18 = vector.broadcast %c-2_i32_7 : i32 to vector<8x1xi32>
    %19 = arith.addi %4, %18 : vector<8x1xi32>
    %c8_i32_8 = arith.constant 8 : i32
    %20 = vector.broadcast %c8_i32_8 : i32 to vector<8x1xi32>
    %21 = arith.cmpi slt, %19, %20 : vector<8x1xi32>
    %22 = arith.andi %17, %21 : vector<8x1xi1>
    %c-1_i32 = arith.constant -1 : i32
    %23 = vector.broadcast %c-1_i32 : i32 to vector<8x1xi32>
    %24 = arith.addi %4, %23 : vector<8x1xi32>
    %c0_i32_9 = arith.constant 0 : i32
    %25 = vector.broadcast %c0_i32_9 : i32 to vector<8x1xi32>
    %26 = arith.cmpi sge, %24, %25 : vector<8x1xi32>
    %c-1_i32_10 = arith.constant -1 : i32
    %27 = vector.broadcast %c-1_i32_10 : i32 to vector<8x1xi32>
    %28 = arith.addi %4, %27 : vector<8x1xi32>
    %c8_i32_11 = arith.constant 8 : i32
    %29 = vector.broadcast %c8_i32_11 : i32 to vector<8x1xi32>
    %30 = arith.cmpi slt, %28, %29 : vector<8x1xi32>
    %31 = arith.andi %26, %30 : vector<8x1xi1>
    %c1_i32 = arith.constant 1 : i32
    %32 = vector.broadcast %c1_i32 : i32 to vector<8x1xi32>
    %33 = arith.addi %4, %32 : vector<8x1xi32>
    %c0_i32_12 = arith.constant 0 : i32
    %34 = vector.broadcast %c0_i32_12 : i32 to vector<8x1xi32>
    %35 = arith.cmpi sge, %33, %34 : vector<8x1xi32>
    %c1_i32_13 = arith.constant 1 : i32
    %36 = vector.broadcast %c1_i32_13 : i32 to vector<8x1xi32>
    %37 = arith.addi %4, %36 : vector<8x1xi32>
    %c8_i32_14 = arith.constant 8 : i32
    %38 = vector.broadcast %c8_i32_14 : i32 to vector<8x1xi32>
    %39 = arith.cmpi slt, %37, %38 : vector<8x1xi32>
    %40 = arith.andi %35, %39 : vector<8x1xi1>
    %c2_i32 = arith.constant 2 : i32
    %41 = vector.broadcast %c2_i32 : i32 to vector<8x1xi32>
    %42 = arith.addi %4, %41 : vector<8x1xi32>
    %c0_i32_15 = arith.constant 0 : i32
    %43 = vector.broadcast %c0_i32_15 : i32 to vector<8x1xi32>
    %44 = arith.cmpi sge, %42, %43 : vector<8x1xi32>
    %c2_i32_16 = arith.constant 2 : i32
    %45 = vector.broadcast %c2_i32_16 : i32 to vector<8x1xi32>
    %46 = arith.addi %4, %45 : vector<8x1xi32>
    %c8_i32_17 = arith.constant 8 : i32
    %47 = vector.broadcast %c8_i32_17 : i32 to vector<8x1xi32>
    %48 = arith.cmpi slt, %46, %47 : vector<8x1xi32>
    %49 = arith.andi %44, %48 : vector<8x1xi1>
    %c3_i32 = arith.constant 3 : i32
    %50 = vector.broadcast %c3_i32 : i32 to vector<8x1xi32>
    %51 = arith.addi %4, %50 : vector<8x1xi32>
    %c0_i32_18 = arith.constant 0 : i32
    %52 = vector.broadcast %c0_i32_18 : i32 to vector<8x1xi32>
    %53 = arith.cmpi sge, %51, %52 : vector<8x1xi32>
    %c3_i32_19 = arith.constant 3 : i32
    %54 = vector.broadcast %c3_i32_19 : i32 to vector<8x1xi32>
    %55 = arith.addi %4, %54 : vector<8x1xi32>
    %c8_i32_20 = arith.constant 8 : i32
    %56 = vector.broadcast %c8_i32_20 : i32 to vector<8x1xi32>
    %57 = arith.cmpi slt, %55, %56 : vector<8x1xi32>
    %58 = arith.andi %53, %57 : vector<8x1xi1>
    %59 = arith.truncf %1 : vector<8x32xf32> to vector<8x32xbf16>
    %c0_21 = arith.constant 0 : index
    %c0_22 = arith.constant 0 : index
    %60 = vector.load %arg3[%c0_21, %c0_22] : memref<32x3584xbf16, #tpu.memory_space<vmem>>, vector<32x3584xbf16>
    %cst = arith.constant dense<0.000000e+00> : vector<8x3584xf32>
    %61 = tpu.matmul %59, %60, %cst {dimension_numbers = #tpu.dot_dimension_numbers<[1], [0], [0], [1], [0, 0, 1, 1], [], []>} : vector<8x32xbf16>, vector<32x3584xbf16>, vector<8x3584xf32> -> vector<8x3584xf32>
    %62 = vector.extract_strided_slice %61 {offsets = [0, 1536], sizes = [8, 512], strides = [1, 1]} : vector<8x3584xf32> to vector<8x512xf32>
    %63 = vector.extract_strided_slice %61 {offsets = [0, 0], sizes = [8, 512], strides = [1, 1]} : vector<8x3584xf32> to vector<8x512xf32>
    %c3_i32_23 = arith.constant 3 : i32
    %64 = tpu.dynamic_rotate %63 by %c3_i32_23 dim 0 : vector<8x512xf32>, i32 -> vector<8x512xf32>
    %cst_24 = arith.constant 0.000000e+00 : f32
    %65 = vector.shape_cast %13 : vector<8x1xi1> to vector<8x1xi1>
    %66 = vector.broadcast %65 : vector<8x1xi1> to vector<8x512xi1>
    %67 = vector.broadcast %cst_24 : f32 to vector<8x512xf32>
    %68 = arith.select %66, %64, %67 : vector<8x512xi1>, vector<8x512xf32>
    %69 = arith.addf %62, %68 : vector<8x512xf32>
    %70 = vector.extract_strided_slice %61 {offsets = [0, 512], sizes = [8, 512], strides = [1, 1]} : vector<8x3584xf32> to vector<8x512xf32>
    %c2_i32_25 = arith.constant 2 : i32
    %71 = tpu.dynamic_rotate %70 by %c2_i32_25 dim 0 : vector<8x512xf32>, i32 -> vector<8x512xf32>
    %cst_26 = arith.constant 0.000000e+00 : f32
    %72 = vector.shape_cast %22 : vector<8x1xi1> to vector<8x1xi1>
    %73 = vector.broadcast %72 : vector<8x1xi1> to vector<8x512xi1>
    %74 = vector.broadcast %cst_26 : f32 to vector<8x512xf32>
    %75 = arith.select %73, %71, %74 : vector<8x512xi1>, vector<8x512xf32>
    %76 = arith.addf %69, %75 : vector<8x512xf32>
    %77 = vector.extract_strided_slice %61 {offsets = [0, 1024], sizes = [8, 512], strides = [1, 1]} : vector<8x3584xf32> to vector<8x512xf32>
    %c1_i32_27 = arith.constant 1 : i32
    %78 = tpu.dynamic_rotate %77 by %c1_i32_27 dim 0 : vector<8x512xf32>, i32 -> vector<8x512xf32>
    %cst_28 = arith.constant 0.000000e+00 : f32
    %79 = vector.shape_cast %31 : vector<8x1xi1> to vector<8x1xi1>
    %80 = vector.broadcast %79 : vector<8x1xi1> to vector<8x512xi1>
    %81 = vector.broadcast %cst_28 : f32 to vector<8x512xf32>
    %82 = arith.select %80, %78, %81 : vector<8x512xi1>, vector<8x512xf32>
    %83 = arith.addf %76, %82 : vector<8x512xf32>
    %84 = vector.extract_strided_slice %61 {offsets = [0, 2048], sizes = [8, 512], strides = [1, 1]} : vector<8x3584xf32> to vector<8x512xf32>
    %c7_i32 = arith.constant 7 : i32
    %85 = tpu.dynamic_rotate %84 by %c7_i32 dim 0 : vector<8x512xf32>, i32 -> vector<8x512xf32>
    %cst_29 = arith.constant 0.000000e+00 : f32
    %86 = vector.shape_cast %40 : vector<8x1xi1> to vector<8x1xi1>
    %87 = vector.broadcast %86 : vector<8x1xi1> to vector<8x512xi1>
    %88 = vector.broadcast %cst_29 : f32 to vector<8x512xf32>
    %89 = arith.select %87, %85, %88 : vector<8x512xi1>, vector<8x512xf32>
    %90 = arith.addf %83, %89 : vector<8x512xf32>
    %91 = vector.extract_strided_slice %61 {offsets = [0, 2560], sizes = [8, 512], strides = [1, 1]} : vector<8x3584xf32> to vector<8x512xf32>
    %c6_i32 = arith.constant 6 : i32
    %92 = tpu.dynamic_rotate %91 by %c6_i32 dim 0 : vector<8x512xf32>, i32 -> vector<8x512xf32>
    %cst_30 = arith.constant 0.000000e+00 : f32
    %93 = vector.shape_cast %49 : vector<8x1xi1> to vector<8x1xi1>
    %94 = vector.broadcast %93 : vector<8x1xi1> to vector<8x512xi1>
    %95 = vector.broadcast %cst_30 : f32 to vector<8x512xf32>
    %96 = arith.select %94, %92, %95 : vector<8x512xi1>, vector<8x512xf32>
    %97 = arith.addf %90, %96 : vector<8x512xf32>
    %98 = vector.extract_strided_slice %61 {offsets = [0, 3072], sizes = [8, 512], strides = [1, 1]} : vector<8x3584xf32> to vector<8x512xf32>
    %c5_i32 = arith.constant 5 : i32
    %99 = tpu.dynamic_rotate %98 by %c5_i32 dim 0 : vector<8x512xf32>, i32 -> vector<8x512xf32>
    %cst_31 = arith.constant 0.000000e+00 : f32
    %100 = vector.shape_cast %58 : vector<8x1xi1> to vector<8x1xi1>
    %101 = vector.broadcast %100 : vector<8x1xi1> to vector<8x512xi1>
    %102 = vector.broadcast %cst_31 : f32 to vector<8x512xf32>
    %103 = arith.select %101, %99, %102 : vector<8x512xi1>, vector<8x512xf32>
    %104 = arith.addf %97, %103 : vector<8x512xf32>
    %105 = vector.extract_strided_slice %104 {offsets = [0, 0], sizes = [8, 200], strides = [1, 1]} : vector<8x512xf32> to vector<8x200xf32>
    %c0_32 = arith.constant 0 : index
    %c0_33 = arith.constant 0 : index
    %106 = vector.load %arg4[%c0_32, %c0_33] : memref<1x200xf32, #tpu.memory_space<vmem>>, vector<1x200xf32>
    %107 = vector.broadcast %106 : vector<1x200xf32> to vector<8x200xf32>
    %108 = arith.addf %105, %107 : vector<8x200xf32>
    %cst_34 = arith.constant 0.000000e+00 : f32
    %109 = vector.broadcast %cst_34 : f32 to vector<8x200xf32>
    %110 = arith.maximumf %108, %109 : vector<8x200xf32>
    %111 = arith.truncf %110 : vector<8x200xf32> to vector<8x200xbf16>
    %112 = vector.extract_strided_slice %104 {offsets = [0, 256], sizes = [8, 200], strides = [1, 1]} : vector<8x512xf32> to vector<8x200xf32>
    %c0_35 = arith.constant 0 : index
    %c0_36 = arith.constant 0 : index
    %113 = vector.load %arg5[%c0_35, %c0_36] : memref<1x200xf32, #tpu.memory_space<vmem>>, vector<1x200xf32>
    %114 = vector.broadcast %113 : vector<1x200xf32> to vector<8x200xf32>
    %115 = arith.addf %112, %114 : vector<8x200xf32>
    %cst_37 = arith.constant 0.000000e+00 : f32
    %116 = vector.broadcast %cst_37 : f32 to vector<8x200xf32>
    %117 = arith.maximumf %115, %116 : vector<8x200xf32>
    %118 = arith.truncf %117 : vector<8x200xf32> to vector<8x200xbf16>
    %c0_38 = arith.constant 0 : index
    %c0_39 = arith.constant 0 : index
    %119 = vector.load %arg6[%c0_38, %c0_39] : memref<200x1792xbf16, #tpu.memory_space<vmem>>, vector<200x1792xbf16>
    %cst_40 = arith.constant dense<0.000000e+00> : vector<8x1792xf32>
    %120 = tpu.matmul %111, %119, %cst_40 {dimension_numbers = #tpu.dot_dimension_numbers<[1], [0], [0], [1], [0, 0, 1, 1], [], []>} : vector<8x200xbf16>, vector<200x1792xbf16>, vector<8x1792xf32> -> vector<8x1792xf32>
    %121 = vector.extract_strided_slice %120 {offsets = [0, 768], sizes = [8, 256], strides = [1, 1]} : vector<8x1792xf32> to vector<8x256xf32>
    %122 = vector.extract_strided_slice %120 {offsets = [0, 0], sizes = [8, 256], strides = [1, 1]} : vector<8x1792xf32> to vector<8x256xf32>
    %c3_i32_41 = arith.constant 3 : i32
    %123 = tpu.dynamic_rotate %122 by %c3_i32_41 dim 0 : vector<8x256xf32>, i32 -> vector<8x256xf32>
    %cst_42 = arith.constant 0.000000e+00 : f32
    %124 = vector.shape_cast %13 : vector<8x1xi1> to vector<8x1xi1>
    %125 = vector.broadcast %124 : vector<8x1xi1> to vector<8x256xi1>
    %126 = vector.broadcast %cst_42 : f32 to vector<8x256xf32>
    %127 = arith.select %125, %123, %126 : vector<8x256xi1>, vector<8x256xf32>
    %128 = arith.addf %121, %127 : vector<8x256xf32>
    %129 = vector.extract_strided_slice %120 {offsets = [0, 256], sizes = [8, 256], strides = [1, 1]} : vector<8x1792xf32> to vector<8x256xf32>
    %c2_i32_43 = arith.constant 2 : i32
    %130 = tpu.dynamic_rotate %129 by %c2_i32_43 dim 0 : vector<8x256xf32>, i32 -> vector<8x256xf32>
    %cst_44 = arith.constant 0.000000e+00 : f32
    %131 = vector.shape_cast %22 : vector<8x1xi1> to vector<8x1xi1>
    %132 = vector.broadcast %131 : vector<8x1xi1> to vector<8x256xi1>
    %133 = vector.broadcast %cst_44 : f32 to vector<8x256xf32>
    %134 = arith.select %132, %130, %133 : vector<8x256xi1>, vector<8x256xf32>
    %135 = arith.addf %128, %134 : vector<8x256xf32>
    %136 = vector.extract_strided_slice %120 {offsets = [0, 512], sizes = [8, 256], strides = [1, 1]} : vector<8x1792xf32> to vector<8x256xf32>
    %c1_i32_45 = arith.constant 1 : i32
    %137 = tpu.dynamic_rotate %136 by %c1_i32_45 dim 0 : vector<8x256xf32>, i32 -> vector<8x256xf32>
    %cst_46 = arith.constant 0.000000e+00 : f32
    %138 = vector.shape_cast %31 : vector<8x1xi1> to vector<8x1xi1>
    %139 = vector.broadcast %138 : vector<8x1xi1> to vector<8x256xi1>
    %140 = vector.broadcast %cst_46 : f32 to vector<8x256xf32>
    %141 = arith.select %139, %137, %140 : vector<8x256xi1>, vector<8x256xf32>
    %142 = arith.addf %135, %141 : vector<8x256xf32>
    %143 = vector.extract_strided_slice %120 {offsets = [0, 1024], sizes = [8, 256], strides = [1, 1]} : vector<8x1792xf32> to vector<8x256xf32>
    %c7_i32_47 = arith.constant 7 : i32
    %144 = tpu.dynamic_rotate %143 by %c7_i32_47 dim 0 : vector<8x256xf32>, i32 -> vector<8x256xf32>
    %cst_48 = arith.constant 0.000000e+00 : f32
    %145 = vector.shape_cast %40 : vector<8x1xi1> to vector<8x1xi1>
    %146 = vector.broadcast %145 : vector<8x1xi1> to vector<8x256xi1>
    %147 = vector.broadcast %cst_48 : f32 to vector<8x256xf32>
    %148 = arith.select %146, %144, %147 : vector<8x256xi1>, vector<8x256xf32>
    %149 = arith.addf %142, %148 : vector<8x256xf32>
    %150 = vector.extract_strided_slice %120 {offsets = [0, 1280], sizes = [8, 256], strides = [1, 1]} : vector<8x1792xf32> to vector<8x256xf32>
    %c6_i32_49 = arith.constant 6 : i32
    %151 = tpu.dynamic_rotate %150 by %c6_i32_49 dim 0 : vector<8x256xf32>, i32 -> vector<8x256xf32>
    %cst_50 = arith.constant 0.000000e+00 : f32
    %152 = vector.shape_cast %49 : vector<8x1xi1> to vector<8x1xi1>
    %153 = vector.broadcast %152 : vector<8x1xi1> to vector<8x256xi1>
    %154 = vector.broadcast %cst_50 : f32 to vector<8x256xf32>
    %155 = arith.select %153, %151, %154 : vector<8x256xi1>, vector<8x256xf32>
    %156 = arith.addf %149, %155 : vector<8x256xf32>
    %157 = vector.extract_strided_slice %120 {offsets = [0, 1536], sizes = [8, 256], strides = [1, 1]} : vector<8x1792xf32> to vector<8x256xf32>
    %c5_i32_51 = arith.constant 5 : i32
    %158 = tpu.dynamic_rotate %157 by %c5_i32_51 dim 0 : vector<8x256xf32>, i32 -> vector<8x256xf32>
    %cst_52 = arith.constant 0.000000e+00 : f32
    %159 = vector.shape_cast %58 : vector<8x1xi1> to vector<8x1xi1>
    %160 = vector.broadcast %159 : vector<8x1xi1> to vector<8x256xi1>
    %161 = vector.broadcast %cst_52 : f32 to vector<8x256xf32>
    %162 = arith.select %160, %158, %161 : vector<8x256xi1>, vector<8x256xf32>
    %163 = arith.addf %156, %162 : vector<8x256xf32>
    %164 = vector.extract_strided_slice %163 {offsets = [0, 0], sizes = [8, 200], strides = [1, 1]} : vector<8x256xf32> to vector<8x200xf32>
    %c0_53 = arith.constant 0 : index
    %c0_54 = arith.constant 0 : index
    %165 = vector.load %arg7[%c0_53, %c0_54] : memref<1x200xf32, #tpu.memory_space<vmem>>, vector<1x200xf32>
    %166 = vector.broadcast %165 : vector<1x200xf32> to vector<8x200xf32>
    %167 = arith.addf %164, %166 : vector<8x200xf32>
    %c0_55 = arith.constant 0 : index
    %c0_56 = arith.constant 0 : index
    %168 = vector.load %arg8[%c0_55, %c0_56] : memref<200x1792xbf16, #tpu.memory_space<vmem>>, vector<200x1792xbf16>
    %cst_57 = arith.constant dense<0.000000e+00> : vector<8x1792xf32>
    %169 = tpu.matmul %118, %168, %cst_57 {dimension_numbers = #tpu.dot_dimension_numbers<[1], [0], [0], [1], [0, 0, 1, 1], [], []>} : vector<8x200xbf16>, vector<200x1792xbf16>, vector<8x1792xf32> -> vector<8x1792xf32>
    %170 = vector.extract_strided_slice %169 {offsets = [0, 768], sizes = [8, 256], strides = [1, 1]} : vector<8x1792xf32> to vector<8x256xf32>
    %171 = vector.extract_strided_slice %169 {offsets = [0, 0], sizes = [8, 256], strides = [1, 1]} : vector<8x1792xf32> to vector<8x256xf32>
    %c3_i32_58 = arith.constant 3 : i32
    %172 = tpu.dynamic_rotate %171 by %c3_i32_58 dim 0 : vector<8x256xf32>, i32 -> vector<8x256xf32>
    %cst_59 = arith.constant 0.000000e+00 : f32
    %173 = vector.shape_cast %13 : vector<8x1xi1> to vector<8x1xi1>
    %174 = vector.broadcast %173 : vector<8x1xi1> to vector<8x256xi1>
    %175 = vector.broadcast %cst_59 : f32 to vector<8x256xf32>
    %176 = arith.select %174, %172, %175 : vector<8x256xi1>, vector<8x256xf32>
    %177 = arith.addf %170, %176 : vector<8x256xf32>
    %178 = vector.extract_strided_slice %169 {offsets = [0, 256], sizes = [8, 256], strides = [1, 1]} : vector<8x1792xf32> to vector<8x256xf32>
    %c2_i32_60 = arith.constant 2 : i32
    %179 = tpu.dynamic_rotate %178 by %c2_i32_60 dim 0 : vector<8x256xf32>, i32 -> vector<8x256xf32>
    %cst_61 = arith.constant 0.000000e+00 : f32
    %180 = vector.shape_cast %22 : vector<8x1xi1> to vector<8x1xi1>
    %181 = vector.broadcast %180 : vector<8x1xi1> to vector<8x256xi1>
    %182 = vector.broadcast %cst_61 : f32 to vector<8x256xf32>
    %183 = arith.select %181, %179, %182 : vector<8x256xi1>, vector<8x256xf32>
    %184 = arith.addf %177, %183 : vector<8x256xf32>
    %185 = vector.extract_strided_slice %169 {offsets = [0, 512], sizes = [8, 256], strides = [1, 1]} : vector<8x1792xf32> to vector<8x256xf32>
    %c1_i32_62 = arith.constant 1 : i32
    %186 = tpu.dynamic_rotate %185 by %c1_i32_62 dim 0 : vector<8x256xf32>, i32 -> vector<8x256xf32>
    %cst_63 = arith.constant 0.000000e+00 : f32
    %187 = vector.shape_cast %31 : vector<8x1xi1> to vector<8x1xi1>
    %188 = vector.broadcast %187 : vector<8x1xi1> to vector<8x256xi1>
    %189 = vector.broadcast %cst_63 : f32 to vector<8x256xf32>
    %190 = arith.select %188, %186, %189 : vector<8x256xi1>, vector<8x256xf32>
    %191 = arith.addf %184, %190 : vector<8x256xf32>
    %192 = vector.extract_strided_slice %169 {offsets = [0, 1024], sizes = [8, 256], strides = [1, 1]} : vector<8x1792xf32> to vector<8x256xf32>
    %c7_i32_64 = arith.constant 7 : i32
    %193 = tpu.dynamic_rotate %192 by %c7_i32_64 dim 0 : vector<8x256xf32>, i32 -> vector<8x256xf32>
    %cst_65 = arith.constant 0.000000e+00 : f32
    %194 = vector.shape_cast %40 : vector<8x1xi1> to vector<8x1xi1>
    %195 = vector.broadcast %194 : vector<8x1xi1> to vector<8x256xi1>
    %196 = vector.broadcast %cst_65 : f32 to vector<8x256xf32>
    %197 = arith.select %195, %193, %196 : vector<8x256xi1>, vector<8x256xf32>
    %198 = arith.addf %191, %197 : vector<8x256xf32>
    %199 = vector.extract_strided_slice %169 {offsets = [0, 1280], sizes = [8, 256], strides = [1, 1]} : vector<8x1792xf32> to vector<8x256xf32>
    %c6_i32_66 = arith.constant 6 : i32
    %200 = tpu.dynamic_rotate %199 by %c6_i32_66 dim 0 : vector<8x256xf32>, i32 -> vector<8x256xf32>
    %cst_67 = arith.constant 0.000000e+00 : f32
    %201 = vector.shape_cast %49 : vector<8x1xi1> to vector<8x1xi1>
    %202 = vector.broadcast %201 : vector<8x1xi1> to vector<8x256xi1>
    %203 = vector.broadcast %cst_67 : f32 to vector<8x256xf32>
    %204 = arith.select %202, %200, %203 : vector<8x256xi1>, vector<8x256xf32>
    %205 = arith.addf %198, %204 : vector<8x256xf32>
    %206 = vector.extract_strided_slice %169 {offsets = [0, 1536], sizes = [8, 256], strides = [1, 1]} : vector<8x1792xf32> to vector<8x256xf32>
    %c5_i32_68 = arith.constant 5 : i32
    %207 = tpu.dynamic_rotate %206 by %c5_i32_68 dim 0 : vector<8x256xf32>, i32 -> vector<8x256xf32>
    %cst_69 = arith.constant 0.000000e+00 : f32
    %208 = vector.shape_cast %58 : vector<8x1xi1> to vector<8x1xi1>
    %209 = vector.broadcast %208 : vector<8x1xi1> to vector<8x256xi1>
    %210 = vector.broadcast %cst_69 : f32 to vector<8x256xf32>
    %211 = arith.select %209, %207, %210 : vector<8x256xi1>, vector<8x256xf32>
    %212 = arith.addf %205, %211 : vector<8x256xf32>
    %213 = vector.extract_strided_slice %212 {offsets = [0, 0], sizes = [8, 200], strides = [1, 1]} : vector<8x256xf32> to vector<8x200xf32>
    %c0_70 = arith.constant 0 : index
    %c0_71 = arith.constant 0 : index
    %214 = vector.load %arg9[%c0_70, %c0_71] : memref<1x200xf32, #tpu.memory_space<vmem>>, vector<1x200xf32>
    %215 = vector.broadcast %214 : vector<1x200xf32> to vector<8x200xf32>
    %216 = arith.addf %213, %215 : vector<8x200xf32>
    %217 = arith.truncf %167 : vector<8x200xf32> to vector<8x200xbf16>
    %218 = arith.truncf %216 : vector<8x200xf32> to vector<8x200xbf16>
    %c0_72 = arith.constant 0 : index
    %c0_73 = arith.constant 0 : index
    %219 = vector.load %arg10[%c0_72, %c0_73] : memref<800x200xbf16, #tpu.memory_space<vmem>>, vector<800x200xbf16>
    %cst_74 = arith.constant dense<0.000000e+00> : vector<800x8xf32>
    %220 = tpu.matmul %219, %218, %cst_74 {dimension_numbers = #tpu.dot_dimension_numbers<[1], [1], [0], [0], [0, 0, 1, 0], [], []>} : vector<800x200xbf16>, vector<8x200xbf16>, vector<800x8xf32> -> vector<800x8xf32>
    %221 = vector.shape_cast %220 : vector<800x8xf32> to vector<4x200x8xf32>
    %222 = arith.truncf %221 : vector<4x200x8xf32> to vector<4x200x8xbf16>
    %223 = vector.extract_strided_slice %222 {offsets = [0, 0, 0], sizes = [1, 200, 8], strides = [1, 1, 1]} : vector<4x200x8xbf16> to vector<1x200x8xbf16>
    %224 = vector.shape_cast %223 : vector<1x200x8xbf16> to vector<200x8xbf16>
    %cst_75 = arith.constant dense<0.000000e+00> : vector<8x8xf32>
    %225 = tpu.matmul %217, %224, %cst_75 {dimension_numbers = #tpu.dot_dimension_numbers<[1], [0], [0], [1], [0, 0, 1, 1], [], []>} : vector<8x200xbf16>, vector<200x8xbf16>, vector<8x8xf32> -> vector<8x8xf32>
    %226 = arith.addf %225, %3 : vector<8x8xf32>
    %c0_76 = arith.constant 0 : index
    %c0_77 = arith.constant 0 : index
    %c0_78 = arith.constant 0 : index
    %c0_79 = arith.constant 0 : index
    %227 = vector.load %arg11[%c0_76, %c0_77, %c0_78, %c0_79] : memref<1x4x8x8xf32, #tpu.memory_space<vmem>>, vector<1x1x8x8xf32>
    %228 = vector.shape_cast %227 : vector<1x1x8x8xf32> to vector<8x8xf32>
    %229 = vector.shape_cast %226 : vector<8x8xf32> to vector<1x1x8x8xf32>
    tpu.vector_store %arg11[%c0_76, %c0_77, %c0_78, %c0_79], %229 {strides = array<i32>} : memref<1x4x8x8xf32, #tpu.memory_space<vmem>>, vector<1x1x8x8xf32>,
    %cst_80 = arith.constant dense<0xFF800000> : vector<8xf32>
    %230 = vector.multi_reduction <maximumf>, %226, %cst_80 [1] : vector<8x8xf32> to vector<8xf32>
    %231 = vector.shape_cast %230 : vector<8xf32> to vector<8x1xf32>
    %cst_81 = arith.constant dense<0xFF800000> : vector<1xf32>
    %232 = vector.multi_reduction <maximumf>, %231, %cst_81 [0] : vector<8x1xf32> to vector<1xf32>
    %233 = vector.shape_cast %232 : vector<1xf32> to vector<1x1xf32>
    %234 = vector.broadcast %233 : vector<1x1xf32> to vector<8x8xf32>
    %235 = arith.subf %226, %234 : vector<8x8xf32>
    %236 = math.exp %235 : vector<8x8xf32>
    %cst_82 = arith.constant dense<0.000000e+00> : vector<8xf32>
    %237 = vector.multi_reduction <add>, %236, %cst_82 [1] : vector<8x8xf32> to vector<8xf32>
    %238 = vector.shape_cast %237 : vector<8xf32> to vector<8x1xf32>
    %cst_83 = arith.constant dense<0.000000e+00> : vector<1xf32>
    %239 = vector.multi_reduction <add>, %238, %cst_83 [0] : vector<8x1xf32> to vector<1xf32>
    %240 = vector.shape_cast %239 : vector<1xf32> to vector<1x1xf32>
    %241 = math.log %240 : vector<1x1xf32>
    %242 = arith.addf %233, %241 : vector<1x1xf32>
    %243 = vector.extract_strided_slice %222 {offsets = [1, 0, 0], sizes = [1, 200, 8], strides = [1, 1, 1]} : vector<4x200x8xbf16> to vector<1x200x8xbf16>
    %244 = vector.shape_cast %243 : vector<1x200x8xbf16> to vector<200x8xbf16>
    %cst_84 = arith.constant dense<0.000000e+00> : vector<8x8xf32>
    %245 = tpu.matmul %217, %244, %cst_84 {dimension_numbers = #tpu.dot_dimension_numbers<[1], [0], [0], [1], [0, 0, 1, 1], [], []>} : vector<8x200xbf16>, vector<200x8xbf16>, vector<8x8xf32> -> vector<8x8xf32>
    %246 = arith.addf %245, %3 : vector<8x8xf32>
    %c0_85 = arith.constant 0 : index
    %c1 = arith.constant 1 : index
    %c0_86 = arith.constant 0 : index
    %c0_87 = arith.constant 0 : index
    %247 = vector.load %arg11[%c0_85, %c1, %c0_86, %c0_87] : memref<1x4x8x8xf32, #tpu.memory_space<vmem>>, vector<1x1x8x8xf32>
    %248 = vector.shape_cast %247 : vector<1x1x8x8xf32> to vector<8x8xf32>
    %249 = vector.shape_cast %246 : vector<8x8xf32> to vector<1x1x8x8xf32>
    tpu.vector_store %arg11[%c0_85, %c1, %c0_86, %c0_87], %249 {strides = array<i32>} : memref<1x4x8x8xf32, #tpu.memory_space<vmem>>, vector<1x1x8x8xf32>,
    %cst_88 = arith.constant dense<0xFF800000> : vector<8xf32>
    %250 = vector.multi_reduction <maximumf>, %246, %cst_88 [1] : vector<8x8xf32> to vector<8xf32>
    %251 = vector.shape_cast %250 : vector<8xf32> to vector<8x1xf32>
    %cst_89 = arith.constant dense<0xFF800000> : vector<1xf32>
    %252 = vector.multi_reduction <maximumf>, %251, %cst_89 [0] : vector<8x1xf32> to vector<1xf32>
    %253 = vector.shape_cast %252 : vector<1xf32> to vector<1x1xf32>
    %254 = vector.broadcast %253 : vector<1x1xf32> to vector<8x8xf32>
    %255 = arith.subf %246, %254 : vector<8x8xf32>
    %256 = math.exp %255 : vector<8x8xf32>
    %cst_90 = arith.constant dense<0.000000e+00> : vector<8xf32>
    %257 = vector.multi_reduction <add>, %256, %cst_90 [1] : vector<8x8xf32> to vector<8xf32>
    %258 = vector.shape_cast %257 : vector<8xf32> to vector<8x1xf32>
    %cst_91 = arith.constant dense<0.000000e+00> : vector<1xf32>
    %259 = vector.multi_reduction <add>, %258, %cst_91 [0] : vector<8x1xf32> to vector<1xf32>
    %260 = vector.shape_cast %259 : vector<1xf32> to vector<1x1xf32>
    %261 = math.log %260 : vector<1x1xf32>
    %262 = arith.addf %253, %261 : vector<1x1xf32>
    %263 = vector.extract_strided_slice %222 {offsets = [2, 0, 0], sizes = [1, 200, 8], strides = [1, 1, 1]} : vector<4x200x8xbf16> to vector<1x200x8xbf16>
    %264 = vector.shape_cast %263 : vector<1x200x8xbf16> to vector<200x8xbf16>
    %cst_92 = arith.constant dense<0.000000e+00> : vector<8x8xf32>
    %265 = tpu.matmul %217, %264, %cst_92 {dimension_numbers = #tpu.dot_dimension_numbers<[1], [0], [0], [1], [0, 0, 1, 1], [], []>} : vector<8x200xbf16>, vector<200x8xbf16>, vector<8x8xf32> -> vector<8x8xf32>
    %266 = arith.addf %265, %3 : vector<8x8xf32>
    %c0_93 = arith.constant 0 : index
    %c2 = arith.constant 2 : index
    %c0_94 = arith.constant 0 : index
    %c0_95 = arith.constant 0 : index
    %267 = vector.load %arg11[%c0_93, %c2, %c0_94, %c0_95] : memref<1x4x8x8xf32, #tpu.memory_space<vmem>>, vector<1x1x8x8xf32>
    %268 = vector.shape_cast %267 : vector<1x1x8x8xf32> to vector<8x8xf32>
    %269 = vector.shape_cast %266 : vector<8x8xf32> to vector<1x1x8x8xf32>
    tpu.vector_store %arg11[%c0_93, %c2, %c0_94, %c0_95], %269 {strides = array<i32>} : memref<1x4x8x8xf32, #tpu.memory_space<vmem>>, vector<1x1x8x8xf32>,
    %cst_96 = arith.constant dense<0xFF800000> : vector<8xf32>
    %270 = vector.multi_reduction <maximumf>, %266, %cst_96 [1] : vector<8x8xf32> to vector<8xf32>
    %271 = vector.shape_cast %270 : vector<8xf32> to vector<8x1xf32>
    %cst_97 = arith.constant dense<0xFF800000> : vector<1xf32>
    %272 = vector.multi_reduction <maximumf>, %271, %cst_97 [0] : vector<8x1xf32> to vector<1xf32>
    %273 = vector.shape_cast %272 : vector<1xf32> to vector<1x1xf32>
    %274 = vector.broadcast %273 : vector<1x1xf32> to vector<8x8xf32>
    %275 = arith.subf %266, %274 : vector<8x8xf32>
    %276 = math.exp %275 : vector<8x8xf32>
    %cst_98 = arith.constant dense<0.000000e+00> : vector<8xf32>
    %277 = vector.multi_reduction <add>, %276, %cst_98 [1] : vector<8x8xf32> to vector<8xf32>
    %278 = vector.shape_cast %277 : vector<8xf32> to vector<8x1xf32>
    %cst_99 = arith.constant dense<0.000000e+00> : vector<1xf32>
    %279 = vector.multi_reduction <add>, %278, %cst_99 [0] : vector<8x1xf32> to vector<1xf32>
    %280 = vector.shape_cast %279 : vector<1xf32> to vector<1x1xf32>
    %281 = math.log %280 : vector<1x1xf32>
    %282 = arith.addf %273, %281 : vector<1x1xf32>
    %283 = vector.extract_strided_slice %222 {offsets = [3, 0, 0], sizes = [1, 200, 8], strides = [1, 1, 1]} : vector<4x200x8xbf16> to vector<1x200x8xbf16>
    %284 = vector.shape_cast %283 : vector<1x200x8xbf16> to vector<200x8xbf16>
    %cst_100 = arith.constant dense<0.000000e+00> : vector<8x8xf32>
    %285 = tpu.matmul %217, %284, %cst_100 {dimension_numbers = #tpu.dot_dimension_numbers<[1], [0], [0], [1], [0, 0, 1, 1], [], []>} : vector<8x200xbf16>, vector<200x8xbf16>, vector<8x8xf32> -> vector<8x8xf32>
    %286 = arith.addf %285, %3 : vector<8x8xf32>
    %c0_101 = arith.constant 0 : index
    %c3 = arith.constant 3 : index
    %c0_102 = arith.constant 0 : index
    %c0_103 = arith.constant 0 : index
    %287 = vector.load %arg11[%c0_101, %c3, %c0_102, %c0_103] : memref<1x4x8x8xf32, #tpu.memory_space<vmem>>, vector<1x1x8x8xf32>
    %288 = vector.shape_cast %287 : vector<1x1x8x8xf32> to vector<8x8xf32>
    %289 = vector.shape_cast %286 : vector<8x8xf32> to vector<1x1x8x8xf32>
    tpu.vector_store %arg11[%c0_101, %c3, %c0_102, %c0_103], %289 {strides = array<i32>} : memref<1x4x8x8xf32, #tpu.memory_space<vmem>>, vector<1x1x8x8xf32>,
    %cst_104 = arith.constant dense<0xFF800000> : vector<8xf32>
    %290 = vector.multi_reduction <maximumf>, %286, %cst_104 [1] : vector<8x8xf32> to vector<8xf32>
    %291 = vector.shape_cast %290 : vector<8xf32> to vector<8x1xf32>
    %cst_105 = arith.constant dense<0xFF800000> : vector<1xf32>
    %292 = vector.multi_reduction <maximumf>, %291, %cst_105 [0] : vector<8x1xf32> to vector<1xf32>
    %293 = vector.shape_cast %292 : vector<1xf32> to vector<1x1xf32>
    %294 = vector.broadcast %293 : vector<1x1xf32> to vector<8x8xf32>
    %295 = arith.subf %286, %294 : vector<8x8xf32>
    %296 = math.exp %295 : vector<8x8xf32>
    %cst_106 = arith.constant dense<0.000000e+00> : vector<8xf32>
    %297 = vector.multi_reduction <add>, %296, %cst_106 [1] : vector<8x8xf32> to vector<8xf32>
    %298 = vector.shape_cast %297 : vector<8xf32> to vector<8x1xf32>
    %cst_107 = arith.constant dense<0.000000e+00> : vector<1xf32>
    %299 = vector.multi_reduction <add>, %298, %cst_107 [0] : vector<8x1xf32> to vector<1xf32>
    %300 = vector.shape_cast %299 : vector<1xf32> to vector<1x1xf32>
    %301 = math.log %300 : vector<1x1xf32>
    %302 = arith.addf %293, %301 : vector<1x1xf32>
    %303 = tpu.concatenate %242, %262, %282, %302 in 1 : vector<1x1xf32>, vector<1x1xf32>, vector<1x1xf32>, vector<1x1xf32> -> vector<1x4xf32>
    %304 = vector.shape_cast %303 : vector<1x4xf32> to vector<1x1x1x4xf32>
    %c0_108 = arith.constant 0 : index
    %c0_109 = arith.constant 0 : index
    %c0_110 = arith.constant 0 : index
    %c0_111 = arith.constant 0 : index
    %305 = vector.load %arg12[%c0_108, %c0_109, %c0_110, %c0_111] : memref<1x1x1x4xf32, #tpu.memory_space<vmem>>, vector<1x1x1x4xf32>
    tpu.vector_store %arg12[%c0_108, %c0_109, %c0_110, %c0_111], %304 {strides = array<i32>} : memref<1x1x1x4xf32, #tpu.memory_space<vmem>>, vector<1x1x1x4xf32>,
    return
  }
  func.func @transform_0(%arg0: i32) -> (i32, i32, i32) {
    %c0_i32 = arith.constant 0 : i32
    %c0_i32_0 = arith.constant 0 : i32
    %c0_i32_1 = arith.constant 0 : i32
    return %arg0, %c0_i32, %c0_i32_0 : i32, i32, i32
  }
  func.func @transform_1(%arg0: i32) -> (i32, i32, i32) {
    %c0_i32 = arith.constant 0 : i32
    %c0_i32_0 = arith.constant 0 : i32
    %c0_i32_1 = arith.constant 0 : i32
    return %arg0, %c0_i32, %c0_i32_0 : i32, i32, i32
  }
  func.func @transform_2(%arg0: i32) -> (i32, i32) {
    %c0_i32 = arith.constant 0 : i32
    %c0_i32_0 = arith.constant 0 : i32
    %c0_i32_1 = arith.constant 0 : i32
    return %c0_i32, %c0_i32_0 : i32, i32
  }
  func.func @transform_3(%arg0: i32) -> (i32, i32) {
    %c0_i32 = arith.constant 0 : i32
    %c0_i32_0 = arith.constant 0 : i32
    %c0_i32_1 = arith.constant 0 : i32
    return %c0_i32, %c0_i32_0 : i32, i32
  }
  func.func @transform_4(%arg0: i32) -> (i32, i32) {
    %c0_i32 = arith.constant 0 : i32
    %c0_i32_0 = arith.constant 0 : i32
    %c0_i32_1 = arith.constant 0 : i32
    return %c0_i32, %c0_i32_0 : i32, i32
  }
  func.func @transform_5(%arg0: i32) -> (i32, i32) {
    %c0_i32 = arith.constant 0 : i32
    %c0_i32_0 = arith.constant 0 : i32
    %c0_i32_1 = arith.constant 0 : i32
    return %c0_i32, %c0_i32_0 : i32, i32
  }
  func.func @transform_6(%arg0: i32) -> (i32, i32) {
    %c0_i32 = arith.constant 0 : i32
    %c0_i32_0 = arith.constant 0 : i32
    %c0_i32_1 = arith.constant 0 : i32
    return %c0_i32, %c0_i32_0 : i32, i32
  }
  func.func @transform_7(%arg0: i32) -> (i32, i32) {
    %c0_i32 = arith.constant 0 : i32
    %c0_i32_0 = arith.constant 0 : i32
    %c0_i32_1 = arith.constant 0 : i32
    return %c0_i32, %c0_i32_0 : i32, i32
  }
  func.func @transform_8(%arg0: i32) -> (i32, i32) {
    %c0_i32 = arith.constant 0 : i32
    %c0_i32_0 = arith.constant 0 : i32
    %c0_i32_1 = arith.constant 0 : i32
    return %c0_i32, %c0_i32_0 : i32, i32
  }
  func.func @transform_9(%arg0: i32) -> (i32, i32) {
    %c0_i32 = arith.constant 0 : i32
    %c0_i32_0 = arith.constant 0 : i32
    %c0_i32_1 = arith.constant 0 : i32
    return %c0_i32, %c0_i32_0 : i32, i32
  }
  func.func @transform_10(%arg0: i32) -> (i32, i32, i32, i32) {
    %c0_i32 = arith.constant 0 : i32
    %c0_i32_0 = arith.constant 0 : i32
    %c0_i32_1 = arith.constant 0 : i32
    %c0_i32_2 = arith.constant 0 : i32
    return %arg0, %c0_i32, %c0_i32_0, %c0_i32_1 : i32, i32, i32, i32
  }
  func.func @transform_11(%arg0: i32) -> (i32, i32, i32, i32) {
    %c0_i32 = arith.constant 0 : i32
    %c0_i32_0 = arith.constant 0 : i32
    %c0_i32_1 = arith.constant 0 : i32
    %c0_i32_2 = arith.constant 0 : i32
    return %arg0, %c0_i32, %c0_i32_0, %c0_i32_1 : i32, i32, i32, i32
  }
}

module attributes {stable_mosaic.version = 11 : i64} {
  func.func @lstm_kernel(%arg0: i32, %arg1: memref<8x8x32xf32, #tpu.memory_space<vmem>>, %arg2: memref<32x64xbf16, #tpu.memory_space<vmem>>, %arg3: memref<1x64xf32, #tpu.memory_space<vmem>>, %arg4: memref<32x64xbf16, #tpu.memory_space<vmem>>, %arg5: memref<16x64xbf16, #tpu.memory_space<vmem>>, %arg6: memref<1x64xf32, #tpu.memory_space<vmem>>, %arg7: memref<32x4xbf16, #tpu.memory_space<vmem>>, %arg8: memref<1x4xf32, #tpu.memory_space<vmem>>, %arg9: memref<8x4xf32, #tpu.memory_space<vmem>>, %arg10: memref<8x8x64xbf16, #tpu.memory_space<vmem>>) attributes {dimension_semantics = [#tpu.dimension_semantics<parallel>], iteration_bounds = array<i64: 1>, scalar_prefetch = 0 : i64, scratch_operands = 1 : i64, tpu.core_type = #tpu.core_type<tc>, window_params = [{transform_indices = @transform_0, window_bounds = array<i64: 8, 8, 32>}, {pipeline_mode = #tpu.pipeline_mode<synchronous>, transform_indices = @transform_1, window_bounds = array<i64: 32, 64>}, {pipeline_mode = #tpu.pipeline_mode<synchronous>, transform_indices = @transform_2, window_bounds = array<i64: 1, 64>}, {pipeline_mode = #tpu.pipeline_mode<synchronous>, transform_indices = @transform_3, window_bounds = array<i64: 32, 64>}, {pipeline_mode = #tpu.pipeline_mode<synchronous>, transform_indices = @transform_4, window_bounds = array<i64: 16, 64>}, {pipeline_mode = #tpu.pipeline_mode<synchronous>, transform_indices = @transform_5, window_bounds = array<i64: 1, 64>}, {pipeline_mode = #tpu.pipeline_mode<synchronous>, transform_indices = @transform_6, window_bounds = array<i64: 32, 4>}, {pipeline_mode = #tpu.pipeline_mode<synchronous>, transform_indices = @transform_7, window_bounds = array<i64: 1, 4>}, {transform_indices = @transform_8, window_bounds = array<i64: 8, 4>}]} {
    %c0 = arith.constant 0 : index
    %c0_0 = arith.constant 0 : index
    %c0_1 = arith.constant 0 : index
    %0 = vector.load %arg1[%c0, %c0_0, %c0_1] : memref<8x8x32xf32, #tpu.memory_space<vmem>>, vector<8x8x32xf32>
    %1 = vector.shape_cast %0 : vector<8x8x32xf32> to vector<64x32xf32>
    %2 = arith.truncf %1 : vector<64x32xf32> to vector<64x32xbf16>
    %c0_2 = arith.constant 0 : index
    %c0_3 = arith.constant 0 : index
    %3 = vector.load %arg4[%c0_2, %c0_3] : memref<32x64xbf16, #tpu.memory_space<vmem>>, vector<32x64xbf16>
    %cst = arith.constant dense<0.000000e+00> : vector<64x64xf32>
    %4 = tpu.matmul %2, %3, %cst {dimension_numbers = #tpu.dot_dimension_numbers<[1], [0], [0], [1], [0, 0, 1, 1], [], []>} : vector<64x32xbf16>, vector<32x64xbf16>, vector<64x64xf32> -> vector<64x64xf32>
    %c0_4 = arith.constant 0 : index
    %c0_5 = arith.constant 0 : index
    %5 = vector.load %arg6[%c0_4, %c0_5] : memref<1x64xf32, #tpu.memory_space<vmem>>, vector<1x64xf32>
    %6 = vector.broadcast %5 : vector<1x64xf32> to vector<64x64xf32>
    %7 = arith.addf %4, %6 : vector<64x64xf32>
    %8 = vector.shape_cast %7 : vector<64x64xf32> to vector<8x8x64xf32>
    %9 = arith.truncf %8 : vector<8x8x64xf32> to vector<8x8x64xbf16>
    %c0_6 = arith.constant 0 : index
    %c0_7 = arith.constant 0 : index
    %c0_8 = arith.constant 0 : index
    %10 = vector.load %arg10[%c0_6, %c0_7, %c0_8] : memref<8x8x64xbf16, #tpu.memory_space<vmem>>, vector<8x8x64xbf16>
    tpu.vector_store %arg10[%c0_6, %c0_7, %c0_8], %9 {strides = array<i32>} : memref<8x8x64xbf16, #tpu.memory_space<vmem>>, vector<8x8x64xbf16>,
    %c0_9 = arith.constant 0 : index
    %c0_10 = arith.constant 0 : index
    %11 = vector.load %arg5[%c0_9, %c0_10] : memref<16x64xbf16, #tpu.memory_space<vmem>>, vector<16x64xbf16>
    %cst_11 = arith.constant 0.000000e+00 : f32
    %12 = vector.broadcast %cst_11 : f32 to vector<8x16xf32>
    %c0_i32 = arith.constant 0 : i32
    %c8_i32 = arith.constant 8 : i32
    %13 = arith.addi %c0_i32, %c8_i32 : i32
    %c1_i32 = arith.constant 1 : i32
    %14:2 = scf.for %arg11 = %c0_i32 to %13 step %c1_i32 iter_args(%arg12 = %12, %arg13 = %12) -> (vector<8x16xf32>, vector<8x16xf32>)  : i32 {
      %c7_i32 = arith.constant 7 : i32
      %48 = arith.subi %c7_i32, %arg11 : i32
      %49 = arith.index_cast %48 : i32 to index
      %c0_30 = arith.constant 0 : index
      %c0_31 = arith.constant 0 : index
      %50 = vector.load %arg10[%49, %c0_30, %c0_31] : memref<8x8x64xbf16, #tpu.memory_space<vmem>>, vector<1x8x64xbf16>
      %51 = vector.shape_cast %50 : vector<1x8x64xbf16> to vector<8x64xbf16>
      %52 = arith.extf %51 : vector<8x64xbf16> to vector<8x64xf32>
      %53 = arith.truncf %arg12 : vector<8x16xf32> to vector<8x16xbf16>
      %cst_32 = arith.constant dense<0.000000e+00> : vector<8x64xf32>
      %54 = tpu.matmul %53, %11, %cst_32 {dimension_numbers = #tpu.dot_dimension_numbers<[1], [0], [0], [1], [0, 0, 1, 1], [], []>} : vector<8x16xbf16>, vector<16x64xbf16>, vector<8x64xf32> -> vector<8x64xf32>
      %55 = arith.addf %52, %54 : vector<8x64xf32>
      %56 = vector.extract_strided_slice %55 {offsets = [0, 0], sizes = [8, 16], strides = [1, 1]} : vector<8x64xf32> to vector<8x16xf32>
      %57 = arith.negf %56 : vector<8x16xf32>
      %58 = math.exp %57 : vector<8x16xf32>
      %cst_33 = arith.constant 1.000000e+00 : f32
      %59 = vector.broadcast %cst_33 : f32 to vector<8x16xf32>
      %60 = arith.addf %59, %58 : vector<8x16xf32>
      %61 = arith.divf %59, %60 : vector<8x16xf32>
      %62 = vector.extract_strided_slice %55 {offsets = [0, 16], sizes = [8, 16], strides = [1, 1]} : vector<8x64xf32> to vector<8x16xf32>
      %63 = arith.negf %62 : vector<8x16xf32>
      %64 = math.exp %63 : vector<8x16xf32>
      %cst_34 = arith.constant 1.000000e+00 : f32
      %65 = vector.broadcast %cst_34 : f32 to vector<8x16xf32>
      %66 = arith.addf %65, %64 : vector<8x16xf32>
      %67 = arith.divf %65, %66 : vector<8x16xf32>
      %68 = vector.extract_strided_slice %55 {offsets = [0, 32], sizes = [8, 16], strides = [1, 1]} : vector<8x64xf32> to vector<8x16xf32>
      %69 = math.tanh %68 : vector<8x16xf32>
      %70 = vector.extract_strided_slice %55 {offsets = [0, 48], sizes = [8, 16], strides = [1, 1]} : vector<8x64xf32> to vector<8x16xf32>
      %71 = arith.negf %70 : vector<8x16xf32>
      %72 = math.exp %71 : vector<8x16xf32>
      %cst_35 = arith.constant 1.000000e+00 : f32
      %73 = vector.broadcast %cst_35 : f32 to vector<8x16xf32>
      %74 = arith.addf %73, %72 : vector<8x16xf32>
      %75 = arith.divf %73, %74 : vector<8x16xf32>
      %76 = arith.mulf %67, %arg13 : vector<8x16xf32>
      %77 = arith.mulf %61, %69 : vector<8x16xf32>
      %78 = arith.addf %76, %77 : vector<8x16xf32>
      %79 = math.tanh %78 : vector<8x16xf32>
      %80 = arith.mulf %75, %79 : vector<8x16xf32>
      scf.yield %80, %78 : vector<8x16xf32>, vector<8x16xf32>
    }
    %c8_i32_12 = arith.constant 8 : i32
    %c0_13 = arith.constant 0 : index
    %c0_14 = arith.constant 0 : index
    %c0_15 = arith.constant 0 : index
    %15 = vector.load %arg1[%c0_13, %c0_14, %c0_15] : memref<8x8x32xf32, #tpu.memory_space<vmem>>, vector<1x8x32xf32>
    %16 = vector.shape_cast %15 : vector<1x8x32xf32> to vector<8x32xf32>
    %17 = arith.truncf %16 : vector<8x32xf32> to vector<8x32xbf16>
    %c0_16 = arith.constant 0 : index
    %c0_17 = arith.constant 0 : index
    %18 = vector.load %arg2[%c0_16, %c0_17] : memref<32x64xbf16, #tpu.memory_space<vmem>>, vector<32x64xbf16>
    %cst_18 = arith.constant dense<0.000000e+00> : vector<8x64xf32>
    %19 = tpu.matmul %17, %18, %cst_18 {dimension_numbers = #tpu.dot_dimension_numbers<[1], [0], [0], [1], [0, 0, 1, 1], [], []>} : vector<8x32xbf16>, vector<32x64xbf16>, vector<8x64xf32> -> vector<8x64xf32>
    %c0_19 = arith.constant 0 : index
    %c0_20 = arith.constant 0 : index
    %20 = vector.load %arg3[%c0_19, %c0_20] : memref<1x64xf32, #tpu.memory_space<vmem>>, vector<1x64xf32>
    %21 = vector.broadcast %20 : vector<1x64xf32> to vector<8x64xf32>
    %22 = arith.addf %19, %21 : vector<8x64xf32>
    %23 = vector.extract_strided_slice %22 {offsets = [0, 0], sizes = [8, 16], strides = [1, 1]} : vector<8x64xf32> to vector<8x16xf32>
    %24 = arith.negf %23 : vector<8x16xf32>
    %25 = math.exp %24 : vector<8x16xf32>
    %cst_21 = arith.constant 1.000000e+00 : f32
    %26 = vector.broadcast %cst_21 : f32 to vector<8x16xf32>
    %27 = arith.addf %26, %25 : vector<8x16xf32>
    %28 = arith.divf %26, %27 : vector<8x16xf32>
    %29 = vector.extract_strided_slice %22 {offsets = [0, 32], sizes = [8, 16], strides = [1, 1]} : vector<8x64xf32> to vector<8x16xf32>
    %30 = math.tanh %29 : vector<8x16xf32>
    %31 = vector.extract_strided_slice %22 {offsets = [0, 48], sizes = [8, 16], strides = [1, 1]} : vector<8x64xf32> to vector<8x16xf32>
    %32 = arith.negf %31 : vector<8x16xf32>
    %33 = math.exp %32 : vector<8x16xf32>
    %cst_22 = arith.constant 1.000000e+00 : f32
    %34 = vector.broadcast %cst_22 : f32 to vector<8x16xf32>
    %35 = arith.addf %34, %33 : vector<8x16xf32>
    %36 = arith.divf %34, %35 : vector<8x16xf32>
    %37 = arith.mulf %28, %30 : vector<8x16xf32>
    %38 = math.tanh %37 : vector<8x16xf32>
    %39 = arith.mulf %36, %38 : vector<8x16xf32>
    %40 = tpu.concatenate %39, %14#0 in 1 : vector<8x16xf32>, vector<8x16xf32> -> vector<8x32xf32>
    %41 = arith.truncf %40 : vector<8x32xf32> to vector<8x32xbf16>
    %c0_23 = arith.constant 0 : index
    %c0_24 = arith.constant 0 : index
    %42 = vector.load %arg7[%c0_23, %c0_24] : memref<32x4xbf16, #tpu.memory_space<vmem>>, vector<32x4xbf16>
    %cst_25 = arith.constant dense<0.000000e+00> : vector<8x4xf32>
    %43 = tpu.matmul %41, %42, %cst_25 {dimension_numbers = #tpu.dot_dimension_numbers<[1], [0], [0], [1], [0, 0, 1, 1], [], []>} : vector<8x32xbf16>, vector<32x4xbf16>, vector<8x4xf32> -> vector<8x4xf32>
    %c0_26 = arith.constant 0 : index
    %c0_27 = arith.constant 0 : index
    %44 = vector.load %arg8[%c0_26, %c0_27] : memref<1x4xf32, #tpu.memory_space<vmem>>, vector<1x4xf32>
    %45 = vector.broadcast %44 : vector<1x4xf32> to vector<8x4xf32>
    %46 = arith.addf %43, %45 : vector<8x4xf32>
    %c0_28 = arith.constant 0 : index
    %c0_29 = arith.constant 0 : index
    %47 = vector.load %arg9[%c0_28, %c0_29] : memref<8x4xf32, #tpu.memory_space<vmem>>, vector<8x4xf32>
    tpu.vector_store %arg9[%c0_28, %c0_29], %46 {strides = array<i32>} : memref<8x4xf32, #tpu.memory_space<vmem>>, vector<8x4xf32>,
    return
  }
  func.func @transform_0(%arg0: i32) -> (i32, i32, i32) {
    %c0_i32 = arith.constant 0 : i32
    %c0_i32_0 = arith.constant 0 : i32
    %c0_i32_1 = arith.constant 0 : i32
    return %c0_i32, %arg0, %c0_i32_0 : i32, i32, i32
  }
  func.func @transform_1(%arg0: i32) -> (i32, i32) {
    %c0_i32 = arith.constant 0 : i32
    %c0_i32_0 = arith.constant 0 : i32
    %c0_i32_1 = arith.constant 0 : i32
    return %c0_i32, %c0_i32_0 : i32, i32
  }
  func.func @transform_2(%arg0: i32) -> (i32, i32) {
    %c0_i32 = arith.constant 0 : i32
    %c0_i32_0 = arith.constant 0 : i32
    %c0_i32_1 = arith.constant 0 : i32
    return %c0_i32, %c0_i32_0 : i32, i32
  }
  func.func @transform_3(%arg0: i32) -> (i32, i32) {
    %c0_i32 = arith.constant 0 : i32
    %c0_i32_0 = arith.constant 0 : i32
    %c0_i32_1 = arith.constant 0 : i32
    return %c0_i32, %c0_i32_0 : i32, i32
  }
  func.func @transform_4(%arg0: i32) -> (i32, i32) {
    %c0_i32 = arith.constant 0 : i32
    %c0_i32_0 = arith.constant 0 : i32
    %c0_i32_1 = arith.constant 0 : i32
    return %c0_i32, %c0_i32_0 : i32, i32
  }
  func.func @transform_5(%arg0: i32) -> (i32, i32) {
    %c0_i32 = arith.constant 0 : i32
    %c0_i32_0 = arith.constant 0 : i32
    %c0_i32_1 = arith.constant 0 : i32
    return %c0_i32, %c0_i32_0 : i32, i32
  }
  func.func @transform_6(%arg0: i32) -> (i32, i32) {
    %c0_i32 = arith.constant 0 : i32
    %c0_i32_0 = arith.constant 0 : i32
    %c0_i32_1 = arith.constant 0 : i32
    return %c0_i32, %c0_i32_0 : i32, i32
  }
  func.func @transform_7(%arg0: i32) -> (i32, i32) {
    %c0_i32 = arith.constant 0 : i32
    %c0_i32_0 = arith.constant 0 : i32
    %c0_i32_1 = arith.constant 0 : i32
    return %c0_i32, %c0_i32_0 : i32, i32
  }
  func.func @transform_8(%arg0: i32) -> (i32, i32) {
    %c0_i32 = arith.constant 0 : i32
    %c0_i32_0 = arith.constant 0 : i32
    return %arg0, %c0_i32 : i32, i32
  }
}

</mosaic_0001>

<llo_original>
// kernel: biaffine_pairwise_forward.3
$region0: #{biaffine_pairwise_forward.3}
  #allocation0 [shape = 'u32[]', space=smem, size = 0x4, offset = 0x4, fixed_abs, tag = 'smem constant byte address 0x4 - core index']
  #allocation1 [shape = 'u32[144,128]{1,0:T(1,128)}', space=vmem, size = 0x12000, scoped, tag = 'internal scratch']
  #allocation2 [shape = 'bf16[8,8,64]{2,1,0:T(8,128)(2,1)}', space=vmem, size = 0x4000, scoped, tag = 'scratch operand']
  %s0 = inlined_call_operand.hbm [shape: f32[8,8,32], index: 0, kind: input, shape index: {}]
  %s1 = inlined_call_operand.hbm [shape: bf16[32,64], index: 1, kind: input, shape index: {}]
  %s2 = inlined_call_operand.hbm [shape: f32[1,64], index: 2, kind: input, shape index: {}]
  %s3 = inlined_call_operand.hbm [shape: bf16[32,64], index: 3, kind: input, shape index: {}]
  %s4 = inlined_call_operand.hbm [shape: bf16[16,64], index: 4, kind: input, shape index: {}]
  %s5 = inlined_call_operand.hbm [shape: f32[1,64], index: 5, kind: input, shape index: {}]
  %s6 = inlined_call_operand.hbm [shape: bf16[32,4], index: 6, kind: input, shape index: {}]
  %s7 = inlined_call_operand.hbm [shape: f32[1,4], index: 7, kind: input, shape index: {}]
  %s8 = inlined_call_operand.hbm [shape: f32[8,4], index: 8, kind: output, shape index: {}]
  %s9 = sld [smem:[#allocation0]]
  $region81: #{biaffine_pairwise_forward.3} parent=0
    _
  %s11 = ssub.s32 1, %s9
  %s12 = scalar_select 0, %s11, %s9
  $region1: #{biaffine_pairwise_forward.3} parent=0
    #allocation3 [shape = 'u8[32768]{0}', space=vmem, size = 0x8000, scoped, tag = 'input window, operand 0, single buffered']
    #allocation4 [shape = 's32[1]{0}', space=sflag, size = 0x4, scoped, tag = 'scoped memory for biaffine_pairwise_forward.3']
    #allocation5 [shape = 's32[1]{0}', space=sflag, size = 0x4, scoped, tag = 'scoped memory for biaffine_pairwise_forward.3']
    #allocation6 [shape = 'u8[8192]{0}', space=vmem, size = 0x2000, scoped, tag = 'input window, operand 1, single buffered']
    #allocation7 [shape = 's32[1]{0}', space=sflag, size = 0x4, scoped, tag = 'scoped memory for biaffine_pairwise_forward.3']
    #allocation8 [shape = 'u8[512]{0}', space=vmem, size = 0x400, scoped, tag = 'input window, operand 2, single buffered']
    #allocation9 [shape = 'u8[8192]{0}', space=vmem, size = 0x2000, scoped, tag = 'input window, operand 3, single buffered']
    #allocation10 [shape = 's32[1]{0}', space=sflag, size = 0x4, scoped, tag = 'scoped memory for biaffine_pairwise_forward.3']
    #allocation11 [shape = 'u8[4096]{0}', space=vmem, size = 0x1000, scoped, tag = 'input window, operand 4, single buffered']
    #allocation12 [shape = 'u8[512]{0}', space=vmem, size = 0x400, scoped, tag = 'input window, operand 5, single buffered']
    #allocation13 [shape = 's32[1]{0}', space=sflag, size = 0x4, scoped, tag = 'scoped memory for biaffine_pairwise_forward.3']
    #allocation14 [shape = 'u8[8192]{0}', space=vmem, size = 0x2000, scoped, tag = 'input window, operand 6, single buffered']
    #allocation15 [shape = 'u8[512]{0}', space=vmem, size = 0x400, scoped, tag = 'input window, operand 7, single buffered']
    #allocation16 [shape = 's32[1]{0}', space=sflag, size = 0x4, scoped, tag = 'scoped memory for biaffine_pairwise_forward.3']
    #allocation17 [shape = 'u8[4096]{0}', space=vmem, size = 0x1000, scoped, tag = 'output window, operand 0, single buffered']
    %13 = vsyncpa [#allocation4], 0
    %14 = vsyncpa [#allocation7], 0
    %15 = vsyncpa [#allocation10], 0
    %16 = vsyncpa [#allocation13], 0
    %17 = vsyncpa [#allocation16], 0
    %18 = vsyncpa [#allocation5], 0
    // Predicated region
    $region2: #{biaffine_pairwise_forward.3} parent=1 // pred_check
      _
    $region3: #{biaffine_pairwise_forward.3} parent=1 // pred_check_branch
      %20 = sbr.rel (0) target = $region5
    $region4: #{biaffine_pairwise_forward.3} parent=1 // pred_region
      %s22 = ssub.s32 1024, 1024
      %23 = vsyncadd [#allocation4], %s22
      %s24 = sshll.u32 [#allocation3], 4
      %s25 = int_to_ptr.vmem [resolvable:$true] %s24
      %30 = dma.hbm_to_vmem [thread:$0]  %s0, 1024, %s25, [#allocation4], 128, 128, 8
    $region5: #{biaffine_pairwise_forward.3} parent=1 // pred_fallthru
      _
    // Predicated region
    $region6: #{biaffine_pairwise_forward.3} parent=1 // pred_check
      _
    $region7: #{biaffine_pairwise_forward.3} parent=1 // pred_check_branch
      %32 = sbr.rel (0) target = $region9
    $region8: #{biaffine_pairwise_forward.3} parent=1 // pred_region
      %s34 = ssub.s32 256, 256
      %35 = vsyncadd [#allocation7], %s34
      %s36 = sshll.u32 [#allocation6], 4
      %s37 = int_to_ptr.vmem [resolvable:$true] %s36
      %42 = dma.hbm_to_vmem [thread:$0]  %s1, 256, %s37, [#allocation7], 64, 64, 4
    $region9: #{biaffine_pairwise_forward.3} parent=1 // pred_fallthru
      _
    // Predicated region
    $region10: #{biaffine_pairwise_forward.3} parent=1 // pred_check
      _
    $region11: #{biaffine_pairwise_forward.3} parent=1 // pred_check_branch
      %44 = sbr.rel (0) target = $region13
    $region12: #{biaffine_pairwise_forward.3} parent=1 // pred_region
      %s46 = ssub.s32 16, 16
      %47 = vsyncadd [#allocation7], %s46
      %s49 = sshll.u32 [#allocation8], 4
      %s50 = int_to_ptr.vmem [resolvable:$true] %s49
      %52 = dma.hbm_to_vmem [thread:$0]  %s2, 16, %s50, [#allocation7]
    $region13: #{biaffine_pairwise_forward.3} parent=1 // pred_fallthru
      _
    // Predicated region
    $region14: #{biaffine_pairwise_forward.3} parent=1 // pred_check
      _
    $region15: #{biaffine_pairwise_forward.3} parent=1 // pred_check_branch
      %54 = sbr.rel (0) target = $region17
    $region16: #{biaffine_pairwise_forward.3} parent=1 // pred_region
      %s56 = ssub.s32 256, 256
      %57 = vsyncadd [#allocation10], %s56
      %s58 = sshll.u32 [#allocation9], 4
      %s59 = int_to_ptr.vmem [resolvable:$true] %s58
      %64 = dma.hbm_to_vmem [thread:$0]  %s3, 256, %s59, [#allocation10], 64, 64, 4
    $region17: #{biaffine_pairwise_forward.3} parent=1 // pred_fallthru
      _
    // Predicated region
    $region18: #{biaffine_pairwise_forward.3} parent=1 // pred_check
      _
    $region19: #{biaffine_pairwise_forward.3} parent=1 // pred_check_branch
      %66 = sbr.rel (0) target = $region21
    $region20: #{biaffine_pairwise_forward.3} parent=1 // pred_region
      %s68 = ssub.s32 128, 128
      %69 = vsyncadd [#allocation10], %s68
      %s70 = sshll.u32 [#allocation11], 4
      %s71 = int_to_ptr.vmem [resolvable:$true] %s70
      %76 = dma.hbm_to_vmem [thread:$0]  %s4, 128, %s71, [#allocation10], 64, 64, 4
    $region21: #{biaffine_pairwise_forward.3} parent=1 // pred_fallthru
      _
    // Predicated region
    $region22: #{biaffine_pairwise_forward.3} parent=1 // pred_check
      _
    $region23: #{biaffine_pairwise_forward.3} parent=1 // pred_check_branch
      %78 = sbr.rel (0) target = $region25
    $region24: #{biaffine_pairwise_forward.3} parent=1 // pred_region
      %s80 = ssub.s32 16, 16
      %81 = vsyncadd [#allocation13], %s80
      %s83 = sshll.u32 [#allocation12], 4
      %s84 = int_to_ptr.vmem [resolvable:$true] %s83
      %86 = dma.hbm_to_vmem [thread:$0]  %s5, 16, %s84, [#allocation13]
    $region25: #{biaffine_pairwise_forward.3} parent=1 // pred_fallthru
      _
    // Predicated region
    $region26: #{biaffine_pairwise_forward.3} parent=1 // pred_check
      _
    $region27: #{biaffine_pairwise_forward.3} parent=1 // pred_check_branch
      %88 = sbr.rel (0) target = $region29
    $region28: #{biaffine_pairwise_forward.3} parent=1 // pred_region
      %s90 = ssub.s32 256, 256
      %91 = vsyncadd [#allocation13], %s90
      %s92 = sshll.u32 [#allocation14], 4
      %s93 = int_to_ptr.vmem [resolvable:$true] %s92
      %98 = dma.hbm_to_vmem [thread:$0]  %s6, 256, %s93, [#allocation13], 64, 64, 4
    $region29: #{biaffine_pairwise_forward.3} parent=1 // pred_fallthru
      _
    // Predicated region
    $region30: #{biaffine_pairwise_forward.3} parent=1 // pred_check
      _
    $region31: #{biaffine_pairwise_forward.3} parent=1 // pred_check_branch
      %100 = sbr.rel (0) target = $region33
    $region32: #{biaffine_pairwise_forward.3} parent=1 // pred_region
      %s102 = ssub.s32 16, 16
      %103 = vsyncadd [#allocation16], %s102
      %s105 = sshll.u32 [#allocation15], 4
      %s106 = int_to_ptr.vmem [resolvable:$true] %s105
      %108 = dma.hbm_to_vmem [thread:$0]  %s7, 16, %s106, [#allocation16]
    $region33: #{biaffine_pairwise_forward.3} parent=1 // pred_fallthru
      _
    // Predicated region
    $region34: #{biaffine_pairwise_forward.3} parent=1 // pred_check
      _
    $region35: #{biaffine_pairwise_forward.3} parent=1 // pred_check_branch
      %110 = sbr.rel (0) target = $region37
    $region36: #{biaffine_pairwise_forward.3} parent=1 // pred_region
      %111 = dma.done [#allocation4], 1024
    $region37: #{biaffine_pairwise_forward.3} parent=1 // pred_fallthru
      _
    // Predicated region
    $region38: #{biaffine_pairwise_forward.3} parent=1 // pred_check
      _
    $region39: #{biaffine_pairwise_forward.3} parent=1 // pred_check_branch
      %113 = sbr.rel (0) target = $region41
    $region40: #{biaffine_pairwise_forward.3} parent=1 // pred_region
      %114 = dma.done [#allocation7], 256
    $region41: #{biaffine_pairwise_forward.3} parent=1 // pred_fallthru
      _
    // Predicated region
    $region42: #{biaffine_pairwise_forward.3} parent=1 // pred_check
      _
    $region43: #{biaffine_pairwise_forward.3} parent=1 // pred_check_branch
      %116 = sbr.rel (0) target = $region45
    $region44: #{biaffine_pairwise_forward.3} parent=1 // pred_region
      %117 = dma.done [#allocation7], 16
    $region45: #{biaffine_pairwise_forward.3} parent=1 // pred_fallthru
      _
    // Predicated region
    $region46: #{biaffine_pairwise_forward.3} parent=1 // pred_check
      _
    $region47: #{biaffine_pairwise_forward.3} parent=1 // pred_check_branch
      %119 = sbr.rel (0) target = $region49
    $region48: #{biaffine_pairwise_forward.3} parent=1 // pred_region
      %120 = dma.done [#allocation10], 256
    $region49: #{biaffine_pairwise_forward.3} parent=1 // pred_fallthru
      _
    // Predicated region
    $region50: #{biaffine_pairwise_forward.3} parent=1 // pred_check
      _
    $region51: #{biaffine_pairwise_forward.3} parent=1 // pred_check_branch
      %122 = sbr.rel (0) target = $region53
    $region52: #{biaffine_pairwise_forward.3} parent=1 // pred_region
      %123 = dma.done [#allocation10], 128
    $region53: #{biaffine_pairwise_forward.3} parent=1 // pred_fallthru
      _
    // Predicated region
    $region54: #{biaffine_pairwise_forward.3} parent=1 // pred_check
      _
    $region55: #{biaffine_pairwise_forward.3} parent=1 // pred_check_branch
      %125 = sbr.rel (0) target = $region57
    $region56: #{biaffine_pairwise_forward.3} parent=1 // pred_region
      %126 = dma.done [#allocation13], 16
    $region57: #{biaffine_pairwise_forward.3} parent=1 // pred_fallthru
      _
    // Predicated region
    $region58: #{biaffine_pairwise_forward.3} parent=1 // pred_check
      _
    $region59: #{biaffine_pairwise_forward.3} parent=1 // pred_check_branch
      %128 = sbr.rel (0) target = $region61
    $region60: #{biaffine_pairwise_forward.3} parent=1 // pred_region
      %129 = dma.done [#allocation13], 256
    $region61: #{biaffine_pairwise_forward.3} parent=1 // pred_fallthru
      _
    // Predicated region
    $region62: #{biaffine_pairwise_forward.3} parent=1 // pred_check
      _
    $region63: #{biaffine_pairwise_forward.3} parent=1 // pred_check_branch
      %131 = sbr.rel (0) target = $region65
    $region64: #{biaffine_pairwise_forward.3} parent=1 // pred_region
      %132 = dma.done [#allocation16], 16
    $region65: #{biaffine_pairwise_forward.3} parent=1 // pred_fallthru
      _
    %v134 = vld [vmem:[#allocation3] sm:$0xff]
    %v135 = vld [vmem:[#allocation3 + $0x8] sm:$0xff]
    %v136 = vld [vmem:[#allocation3 + $0x10] sm:$0xff]
    %v137 = vld [vmem:[#allocation3 + $0x18] sm:$0xff]
    %v138 = vld [vmem:[#allocation3 + $0x20] sm:$0xff]
    %v139 = vld [vmem:[#allocation3 + $0x28] sm:$0xff]
    %v140 = vld [vmem:[#allocation3 + $0x30] sm:$0xff]
    %v141 = vld [vmem:[#allocation3 + $0x38] sm:$0xff]
    %v142 = vpack.c.bf16 %v135, %v134
    %v143 = vpack.c.bf16 %v137, %v136
    %v144 = vpack.c.bf16 %v139, %v138
    %v145 = vpack.c.bf16 %v141, %v140
    %v146 = vld [vmem:[#allocation9] sm:$0xf]
    %v147 = vld [vmem:[#allocation9 + $0x4] sm:$0xf]
    %v148 = vld [vmem:[#allocation9 + $0x8] sm:$0xf]
    %v149 = vld [vmem:[#allocation9 + $0xc] sm:$0xf]
    %v150 = vld [vmem:[#allocation12] sm:$0x1]
    %v152 = vlaneseq
    %v153 = vshrl.u32 %v152, 7
    %v154 = vsub.s32 0, %v153
    %v155 = vrot.slane %v150, %v154
    %v161 = vunpack.c.l.b16 %v146
    %v162 = vunpack.c.l.b16 %v147
    %v163 = vunpack.c.l.b16 %v148
    %v164 = vunpack.c.l.b16 %v149
    %v165 = vpack.c.b16 %v162, %v161
    %v166 = vpack.c.b16 %v164, %v163
    %vm169 = vcmask 261120
    %v171 = vsel %vm169, %v142, 0
    %v174 = vsel %vm169, %v143, 0
    %v177 = vsel %vm169, %v144, 0
    %v180 = vsel %vm169, %v145, 0
    %182 = vmatprep.subr.bf16.mxu0 0
    %183 = vmatpush1.bf16.msra.mxu0 %v165
    %184 = vmatprep.subr.bf16.mxu0 0
    %185 = vmatpush1.bf16.msra.mxu0 %v166
    %186 = vmatprep.subr.bf16.mxu0 0
    %187 = vmatpush1.bf16.msra.mxu0 0
    %188 = vmatprep.subr.bf16.mxu0 0
    %189 = vmatpush1.bf16.msra.mxu0 0
    %190 = vmatprep.subr.bf16.mxu0 0
    %191 = vmatpush1.bf16.msra.mxu0 0
    %192 = vmatprep.subr.bf16.mxu0 0
    %193 = vmatpush1.bf16.msra.mxu0 0
    %194 = vmatprep.subr.bf16.mxu0 0
    %195 = vmatpush1.bf16.msra.mxu0 0
    %196 = vmatprep.subr.bf16.mxu0 0
    %197 = vmatpush1.bf16.msra.mxu0 0
    %198 = vmatprep.subr.bf16.mxu0 0
    %199 = vmatpush1.bf16.msra.mxu0 0
    %200 = vmatprep.subr.bf16.mxu0 0
    %201 = vmatpush1.bf16.msra.mxu0 0
    %202 = vmatprep.subr.bf16.mxu0 0
    %203 = vmatpush1.bf16.msra.mxu0 0
    %204 = vmatprep.subr.bf16.mxu0 0
    %205 = vmatpush1.bf16.msra.mxu0 0
    %206 = vmatprep.subr.bf16.mxu0 0
    %207 = vmatpush1.bf16.msra.mxu0 0
    %208 = vmatprep.subr.bf16.mxu0 0
    %209 = vmatpush1.bf16.msra.mxu0 0
    %210 = vmatprep.subr.bf16.mxu0 0
    %211 = vmatpush1.bf16.msra.mxu0 0
    %212 = vmatprep.subr.bf16.mxu0 0
    %213 = vmatpush1.bf16.msra.mxu0 0
    %214 = vmatprep.mubr.bf16.mxu0 0
    %215 = vmatmul.mubr.bf16.gmra.mrb[0].mxu0 %v171
    %v216 = vpop.f32.mrb[0].mxu0
    %v217 = vadd.f32 %v155, %v216
    %v218 = vpop.f32.mrb[0].mxu0
    %v219 = vpop.f32.mrb[0].mxu0
    %v220 = vadd.f32 %v155, %v219
    %v221 = vpop.f32.mrb[0].mxu0
    %222 = vmatprep.mubr.bf16.mxu0 0
    %223 = vmatmul.mubr.bf16.gmra.mrb[0].mxu0 %v174
    %v224 = vpop.f32.mrb[0].mxu0
    %v225 = vadd.f32 %v155, %v224
    %v226 = vpop.f32.mrb[0].mxu0
    %v227 = vpop.f32.mrb[0].mxu0
    %v228 = vadd.f32 %v155, %v227
    %v229 = vpop.f32.mrb[0].mxu0
    %230 = vmatprep.mubr.bf16.mxu0 0
    %231 = vmatmul.mubr.bf16.gmra.mrb[0].mxu0 %v177
    %v232 = vpop.f32.mrb[0].mxu0
    %v233 = vadd.f32 %v155, %v232
    %v234 = vpop.f32.mrb[0].mxu0
    %v235 = vpop.f32.mrb[0].mxu0
    %v236 = vadd.f32 %v155, %v235
    %v237 = vpop.f32.mrb[0].mxu0
    %238 = vmatprep.mubr.bf16.mxu0 0
    %239 = vmatmul.mubr.bf16.gmra.mrb[0].mxu0 %v180
    %v240 = vpop.f32.mrb[0].mxu0
    %v241 = vadd.f32 %v155, %v240
    %v242 = vpop.f32.mrb[0].mxu0
    %v243 = vpop.f32.mrb[0].mxu0
    %v244 = vadd.f32 %v155, %v243
    %v245 = vpop.f32.mrb[0].mxu0
    %246 = vdwg.mxu0
    %v247 = vpack.c.bf16 %v217, %v217
    %v248 = vpack.c.bf16 %v220, %v220
    %v249 = vpack.c.bf16 %v225, %v225
    %v250 = vpack.c.bf16 %v228, %v228
    %v251 = vpack.c.bf16 %v233, %v233
    %v252 = vpack.c.bf16 %v236, %v236
    %v253 = vpack.c.bf16 %v241, %v241
    %v254 = vpack.c.bf16 %v244, %v244
    %vm255 = vcmask 519168
    %256 = vst.msk [vmem:[#allocation2] sm:$0xf] %vm255, %v247
    %257 = vst.msk [vmem:[#allocation2 + $0x4] sm:$0xf] %vm255, %v248
    %258 = vst.msk [vmem:[#allocation2 + $0x8] sm:$0xf] %vm255, %v249
    %259 = vst.msk [vmem:[#allocation2 + $0xc] sm:$0xf] %vm255, %v250
    %260 = vst.msk [vmem:[#allocation2 + $0x10] sm:$0xf] %vm255, %v251
    %261 = vst.msk [vmem:[#allocation2 + $0x14] sm:$0xf] %vm255, %v252
    %262 = vst.msk [vmem:[#allocation2 + $0x18] sm:$0xf] %vm255, %v253
    %263 = vst.msk [vmem:[#allocation2 + $0x1c] sm:$0xf] %vm255, %v254
    %v264 = vld [vmem:[#allocation11] sm:$0xf]
    %v265 = vld [vmem:[#allocation11 + $0x4] sm:$0xf]
    loop: start=0, step=1, limit=8
    $region66: #{biaffine_pairwise_forward.3} parent=1 // loop_pre_header
      _
    $region67: #{biaffine_pairwise_forward.3} parent=1 // loop_header
      %s267 = sphi 0, %s271
      %p268 = scmp.ge.s32.totalorder %s267, 8
      %v272 = vphi 0.0, %v357
      %v273 = vphi 0.0, %v351
    $region68: #{biaffine_pairwise_forward.3} parent=1 // loop_header_branch
      %270 = sbr.rel (%p268) target = $region72
    $region69: #{biaffine_pairwise_forward.3} parent=1 // loop_body
      %s274 = ssub.s32 7, %s267
      %s275 = smul.addr %s274, 4
      %s276 = scalar_lea.vmem [#allocation2], %s275
      %v277 = vld [vmem:[%s276] sm:$0xf]
      %v278 = vunpack.c.l.bf16 %v277
      %v279 = vpack.c.bf16 %v272, %v272
      %281 = vrot.lane.b32.xlu0 %v279, 80
      %v282 = vpop.permute.xlu0 %281
      %v285 = vunpack.c.l.b16 %v264
      %v286 = vunpack.c.l.b16 %v265
      %v287 = vpack.c.b16 %v286, %v285
      %vm289 = vcmask 130048
      %v291 = vsel %vm289, %v282, 0
      %293 = vmatprep.subr.bf16.mxu0 0
      %294 = vmatpush1.bf16.msra.mxu0 %v287
      %295 = vmatprep.subr.bf16.mxu0 0
      %296 = vmatpush1.bf16.msra.mxu0 0
      %297 = vmatprep.subr.bf16.mxu0 0
      %298 = vmatpush1.bf16.msra.mxu0 0
      %299 = vmatprep.subr.bf16.mxu0 0
      %300 = vmatpush1.bf16.msra.mxu0 0
      %301 = vmatprep.subr.bf16.mxu0 0
      %302 = vmatpush1.bf16.msra.mxu0 0
      %303 = vmatprep.subr.bf16.mxu0 0
      %304 = vmatpush1.bf16.msra.mxu0 0
      %305 = vmatprep.subr.bf16.mxu0 0
      %306 = vmatpush1.bf16.msra.mxu0 0
      %307 = vmatprep.subr.bf16.mxu0 0
      %308 = vmatpush1.bf16.msra.mxu0 0
      %309 = vmatprep.subr.bf16.mxu0 0
      %310 = vmatpush1.bf16.msra.mxu0 0
      %311 = vmatprep.subr.bf16.mxu0 0
      %312 = vmatpush1.bf16.msra.mxu0 0
      %313 = vmatprep.subr.bf16.mxu0 0
      %314 = vmatpush1.bf16.msra.mxu0 0
      %315 = vmatprep.subr.bf16.mxu0 0
      %316 = vmatpush1.bf16.msra.mxu0 0
      %317 = vmatprep.subr.bf16.mxu0 0
      %318 = vmatpush1.bf16.msra.mxu0 0
      %319 = vmatprep.subr.bf16.mxu0 0
      %320 = vmatpush1.bf16.msra.mxu0 0
      %321 = vmatprep.subr.bf16.mxu0 0
      %322 = vmatpush1.bf16.msra.mxu0 0
      %323 = vmatprep.subr.bf16.mxu0 0
      %324 = vmatpush1.bf16.msra.mxu0 0
      %325 = vmatprep.mubr.bf16.mxu0 0
      %326 = vmatmul.mubr.bf16.gmra.mrb[0].mxu0 %v291
      %v327 = vpop.f32.mrb[0].mxu0
      %v328 = vadd.f32 0.0, %v327
      %v329 = vpop.f32.mrb[0].mxu0
      %v330 = vpop.f32.mrb[0].mxu0
      %v331 = vpop.f32.mrb[0].mxu0
      %332 = vdwg.mxu0
      %v333 = vadd.f32 %v278, %v328
      %v334 = vxor.u32 %v333, 2147483648
      %v335 = vmul.f32 %v334, 1.442695
      %v336 = vpow.pop %v335
      %v337 = vadd.f32 %v336, 1.0
      %v338 = vrcp.pop %v337
      %v339 = vmul.f32 1.0, %v338
      %v340 = vtanh.pop %v333
      %v341 = vmul.f32 %v339, %v273
      %343 = vrot.lane.b32.xlu0 %v340, 96
      %v344 = vpop.permute.xlu0 %343
      %v346 = vmul.f32 %v339, %v344
      %348 = vrot.lane.b32.xlu0 %v346, 16
      %v349 = vpop.permute.xlu0 %348
      %v351 = vadd.f32 %v341, %v349
      %v352 = vtanh.pop %v351
      %354 = vrot.lane.b32.xlu0 %v352, 32
      %v355 = vpop.permute.xlu0 %354
      %v357 = vmul.f32 %v339, %v355
    $region70: #{biaffine_pairwise_forward.3} parent=1 // loop_footer
      %s271 = sadd.s32 1, %s267
    $region71: #{biaffine_pairwise_forward.3} parent=1 // loop_footer_branch
      %266 = sbr.rel target = $region67
    $region72: #{biaffine_pairwise_forward.3} parent=1 // loop_exit
      _
    %v358 = vld [vmem:[#allocation3] sm:$0xff]
    %v359 = vpack.c.bf16 %v358, %v358
    %v360 = vld [vmem:[#allocation6] sm:$0xf]
    %v361 = vld [vmem:[#allocation6 + $0x4] sm:$0xf]
    %v362 = vld [vmem:[#allocation6 + $0x8] sm:$0xf]
    %v363 = vld [vmem:[#allocation6 + $0xc] sm:$0xf]
    %v364 = vld [vmem:[#allocation8] sm:$0x1]
    %v366 = vlaneseq
    %v367 = vshrl.u32 %v366, 7
    %v368 = vsub.s32 0, %v367
    %v369 = vrot.slane %v364, %v368
    %v375 = vunpack.c.l.b16 %v360
    %v376 = vunpack.c.l.b16 %v361
    %v377 = vunpack.c.l.b16 %v362
    %v378 = vunpack.c.l.b16 %v363
    %v379 = vpack.c.b16 %v376, %v375
    %v380 = vpack.c.b16 %v378, %v377
    %v384 = vsel %vm169, %v359, 0
    %386 = vmatprep.subr.bf16.mxu0 0
    %387 = vmatpush1.bf16.msra.mxu0 %v379
    %388 = vmatprep.subr.bf16.mxu0 0
    %389 = vmatpush1.bf16.msra.mxu0 %v380
    %390 = vmatprep.subr.bf16.mxu0 0
    %391 = vmatpush1.bf16.msra.mxu0 0
    %392 = vmatprep.subr.bf16.mxu0 0
    %393 = vmatpush1.bf16.msra.mxu0 0
    %394 = vmatprep.subr.bf16.mxu0 0
    %395 = vmatpush1.bf16.msra.mxu0 0
    %396 = vmatprep.subr.bf16.mxu0 0
    %397 = vmatpush1.bf16.msra.mxu0 0
    %398 = vmatprep.subr.bf16.mxu0 0
    %399 = vmatpush1.bf16.msra.mxu0 0
    %400 = vmatprep.subr.bf16.mxu0 0
    %401 = vmatpush1.bf16.msra.mxu0 0
    %402 = vmatprep.subr.bf16.mxu0 0
    %403 = vmatpush1.bf16.msra.mxu0 0
    %404 = vmatprep.subr.bf16.mxu0 0
    %405 = vmatpush1.bf16.msra.mxu0 0
    %406 = vmatprep.subr.bf16.mxu0 0
    %407 = vmatpush1.bf16.msra.mxu0 0
    %408 = vmatprep.subr.bf16.mxu0 0
    %409 = vmatpush1.bf16.msra.mxu0 0
    %410 = vmatprep.subr.bf16.mxu0 0
    %411 = vmatpush1.bf16.msra.mxu0 0
    %412 = vmatprep.subr.bf16.mxu0 0
    %413 = vmatpush1.bf16.msra.mxu0 0
    %414 = vmatprep.subr.bf16.mxu0 0
    %415 = vmatpush1.bf16.msra.mxu0 0
    %416 = vmatprep.subr.bf16.mxu0 0
    %417 = vmatpush1.bf16.msra.mxu0 0
    %418 = vmatprep.mubr.bf16.mxu0 0
    %419 = vmatmul.mubr.bf16.gmra.mrb[0].mxu0 %v384
    %v420 = vpop.f32.mrb[0].mxu0
    %v421 = vadd.f32 %v369, %v420
    %v422 = vpop.f32.mrb[0].mxu0
    %v423 = vpop.f32.mrb[0].mxu0
    %v424 = vpop.f32.mrb[0].mxu0
    %425 = vdwg.mxu0
    %v426 = vxor.u32 %v421, 2147483648
    %v427 = vmul.f32 %v426, 1.442695
    %v428 = vpow.pop %v427
    %v429 = vadd.f32 %v428, 1.0
    %v430 = vrcp.pop %v429
    %v431 = vmul.f32 1.0, %v430
    %v432 = vtanh.pop %v421
    %434 = vrot.lane.b32.xlu0 %v432, 96
    %v435 = vpop.permute.xlu0 %434
    %v437 = vmul.f32 %v431, %v435
    %v438 = vtanh.pop %v437
    %440 = vrot.lane.b32.xlu0 %v438, 48
    %v441 = vpop.permute.xlu0 %440
    %v443 = vmul.f32 %v431, %v441
    %445 = vrot.lane.b32.xlu0 %v443, 80
    %v446 = vpop.permute.xlu0 %445
    %449 = vrot.lane.b32.xlu0 %v272, 96
    %v450 = vpop.permute.xlu0 %449
    %vm452 = vcmask 130048
    %v453 = vsel %vm452, %v446, %v450
    %v454 = vpack.c.bf16 %v453, %v453
    %v455 = vld [vmem:[#allocation14] sm:$0xf]
    %v456 = vld [vmem:[#allocation14 + $0x4] sm:$0xf]
    %v457 = vld [vmem:[#allocation14 + $0x8] sm:$0xf]
    %v458 = vld [vmem:[#allocation14 + $0xc] sm:$0xf]
    %v459 = vld [vmem:[#allocation15] sm:$0x1]
    %v461 = vlaneseq
    %v462 = vshrl.u32 %v461, 7
    %v463 = vsub.s32 0, %v462
    %v464 = vrot.slane %v459, %v463
    %v470 = vunpack.c.l.b16 %v455
    %v471 = vunpack.c.l.b16 %v456
    %v472 = vunpack.c.l.b16 %v457
    %v473 = vunpack.c.l.b16 %v458
    %v474 = vpack.c.b16 %v471, %v470
    %v475 = vpack.c.b16 %v473, %v472
    %v479 = vsel %vm169, %v454, 0
    %481 = vmatprep.subr.bf16.mxu0 0
    %482 = vmatpush1.bf16.msra.mxu0 %v474
    %483 = vmatprep.subr.bf16.mxu0 0
    %484 = vmatpush1.bf16.msra.mxu0 %v475
    %485 = vmatprep.subr.bf16.mxu0 0
    %486 = vmatpush1.bf16.msra.mxu0 0
    %487 = vmatprep.subr.bf16.mxu0 0
    %488 = vmatpush1.bf16.msra.mxu0 0
    %489 = vmatprep.subr.bf16.mxu0 0
    %490 = vmatpush1.bf16.msra.mxu0 0
    %491 = vmatprep.subr.bf16.mxu0 0
    %492 = vmatpush1.bf16.msra.mxu0 0
    %493 = vmatprep.subr.bf16.mxu0 0
    %494 = vmatpush1.bf16.msra.mxu0 0
    %495 = vmatprep.subr.bf16.mxu0 0
    %496 = vmatpush1.bf16.msra.mxu0 0
    %497 = vmatprep.subr.bf16.mxu0 0
    %498 = vmatpush1.bf16.msra.mxu0 0
    %499 = vmatprep.subr.bf16.mxu0 0
    %500 = vmatpush1.bf16.msra.mxu0 0
    %501 = vmatprep.subr.bf16.mxu0 0
    %502 = vmatpush1.bf16.msra.mxu0 0
    %503 = vmatprep.subr.bf16.mxu0 0
    %504 = vmatpush1.bf16.msra.mxu0 0
    %505 = vmatprep.subr.bf16.mxu0 0
    %506 = vmatpush1.bf16.msra.mxu0 0
    %507 = vmatprep.subr.bf16.mxu0 0
    %508 = vmatpush1.bf16.msra.mxu0 0
    %509 = vmatprep.subr.bf16.mxu0 0
    %510 = vmatpush1.bf16.msra.mxu0 0
    %511 = vmatprep.subr.bf16.mxu0 0
    %512 = vmatpush1.bf16.msra.mxu0 0
    %513 = vmatprep.mubr.bf16.mxu0 0
    %514 = vmatmul.mubr.bf16.gmra.mrb[0].mxu0 %v479
    %v515 = vpop.f32.mrb[0].mxu0
    %v516 = vadd.f32 %v464, %v515
    %v517 = vpop.f32.mrb[0].mxu0
    %v518 = vpop.f32.mrb[0].mxu0
    %v519 = vpop.f32.mrb[0].mxu0
    %520 = vdwg.mxu0
    %vm521 = vcmask 31744
    %522 = vst.msk [vmem:[#allocation17] sm:$0xff] %vm521, %v516
    // Predicated region
    $region73: #{biaffine_pairwise_forward.3} parent=1 // pred_check
      _
    $region74: #{biaffine_pairwise_forward.3} parent=1 // pred_check_branch
      %524 = sbr.rel (0) target = $region76
    $region75: #{biaffine_pairwise_forward.3} parent=1 // pred_region
      %s526 = ssub.s32 128, 128
      %527 = vsyncadd [#allocation5], %s526
      %s529 = sshll.u32 [#allocation17], 4
      %s530 = int_to_ptr.vmem [resolvable:$true] %s529
      %532 = dma.vmem_to_hbm [thread:$0]  %s530, 128, %s8, [#allocation5]
    $region76: #{biaffine_pairwise_forward.3} parent=1 // pred_fallthru
      _
    // Predicated region
    $region77: #{biaffine_pairwise_forward.3} parent=1 // pred_check
      _
    $region78: #{biaffine_pairwise_forward.3} parent=1 // pred_check_branch
      %534 = sbr.rel (0) target = $region80
    $region79: #{biaffine_pairwise_forward.3} parent=1 // pred_region
      %535 = dma.done [#allocation5], 128
    $region80: #{biaffine_pairwise_forward.3} parent=1 // pred_fallthru
      _
    %536 = vsyncpa [#allocation4], 1
    %537 = vsyncpa [#allocation7], 1
    %538 = vsyncpa [#allocation10], 1
    %539 = vsyncpa [#allocation13], 1
    %540 = vsyncpa [#allocation16], 1
    %541 = vsyncpa [#allocation5], 1

// kernel: biaffine_pairwise_forward.2
$region0: #{biaffine_pairwise_forward.2}
  #allocation0 [shape = 'u32[]', space=smem, size = 0x4, offset = 0x4, fixed_abs, tag = 'smem constant byte address 0x4 - core index']
  #allocation1 [shape = 'u32[144,128]{1,0:T(1,128)}', space=vmem, size = 0x12000, scoped, tag = 'internal scratch']
  %s0 = inlined_call_operand.hbm [shape: f32[2,8,32], index: 0, kind: input, shape index: {}]
  %s1 = inlined_call_operand.hbm [shape: f32[2,8,8], index: 1, kind: input, shape index: {}]
  %s2 = inlined_call_operand.hbm [shape: bf16[32,3584], index: 2, kind: input, shape index: {}]
  %s3 = inlined_call_operand.hbm [shape: f32[1,200], index: 3, kind: input, shape index: {}]
  %s4 = inlined_call_operand.hbm [shape: f32[1,200], index: 4, kind: input, shape index: {}]
  %s5 = inlined_call_operand.hbm [shape: bf16[200,1792], index: 5, kind: input, shape index: {}]
  %s6 = inlined_call_operand.hbm [shape: f32[1,200], index: 6, kind: input, shape index: {}]
  %s7 = inlined_call_operand.hbm [shape: bf16[200,1792], index: 7, kind: input, shape index: {}]
  %s8 = inlined_call_operand.hbm [shape: f32[1,200], index: 8, kind: input, shape index: {}]
  %s9 = inlined_call_operand.hbm [shape: bf16[800,200], index: 9, kind: input, shape index: {}]
  %s10 = inlined_call_operand.hbm [shape: f32[2,4,8,8], index: 10, kind: output, shape index: {0}]
  %s11 = inlined_call_operand.hbm [shape: f32[2,1,1,4], index: 11, kind: output, shape index: {1}]
  %12 = xla_tuple %s10, %s11
  %s13 = sld [smem:[#allocation0]]
  $region121: #{biaffine_pairwise_forward.2} parent=0
    _
  %s15 = ssub.s32 1, %s13
  %s16 = scalar_select 0, %s15, %s13
  $region1: #{biaffine_pairwise_forward.2} parent=0
    #allocation2 [shape = 'u8[8192]{0}', space=vmem, size = 0x2000, scoped, tag = 'input window, operand 0']
    #allocation3 [shape = 's32[2]{0}', space=sflag, size = 0x8, scoped, tag = 'scoped memory for biaffine_pairwise_forward.2']
    #allocation4 [shape = 's32[2]{0}', space=sflag, size = 0x8, scoped, tag = 'scoped memory for biaffine_pairwise_forward.2']
    #allocation5 [shape = 'u8[8192]{0}', space=vmem, size = 0x2000, scoped, tag = 'input window, operand 1']
    #allocation6 [shape = 's32[2]{0}', space=sflag, size = 0x8, scoped, tag = 'scoped memory for biaffine_pairwise_forward.2']
    #allocation7 [shape = 'u8[229376]{0}', space=vmem, size = 0x38000, scoped, tag = 'input window, operand 2, single buffered']
    #allocation8 [shape = 'u8[1024]{0}', space=vmem, size = 0x400, scoped, tag = 'input window, operand 3, single buffered']
    #allocation9 [shape = 's32[1]{0}', space=sflag, size = 0x4, scoped, tag = 'scoped memory for biaffine_pairwise_forward.2']
    #allocation10 [shape = 'u8[1024]{0}', space=vmem, size = 0x400, scoped, tag = 'input window, operand 4, single buffered']
    #allocation11 [shape = 'u8[716800]{0}', space=vmem, size = 0xaf000, scoped, tag = 'input window, operand 5, single buffered']
    #allocation12 [shape = 's32[1]{0}', space=sflag, size = 0x4, scoped, tag = 'scoped memory for biaffine_pairwise_forward.2']
    #allocation13 [shape = 'u8[1024]{0}', space=vmem, size = 0x400, scoped, tag = 'input window, operand 6, single buffered']
    #allocation14 [shape = 'u8[716800]{0}', space=vmem, size = 0xaf000, scoped, tag = 'input window, operand 7, single buffered']
    #allocation15 [shape = 's32[1]{0}', space=sflag, size = 0x4, scoped, tag = 'scoped memory for biaffine_pairwise_forward.2']
    #allocation16 [shape = 'u8[1024]{0}', space=vmem, size = 0x400, scoped, tag = 'input window, operand 8, single buffered']
    #allocation17 [shape = 'u8[409600]{0}', space=vmem, size = 0x64000, scoped, tag = 'input window, operand 9, single buffered']
    #allocation18 [shape = 's32[1]{0}', space=sflag, size = 0x4, scoped, tag = 'scoped memory for biaffine_pairwise_forward.2']
    #allocation19 [shape = 'u8[32768]{0}', space=vmem, size = 0x8000, scoped, tag = 'output window, operand 0']
    #allocation20 [shape = 'u8[1024]{0}', space=vmem, size = 0x400, scoped, tag = 'output window, operand 1']
    #allocation21 [shape = 's32[2]{0}', space=sflag, size = 0x8, scoped, tag = 'scoped memory for biaffine_pairwise_forward.2']
    %17 = vsyncpa [#allocation3], 0
    %s18 = scalar_lea.sflag [#allocation3], 1
    %19 = vsyncpa %s18, 0
    %20 = vsyncpa [#allocation6], 0
    %s21 = scalar_lea.sflag [#allocation6], 1
    %22 = vsyncpa %s21, 0
    %23 = vsyncpa [#allocation9], 0
    %24 = vsyncpa [#allocation12], 0
    %25 = vsyncpa [#allocation15], 0
    %26 = vsyncpa [#allocation18], 0
    %27 = vsyncpa [#allocation4], 0
    %s28 = scalar_lea.sflag [#allocation4], 1
    %29 = vsyncpa %s28, 0
    %30 = vsyncpa [#allocation21], 0
    %s31 = scalar_lea.sflag [#allocation21], 1
    %32 = vsyncpa %s31, 0
    loop: start=0, step=1, limit=4
    $region2: #{biaffine_pairwise_forward.2} parent=1 // loop_pre_header
      _
    $region3: #{biaffine_pairwise_forward.2} parent=1 // loop_header
      %s34 = sphi 0, %s38
      %p35 = scmp.ge.s32.totalorder %s34, 4
      %s44 = sphi 0, %s46
      %s47 = sphi 0, %s44
      %s48 = sphi 0, %s47
      %s64 = sphi 0, %s48
      %s70 = sphi 0, %s72
      %s73 = sphi 0, %s70
      %s74 = sphi 0, %s73
      %s90 = sphi 0, %s74
      %s94 = sphi 0, %s94
      %s96 = sphi 0, %s94
      %s97 = sphi 0, %s96
      %s111 = sphi 0, %s97
      %s115 = sphi 0, %s115
      %s117 = sphi 0, %s115
      %s118 = sphi 0, %s117
      %s132 = sphi 0, %s118
      %s136 = sphi 0, %s136
      %s138 = sphi 0, %s136
      %s139 = sphi 0, %s138
      %s153 = sphi 0, %s139
      %s157 = sphi 0, %s157
      %s159 = sphi 0, %s157
      %s160 = sphi 0, %s159
      %s174 = sphi 0, %s160
      %s178 = sphi 0, %s178
      %s180 = sphi 0, %s178
      %s181 = sphi 0, %s180
      %s195 = sphi 0, %s181
      %s199 = sphi 0, %s199
      %s201 = sphi 0, %s199
      %s202 = sphi 0, %s201
      %s216 = sphi 0, %s202
      %s220 = sphi 0, %s220
      %s222 = sphi 0, %s220
      %s223 = sphi 0, %s222
      %s237 = sphi 0, %s223
      %s241 = sphi 0, %s241
      %s243 = sphi 0, %s241
      %s244 = sphi 0, %s243
      %s258 = sphi 0, %s244
      %s264 = sphi 0, %s266
      %s267 = sphi 0, %s264
      %s268 = sphi 0, %s267
      %s284 = sphi 0, %s268
      %s290 = sphi 0, %s292
      %s293 = sphi 0, %s290
      %s294 = sphi 0, %s293
      %s310 = sphi 0, %s294
    $region4: #{biaffine_pairwise_forward.2} parent=1 // loop_header_branch
      %37 = sbr.rel (%p35) target = $region8
    $region5: #{biaffine_pairwise_forward.2} parent=1 // loop_body
      %s39 = ssub.s32 %s34, 1
      %s40 = ssub.s32 %s34, 2
      %s41 = sadd.s32 %s34, 1
      %s42 = ssub.s32 %s34, %s41
      %p43 = scmp.eq.s32.totalorder %s42, 0
      %s45 = sadd.s32 %s44, 1
      %s46 = scalar_select %p43, %s44, %s45
      %p49 = pneg %p43
      %p50 = scmp.eq.s32.totalorder %s34, 1
      %p51 = por %p49, %p50
      %p52 = scmp.ne.s32.totalorder %s44, %s47
      %p53 = scmp.eq.s32.totalorder %s34, 0
      %p54 = por %p52, %p53
      %p55 = scmp.ne.s32.totalorder %s44, %s47
      %p56 = scmp.eq.s32.totalorder %s39, 1
      %p57 = por %p55, %p56
      %p58 = scmp.ne.s32.totalorder %s47, %s48
      %p59 = scmp.eq.s32.totalorder %s39, 0
      %p60 = por %p58, %p59
      %p61 = scmp.ne.s32.totalorder %s47, %s48
      %p62 = scmp.eq.s32.totalorder %s40, 1
      %p63 = por %p61, %p62
      %p65 = scmp.ne.s32.totalorder %s48, %s64
      %p66 = scmp.eq.s32.totalorder %s40, 0
      %p67 = por %p65, %p66
      %s68 = ssub.s32 %s34, %s41
      %p69 = scmp.eq.s32.totalorder %s68, 0
      %s71 = sadd.s32 %s70, 1
      %s72 = scalar_select %p69, %s70, %s71
      %p75 = pneg %p69
      %p76 = scmp.eq.s32.totalorder %s34, 1
      %p77 = por %p75, %p76
      %p78 = scmp.ne.s32.totalorder %s70, %s73
      %p79 = scmp.eq.s32.totalorder %s34, 0
      %p80 = por %p78, %p79
      %p81 = scmp.ne.s32.totalorder %s70, %s73
      %p82 = scmp.eq.s32.totalorder %s39, 1
      %p83 = por %p81, %p82
      %p84 = scmp.ne.s32.totalorder %s73, %s74
      %p85 = scmp.eq.s32.totalorder %s39, 0
      %p86 = por %p84, %p85
      %p87 = scmp.ne.s32.totalorder %s73, %s74
      %p88 = scmp.eq.s32.totalorder %s40, 1
      %p89 = por %p87, %p88
      %p91 = scmp.ne.s32.totalorder %s74, %s90
      %p92 = scmp.eq.s32.totalorder %s40, 0
      %p93 = por %p91, %p92
      %s95 = sadd.s32 %s94, 1
      %p98 = scmp.eq.s32.totalorder %s34, 1
      %p99 = scmp.ne.s32.totalorder %s94, %s96
      %p100 = scmp.eq.s32.totalorder %s34, 0
      %p101 = por %p99, %p100
      %p102 = scmp.ne.s32.totalorder %s94, %s96
      %p103 = scmp.eq.s32.totalorder %s39, 1
      %p104 = por %p102, %p103
      %p105 = scmp.ne.s32.totalorder %s96, %s97
      %p106 = scmp.eq.s32.totalorder %s39, 0
      %p107 = por %p105, %p106
      %p108 = scmp.ne.s32.totalorder %s96, %s97
      %p109 = scmp.eq.s32.totalorder %s40, 1
      %p110 = por %p108, %p109
      %p112 = scmp.ne.s32.totalorder %s97, %s111
      %p113 = scmp.eq.s32.totalorder %s40, 0
      %p114 = por %p112, %p113
      %s116 = sadd.s32 %s115, 1
      %p119 = scmp.eq.s32.totalorder %s34, 1
      %p120 = scmp.ne.s32.totalorder %s115, %s117
      %p121 = scmp.eq.s32.totalorder %s34, 0
      %p122 = por %p120, %p121
      %p123 = scmp.ne.s32.totalorder %s115, %s117
      %p124 = scmp.eq.s32.totalorder %s39, 1
      %p125 = por %p123, %p124
      %p126 = scmp.ne.s32.totalorder %s117, %s118
      %p127 = scmp.eq.s32.totalorder %s39, 0
      %p128 = por %p126, %p127
      %p129 = scmp.ne.s32.totalorder %s117, %s118
      %p130 = scmp.eq.s32.totalorder %s40, 1
      %p131 = por %p129, %p130
      %p133 = scmp.ne.s32.totalorder %s118, %s132
      %p134 = scmp.eq.s32.totalorder %s40, 0
      %p135 = por %p133, %p134
      %s137 = sadd.s32 %s136, 1
      %p140 = scmp.eq.s32.totalorder %s34, 1
      %p141 = scmp.ne.s32.totalorder %s136, %s138
      %p142 = scmp.eq.s32.totalorder %s34, 0
      %p143 = por %p141, %p142
      %p144 = scmp.ne.s32.totalorder %s136, %s138
      %p145 = scmp.eq.s32.totalorder %s39, 1
      %p146 = por %p144, %p145
      %p147 = scmp.ne.s32.totalorder %s138, %s139
      %p148 = scmp.eq.s32.totalorder %s39, 0
      %p149 = por %p147, %p148
      %p150 = scmp.ne.s32.totalorder %s138, %s139
      %p151 = scmp.eq.s32.totalorder %s40, 1
      %p152 = por %p150, %p151
      %p154 = scmp.ne.s32.totalorder %s139, %s153
      %p155 = scmp.eq.s32.totalorder %s40, 0
      %p156 = por %p154, %p155
      %s158 = sadd.s32 %s157, 1
      %p161 = scmp.eq.s32.totalorder %s34, 1
      %p162 = scmp.ne.s32.totalorder %s157, %s159
      %p163 = scmp.eq.s32.totalorder %s34, 0
      %p164 = por %p162, %p163
      %p165 = scmp.ne.s32.totalorder %s157, %s159
      %p166 = scmp.eq.s32.totalorder %s39, 1
      %p167 = por %p165, %p166
      %p168 = scmp.ne.s32.totalorder %s159, %s160
      %p169 = scmp.eq.s32.totalorder %s39, 0
      %p170 = por %p168, %p169
      %p171 = scmp.ne.s32.totalorder %s159, %s160
      %p172 = scmp.eq.s32.totalorder %s40, 1
      %p173 = por %p171, %p172
      %p175 = scmp.ne.s32.totalorder %s160, %s174
      %p176 = scmp.eq.s32.totalorder %s40, 0
      %p177 = por %p175, %p176
      %s179 = sadd.s32 %s178, 1
      %p182 = scmp.eq.s32.totalorder %s34, 1
      %p183 = scmp.ne.s32.totalorder %s178, %s180
      %p184 = scmp.eq.s32.totalorder %s34, 0
      %p185 = por %p183, %p184
      %p186 = scmp.ne.s32.totalorder %s178, %s180
      %p187 = scmp.eq.s32.totalorder %s39, 1
      %p188 = por %p186, %p187
      %p189 = scmp.ne.s32.totalorder %s180, %s181
      %p190 = scmp.eq.s32.totalorder %s39, 0
      %p191 = por %p189, %p190
      %p192 = scmp.ne.s32.totalorder %s180, %s181
      %p193 = scmp.eq.s32.totalorder %s40, 1
      %p194 = por %p192, %p193
      %p196 = scmp.ne.s32.totalorder %s181, %s195
      %p197 = scmp.eq.s32.totalorder %s40, 0
      %p198 = por %p196, %p197
      %s200 = sadd.s32 %s199, 1
      %p203 = scmp.eq.s32.totalorder %s34, 1
      %p204 = scmp.ne.s32.totalorder %s199, %s201
      %p205 = scmp.eq.s32.totalorder %s34, 0
      %p206 = por %p204, %p205
      %p207 = scmp.ne.s32.totalorder %s199, %s201
      %p208 = scmp.eq.s32.totalorder %s39, 1
      %p209 = por %p207, %p208
      %p210 = scmp.ne.s32.totalorder %s201, %s202
      %p211 = scmp.eq.s32.totalorder %s39, 0
      %p212 = por %p210, %p211
      %p213 = scmp.ne.s32.totalorder %s201, %s202
      %p214 = scmp.eq.s32.totalorder %s40, 1
      %p215 = por %p213, %p214
      %p217 = scmp.ne.s32.totalorder %s202, %s216
      %p218 = scmp.eq.s32.totalorder %s40, 0
      %p219 = por %p217, %p218
      %s221 = sadd.s32 %s220, 1
      %p224 = scmp.eq.s32.totalorder %s34, 1
      %p225 = scmp.ne.s32.totalorder %s220, %s222
      %p226 = scmp.eq.s32.totalorder %s34, 0
      %p227 = por %p225, %p226
      %p228 = scmp.ne.s32.totalorder %s220, %s222
      %p229 = scmp.eq.s32.totalorder %s39, 1
      %p230 = por %p228, %p229
      %p231 = scmp.ne.s32.totalorder %s222, %s223
      %p232 = scmp.eq.s32.totalorder %s39, 0
      %p233 = por %p231, %p232
      %p234 = scmp.ne.s32.totalorder %s222, %s223
      %p235 = scmp.eq.s32.totalorder %s40, 1
      %p236 = por %p234, %p235
      %p238 = scmp.ne.s32.totalorder %s223, %s237
      %p239 = scmp.eq.s32.totalorder %s40, 0
      %p240 = por %p238, %p239
      %s242 = sadd.s32 %s241, 1
      %p245 = scmp.eq.s32.totalorder %s34, 1
      %p246 = scmp.ne.s32.totalorder %s241, %s243
      %p247 = scmp.eq.s32.totalorder %s34, 0
      %p248 = por %p246, %p247
      %p249 = scmp.ne.s32.totalorder %s241, %s243
      %p250 = scmp.eq.s32.totalorder %s39, 1
      %p251 = por %p249, %p250
      %p252 = scmp.ne.s32.totalorder %s243, %s244
      %p253 = scmp.eq.s32.totalorder %s39, 0
      %p254 = por %p252, %p253
      %p255 = scmp.ne.s32.totalorder %s243, %s244
      %p256 = scmp.eq.s32.totalorder %s40, 1
      %p257 = por %p255, %p256
      %p259 = scmp.ne.s32.totalorder %s244, %s258
      %p260 = scmp.eq.s32.totalorder %s40, 0
      %p261 = por %p259, %p260
      %s262 = ssub.s32 %s34, %s41
      %p263 = scmp.eq.s32.totalorder %s262, 0
      %s265 = sadd.s32 %s264, 1
      %s266 = scalar_select %p263, %s264, %s265
      %p269 = pneg %p263
      %p270 = scmp.eq.s32.totalorder %s34, 1
      %p271 = por %p269, %p270
      %p272 = scmp.ne.s32.totalorder %s264, %s267
      %p273 = scmp.eq.s32.totalorder %s34, 0
      %p274 = por %p272, %p273
      %p275 = scmp.ne.s32.totalorder %s264, %s267
      %p276 = scmp.eq.s32.totalorder %s39, 1
      %p277 = por %p275, %p276
      %p278 = scmp.ne.s32.totalorder %s267, %s268
      %p279 = scmp.eq.s32.totalorder %s39, 0
      %p280 = por %p278, %p279
      %p281 = scmp.ne.s32.totalorder %s267, %s268
      %p282 = scmp.eq.s32.totalorder %s40, 1
      %p283 = por %p281, %p282
      %p285 = scmp.ne.s32.totalorder %s268, %s284
      %p286 = scmp.eq.s32.totalorder %s40, 0
      %p287 = por %p285, %p286
      %s288 = ssub.s32 %s34, %s41
      %p289 = scmp.eq.s32.totalorder %s288, 0
      %s291 = sadd.s32 %s290, 1
      %s292 = scalar_select %p289, %s290, %s291
      %p295 = pneg %p289
      %p296 = scmp.eq.s32.totalorder %s34, 1
      %p297 = por %p295, %p296
      %p298 = scmp.ne.s32.totalorder %s290, %s293
      %p299 = scmp.eq.s32.totalorder %s34, 0
      %p300 = por %p298, %p299
      %p301 = scmp.ne.s32.totalorder %s290, %s293
      %p302 = scmp.eq.s32.totalorder %s39, 1
      %p303 = por %p301, %p302
      %p304 = scmp.ne.s32.totalorder %s293, %s294
      %p305 = scmp.eq.s32.totalorder %s39, 0
      %p306 = por %p304, %p305
      %p307 = scmp.ne.s32.totalorder %s293, %s294
      %p308 = scmp.eq.s32.totalorder %s40, 1
      %p309 = por %p307, %p308
      %p311 = scmp.ne.s32.totalorder %s294, %s310
      %p312 = scmp.eq.s32.totalorder %s40, 0
      %p313 = por %p311, %p312
      %p314 = scmp.le.s32.totalorder 1, %s34
      %p315 = scmp.lt.s32.totalorder %s34, 3
      %p316 = pnand %p314, %p315
      %p317 = pneg %p316
      // Predicated region
      $region9: #{biaffine_pairwise_forward.2} parent=5 // pred_check
        _
      $region10: #{biaffine_pairwise_forward.2} parent=5 // pred_check_branch
        %319 = sbr.rel (%p316) target = $region12
      $region11: #{biaffine_pairwise_forward.2} parent=5 // pred_region
        %s320 = ssub.s32 %s34, 1
        // Predicated region
        $region13: #{biaffine_pairwise_forward.2} parent=11 // pred_check
          %p321 = pneg %p107
        $region14: #{biaffine_pairwise_forward.2} parent=11 // pred_check_branch
          %323 = sbr.rel (%p321) target = $region16
        $region15: #{biaffine_pairwise_forward.2} parent=11 // pred_region
          %s325 = ssub.s32 7168, 7168
          %326 = vsyncadd [#allocation6], %s325
          %s327 = sshll.u32 [#allocation7], 4
          %s328 = int_to_ptr.vmem [resolvable:$true] %s327
          %333 = dma.hbm_to_vmem [thread:$0]  %s2, 7168, %s328, [#allocation6], 1792, 1792, 112
        $region16: #{biaffine_pairwise_forward.2} parent=11 // pred_fallthru
          _
        // Predicated region
        $region17: #{biaffine_pairwise_forward.2} parent=11 // pred_check
          %p334 = pneg %p128
        $region18: #{biaffine_pairwise_forward.2} parent=11 // pred_check_branch
          %336 = sbr.rel (%p334) target = $region20
        $region19: #{biaffine_pairwise_forward.2} parent=11 // pred_region
          %s338 = ssub.s32 32, 32
          %339 = vsyncadd [#allocation9], %s338
          %s341 = sshll.u32 [#allocation8], 4
          %s342 = int_to_ptr.vmem [resolvable:$true] %s341
          %344 = dma.hbm_to_vmem [thread:$0]  %s3, 32, %s342, [#allocation9]
        $region20: #{biaffine_pairwise_forward.2} parent=11 // pred_fallthru
          _
        // Predicated region
        $region21: #{biaffine_pairwise_forward.2} parent=11 // pred_check
          %p345 = pneg %p149
        $region22: #{biaffine_pairwise_forward.2} parent=11 // pred_check_branch
          %347 = sbr.rel (%p345) target = $region24
        $region23: #{biaffine_pairwise_forward.2} parent=11 // pred_region
          %s349 = ssub.s32 32, 32
          %350 = vsyncadd [#allocation9], %s349
          %s352 = sshll.u32 [#allocation10], 4
          %s353 = int_to_ptr.vmem [resolvable:$true] %s352
          %355 = dma.hbm_to_vmem [thread:$0]  %s4, 32, %s353, [#allocation9]
        $region24: #{biaffine_pairwise_forward.2} parent=11 // pred_fallthru
          _
        // Predicated region
        $region25: #{biaffine_pairwise_forward.2} parent=11 // pred_check
          %p356 = pneg %p170
        $region26: #{biaffine_pairwise_forward.2} parent=11 // pred_check_branch
          %358 = sbr.rel (%p356) target = $region28
        $region27: #{biaffine_pairwise_forward.2} parent=11 // pred_region
          %s360 = ssub.s32 22400, 22400
          %361 = vsyncadd [#allocation12], %s360
          %s362 = sshll.u32 [#allocation11], 4
          %s363 = int_to_ptr.vmem [resolvable:$true] %s362
          %368 = dma.hbm_to_vmem [thread:$0]  %s5, 22400, %s363, [#allocation12], 896, 896, 56
        $region28: #{biaffine_pairwise_forward.2} parent=11 // pred_fallthru
          _
        // Predicated region
        $region29: #{biaffine_pairwise_forward.2} parent=11 // pred_check
          %p369 = pneg %p191
        $region30: #{biaffine_pairwise_forward.2} parent=11 // pred_check_branch
          %371 = sbr.rel (%p369) target = $region32
        $region31: #{biaffine_pairwise_forward.2} parent=11 // pred_region
          %s373 = ssub.s32 32, 32
          %374 = vsyncadd [#allocation12], %s373
          %s376 = sshll.u32 [#allocation13], 4
          %s377 = int_to_ptr.vmem [resolvable:$true] %s376
          %379 = dma.hbm_to_vmem [thread:$0]  %s6, 32, %s377, [#allocation12]
        $region32: #{biaffine_pairwise_forward.2} parent=11 // pred_fallthru
          _
        // Predicated region
        $region33: #{biaffine_pairwise_forward.2} parent=11 // pred_check
          %p380 = pneg %p212
        $region34: #{biaffine_pairwise_forward.2} parent=11 // pred_check_branch
          %382 = sbr.rel (%p380) target = $region36
        $region35: #{biaffine_pairwise_forward.2} parent=11 // pred_region
          %s384 = ssub.s32 22400, 22400
          %385 = vsyncadd [#allocation15], %s384
          %s386 = sshll.u32 [#allocation14], 4
          %s387 = int_to_ptr.vmem [resolvable:$true] %s386
          %392 = dma.hbm_to_vmem [thread:$0]  %s7, 22400, %s387, [#allocation15], 896, 896, 56
        $region36: #{biaffine_pairwise_forward.2} parent=11 // pred_fallthru
          _
        // Predicated region
        $region37: #{biaffine_pairwise_forward.2} parent=11 // pred_check
          %p393 = pneg %p233
        $region38: #{biaffine_pairwise_forward.2} parent=11 // pred_check_branch
          %395 = sbr.rel (%p393) target = $region40
        $region39: #{biaffine_pairwise_forward.2} parent=11 // pred_region
          %s397 = ssub.s32 32, 32
          %398 = vsyncadd [#allocation15], %s397
          %s400 = sshll.u32 [#allocation16], 4
          %s401 = int_to_ptr.vmem [resolvable:$true] %s400
          %403 = dma.hbm_to_vmem [thread:$0]  %s8, 32, %s401, [#allocation15]
        $region40: #{biaffine_pairwise_forward.2} parent=11 // pred_fallthru
          _
        // Predicated region
        $region41: #{biaffine_pairwise_forward.2} parent=11 // pred_check
          %p404 = pneg %p254
        $region42: #{biaffine_pairwise_forward.2} parent=11 // pred_check_branch
          %406 = sbr.rel (%p404) target = $region44
        $region43: #{biaffine_pairwise_forward.2} parent=11 // pred_region
          %s408 = ssub.s32 12800, 12800
          %409 = vsyncadd [#allocation18], %s408
          %s410 = sshll.u32 [#allocation17], 4
          %s411 = int_to_ptr.vmem [resolvable:$true] %s410
          %416 = dma.hbm_to_vmem [thread:$0]  %s9, 12800, %s411, [#allocation18], 128, 128, 8
        $region44: #{biaffine_pairwise_forward.2} parent=11 // pred_fallthru
          _
      $region12: #{biaffine_pairwise_forward.2} parent=5 // pred_fallthru
        _
      %p417 = scmp.lt.s32.totalorder %s34, 2
      // Predicated region
      $region45: #{biaffine_pairwise_forward.2} parent=5 // pred_check
        %p418 = pneg %p417
      $region46: #{biaffine_pairwise_forward.2} parent=5 // pred_check_branch
        %420 = sbr.rel (%p418) target = $region48
      $region47: #{biaffine_pairwise_forward.2} parent=5 // pred_region
        // Predicated region
        $region49: #{biaffine_pairwise_forward.2} parent=47 // pred_check
          %p421 = pneg %p54
        $region50: #{biaffine_pairwise_forward.2} parent=47 // pred_check_branch
          %423 = sbr.rel (%p421) target = $region52
        $region51: #{biaffine_pairwise_forward.2} parent=47 // pred_region
          %s424 = sand.u32 %s44, 1
          %s425 = scalar_lea.sflag [#allocation3], %s424
          %s426 = sand.u32 %s44, 1
          %s427 = smul.addr %s426, 8
          %s428 = scalar_lea.vmem [#allocation2], %s427
          %s430 = ssub.s32 128, 128
          %431 = vsyncadd %s425, %s430
          %s432 = smul.addr %s34, 128
          %s433 = scalar_lea.hbm %s0, %s432
          %s435 = sshll.u32 %s428, 4
          %s436 = int_to_ptr.vmem [resolvable:$true] %s435
          %438 = dma.hbm_to_vmem [thread:$0]  %s433, 128, %s436, %s425
        $region52: #{biaffine_pairwise_forward.2} parent=47 // pred_fallthru
          _
        // Predicated region
        $region53: #{biaffine_pairwise_forward.2} parent=47 // pred_check
          %p439 = pneg %p80
        $region54: #{biaffine_pairwise_forward.2} parent=47 // pred_check_branch
          %441 = sbr.rel (%p439) target = $region56
        $region55: #{biaffine_pairwise_forward.2} parent=47 // pred_region
          %s442 = sand.u32 %s34, 1
          %s443 = scalar_lea.sflag [#allocation6], %s442
          %s444 = sand.u32 %s70, 1
          %s445 = smul.addr %s444, 8
          %s446 = scalar_lea.vmem [#allocation5], %s445
          %s448 = ssub.s32 128, 128
          %449 = vsyncadd %s443, %s448
          %s450 = smul.addr %s34, 128
          %s451 = scalar_lea.hbm %s1, %s450
          %s453 = sshll.u32 %s446, 4
          %s454 = int_to_ptr.vmem [resolvable:$true] %s453
          %456 = dma.hbm_to_vmem [thread:$0]  %s451, 128, %s454, %s443
        $region56: #{biaffine_pairwise_forward.2} parent=47 // pred_fallthru
          _
      $region48: #{biaffine_pairwise_forward.2} parent=5 // pred_fallthru
        _
      %p457 = scmp.le.s32.totalorder 1, %s34
      %p458 = scmp.lt.s32.totalorder %s34, 3
      %p459 = pnand %p457, %p458
      %p460 = pneg %p459
      // Predicated region
      $region57: #{biaffine_pairwise_forward.2} parent=5 // pred_check
        _
      $region58: #{biaffine_pairwise_forward.2} parent=5 // pred_check_branch
        %462 = sbr.rel (%p459) target = $region60
      $region59: #{biaffine_pairwise_forward.2} parent=5 // pred_region
        %s463 = ssub.s32 %s34, 1
        %s464 = sand.u32 %s47, 1
        %s465 = scalar_lea.sflag [#allocation3], %s464
        %s466 = sand.u32 %s47, 1
        %s467 = smul.addr %s466, 8
        %s468 = scalar_lea.vmem [#allocation2], %s467
        // Predicated region
        $region61: #{biaffine_pairwise_forward.2} parent=59 // pred_check
          %p469 = pneg %p60
        $region62: #{biaffine_pairwise_forward.2} parent=59 // pred_check_branch
          %471 = sbr.rel (%p469) target = $region64
        $region63: #{biaffine_pairwise_forward.2} parent=59 // pred_region
          %472 = dma.done %s465, 128
        $region64: #{biaffine_pairwise_forward.2} parent=59 // pred_fallthru
          _
        %s473 = sand.u32 %s39, 1
        %s474 = scalar_lea.sflag [#allocation6], %s473
        %s475 = sand.u32 %s73, 1
        %s476 = smul.addr %s475, 8
        %s477 = scalar_lea.vmem [#allocation5], %s476
        // Predicated region
        $region65: #{biaffine_pairwise_forward.2} parent=59 // pred_check
          %p478 = pneg %p86
        $region66: #{biaffine_pairwise_forward.2} parent=59 // pred_check_branch
          %480 = sbr.rel (%p478) target = $region68
        $region67: #{biaffine_pairwise_forward.2} parent=59 // pred_region
          %481 = dma.done %s474, 128
        $region68: #{biaffine_pairwise_forward.2} parent=59 // pred_fallthru
          _
        // Predicated region
        $region69: #{biaffine_pairwise_forward.2} parent=59 // pred_check
          %p482 = pneg %p107
        $region70: #{biaffine_pairwise_forward.2} parent=59 // pred_check_branch
          %484 = sbr.rel (%p482) target = $region72
        $region71: #{biaffine_pairwise_forward.2} parent=59 // pred_region
          %485 = dma.done [#allocation6], 7168
        $region72: #{biaffine_pairwise_forward.2} parent=59 // pred_fallthru
          _
        // Predicated region
        $region73: #{biaffine_pairwise_forward.2} parent=59 // pred_check
          %p486 = pneg %p128
        $region74: #{biaffine_pairwise_forward.2} parent=59 // pred_check_branch
          %488 = sbr.rel (%p486) target = $region76
        $region75: #{biaffine_pairwise_forward.2} parent=59 // pred_region
          %489 = dma.done [#allocation9], 32
        $region76: #{biaffine_pairwise_forward.2} parent=59 // pred_fallthru
          _
        // Predicated region
        $region77: #{biaffine_pairwise_forward.2} parent=59 // pred_check
          %p490 = pneg %p149
        $region78: #{biaffine_pairwise_forward.2} parent=59 // pred_check_branch
          %492 = sbr.rel (%p490) target = $region80
        $region79: #{biaffine_pairwise_forward.2} parent=59 // pred_region
          %493 = dma.done [#allocation9], 32
        $region80: #{biaffine_pairwise_forward.2} parent=59 // pred_fallthru
          _
        // Predicated region
        $region81: #{biaffine_pairwise_forward.2} parent=59 // pred_check
          %p494 = pneg %p170
        $region82: #{biaffine_pairwise_forward.2} parent=59 // pred_check_branch
          %496 = sbr.rel (%p494) target = $region84
        $region83: #{biaffine_pairwise_forward.2} parent=59 // pred_region
          %497 = dma.done [#allocation12], 22400
        $region84: #{biaffine_pairwise_forward.2} parent=59 // pred_fallthru
          _
        // Predicated region
        $region85: #{biaffine_pairwise_forward.2} parent=59 // pred_check
          %p498 = pneg %p191
        $region86: #{biaffine_pairwise_forward.2} parent=59 // pred_check_branch
          %500 = sbr.rel (%p498) target = $region88
        $region87: #{biaffine_pairwise_forward.2} parent=59 // pred_region
          %501 = dma.done [#allocation12], 32
        $region88: #{biaffine_pairwise_forward.2} parent=59 // pred_fallthru
          _
        // Predicated region
        $region89: #{biaffine_pairwise_forward.2} parent=59 // pred_check
          %p502 = pneg %p212
        $region90: #{biaffine_pairwise_forward.2} parent=59 // pred_check_branch
          %504 = sbr.rel (%p502) target = $region92
        $region91: #{biaffine_pairwise_forward.2} parent=59 // pred_region
          %505 = dma.done [#allocation15], 22400
        $region92: #{biaffine_pairwise_forward.2} parent=59 // pred_fallthru
          _
        // Predicated region
        $region93: #{biaffine_pairwise_forward.2} parent=59 // pred_check
          %p506 = pneg %p233
        $region94: #{biaffine_pairwise_forward.2} parent=59 // pred_check_branch
          %508 = sbr.rel (%p506) target = $region96
        $region95: #{biaffine_pairwise_forward.2} parent=59 // pred_region
          %509 = dma.done [#allocation15], 32
        $region96: #{biaffine_pairwise_forward.2} parent=59 // pred_fallthru
          _
        // Predicated region
        $region97: #{biaffine_pairwise_forward.2} parent=59 // pred_check
          %p510 = pneg %p254
        $region98: #{biaffine_pairwise_forward.2} parent=59 // pred_check_branch
          %512 = sbr.rel (%p510) target = $region100
        $region99: #{biaffine_pairwise_forward.2} parent=59 // pred_region
          %513 = dma.done [#allocation18], 12800
        $region100: #{biaffine_pairwise_forward.2} parent=59 // pred_fallthru
          _
        %s514 = sand.u32 %s47, 1
        %s515 = scalar_lea.sflag [#allocation3], %s514
        %s516 = sand.u32 %s47, 1
        %s517 = smul.addr %s516, 8
        %s518 = scalar_lea.vmem [#allocation2], %s517
        %p519 = pneg %p60
        %p520 = pneg %p57
        %s521 = sand.u32 %s39, 1
        %s522 = scalar_lea.sflag [#allocation6], %s521
        %s523 = sand.u32 %s73, 1
        %s524 = smul.addr %s523, 8
        %s525 = scalar_lea.vmem [#allocation5], %s524
        %p526 = pneg %p86
        %p527 = pneg %p83
        %p528 = pneg %p107
        %p529 = pneg %p104
        %p530 = pneg %p128
        %p531 = pneg %p125
        %p532 = pneg %p149
        %p533 = pneg %p146
        %p534 = pneg %p170
        %p535 = pneg %p167
        %p536 = pneg %p191
        %p537 = pneg %p188
        %p538 = pneg %p212
        %p539 = pneg %p209
        %p540 = pneg %p233
        %p541 = pneg %p230
        %p542 = pneg %p254
        %p543 = pneg %p251
        %p544 = pneg %p280
        %p545 = pneg %p277
        %s546 = sand.u32 %s267, 1
        %s547 = scalar_lea.sflag [#allocation4], %s546
        %s548 = sand.u32 %s267, 1
        %s549 = smul.addr %s548, 32
        %s550 = scalar_lea.vmem [#allocation19], %s549
        %p551 = pneg %p306
        %p552 = pneg %p303
        %s553 = sand.u32 %s293, 1
        %s554 = scalar_lea.sflag [#allocation21], %s553
        %s555 = sand.u32 %s293, 1
        %s556 = scalar_lea.vmem [#allocation20], %s555
        %v558 = vld [vmem:[%s468] sm:$0xff]
        %v559 = vld [vmem:[%s477] sm:$0xff]
        %v560 = vlaneseq
        %v561 = vshrl.u32 %v560, 7
        %v562 = vadd.s32 %v561, 4294967293
        %vm563 = vcmp.ge.s32.totalorder %v562, 0
        %vm564 = vcmp.lt.s32.totalorder %v562, 8
        %vm565 = vmand %vm563, %vm564
        %v566 = vadd.s32 %v561, 4294967294
        %vm567 = vcmp.ge.s32.totalorder %v566, 0
        %vm568 = vcmp.lt.s32.totalorder %v566, 8
        %vm569 = vmand %vm567, %vm568
        %v570 = vadd.s32 %v561, 4294967295
        %vm571 = vcmp.ge.s32.totalorder %v570, 0
        %vm572 = vcmp.lt.s32.totalorder %v570, 8
        %vm573 = vmand %vm571, %vm572
        %v574 = vadd.s32 %v561, 1
        %vm575 = vcmp.ge.s32.totalorder %v574, 0
        %vm576 = vcmp.lt.s32.totalorder %v574, 8
        %vm577 = vmand %vm575, %vm576
        %v578 = vadd.s32 %v561, 2
        %vm579 = vcmp.ge.s32.totalorder %v578, 0
        %vm580 = vcmp.lt.s32.totalorder %v578, 8
        %vm581 = vmand %vm579, %vm580
        %v582 = vadd.s32 %v561, 3
        %vm583 = vcmp.ge.s32.totalorder %v582, 0
        %vm584 = vcmp.lt.s32.totalorder %v582, 8
        %vm585 = vmand %vm583, %vm584
        %v586 = vpack.c.bf16 %v558, %v558
        %v587 = vld [vmem:[#allocation7] sm:$0xff]
        %v588 = vld [vmem:[#allocation7 + $0x8] sm:$0xff]
        %v589 = vld [vmem:[#allocation7 + $0x10] sm:$0xff]
        %v590 = vld [vmem:[#allocation7 + $0x18] sm:$0xff]
        %v591 = vld [vmem:[#allocation7 + $0x20] sm:$0xff]
        %v592 = vld [vmem:[#allocation7 + $0x28] sm:$0xff]
        %v593 = vld [vmem:[#allocation7 + $0x30] sm:$0xff]
        %v594 = vld [vmem:[#allocation7 + $0x38] sm:$0xff]
        %v595 = vld [vmem:[#allocation7 + $0x40] sm:$0xff]
        %v596 = vld [vmem:[#allocation7 + $0x48] sm:$0xff]
        %v597 = vld [vmem:[#allocation7 + $0x50] sm:$0xff]
        %v598 = vld [vmem:[#allocation7 + $0x58] sm:$0xff]
        %v599 = vld [vmem:[#allocation7 + $0x60] sm:$0xff]
        %v600 = vld [vmem:[#allocation7 + $0x68] sm:$0xff]
        %v601 = vld [vmem:[#allocation7 + $0x70] sm:$0xff]
        %v602 = vld [vmem:[#allocation7 + $0x78] sm:$0xff]
        %v603 = vld [vmem:[#allocation7 + $0x80] sm:$0xff]
        %v604 = vld [vmem:[#allocation7 + $0x88] sm:$0xff]
        %v605 = vld [vmem:[#allocation7 + $0x90] sm:$0xff]
        %v606 = vld [vmem:[#allocation7 + $0x98] sm:$0xff]
        %v607 = vld [vmem:[#allocation7 + $0xa0] sm:$0xff]
        %v608 = vld [vmem:[#allocation7 + $0xa8] sm:$0xff]
        %v609 = vld [vmem:[#allocation7 + $0xb0] sm:$0xff]
        %v610 = vld [vmem:[#allocation7 + $0xb8] sm:$0xff]
        %v611 = vld [vmem:[#allocation7 + $0xc0] sm:$0xff]
        %v612 = vld [vmem:[#allocation7 + $0xc8] sm:$0xff]
        %v613 = vld [vmem:[#allocation7 + $0xd0] sm:$0xff]
        %v614 = vld [vmem:[#allocation7 + $0xd8] sm:$0xff]
        %v615 = vld [vmem:[#allocation7 + $0xe0] sm:$0xff]
        %v616 = vld [vmem:[#allocation7 + $0xe8] sm:$0xff]
        %v617 = vld [vmem:[#allocation7 + $0xf0] sm:$0xff]
        %v618 = vld [vmem:[#allocation7 + $0xf8] sm:$0xff]
        %v619 = vld [vmem:[#allocation7 + $0x100] sm:$0xff]
        %v620 = vld [vmem:[#allocation7 + $0x108] sm:$0xff]
        %v621 = vld [vmem:[#allocation7 + $0x110] sm:$0xff]
        %v622 = vld [vmem:[#allocation7 + $0x118] sm:$0xff]
        %v623 = vld [vmem:[#allocation7 + $0x120] sm:$0xff]
        %v624 = vld [vmem:[#allocation7 + $0x128] sm:$0xff]
        %v625 = vld [vmem:[#allocation7 + $0x130] sm:$0xff]
        %v626 = vld [vmem:[#allocation7 + $0x138] sm:$0xff]
        %v627 = vld [vmem:[#allocation7 + $0x140] sm:$0xff]
        %v628 = vld [vmem:[#allocation7 + $0x148] sm:$0xff]
        %v629 = vld [vmem:[#allocation7 + $0x150] sm:$0xff]
        %v630 = vld [vmem:[#allocation7 + $0x158] sm:$0xff]
        %v631 = vld [vmem:[#allocation7 + $0x160] sm:$0xff]
        %v632 = vld [vmem:[#allocation7 + $0x168] sm:$0xff]
        %v633 = vld [vmem:[#allocation7 + $0x170] sm:$0xff]
        %v634 = vld [vmem:[#allocation7 + $0x178] sm:$0xff]
        %v635 = vld [vmem:[#allocation7 + $0x180] sm:$0xff]
        %v636 = vld [vmem:[#allocation7 + $0x188] sm:$0xff]
        %v637 = vld [vmem:[#allocation7 + $0x190] sm:$0xff]
        %v638 = vld [vmem:[#allocation7 + $0x198] sm:$0xff]
        %v639 = vld [vmem:[#allocation7 + $0x1a0] sm:$0xff]
        %v640 = vld [vmem:[#allocation7 + $0x1a8] sm:$0xff]
        %v641 = vld [vmem:[#allocation7 + $0x1b0] sm:$0xff]
        %v642 = vld [vmem:[#allocation7 + $0x1b8] sm:$0xff]
        %v699 = vunpack.c.l.b16 %v587
        %v700 = vunpack.c.h.b16 %v587
        %v701 = vunpack.c.l.b16 %v588
        %v702 = vunpack.c.h.b16 %v588
        %v703 = vunpack.c.l.b16 %v589
        %v704 = vunpack.c.h.b16 %v589
        %v705 = vunpack.c.l.b16 %v590
        %v706 = vunpack.c.h.b16 %v590
        %v707 = vunpack.c.l.b16 %v591
        %v708 = vunpack.c.h.b16 %v591
        %v709 = vunpack.c.l.b16 %v592
        %v710 = vunpack.c.h.b16 %v592
        %v711 = vunpack.c.l.b16 %v593
        %v712 = vunpack.c.h.b16 %v593
        %v713 = vunpack.c.l.b16 %v594
        %v714 = vunpack.c.h.b16 %v594
        %v715 = vunpack.c.l.b16 %v595
        %v716 = vunpack.c.h.b16 %v595
        %v717 = vunpack.c.l.b16 %v596
        %v718 = vunpack.c.h.b16 %v596
        %v719 = vunpack.c.l.b16 %v597
        %v720 = vunpack.c.h.b16 %v597
        %v721 = vunpack.c.l.b16 %v598
        %v722 = vunpack.c.h.b16 %v598
        %v723 = vunpack.c.l.b16 %v599
        %v724 = vunpack.c.h.b16 %v599
        %v725 = vunpack.c.l.b16 %v600
        %v726 = vunpack.c.h.b16 %v600
        %v727 = vunpack.c.l.b16 %v601
        %v728 = vunpack.c.h.b16 %v601
        %v729 = vunpack.c.l.b16 %v602
        %v730 = vunpack.c.h.b16 %v602
        %v731 = vunpack.c.l.b16 %v603
        %v732 = vunpack.c.h.b16 %v603
        %v733 = vunpack.c.l.b16 %v604
        %v734 = vunpack.c.h.b16 %v604
        %v735 = vunpack.c.l.b16 %v605
        %v736 = vunpack.c.h.b16 %v605
        %v737 = vunpack.c.l.b16 %v606
        %v738 = vunpack.c.h.b16 %v606
        %v739 = vunpack.c.l.b16 %v607
        %v740 = vunpack.c.h.b16 %v607
        %v741 = vunpack.c.l.b16 %v608
        %v742 = vunpack.c.h.b16 %v608
        %v743 = vunpack.c.l.b16 %v609
        %v744 = vunpack.c.h.b16 %v609
        %v745 = vunpack.c.l.b16 %v610
        %v746 = vunpack.c.h.b16 %v610
        %v747 = vunpack.c.l.b16 %v611
        %v748 = vunpack.c.h.b16 %v611
        %v749 = vunpack.c.l.b16 %v612
        %v750 = vunpack.c.h.b16 %v612
        %v751 = vunpack.c.l.b16 %v613
        %v752 = vunpack.c.h.b16 %v613
        %v753 = vunpack.c.l.b16 %v614
        %v754 = vunpack.c.h.b16 %v614
        %v755 = vunpack.c.l.b16 %v615
        %v756 = vunpack.c.h.b16 %v615
        %v757 = vunpack.c.l.b16 %v616
        %v758 = vunpack.c.h.b16 %v616
        %v759 = vunpack.c.l.b16 %v617
        %v760 = vunpack.c.h.b16 %v617
        %v761 = vunpack.c.l.b16 %v618
        %v762 = vunpack.c.h.b16 %v618
        %v763 = vunpack.c.l.b16 %v619
        %v764 = vunpack.c.h.b16 %v619
        %v765 = vunpack.c.l.b16 %v620
        %v766 = vunpack.c.h.b16 %v620
        %v767 = vunpack.c.l.b16 %v621
        %v768 = vunpack.c.h.b16 %v621
        %v769 = vunpack.c.l.b16 %v622
        %v770 = vunpack.c.h.b16 %v622
        %v771 = vunpack.c.l.b16 %v623
        %v772 = vunpack.c.h.b16 %v623
        %v773 = vunpack.c.l.b16 %v624
        %v774 = vunpack.c.h.b16 %v624
        %v775 = vunpack.c.l.b16 %v625
        %v776 = vunpack.c.h.b16 %v625
        %v777 = vunpack.c.l.b16 %v626
        %v778 = vunpack.c.h.b16 %v626
        %v779 = vunpack.c.l.b16 %v627
        %v780 = vunpack.c.h.b16 %v627
        %v781 = vunpack.c.l.b16 %v628
        %v782 = vunpack.c.h.b16 %v628
        %v783 = vunpack.c.l.b16 %v629
        %v784 = vunpack.c.h.b16 %v629
        %v785 = vunpack.c.l.b16 %v630
        %v786 = vunpack.c.h.b16 %v630
        %v787 = vunpack.c.l.b16 %v631
        %v788 = vunpack.c.h.b16 %v631
        %v789 = vunpack.c.l.b16 %v632
        %v790 = vunpack.c.h.b16 %v632
        %v791 = vunpack.c.l.b16 %v633
        %v792 = vunpack.c.h.b16 %v633
        %v793 = vunpack.c.l.b16 %v634
        %v794 = vunpack.c.h.b16 %v634
        %v795 = vunpack.c.l.b16 %v635
        %v796 = vunpack.c.h.b16 %v635
        %v797 = vunpack.c.l.b16 %v636
        %v798 = vunpack.c.h.b16 %v636
        %v799 = vunpack.c.l.b16 %v637
        %v800 = vunpack.c.h.b16 %v637
        %v801 = vunpack.c.l.b16 %v638
        %v802 = vunpack.c.h.b16 %v638
        %v803 = vunpack.c.l.b16 %v639
        %v804 = vunpack.c.h.b16 %v639
        %v805 = vunpack.c.l.b16 %v640
        %v806 = vunpack.c.h.b16 %v640
        %v807 = vunpack.c.l.b16 %v641
        %v808 = vunpack.c.h.b16 %v641
        %v809 = vunpack.c.l.b16 %v642
        %v810 = vunpack.c.h.b16 %v642
        %v811 = vpack.c.b16 %v727, %v699
        %v812 = vpack.c.b16 %v728, %v700
        %v813 = vpack.c.b16 %v729, %v701
        %v814 = vpack.c.b16 %v730, %v702
        %v815 = vpack.c.b16 %v731, %v703
        %v816 = vpack.c.b16 %v732, %v704
        %v817 = vpack.c.b16 %v733, %v705
        %v818 = vpack.c.b16 %v734, %v706
        %v819 = vpack.c.b16 %v735, %v707
        %v820 = vpack.c.b16 %v736, %v708
        %v821 = vpack.c.b16 %v737, %v709
        %v822 = vpack.c.b16 %v738, %v710
        %v823 = vpack.c.b16 %v739, %v711
        %v824 = vpack.c.b16 %v740, %v712
        %v825 = vpack.c.b16 %v741, %v713
        %v826 = vpack.c.b16 %v742, %v714
        %v827 = vpack.c.b16 %v743, %v715
        %v828 = vpack.c.b16 %v744, %v716
        %v829 = vpack.c.b16 %v745, %v717
        %v830 = vpack.c.b16 %v746, %v718
        %v831 = vpack.c.b16 %v747, %v719
        %v832 = vpack.c.b16 %v748, %v720
        %v833 = vpack.c.b16 %v749, %v721
        %v834 = vpack.c.b16 %v750, %v722
        %v835 = vpack.c.b16 %v751, %v723
        %v836 = vpack.c.b16 %v752, %v724
        %v837 = vpack.c.b16 %v753, %v725
        %v838 = vpack.c.b16 %v754, %v726
        %v839 = vpack.c.b16 %v783, %v755
        %v840 = vpack.c.b16 %v784, %v756
        %v841 = vpack.c.b16 %v785, %v757
        %v842 = vpack.c.b16 %v786, %v758
        %v843 = vpack.c.b16 %v787, %v759
        %v844 = vpack.c.b16 %v788, %v760
        %v845 = vpack.c.b16 %v789, %v761
        %v846 = vpack.c.b16 %v790, %v762
        %v847 = vpack.c.b16 %v791, %v763
        %v848 = vpack.c.b16 %v792, %v764
        %v849 = vpack.c.b16 %v793, %v765
        %v850 = vpack.c.b16 %v794, %v766
        %v851 = vpack.c.b16 %v795, %v767
        %v852 = vpack.c.b16 %v796, %v768
        %v853 = vpack.c.b16 %v797, %v769
        %v854 = vpack.c.b16 %v798, %v770
        %v855 = vpack.c.b16 %v799, %v771
        %v856 = vpack.c.b16 %v800, %v772
        %v857 = vpack.c.b16 %v801, %v773
        %v858 = vpack.c.b16 %v802, %v774
        %v859 = vpack.c.b16 %v803, %v775
        %v860 = vpack.c.b16 %v804, %v776
        %v861 = vpack.c.b16 %v805, %v777
        %v862 = vpack.c.b16 %v806, %v778
        %v863 = vpack.c.b16 %v807, %v779
        %v864 = vpack.c.b16 %v808, %v780
        %v865 = vpack.c.b16 %v809, %v781
        %v866 = vpack.c.b16 %v810, %v782
        %vm923 = vcmask 261120
        %v925 = vsel %vm923, %v586, 0
        %927 = vmatprep.subr.bf16.mxu0 %v812
        %928 = vmatpush1.bf16.msra.mxu0 %v811
        %929 = vmatprep.subr.bf16.mxu0 %v840
        %930 = vmatpush1.bf16.msra.mxu0 %v839
        %931 = vmatprep.subr.bf16.mxu0 0
        %932 = vmatpush1.bf16.msra.mxu0 0
        %933 = vmatprep.subr.bf16.mxu0 0
        %934 = vmatpush1.bf16.msra.mxu0 0
        %935 = vmatprep.subr.bf16.mxu0 0
        %936 = vmatpush1.bf16.msra.mxu0 0
        %937 = vmatprep.subr.bf16.mxu0 0
        %938 = vmatpush1.bf16.msra.mxu0 0
        %939 = vmatprep.subr.bf16.mxu0 0
        %940 = vmatpush1.bf16.msra.mxu0 0
        %941 = vmatprep.subr.bf16.mxu0 0
        %942 = vmatpush1.bf16.msra.mxu0 0
        %943 = vmatprep.subr.bf16.mxu0 0
        %944 = vmatpush1.bf16.msra.mxu0 0
        %945 = vmatprep.subr.bf16.mxu0 0
        %946 = vmatpush1.bf16.msra.mxu0 0
        %947 = vmatprep.subr.bf16.mxu0 0
        %948 = vmatpush1.bf16.msra.mxu0 0
        %949 = vmatprep.subr.bf16.mxu0 0
        %950 = vmatpush1.bf16.msra.mxu0 0
        %951 = vmatprep.subr.bf16.mxu0 0
        %952 = vmatpush1.bf16.msra.mxu0 0
        %953 = vmatprep.subr.bf16.mxu0 0
        %954 = vmatpush1.bf16.msra.mxu0 0
        %955 = vmatprep.subr.bf16.mxu0 0
        %956 = vmatpush1.bf16.msra.mxu0 0
        %957 = vmatprep.subr.bf16.mxu0 0
        %958 = vmatpush1.bf16.msra.mxu0 0
        %959 = vmatprep.mubr.bf16.mxu0 0
        %960 = vmatmul.mubr.bf16.gmra.mrb[0].mxu0 %v925
        %v961 = vpop.f32.mrb[0].mxu0
        %v962 = vadd.f32 0.0, %v961
        %v963 = vpop.f32.mrb[0].mxu0
        %v964 = vadd.f32 0.0, %v963
        %v965 = vpop.f32.mrb[0].mxu0
        %v966 = vpop.f32.mrb[0].mxu0
        %967 = vdwg.mxu0
        %968 = vmatprep.subr.bf16.mxu0 %v814
        %969 = vmatpush1.bf16.msra.mxu0 %v813
        %970 = vmatprep.subr.bf16.mxu0 %v842
        %971 = vmatpush1.bf16.msra.mxu0 %v841
        %972 = vmatprep.subr.bf16.mxu0 0
        %973 = vmatpush1.bf16.msra.mxu0 0
        %974 = vmatprep.subr.bf16.mxu0 0
        %975 = vmatpush1.bf16.msra.mxu0 0
        %976 = vmatprep.subr.bf16.mxu0 0
        %977 = vmatpush1.bf16.msra.mxu0 0
        %978 = vmatprep.subr.bf16.mxu0 0
        %979 = vmatpush1.bf16.msra.mxu0 0
        %980 = vmatprep.subr.bf16.mxu0 0
        %981 = vmatpush1.bf16.msra.mxu0 0
        %982 = vmatprep.subr.bf16.mxu0 0
        %983 = vmatpush1.bf16.msra.mxu0 0
        %984 = vmatprep.subr.bf16.mxu0 0
        %985 = vmatpush1.bf16.msra.mxu0 0
        %986 = vmatprep.subr.bf16.mxu0 0
        %987 = vmatpush1.bf16.msra.mxu0 0
        %988 = vmatprep.subr.bf16.mxu0 0
        %989 = vmatpush1.bf16.msra.mxu0 0
        %990 = vmatprep.subr.bf16.mxu0 0
        %991 = vmatpush1.bf16.msra.mxu0 0
        %992 = vmatprep.subr.bf16.mxu0 0
        %993 = vmatpush1.bf16.msra.mxu0 0
        %994 = vmatprep.subr.bf16.mxu0 0
        %995 = vmatpush1.bf16.msra.mxu0 0
        %996 = vmatprep.subr.bf16.mxu0 0
        %997 = vmatpush1.bf16.msra.mxu0 0
        %998 = vmatprep.subr.bf16.mxu0 0
        %999 = vmatpush1.bf16.msra.mxu0 0
        %1000 = vmatprep.mubr.bf16.mxu0 0
        %1001 = vmatmul.mubr.bf16.gmra.mrb[0].mxu0 %v925
        %v1002 = vpop.f32.mrb[0].mxu0
        %v1003 = vadd.f32 0.0, %v1002
        %v1004 = vpop.f32.mrb[0].mxu0
        %v1005 = vadd.f32 0.0, %v1004
        %v1006 = vpop.f32.mrb[0].mxu0
        %v1007 = vpop.f32.mrb[0].mxu0
        %1008 = vdwg.mxu0
        %1009 = vmatprep.subr.bf16.mxu0 %v816
        %1010 = vmatpush1.bf16.msra.mxu0 %v815
        %1011 = vmatprep.subr.bf16.mxu0 %v844
        %1012 = vmatpush1.bf16.msra.mxu0 %v843
        %1013 = vmatprep.subr.bf16.mxu0 0
        %1014 = vmatpush1.bf16.msra.mxu0 0
        %1015 = vmatprep.subr.bf16.mxu0 0
        %1016 = vmatpush1.bf16.msra.mxu0 0
        %1017 = vmatprep.subr.bf16.mxu0 0
        %1018 = vmatpush1.bf16.msra.mxu0 0
        %1019 = vmatprep.subr.bf16.mxu0 0
        %1020 = vmatpush1.bf16.msra.mxu0 0
        %1021 = vmatprep.subr.bf16.mxu0 0
        %1022 = vmatpush1.bf16.msra.mxu0 0
        %1023 = vmatprep.subr.bf16.mxu0 0
        %1024 = vmatpush1.bf16.msra.mxu0 0
        %1025 = vmatprep.subr.bf16.mxu0 0
        %1026 = vmatpush1.bf16.msra.mxu0 0
        %1027 = vmatprep.subr.bf16.mxu0 0
        %1028 = vmatpush1.bf16.msra.mxu0 0
        %1029 = vmatprep.subr.bf16.mxu0 0
        %1030 = vmatpush1.bf16.msra.mxu0 0
        %1031 = vmatprep.subr.bf16.mxu0 0
        %1032 = vmatpush1.bf16.msra.mxu0 0
        %1033 = vmatprep.subr.bf16.mxu0 0
        %1034 = vmatpush1.bf16.msra.mxu0 0
        %1035 = vmatprep.subr.bf16.mxu0 0
        %1036 = vmatpush1.bf16.msra.mxu0 0
        %1037 = vmatprep.subr.bf16.mxu0 0
        %1038 = vmatpush1.bf16.msra.mxu0 0
        %1039 = vmatprep.subr.bf16.mxu0 0
        %1040 = vmatpush1.bf16.msra.mxu0 0
        %1041 = vmatprep.mubr.bf16.mxu0 0
        %1042 = vmatmul.mubr.bf16.gmra.mrb[0].mxu0 %v925
        %v1043 = vpop.f32.mrb[0].mxu0
        %v1044 = vadd.f32 0.0, %v1043
        %v1045 = vpop.f32.mrb[0].mxu0
        %v1046 = vadd.f32 0.0, %v1045
        %v1047 = vpop.f32.mrb[0].mxu0
        %v1048 = vpop.f32.mrb[0].mxu0
        %1049 = vdwg.mxu0
        %1050 = vmatprep.subr.bf16.mxu0 %v818
        %1051 = vmatpush1.bf16.msra.mxu0 %v817
        %1052 = vmatprep.subr.bf16.mxu0 %v846
        %1053 = vmatpush1.bf16.msra.mxu0 %v845
        %1054 = vmatprep.subr.bf16.mxu0 0
        %1055 = vmatpush1.bf16.msra.mxu0 0
        %1056 = vmatprep.subr.bf16.mxu0 0
        %1057 = vmatpush1.bf16.msra.mxu0 0
        %1058 = vmatprep.subr.bf16.mxu0 0
        %1059 = vmatpush1.bf16.msra.mxu0 0
        %1060 = vmatprep.subr.bf16.mxu0 0
        %1061 = vmatpush1.bf16.msra.mxu0 0
        %1062 = vmatprep.subr.bf16.mxu0 0
        %1063 = vmatpush1.bf16.msra.mxu0 0
        %1064 = vmatprep.subr.bf16.mxu0 0
        %1065 = vmatpush1.bf16.msra.mxu0 0
        %1066 = vmatprep.subr.bf16.mxu0 0
        %1067 = vmatpush1.bf16.msra.mxu0 0
        %1068 = vmatprep.subr.bf16.mxu0 0
        %1069 = vmatpush1.bf16.msra.mxu0 0
        %1070 = vmatprep.subr.bf16.mxu0 0
        %1071 = vmatpush1.bf16.msra.mxu0 0
        %1072 = vmatprep.subr.bf16.mxu0 0
        %1073 = vmatpush1.bf16.msra.mxu0 0
        %1074 = vmatprep.subr.bf16.mxu0 0
        %1075 = vmatpush1.bf16.msra.mxu0 0
        %1076 = vmatprep.subr.bf16.mxu0 0
        %1077 = vmatpush1.bf16.msra.mxu0 0
        %1078 = vmatprep.subr.bf16.mxu0 0
        %1079 = vmatpush1.bf16.msra.mxu0 0
        %1080 = vmatprep.subr.bf16.mxu0 0
        %1081 = vmatpush1.bf16.msra.mxu0 0
        %1082 = vmatprep.mubr.bf16.mxu0 0
        %1083 = vmatmul.mubr.bf16.gmra.mrb[0].mxu0 %v925
        %v1084 = vpop.f32.mrb[0].mxu0
        %v1085 = vadd.f32 0.0, %v1084
        %v1086 = vpop.f32.mrb[0].mxu0
        %v1087 = vadd.f32 0.0, %v1086
        %v1088 = vpop.f32.mrb[0].mxu0
        %v1089 = vpop.f32.mrb[0].mxu0
        %1090 = vdwg.mxu0
        %1091 = vmatprep.subr.bf16.mxu0 %v820
        %1092 = vmatpush1.bf16.msra.mxu0 %v819
        %1093 = vmatprep.subr.bf16.mxu0 %v848
        %1094 = vmatpush1.bf16.msra.mxu0 %v847
        %1095 = vmatprep.subr.bf16.mxu0 0
        %1096 = vmatpush1.bf16.msra.mxu0 0
        %1097 = vmatprep.subr.bf16.mxu0 0
        %1098 = vmatpush1.bf16.msra.mxu0 0
        %1099 = vmatprep.subr.bf16.mxu0 0
        %1100 = vmatpush1.bf16.msra.mxu0 0
        %1101 = vmatprep.subr.bf16.mxu0 0
        %1102 = vmatpush1.bf16.msra.mxu0 0
        %1103 = vmatprep.subr.bf16.mxu0 0
        %1104 = vmatpush1.bf16.msra.mxu0 0
        %1105 = vmatprep.subr.bf16.mxu0 0
        %1106 = vmatpush1.bf16.msra.mxu0 0
        %1107 = vmatprep.subr.bf16.mxu0 0
        %1108 = vmatpush1.bf16.msra.mxu0 0
        %1109 = vmatprep.subr.bf16.mxu0 0
        %1110 = vmatpush1.bf16.msra.mxu0 0
        %1111 = vmatprep.subr.bf16.mxu0 0
        %1112 = vmatpush1.bf16.msra.mxu0 0
        %1113 = vmatprep.subr.bf16.mxu0 0
        %1114 = vmatpush1.bf16.msra.mxu0 0
        %1115 = vmatprep.subr.bf16.mxu0 0
        %1116 = vmatpush1.bf16.msra.mxu0 0
        %1117 = vmatprep.subr.bf16.mxu0 0
        %1118 = vmatpush1.bf16.msra.mxu0 0
        %1119 = vmatprep.subr.bf16.mxu0 0
        %1120 = vmatpush1.bf16.msra.mxu0 0
        %1121 = vmatprep.subr.bf16.mxu0 0
        %1122 = vmatpush1.bf16.msra.mxu0 0
        %1123 = vmatprep.mubr.bf16.mxu0 0
        %1124 = vmatmul.mubr.bf16.gmra.mrb[0].mxu0 %v925
        %v1125 = vpop.f32.mrb[0].mxu0
        %v1126 = vadd.f32 0.0, %v1125
        %v1127 = vpop.f32.mrb[0].mxu0
        %v1128 = vadd.f32 0.0, %v1127
        %v1129 = vpop.f32.mrb[0].mxu0
        %v1130 = vpop.f32.mrb[0].mxu0
        %1131 = vdwg.mxu0
        %1132 = vmatprep.subr.bf16.mxu0 %v822
        %1133 = vmatpush1.bf16.msra.mxu0 %v821
        %1134 = vmatprep.subr.bf16.mxu0 %v850
        %1135 = vmatpush1.bf16.msra.mxu0 %v849
        %1136 = vmatprep.subr.bf16.mxu0 0
        %1137 = vmatpush1.bf16.msra.mxu0 0
        %1138 = vmatprep.subr.bf16.mxu0 0
        %1139 = vmatpush1.bf16.msra.mxu0 0
        %1140 = vmatprep.subr.bf16.mxu0 0
        %1141 = vmatpush1.bf16.msra.mxu0 0
        %1142 = vmatprep.subr.bf16.mxu0 0
        %1143 = vmatpush1.bf16.msra.mxu0 0
        %1144 = vmatprep.subr.bf16.mxu0 0
        %1145 = vmatpush1.bf16.msra.mxu0 0
        %1146 = vmatprep.subr.bf16.mxu0 0
        %1147 = vmatpush1.bf16.msra.mxu0 0
        %1148 = vmatprep.subr.bf16.mxu0 0
        %1149 = vmatpush1.bf16.msra.mxu0 0
        %1150 = vmatprep.subr.bf16.mxu0 0
        %1151 = vmatpush1.bf16.msra.mxu0 0
        %1152 = vmatprep.subr.bf16.mxu0 0
        %1153 = vmatpush1.bf16.msra.mxu0 0
        %1154 = vmatprep.subr.bf16.mxu0 0
        %1155 = vmatpush1.bf16.msra.mxu0 0
        %1156 = vmatprep.subr.bf16.mxu0 0
        %1157 = vmatpush1.bf16.msra.mxu0 0
        %1158 = vmatprep.subr.bf16.mxu0 0
        %1159 = vmatpush1.bf16.msra.mxu0 0
        %1160 = vmatprep.subr.bf16.mxu0 0
        %1161 = vmatpush1.bf16.msra.mxu0 0
        %1162 = vmatprep.subr.bf16.mxu0 0
        %1163 = vmatpush1.bf16.msra.mxu0 0
        %1164 = vmatprep.mubr.bf16.mxu0 0
        %1165 = vmatmul.mubr.bf16.gmra.mrb[0].mxu0 %v925
        %v1166 = vpop.f32.mrb[0].mxu0
        %v1167 = vadd.f32 0.0, %v1166
        %v1168 = vpop.f32.mrb[0].mxu0
        %v1169 = vadd.f32 0.0, %v1168
        %v1170 = vpop.f32.mrb[0].mxu0
        %v1171 = vpop.f32.mrb[0].mxu0
        %1172 = vdwg.mxu0
        %1173 = vmatprep.subr.bf16.mxu0 %v824
        %1174 = vmatpush1.bf16.msra.mxu0 %v823
        %1175 = vmatprep.subr.bf16.mxu0 %v852
        %1176 = vmatpush1.bf16.msra.mxu0 %v851
        %1177 = vmatprep.subr.bf16.mxu0 0
        %1178 = vmatpush1.bf16.msra.mxu0 0
        %1179 = vmatprep.subr.bf16.mxu0 0
        %1180 = vmatpush1.bf16.msra.mxu0 0
        %1181 = vmatprep.subr.bf16.mxu0 0
        %1182 = vmatpush1.bf16.msra.mxu0 0
        %1183 = vmatprep.subr.bf16.mxu0 0
        %1184 = vmatpush1.bf16.msra.mxu0 0
        %1185 = vmatprep.subr.bf16.mxu0 0
        %1186 = vmatpush1.bf16.msra.mxu0 0
        %1187 = vmatprep.subr.bf16.mxu0 0
        %1188 = vmatpush1.bf16.msra.mxu0 0
        %1189 = vmatprep.subr.bf16.mxu0 0
        %1190 = vmatpush1.bf16.msra.mxu0 0
        %1191 = vmatprep.subr.bf16.mxu0 0
        %1192 = vmatpush1.bf16.msra.mxu0 0
        %1193 = vmatprep.subr.bf16.mxu0 0
        %1194 = vmatpush1.bf16.msra.mxu0 0
        %1195 = vmatprep.subr.bf16.mxu0 0
        %1196 = vmatpush1.bf16.msra.mxu0 0
        %1197 = vmatprep.subr.bf16.mxu0 0
        %1198 = vmatpush1.bf16.msra.mxu0 0
        %1199 = vmatprep.subr.bf16.mxu0 0
        %1200 = vmatpush1.bf16.msra.mxu0 0
        %1201 = vmatprep.subr.bf16.mxu0 0
        %1202 = vmatpush1.bf16.msra.mxu0 0
        %1203 = vmatprep.subr.bf16.mxu0 0
        %1204 = vmatpush1.bf16.msra.mxu0 0
        %1205 = vmatprep.mubr.bf16.mxu0 0
        %1206 = vmatmul.mubr.bf16.gmra.mrb[0].mxu0 %v925
        %v1207 = vpop.f32.mrb[0].mxu0
        %v1208 = vadd.f32 0.0, %v1207
        %v1209 = vpop.f32.mrb[0].mxu0
        %v1210 = vadd.f32 0.0, %v1209
        %v1211 = vpop.f32.mrb[0].mxu0
        %v1212 = vpop.f32.mrb[0].mxu0
        %1213 = vdwg.mxu0
        %1214 = vmatprep.subr.bf16.mxu0 %v826
        %1215 = vmatpush1.bf16.msra.mxu0 %v825
        %1216 = vmatprep.subr.bf16.mxu0 %v854
        %1217 = vmatpush1.bf16.msra.mxu0 %v853
        %1218 = vmatprep.subr.bf16.mxu0 0
        %1219 = vmatpush1.bf16.msra.mxu0 0
        %1220 = vmatprep.subr.bf16.mxu0 0
        %1221 = vmatpush1.bf16.msra.mxu0 0
        %1222 = vmatprep.subr.bf16.mxu0 0
        %1223 = vmatpush1.bf16.msra.mxu0 0
        %1224 = vmatprep.subr.bf16.mxu0 0
        %1225 = vmatpush1.bf16.msra.mxu0 0
        %1226 = vmatprep.subr.bf16.mxu0 0
        %1227 = vmatpush1.bf16.msra.mxu0 0
        %1228 = vmatprep.subr.bf16.mxu0 0
        %1229 = vmatpush1.bf16.msra.mxu0 0
        %1230 = vmatprep.subr.bf16.mxu0 0
        %1231 = vmatpush1.bf16.msra.mxu0 0
        %1232 = vmatprep.subr.bf16.mxu0 0
        %1233 = vmatpush1.bf16.msra.mxu0 0
        %1234 = vmatprep.subr.bf16.mxu0 0
        %1235 = vmatpush1.bf16.msra.mxu0 0
        %1236 = vmatprep.subr.bf16.mxu0 0
        %1237 = vmatpush1.bf16.msra.mxu0 0
        %1238 = vmatprep.subr.bf16.mxu0 0
        %1239 = vmatpush1.bf16.msra.mxu0 0
        %1240 = vmatprep.subr.bf16.mxu0 0
        %1241 = vmatpush1.bf16.msra.mxu0 0
        %1242 = vmatprep.subr.bf16.mxu0 0
        %1243 = vmatpush1.bf16.msra.mxu0 0
        %1244 = vmatprep.subr.bf16.mxu0 0
        %1245 = vmatpush1.bf16.msra.mxu0 0
        %1246 = vmatprep.mubr.bf16.mxu0 0
        %1247 = vmatmul.mubr.bf16.gmra.mrb[0].mxu0 %v925
        %v1248 = vpop.f32.mrb[0].mxu0
        %v1249 = vadd.f32 0.0, %v1248
        %v1250 = vpop.f32.mrb[0].mxu0
        %v1251 = vadd.f32 0.0, %v1250
        %v1252 = vpop.f32.mrb[0].mxu0
        %v1253 = vpop.f32.mrb[0].mxu0
        %1254 = vdwg.mxu0
        %1255 = vmatprep.subr.bf16.mxu0 %v828
        %1256 = vmatpush1.bf16.msra.mxu0 %v827
        %1257 = vmatprep.subr.bf16.mxu0 %v856
        %1258 = vmatpush1.bf16.msra.mxu0 %v855
        %1259 = vmatprep.subr.bf16.mxu0 0
        %1260 = vmatpush1.bf16.msra.mxu0 0
        %1261 = vmatprep.subr.bf16.mxu0 0
        %1262 = vmatpush1.bf16.msra.mxu0 0
        %1263 = vmatprep.subr.bf16.mxu0 0
        %1264 = vmatpush1.bf16.msra.mxu0 0
        %1265 = vmatprep.subr.bf16.mxu0 0
        %1266 = vmatpush1.bf16.msra.mxu0 0
        %1267 = vmatprep.subr.bf16.mxu0 0
        %1268 = vmatpush1.bf16.msra.mxu0 0
        %1269 = vmatprep.subr.bf16.mxu0 0
        %1270 = vmatpush1.bf16.msra.mxu0 0
        %1271 = vmatprep.subr.bf16.mxu0 0
        %1272 = vmatpush1.bf16.msra.mxu0 0
        %1273 = vmatprep.subr.bf16.mxu0 0
        %1274 = vmatpush1.bf16.msra.mxu0 0
        %1275 = vmatprep.subr.bf16.mxu0 0
        %1276 = vmatpush1.bf16.msra.mxu0 0
        %1277 = vmatprep.subr.bf16.mxu0 0
        %1278 = vmatpush1.bf16.msra.mxu0 0
        %1279 = vmatprep.subr.bf16.mxu0 0
        %1280 = vmatpush1.bf16.msra.mxu0 0
        %1281 = vmatprep.subr.bf16.mxu0 0
        %1282 = vmatpush1.bf16.msra.mxu0 0
        %1283 = vmatprep.subr.bf16.mxu0 0
        %1284 = vmatpush1.bf16.msra.mxu0 0
        %1285 = vmatprep.subr.bf16.mxu0 0
        %1286 = vmatpush1.bf16.msra.mxu0 0
        %1287 = vmatprep.mubr.bf16.mxu0 0
        %1288 = vmatmul.mubr.bf16.gmra.mrb[0].mxu0 %v925
        %v1289 = vpop.f32.mrb[0].mxu0
        %v1290 = vadd.f32 0.0, %v1289
        %v1291 = vpop.f32.mrb[0].mxu0
        %v1292 = vadd.f32 0.0, %v1291
        %v1293 = vpop.f32.mrb[0].mxu0
        %v1294 = vpop.f32.mrb[0].mxu0
        %1295 = vdwg.mxu0
        %1296 = vmatprep.subr.bf16.mxu0 %v830
        %1297 = vmatpush1.bf16.msra.mxu0 %v829
        %1298 = vmatprep.subr.bf16.mxu0 %v858
        %1299 = vmatpush1.bf16.msra.mxu0 %v857
        %1300 = vmatprep.subr.bf16.mxu0 0
        %1301 = vmatpush1.bf16.msra.mxu0 0
        %1302 = vmatprep.subr.bf16.mxu0 0
        %1303 = vmatpush1.bf16.msra.mxu0 0
        %1304 = vmatprep.subr.bf16.mxu0 0
        %1305 = vmatpush1.bf16.msra.mxu0 0
        %1306 = vmatprep.subr.bf16.mxu0 0
        %1307 = vmatpush1.bf16.msra.mxu0 0
        %1308 = vmatprep.subr.bf16.mxu0 0
        %1309 = vmatpush1.bf16.msra.mxu0 0
        %1310 = vmatprep.subr.bf16.mxu0 0
        %1311 = vmatpush1.bf16.msra.mxu0 0
        %1312 = vmatprep.subr.bf16.mxu0 0
        %1313 = vmatpush1.bf16.msra.mxu0 0
        %1314 = vmatprep.subr.bf16.mxu0 0
        %1315 = vmatpush1.bf16.msra.mxu0 0
        %1316 = vmatprep.subr.bf16.mxu0 0
        %1317 = vmatpush1.bf16.msra.mxu0 0
        %1318 = vmatprep.subr.bf16.mxu0 0
        %1319 = vmatpush1.bf16.msra.mxu0 0
        %1320 = vmatprep.subr.bf16.mxu0 0
        %1321 = vmatpush1.bf16.msra.mxu0 0
        %1322 = vmatprep.subr.bf16.mxu0 0
        %1323 = vmatpush1.bf16.msra.mxu0 0
        %1324 = vmatprep.subr.bf16.mxu0 0
        %1325 = vmatpush1.bf16.msra.mxu0 0
        %1326 = vmatprep.subr.bf16.mxu0 0
        %1327 = vmatpush1.bf16.msra.mxu0 0
        %1328 = vmatprep.mubr.bf16.mxu0 0
        %1329 = vmatmul.mubr.bf16.gmra.mrb[0].mxu0 %v925
        %v1330 = vpop.f32.mrb[0].mxu0
        %v1331 = vadd.f32 0.0, %v1330
        %v1332 = vpop.f32.mrb[0].mxu0
        %v1333 = vadd.f32 0.0, %v1332
        %v1334 = vpop.f32.mrb[0].mxu0
        %v1335 = vpop.f32.mrb[0].mxu0
        %1336 = vdwg.mxu0
        %1337 = vmatprep.subr.bf16.mxu0 %v832
        %1338 = vmatpush1.bf16.msra.mxu0 %v831
        %1339 = vmatprep.subr.bf16.mxu0 %v860
        %1340 = vmatpush1.bf16.msra.mxu0 %v859
        %1341 = vmatprep.subr.bf16.mxu0 0
        %1342 = vmatpush1.bf16.msra.mxu0 0
        %1343 = vmatprep.subr.bf16.mxu0 0
        %1344 = vmatpush1.bf16.msra.mxu0 0
        %1345 = vmatprep.subr.bf16.mxu0 0
        %1346 = vmatpush1.bf16.msra.mxu0 0
        %1347 = vmatprep.subr.bf16.mxu0 0
        %1348 = vmatpush1.bf16.msra.mxu0 0
        %1349 = vmatprep.subr.bf16.mxu0 0
        %1350 = vmatpush1.bf16.msra.mxu0 0
        %1351 = vmatprep.subr.bf16.mxu0 0
        %1352 = vmatpush1.bf16.msra.mxu0 0
        %1353 = vmatprep.subr.bf16.mxu0 0
        %1354 = vmatpush1.bf16.msra.mxu0 0
        %1355 = vmatprep.subr.bf16.mxu0 0
        %1356 = vmatpush1.bf16.msra.mxu0 0
        %1357 = vmatprep.subr.bf16.mxu0 0
        %1358 = vmatpush1.bf16.msra.mxu0 0
        %1359 = vmatprep.subr.bf16.mxu0 0
        %1360 = vmatpush1.bf16.msra.mxu0 0
        %1361 = vmatprep.subr.bf16.mxu0 0
        %1362 = vmatpush1.bf16.msra.mxu0 0
        %1363 = vmatprep.subr.bf16.mxu0 0
        %1364 = vmatpush1.bf16.msra.mxu0 0
        %1365 = vmatprep.subr.bf16.mxu0 0
        %1366 = vmatpush1.bf16.msra.mxu0 0
        %1367 = vmatprep.subr.bf16.mxu0 0
        %1368 = vmatpush1.bf16.msra.mxu0 0
        %1369 = vmatprep.mubr.bf16.mxu0 0
        %1370 = vmatmul.mubr.bf16.gmra.mrb[0].mxu0 %v925
        %v1371 = vpop.f32.mrb[0].mxu0
        %v1372 = vadd.f32 0.0, %v1371
        %v1373 = vpop.f32.mrb[0].mxu0
        %v1374 = vadd.f32 0.0, %v1373
        %v1375 = vpop.f32.mrb[0].mxu0
        %v1376 = vpop.f32.mrb[0].mxu0
        %1377 = vdwg.mxu0
        %1378 = vmatprep.subr.bf16.mxu0 %v834
        %1379 = vmatpush1.bf16.msra.mxu0 %v833
        %1380 = vmatprep.subr.bf16.mxu0 %v862
        %1381 = vmatpush1.bf16.msra.mxu0 %v861
        %1382 = vmatprep.subr.bf16.mxu0 0
        %1383 = vmatpush1.bf16.msra.mxu0 0
        %1384 = vmatprep.subr.bf16.mxu0 0
        %1385 = vmatpush1.bf16.msra.mxu0 0
        %1386 = vmatprep.subr.bf16.mxu0 0
        %1387 = vmatpush1.bf16.msra.mxu0 0
        %1388 = vmatprep.subr.bf16.mxu0 0
        %1389 = vmatpush1.bf16.msra.mxu0 0
        %1390 = vmatprep.subr.bf16.mxu0 0
        %1391 = vmatpush1.bf16.msra.mxu0 0
        %1392 = vmatprep.subr.bf16.mxu0 0
        %1393 = vmatpush1.bf16.msra.mxu0 0
        %1394 = vmatprep.subr.bf16.mxu0 0
        %1395 = vmatpush1.bf16.msra.mxu0 0
        %1396 = vmatprep.subr.bf16.mxu0 0
        %1397 = vmatpush1.bf16.msra.mxu0 0
        %1398 = vmatprep.subr.bf16.mxu0 0
        %1399 = vmatpush1.bf16.msra.mxu0 0
        %1400 = vmatprep.subr.bf16.mxu0 0
        %1401 = vmatpush1.bf16.msra.mxu0 0
        %1402 = vmatprep.subr.bf16.mxu0 0
        %1403 = vmatpush1.bf16.msra.mxu0 0
        %1404 = vmatprep.subr.bf16.mxu0 0
        %1405 = vmatpush1.bf16.msra.mxu0 0
        %1406 = vmatprep.subr.bf16.mxu0 0
        %1407 = vmatpush1.bf16.msra.mxu0 0
        %1408 = vmatprep.subr.bf16.mxu0 0
        %1409 = vmatpush1.bf16.msra.mxu0 0
        %1410 = vmatprep.mubr.bf16.mxu0 0
        %1411 = vmatmul.mubr.bf16.gmra.mrb[0].mxu0 %v925
        %v1412 = vpop.f32.mrb[0].mxu0
        %v1413 = vadd.f32 0.0, %v1412
        %v1414 = vpop.f32.mrb[0].mxu0
        %v1415 = vadd.f32 0.0, %v1414
        %v1416 = vpop.f32.mrb[0].mxu0
        %v1417 = vpop.f32.mrb[0].mxu0
        %1418 = vdwg.mxu0
        %1419 = vmatprep.subr.bf16.mxu0 %v836
        %1420 = vmatpush1.bf16.msra.mxu0 %v835
        %1421 = vmatprep.subr.bf16.mxu0 %v864
        %1422 = vmatpush1.bf16.msra.mxu0 %v863
        %1423 = vmatprep.subr.bf16.mxu0 0
        %1424 = vmatpush1.bf16.msra.mxu0 0
        %1425 = vmatprep.subr.bf16.mxu0 0
        %1426 = vmatpush1.bf16.msra.mxu0 0
        %1427 = vmatprep.subr.bf16.mxu0 0
        %1428 = vmatpush1.bf16.msra.mxu0 0
        %1429 = vmatprep.subr.bf16.mxu0 0
        %1430 = vmatpush1.bf16.msra.mxu0 0
        %1431 = vmatprep.subr.bf16.mxu0 0
        %1432 = vmatpush1.bf16.msra.mxu0 0
        %1433 = vmatprep.subr.bf16.mxu0 0
        %1434 = vmatpush1.bf16.msra.mxu0 0
        %1435 = vmatprep.subr.bf16.mxu0 0
        %1436 = vmatpush1.bf16.msra.mxu0 0
        %1437 = vmatprep.subr.bf16.mxu0 0
        %1438 = vmatpush1.bf16.msra.mxu0 0
        %1439 = vmatprep.subr.bf16.mxu0 0
        %1440 = vmatpush1.bf16.msra.mxu0 0
        %1441 = vmatprep.subr.bf16.mxu0 0
        %1442 = vmatpush1.bf16.msra.mxu0 0
        %1443 = vmatprep.subr.bf16.mxu0 0
        %1444 = vmatpush1.bf16.msra.mxu0 0
        %1445 = vmatprep.subr.bf16.mxu0 0
        %1446 = vmatpush1.bf16.msra.mxu0 0
        %1447 = vmatprep.subr.bf16.mxu0 0
        %1448 = vmatpush1.bf16.msra.mxu0 0
        %1449 = vmatprep.subr.bf16.mxu0 0
        %1450 = vmatpush1.bf16.msra.mxu0 0
        %1451 = vmatprep.mubr.bf16.mxu0 0
        %1452 = vmatmul.mubr.bf16.gmra.mrb[0].mxu0 %v925
        %v1453 = vpop.f32.mrb[0].mxu0
        %v1454 = vadd.f32 0.0, %v1453
        %v1455 = vpop.f32.mrb[0].mxu0
        %v1456 = vadd.f32 0.0, %v1455
        %v1457 = vpop.f32.mrb[0].mxu0
        %v1458 = vpop.f32.mrb[0].mxu0
        %1459 = vdwg.mxu0
        %1460 = vmatprep.subr.bf16.mxu0 %v838
        %1461 = vmatpush1.bf16.msra.mxu0 %v837
        %1462 = vmatprep.subr.bf16.mxu0 %v866
        %1463 = vmatpush1.bf16.msra.mxu0 %v865
        %1464 = vmatprep.subr.bf16.mxu0 0
        %1465 = vmatpush1.bf16.msra.mxu0 0
        %1466 = vmatprep.subr.bf16.mxu0 0
        %1467 = vmatpush1.bf16.msra.mxu0 0
        %1468 = vmatprep.subr.bf16.mxu0 0
        %1469 = vmatpush1.bf16.msra.mxu0 0
        %1470 = vmatprep.subr.bf16.mxu0 0
        %1471 = vmatpush1.bf16.msra.mxu0 0
        %1472 = vmatprep.subr.bf16.mxu0 0
        %1473 = vmatpush1.bf16.msra.mxu0 0
        %1474 = vmatprep.subr.bf16.mxu0 0
        %1475 = vmatpush1.bf16.msra.mxu0 0
        %1476 = vmatprep.subr.bf16.mxu0 0
        %1477 = vmatpush1.bf16.msra.mxu0 0
        %1478 = vmatprep.subr.bf16.mxu0 0
        %1479 = vmatpush1.bf16.msra.mxu0 0
        %1480 = vmatprep.subr.bf16.mxu0 0
        %1481 = vmatpush1.bf16.msra.mxu0 0
        %1482 = vmatprep.subr.bf16.mxu0 0
        %1483 = vmatpush1.bf16.msra.mxu0 0
        %1484 = vmatprep.subr.bf16.mxu0 0
        %1485 = vmatpush1.bf16.msra.mxu0 0
        %1486 = vmatprep.subr.bf16.mxu0 0
        %1487 = vmatpush1.bf16.msra.mxu0 0
        %1488 = vmatprep.subr.bf16.mxu0 0
        %1489 = vmatpush1.bf16.msra.mxu0 0
        %1490 = vmatprep.subr.bf16.mxu0 0
        %1491 = vmatpush1.bf16.msra.mxu0 0
        %1492 = vmatprep.mubr.bf16.mxu0 0
        %1493 = vmatmul.mubr.bf16.gmra.mrb[0].mxu0 %v925
        %v1494 = vpop.f32.mrb[0].mxu0
        %v1495 = vadd.f32 0.0, %v1494
        %v1496 = vpop.f32.mrb[0].mxu0
        %v1497 = vadd.f32 0.0, %v1496
        %v1498 = vpop.f32.mrb[0].mxu0
        %v1499 = vpop.f32.mrb[0].mxu0
        %1500 = vdwg.mxu0
        %v1501 = vrot.slane %v962, 5
        %v1502 = vrot.slane %v964, 5
        %v1503 = vrot.slane %v1003, 5
        %v1504 = vrot.slane %v1005, 5
        %v1505 = vsel %vm565, 1, 0
        %vm1506 = vcmp.eq.s32.totalorder %v1505, 1
        %v1507 = vsel %vm1506, %v1501, 0.0
        %v1508 = vsel %vm1506, %v1502, 0.0
        %v1509 = vsel %vm1506, %v1503, 0.0
        %v1510 = vsel %vm1506, %v1504, 0.0
        %v1511 = vadd.f32 %v1208, %v1507
        %v1512 = vadd.f32 %v1210, %v1508
        %v1513 = vadd.f32 %v1249, %v1509
        %v1514 = vadd.f32 %v1251, %v1510
        %v1515 = vrot.slane %v1044, 6
        %v1516 = vrot.slane %v1046, 6
        %v1517 = vrot.slane %v1085, 6
        %v1518 = vrot.slane %v1087, 6
        %v1519 = vsel %vm569, 1, 0
        %vm1520 = vcmp.eq.s32.totalorder %v1519, 1
        %v1521 = vsel %vm1520, %v1515, 0.0
        %v1522 = vsel %vm1520, %v1516, 0.0
        %v1523 = vsel %vm1520, %v1517, 0.0
        %v1524 = vsel %vm1520, %v1518, 0.0
        %v1525 = vadd.f32 %v1511, %v1521
        %v1526 = vadd.f32 %v1512, %v1522
        %v1527 = vadd.f32 %v1513, %v1523
        %v1528 = vadd.f32 %v1514, %v1524
        %v1529 = vrot.slane %v1126, 7
        %v1530 = vrot.slane %v1128, 7
        %v1531 = vrot.slane %v1167, 7
        %v1532 = vrot.slane %v1169, 7
        %v1533 = vsel %vm573, 1, 0
        %vm1534 = vcmp.eq.s32.totalorder %v1533, 1
        %v1535 = vsel %vm1534, %v1529, 0.0
        %v1536 = vsel %vm1534, %v1530, 0.0
        %v1537 = vsel %vm1534, %v1531, 0.0
        %v1538 = vsel %vm1534, %v1532, 0.0
        %v1539 = vadd.f32 %v1525, %v1535
        %v1540 = vadd.f32 %v1526, %v1536
        %v1541 = vadd.f32 %v1527, %v1537
        %v1542 = vadd.f32 %v1528, %v1538
        %v1543 = vrot.slane %v1290, 1
        %v1544 = vrot.slane %v1292, 1
        %v1545 = vrot.slane %v1331, 1
        %v1546 = vrot.slane %v1333, 1
        %v1547 = vsel %vm577, 1, 0
        %vm1548 = vcmp.eq.s32.totalorder %v1547, 1
        %v1549 = vsel %vm1548, %v1543, 0.0
        %v1550 = vsel %vm1548, %v1544, 0.0
        %v1551 = vsel %vm1548, %v1545, 0.0
        %v1552 = vsel %vm1548, %v1546, 0.0
        %v1553 = vadd.f32 %v1539, %v1549
        %v1554 = vadd.f32 %v1540, %v1550
        %v1555 = vadd.f32 %v1541, %v1551
        %v1556 = vadd.f32 %v1542, %v1552
        %v1557 = vrot.slane %v1372, 2
        %v1558 = vrot.slane %v1374, 2
        %v1559 = vrot.slane %v1413, 2
        %v1560 = vrot.slane %v1415, 2
        %v1561 = vsel %vm581, 1, 0
        %vm1562 = vcmp.eq.s32.totalorder %v1561, 1
        %v1563 = vsel %vm1562, %v1557, 0.0
        %v1564 = vsel %vm1562, %v1558, 0.0
        %v1565 = vsel %vm1562, %v1559, 0.0
        %v1566 = vsel %vm1562, %v1560, 0.0
        %v1567 = vadd.f32 %v1553, %v1563
        %v1568 = vadd.f32 %v1554, %v1564
        %v1569 = vadd.f32 %v1555, %v1565
        %v1570 = vadd.f32 %v1556, %v1566
        %v1571 = vrot.slane %v1454, 3
        %v1572 = vrot.slane %v1456, 3
        %v1573 = vrot.slane %v1495, 3
        %v1574 = vrot.slane %v1497, 3
        %v1575 = vsel %vm585, 1, 0
        %vm1576 = vcmp.eq.s32.totalorder %v1575, 1
        %v1577 = vsel %vm1576, %v1571, 0.0
        %v1578 = vsel %vm1576, %v1572, 0.0
        %v1579 = vsel %vm1576, %v1573, 0.0
        %v1580 = vsel %vm1576, %v1574, 0.0
        %v1581 = vadd.f32 %v1567, %v1577
        %v1582 = vadd.f32 %v1568, %v1578
        %v1583 = vadd.f32 %v1569, %v1579
        %v1584 = vadd.f32 %v1570, %v1580
        %v1585 = vld [vmem:[#allocation8] sm:$0x3]
        %v1587 = vlaneseq
        %v1588 = vshrl.u32 %v1587, 7
        %v1589 = vsub.s32 0, %v1588
        %v1590 = vrot.slane %v1585, %v1589
        %v1591 = vlaneseq
        %v1592 = vshrl.u32 %v1591, 7
        %v1593 = vsub.s32 1, %v1592
        %v1594 = vrot.slane %v1585, %v1593
        %v1597 = vadd.f32 %v1581, %v1590
        %v1598 = vadd.f32 %v1582, %v1594
        %v1599 = vmax.f32 %v1597, 0.0
        %v1600 = vmax.f32 %v1598, 0.0
        %v1601 = vpack.c.bf16 %v1599, %v1599
        %v1602 = vpack.c.bf16 %v1600, %v1600
        %v1603 = vld [vmem:[#allocation10] sm:$0x3]
        %v1605 = vlaneseq
        %v1606 = vshrl.u32 %v1605, 7
        %v1607 = vsub.s32 0, %v1606
        %v1608 = vrot.slane %v1603, %v1607
        %v1609 = vlaneseq
        %v1610 = vshrl.u32 %v1609, 7
        %v1611 = vsub.s32 1, %v1610
        %v1612 = vrot.slane %v1603, %v1611
        %v1615 = vadd.f32 %v1583, %v1608
        %v1616 = vadd.f32 %v1584, %v1612
        %v1617 = vmax.f32 %v1615, 0.0
        %v1618 = vmax.f32 %v1616, 0.0
        %v1619 = vpack.c.bf16 %v1617, %v1617
        %v1620 = vpack.c.bf16 %v1618, %v1618
        %v1621 = vld [vmem:[#allocation11] sm:$0xff]
        %v1622 = vld [vmem:[#allocation11 + $0x8] sm:$0xff]
        %v1623 = vld [vmem:[#allocation11 + $0x10] sm:$0xff]
        %v1624 = vld [vmem:[#allocation11 + $0x18] sm:$0xff]
        %v1625 = vld [vmem:[#allocation11 + $0x20] sm:$0xff]
        %v1626 = vld [vmem:[#allocation11 + $0x28] sm:$0xff]
        %v1627 = vld [vmem:[#allocation11 + $0x30] sm:$0xff]
        %v1628 = vld [vmem:[#allocation11 + $0x38] sm:$0xff]
        %v1629 = vld [vmem:[#allocation11 + $0x40] sm:$0xff]
        %v1630 = vld [vmem:[#allocation11 + $0x48] sm:$0xff]
        %v1631 = vld [vmem:[#allocation11 + $0x50] sm:$0xff]
        %v1632 = vld [vmem:[#allocation11 + $0x58] sm:$0xff]
        %v1633 = vld [vmem:[#allocation11 + $0x60] sm:$0xff]
        %v1634 = vld [vmem:[#allocation11 + $0x68] sm:$0xff]
        %v1635 = vld [vmem:[#allocation11 + $0x70] sm:$0xff]
        %v1636 = vld [vmem:[#allocation11 + $0x78] sm:$0xff]
        %v1637 = vld [vmem:[#allocation11 + $0x80] sm:$0xff]
        %v1638 = vld [vmem:[#allocation11 + $0x88] sm:$0xff]
        %v1639 = vld [vmem:[#allocation11 + $0x90] sm:$0xff]
        %v1640 = vld [vmem:[#allocation11 + $0x98] sm:$0xff]
        %v1641 = vld [vmem:[#allocation11 + $0xa0] sm:$0xff]
        %v1642 = vld [vmem:[#allocation11 + $0xa8] sm:$0xff]
        %v1643 = vld [vmem:[#allocation11 + $0xb0] sm:$0xff]
        %v1644 = vld [vmem:[#allocation11 + $0xb8] sm:$0xff]
        %v1645 = vld [vmem:[#allocation11 + $0xc0] sm:$0xff]
        %v1646 = vld [vmem:[#allocation11 + $0xc8] sm:$0xff]
        %v1647 = vld [vmem:[#allocation11 + $0xd0] sm:$0xff]
        %v1648 = vld [vmem:[#allocation11 + $0xd8] sm:$0xff]
        %v1649 = vld [vmem:[#allocation11 + $0xe0] sm:$0xff]
        %v1650 = vld [vmem:[#allocation11 + $0xe8] sm:$0xff]
        %v1651 = vld [vmem:[#allocation11 + $0xf0] sm:$0xff]
        %v1652 = vld [vmem:[#allocation11 + $0xf8] sm:$0xff]
        %v1653 = vld [vmem:[#allocation11 + $0x100] sm:$0xff]
        %v1654 = vld [vmem:[#allocation11 + $0x108] sm:$0xff]
        %v1655 = vld [vmem:[#allocation11 + $0x110] sm:$0xff]
        %v1656 = vld [vmem:[#allocation11 + $0x118] sm:$0xff]
        %v1657 = vld [vmem:[#allocation11 + $0x120] sm:$0xff]
        %v1658 = vld [vmem:[#allocation11 + $0x128] sm:$0xff]
        %v1659 = vld [vmem:[#allocation11 + $0x130] sm:$0xff]
        %v1660 = vld [vmem:[#allocation11 + $0x138] sm:$0xff]
        %v1661 = vld [vmem:[#allocation11 + $0x140] sm:$0xff]
        %v1662 = vld [vmem:[#allocation11 + $0x148] sm:$0xff]
        %v1663 = vld [vmem:[#allocation11 + $0x150] sm:$0xff]
        %v1664 = vld [vmem:[#allocation11 + $0x158] sm:$0xff]
        %v1665 = vld [vmem:[#allocation11 + $0x160] sm:$0xff]
        %v1666 = vld [vmem:[#allocation11 + $0x168] sm:$0xff]
        %v1667 = vld [vmem:[#allocation11 + $0x170] sm:$0xff]
        %v1668 = vld [vmem:[#allocation11 + $0x178] sm:$0xff]
        %v1669 = vld [vmem:[#allocation11 + $0x180] sm:$0xff]
        %v1670 = vld [vmem:[#allocation11 + $0x188] sm:$0xff]
        %v1671 = vld [vmem:[#allocation11 + $0x190] sm:$0xff]
        %v1672 = vld [vmem:[#allocation11 + $0x198] sm:$0xff]
        %v1673 = vld [vmem:[#allocation11 + $0x1a0] sm:$0xff]
        %v1674 = vld [vmem:[#allocation11 + $0x1a8] sm:$0xff]
        %v1675 = vld [vmem:[#allocation11 + $0x1b0] sm:$0xff]
        %v1676 = vld [vmem:[#allocation11 + $0x1b8] sm:$0xff]
        %v1677 = vld [vmem:[#allocation11 + $0x1c0] sm:$0xff]
        %v1678 = vld [vmem:[#allocation11 + $0x1c8] sm:$0xff]
        %v1679 = vld [vmem:[#allocation11 + $0x1d0] sm:$0xff]
        %v1680 = vld [vmem:[#allocation11 + $0x1d8] sm:$0xff]
        %v1681 = vld [vmem:[#allocation11 + $0x1e0] sm:$0xff]
        %v1682 = vld [vmem:[#allocation11 + $0x1e8] sm:$0xff]
        %v1683 = vld [vmem:[#allocation11 + $0x1f0] sm:$0xff]
        %v1684 = vld [vmem:[#allocation11 + $0x1f8] sm:$0xff]
        %v1685 = vld [vmem:[#allocation11 + $0x200] sm:$0xff]
        %v1686 = vld [vmem:[#allocation11 + $0x208] sm:$0xff]
        %v1687 = vld [vmem:[#allocation11 + $0x210] sm:$0xff]
        %v1688 = vld [vmem:[#allocation11 + $0x218] sm:$0xff]
        %v1689 = vld [vmem:[#allocation11 + $0x220] sm:$0xff]
        %v1690 = vld [vmem:[#allocation11 + $0x228] sm:$0xff]
        %v1691 = vld [vmem:[#allocation11 + $0x230] sm:$0xff]
        %v1692 = vld [vmem:[#allocation11 + $0x238] sm:$0xff]
        %v1693 = vld [vmem:[#allocation11 + $0x240] sm:$0xff]
        %v1694 = vld [vmem:[#allocation11 + $0x248] sm:$0xff]
        %v1695 = vld [vmem:[#allocation11 + $0x250] sm:$0xff]
        %v1696 = vld [vmem:[#allocation11 + $0x258] sm:$0xff]
        %v1697 = vld [vmem:[#allocation11 + $0x260] sm:$0xff]
        %v1698 = vld [vmem:[#allocation11 + $0x268] sm:$0xff]
        %v1699 = vld [vmem:[#allocation11 + $0x270] sm:$0xff]
        %v1700 = vld [vmem:[#allocation11 + $0x278] sm:$0xff]
        %v1701 = vld [vmem:[#allocation11 + $0x280] sm:$0xff]
        %v1702 = vld [vmem:[#allocation11 + $0x288] sm:$0xff]
        %v1703 = vld [vmem:[#allocation11 + $0x290] sm:$0xff]
        %v1704 = vld [vmem:[#allocation11 + $0x298] sm:$0xff]
        %v1705 = vld [vmem:[#allocation11 + $0x2a0] sm:$0xff]
        %v1706 = vld [vmem:[#allocation11 + $0x2a8] sm:$0xff]
        %v1707 = vld [vmem:[#allocation11 + $0x2b0] sm:$0xff]
        %v1708 = vld [vmem:[#allocation11 + $0x2b8] sm:$0xff]
        %v1709 = vld [vmem:[#allocation11 + $0x2c0] sm:$0xff]
        %v1710 = vld [vmem:[#allocation11 + $0x2c8] sm:$0xff]
        %v1711 = vld [vmem:[#allocation11 + $0x2d0] sm:$0xff]
        %v1712 = vld [vmem:[#allocation11 + $0x2d8] sm:$0xff]
        %v1713 = vld [vmem:[#allocation11 + $0x2e0] sm:$0xff]
        %v1714 = vld [vmem:[#allocation11 + $0x2e8] sm:$0xff]
        %v1715 = vld [vmem:[#allocation11 + $0x2f0] sm:$0xff]
        %v1716 = vld [vmem:[#allocation11 + $0x2f8] sm:$0xff]
        %v1717 = vld [vmem:[#allocation11 + $0x300] sm:$0xff]
        %v1718 = vld [vmem:[#allocation11 + $0x308] sm:$0xff]
        %v1719 = vld [vmem:[#allocation11 + $0x310] sm:$0xff]
        %v1720 = vld [vmem:[#allocation11 + $0x318] sm:$0xff]
        %v1721 = vld [vmem:[#allocation11 + $0x320] sm:$0xff]
        %v1722 = vld [vmem:[#allocation11 + $0x328] sm:$0xff]
        %v1723 = vld [vmem:[#allocation11 + $0x330] sm:$0xff]
        %v1724 = vld [vmem:[#allocation11 + $0x338] sm:$0xff]
        %v1725 = vld [vmem:[#allocation11 + $0x340] sm:$0xff]
        %v1726 = vld [vmem:[#allocation11 + $0x348] sm:$0xff]
        %v1727 = vld [vmem:[#allocation11 + $0x350] sm:$0xff]
        %v1728 = vld [vmem:[#allocation11 + $0x358] sm:$0xff]
        %v1729 = vld [vmem:[#allocation11 + $0x360] sm:$0xff]
        %v1730 = vld [vmem:[#allocation11 + $0x368] sm:$0xff]
        %v1731 = vld [vmem:[#allocation11 + $0x370] sm:$0xff]
        %v1732 = vld [vmem:[#allocation11 + $0x378] sm:$0xff]
        %v1733 = vld [vmem:[#allocation11 + $0x380] sm:$0xff]
        %v1734 = vld [vmem:[#allocation11 + $0x388] sm:$0xff]
        %v1735 = vld [vmem:[#allocation11 + $0x390] sm:$0xff]
        %v1736 = vld [vmem:[#allocation11 + $0x398] sm:$0xff]
        %v1737 = vld [vmem:[#allocation11 + $0x3a0] sm:$0xff]
        %v1738 = vld [vmem:[#allocation11 + $0x3a8] sm:$0xff]
        %v1739 = vld [vmem:[#allocation11 + $0x3b0] sm:$0xff]
        %v1740 = vld [vmem:[#allocation11 + $0x3b8] sm:$0xff]
        %v1741 = vld [vmem:[#allocation11 + $0x3c0] sm:$0xff]
        %v1742 = vld [vmem:[#allocation11 + $0x3c8] sm:$0xff]
        %v1743 = vld [vmem:[#allocation11 + $0x3d0] sm:$0xff]
        %v1744 = vld [vmem:[#allocation11 + $0x3d8] sm:$0xff]
        %v1745 = vld [vmem:[#allocation11 + $0x3e0] sm:$0xff]
        %v1746 = vld [vmem:[#allocation11 + $0x3e8] sm:$0xff]
        %v1747 = vld [vmem:[#allocation11 + $0x3f0] sm:$0xff]
        %v1748 = vld [vmem:[#allocation11 + $0x3f8] sm:$0xff]
        %v1749 = vld [vmem:[#allocation11 + $0x400] sm:$0xff]
        %v1750 = vld [vmem:[#allocation11 + $0x408] sm:$0xff]
        %v1751 = vld [vmem:[#allocation11 + $0x410] sm:$0xff]
        %v1752 = vld [vmem:[#allocation11 + $0x418] sm:$0xff]
        %v1753 = vld [vmem:[#allocation11 + $0x420] sm:$0xff]
        %v1754 = vld [vmem:[#allocation11 + $0x428] sm:$0xff]
        %v1755 = vld [vmem:[#allocation11 + $0x430] sm:$0xff]
        %v1756 = vld [vmem:[#allocation11 + $0x438] sm:$0xff]
        %v1757 = vld [vmem:[#allocation11 + $0x440] sm:$0xff]
        %v1758 = vld [vmem:[#allocation11 + $0x448] sm:$0xff]
        %v1759 = vld [vmem:[#allocation11 + $0x450] sm:$0xff]
        %v1760 = vld [vmem:[#allocation11 + $0x458] sm:$0xff]
        %v1761 = vld [vmem:[#allocation11 + $0x460] sm:$0xff]
        %v1762 = vld [vmem:[#allocation11 + $0x468] sm:$0xff]
        %v1763 = vld [vmem:[#allocation11 + $0x470] sm:$0xff]
        %v1764 = vld [vmem:[#allocation11 + $0x478] sm:$0xff]
        %v1765 = vld [vmem:[#allocation11 + $0x480] sm:$0xff]
        %v1766 = vld [vmem:[#allocation11 + $0x488] sm:$0xff]
        %v1767 = vld [vmem:[#allocation11 + $0x490] sm:$0xff]
        %v1768 = vld [vmem:[#allocation11 + $0x498] sm:$0xff]
        %v1769 = vld [vmem:[#allocation11 + $0x4a0] sm:$0xff]
        %v1770 = vld [vmem:[#allocation11 + $0x4a8] sm:$0xff]
        %v1771 = vld [vmem:[#allocation11 + $0x4b0] sm:$0xff]
        %v1772 = vld [vmem:[#allocation11 + $0x4b8] sm:$0xff]
        %v1773 = vld [vmem:[#allocation11 + $0x4c0] sm:$0xff]
        %v1774 = vld [vmem:[#allocation11 + $0x4c8] sm:$0xff]
        %v1775 = vld [vmem:[#allocation11 + $0x4d0] sm:$0xff]
        %v1776 = vld [vmem:[#allocation11 + $0x4d8] sm:$0xff]
        %v1777 = vld [vmem:[#allocation11 + $0x4e0] sm:$0xff]
        %v1778 = vld [vmem:[#allocation11 + $0x4e8] sm:$0xff]
        %v1779 = vld [vmem:[#allocation11 + $0x4f0] sm:$0xff]
        %v1780 = vld [vmem:[#allocation11 + $0x4f8] sm:$0xff]
        %v1781 = vld [vmem:[#allocation11 + $0x500] sm:$0xff]
        %v1782 = vld [vmem:[#allocation11 + $0x508] sm:$0xff]
        %v1783 = vld [vmem:[#allocation11 + $0x510] sm:$0xff]
        %v1784 = vld [vmem:[#allocation11 + $0x518] sm:$0xff]
        %v1785 = vld [vmem:[#allocation11 + $0x520] sm:$0xff]
        %v1786 = vld [vmem:[#allocation11 + $0x528] sm:$0xff]
        %v1787 = vld [vmem:[#allocation11 + $0x530] sm:$0xff]
        %v1788 = vld [vmem:[#allocation11 + $0x538] sm:$0xff]
        %v1789 = vld [vmem:[#allocation11 + $0x540] sm:$0xff]
        %v1790 = vld [vmem:[#allocation11 + $0x548] sm:$0xff]
        %v1791 = vld [vmem:[#allocation11 + $0x550] sm:$0xff]
        %v1792 = vld [vmem:[#allocation11 + $0x558] sm:$0xff]
        %v1793 = vld [vmem:[#allocation11 + $0x560] sm:$0xff]
        %v1794 = vld [vmem:[#allocation11 + $0x568] sm:$0xff]
        %v1795 = vld [vmem:[#allocation11 + $0x570] sm:$0xff]
        %v1971 = vunpack.c.l.b16 %v1621
        %v1972 = vunpack.c.h.b16 %v1621
        %v1973 = vunpack.c.l.b16 %v1622
        %v1974 = vunpack.c.h.b16 %v1622
        %v1975 = vunpack.c.l.b16 %v1623
        %v1976 = vunpack.c.h.b16 %v1623
        %v1977 = vunpack.c.l.b16 %v1624
        %v1978 = vunpack.c.h.b16 %v1624
        %v1979 = vunpack.c.l.b16 %v1625
        %v1980 = vunpack.c.h.b16 %v1625
        %v1981 = vunpack.c.l.b16 %v1626
        %v1982 = vunpack.c.h.b16 %v1626
        %v1983 = vunpack.c.l.b16 %v1627
        %v1984 = vunpack.c.h.b16 %v1627
        %v1985 = vunpack.c.l.b16 %v1628
        %v1986 = vunpack.c.h.b16 %v1628
        %v1987 = vunpack.c.l.b16 %v1629
        %v1988 = vunpack.c.h.b16 %v1629
        %v1989 = vunpack.c.l.b16 %v1630
        %v1990 = vunpack.c.h.b16 %v1630
        %v1991 = vunpack.c.l.b16 %v1631
        %v1992 = vunpack.c.h.b16 %v1631
        %v1993 = vunpack.c.l.b16 %v1632
        %v1994 = vunpack.c.h.b16 %v1632
        %v1995 = vunpack.c.l.b16 %v1633
        %v1996 = vunpack.c.h.b16 %v1633
        %v1997 = vunpack.c.l.b16 %v1634
        %v1998 = vunpack.c.h.b16 %v1634
        %v1999 = vunpack.c.l.b16 %v1635
        %v2000 = vunpack.c.h.b16 %v1635
        %v2001 = vunpack.c.l.b16 %v1636
        %v2002 = vunpack.c.h.b16 %v1636
        %v2003 = vunpack.c.l.b16 %v1637
        %v2004 = vunpack.c.h.b16 %v1637
        %v2005 = vunpack.c.l.b16 %v1638
        %v2006 = vunpack.c.h.b16 %v1638
        %v2007 = vunpack.c.l.b16 %v1639
        %v2008 = vunpack.c.h.b16 %v1639
        %v2009 = vunpack.c.l.b16 %v1640
        %v2010 = vunpack.c.h.b16 %v1640
        %v2011 = vunpack.c.l.b16 %v1641
        %v2012 = vunpack.c.h.b16 %v1641
        %v2013 = vunpack.c.l.b16 %v1642
        %v2014 = vunpack.c.h.b16 %v1642
        %v2015 = vunpack.c.l.b16 %v1643
        %v2016 = vunpack.c.h.b16 %v1643
        %v2017 = vunpack.c.l.b16 %v1644
        %v2018 = vunpack.c.h.b16 %v1644
        %v2019 = vunpack.c.l.b16 %v1645
        %v2020 = vunpack.c.h.b16 %v1645
        %v2021 = vunpack.c.l.b16 %v1646
        %v2022 = vunpack.c.h.b16 %v1646
        %v2023 = vunpack.c.l.b16 %v1647
        %v2024 = vunpack.c.h.b16 %v1647
        %v2025 = vunpack.c.l.b16 %v1648
        %v2026 = vunpack.c.h.b16 %v1648
        %v2027 = vunpack.c.l.b16 %v1649
        %v2028 = vunpack.c.h.b16 %v1649
        %v2029 = vunpack.c.l.b16 %v1650
        %v2030 = vunpack.c.h.b16 %v1650
        %v2031 = vunpack.c.l.b16 %v1651
        %v2032 = vunpack.c.h.b16 %v1651
        %v2033 = vunpack.c.l.b16 %v1652
        %v2034 = vunpack.c.h.b16 %v1652
        %v2035 = vunpack.c.l.b16 %v1653
        %v2036 = vunpack.c.h.b16 %v1653
        %v2037 = vunpack.c.l.b16 %v1654
        %v2038 = vunpack.c.h.b16 %v1654
        %v2039 = vunpack.c.l.b16 %v1655
        %v2040 = vunpack.c.h.b16 %v1655
        %v2041 = vunpack.c.l.b16 %v1656
        %v2042 = vunpack.c.h.b16 %v1656
        %v2043 = vunpack.c.l.b16 %v1657
        %v2044 = vunpack.c.h.b16 %v1657
        %v2045 = vunpack.c.l.b16 %v1658
        %v2046 = vunpack.c.h.b16 %v1658
        %v2047 = vunpack.c.l.b16 %v1659
        %v2048 = vunpack.c.h.b16 %v1659
        %v2049 = vunpack.c.l.b16 %v1660
        %v2050 = vunpack.c.h.b16 %v1660
        %v2051 = vunpack.c.l.b16 %v1661
        %v2052 = vunpack.c.h.b16 %v1661
        %v2053 = vunpack.c.l.b16 %v1662
        %v2054 = vunpack.c.h.b16 %v1662
        %v2055 = vunpack.c.l.b16 %v1663
        %v2056 = vunpack.c.h.b16 %v1663
        %v2057 = vunpack.c.l.b16 %v1664
        %v2058 = vunpack.c.h.b16 %v1664
        %v2059 = vunpack.c.l.b16 %v1665
        %v2060 = vunpack.c.h.b16 %v1665
        %v2061 = vunpack.c.l.b16 %v1666
        %v2062 = vunpack.c.h.b16 %v1666
        %v2063 = vunpack.c.l.b16 %v1667
        %v2064 = vunpack.c.h.b16 %v1667
        %v2065 = vunpack.c.l.b16 %v1668
        %v2066 = vunpack.c.h.b16 %v1668
        %v2067 = vunpack.c.l.b16 %v1669
        %v2068 = vunpack.c.h.b16 %v1669
        %v2069 = vunpack.c.l.b16 %v1670
        %v2070 = vunpack.c.h.b16 %v1670
        %v2071 = vunpack.c.l.b16 %v1671
        %v2072 = vunpack.c.h.b16 %v1671
        %v2073 = vunpack.c.l.b16 %v1672
        %v2074 = vunpack.c.h.b16 %v1672
        %v2075 = vunpack.c.l.b16 %v1673
        %v2076 = vunpack.c.h.b16 %v1673
        %v2077 = vunpack.c.l.b16 %v1674
        %v2078 = vunpack.c.h.b16 %v1674
        %v2079 = vunpack.c.l.b16 %v1675
        %v2080 = vunpack.c.h.b16 %v1675
        %v2081 = vunpack.c.l.b16 %v1676
        %v2082 = vunpack.c.h.b16 %v1676
        %v2083 = vunpack.c.l.b16 %v1677
        %v2084 = vunpack.c.h.b16 %v1677
        %v2085 = vunpack.c.l.b16 %v1678
        %v2086 = vunpack.c.h.b16 %v1678
        %v2087 = vunpack.c.l.b16 %v1679
        %v2088 = vunpack.c.h.b16 %v1679
        %v2089 = vunpack.c.l.b16 %v1680
        %v2090 = vunpack.c.h.b16 %v1680
        %v2091 = vunpack.c.l.b16 %v1681
        %v2092 = vunpack.c.h.b16 %v1681
        %v2093 = vunpack.c.l.b16 %v1682
        %v2094 = vunpack.c.h.b16 %v1682
        %v2095 = vunpack.c.l.b16 %v1683
        %v2096 = vunpack.c.h.b16 %v1683
        %v2097 = vunpack.c.l.b16 %v1684
        %v2098 = vunpack.c.h.b16 %v1684
        %v2099 = vunpack.c.l.b16 %v1685
        %v2100 = vunpack.c.h.b16 %v1685
        %v2101 = vunpack.c.l.b16 %v1686
        %v2102 = vunpack.c.h.b16 %v1686
        %v2103 = vunpack.c.l.b16 %v1687
        %v2104 = vunpack.c.h.b16 %v1687
        %v2105 = vunpack.c.l.b16 %v1688
        %v2106 = vunpack.c.h.b16 %v1688
        %v2107 = vunpack.c.l.b16 %v1689
        %v2108 = vunpack.c.h.b16 %v1689
        %v2109 = vunpack.c.l.b16 %v1690
        %v2110 = vunpack.c.h.b16 %v1690
        %v2111 = vunpack.c.l.b16 %v1691
        %v2112 = vunpack.c.h.b16 %v1691
        %v2113 = vunpack.c.l.b16 %v1692
        %v2114 = vunpack.c.h.b16 %v1692
        %v2115 = vunpack.c.l.b16 %v1693
        %v2116 = vunpack.c.h.b16 %v1693
        %v2117 = vunpack.c.l.b16 %v1694
        %v2118 = vunpack.c.h.b16 %v1694
        %v2119 = vunpack.c.l.b16 %v1695
        %v2120 = vunpack.c.h.b16 %v1695
        %v2121 = vunpack.c.l.b16 %v1696
        %v2122 = vunpack.c.h.b16 %v1696
        %v2123 = vunpack.c.l.b16 %v1697
        %v2124 = vunpack.c.h.b16 %v1697
        %v2125 = vunpack.c.l.b16 %v1698
        %v2126 = vunpack.c.h.b16 %v1698
        %v2127 = vunpack.c.l.b16 %v1699
        %v2128 = vunpack.c.h.b16 %v1699
        %v2129 = vunpack.c.l.b16 %v1700
        %v2130 = vunpack.c.h.b16 %v1700
        %v2131 = vunpack.c.l.b16 %v1701
        %v2132 = vunpack.c.h.b16 %v1701
        %v2133 = vunpack.c.l.b16 %v1702
        %v2134 = vunpack.c.h.b16 %v1702
        %v2135 = vunpack.c.l.b16 %v1703
        %v2136 = vunpack.c.h.b16 %v1703
        %v2137 = vunpack.c.l.b16 %v1704
        %v2138 = vunpack.c.h.b16 %v1704
        %v2139 = vunpack.c.l.b16 %v1705
        %v2140 = vunpack.c.h.b16 %v1705
        %v2141 = vunpack.c.l.b16 %v1706
        %v2142 = vunpack.c.h.b16 %v1706
        %v2143 = vunpack.c.l.b16 %v1707
        %v2144 = vunpack.c.h.b16 %v1707
        %v2145 = vunpack.c.l.b16 %v1708
        %v2146 = vunpack.c.h.b16 %v1708
        %v2147 = vunpack.c.l.b16 %v1709
        %v2148 = vunpack.c.h.b16 %v1709
        %v2149 = vunpack.c.l.b16 %v1710
        %v2150 = vunpack.c.h.b16 %v1710
        %v2151 = vunpack.c.l.b16 %v1711
        %v2152 = vunpack.c.h.b16 %v1711
        %v2153 = vunpack.c.l.b16 %v1712
        %v2154 = vunpack.c.h.b16 %v1712
        %v2155 = vunpack.c.l.b16 %v1713
        %v2156 = vunpack.c.h.b16 %v1713
        %v2157 = vunpack.c.l.b16 %v1714
        %v2158 = vunpack.c.h.b16 %v1714
        %v2159 = vunpack.c.l.b16 %v1715
        %v2160 = vunpack.c.h.b16 %v1715
        %v2161 = vunpack.c.l.b16 %v1716
        %v2162 = vunpack.c.h.b16 %v1716
        %v2163 = vunpack.c.l.b16 %v1717
        %v2164 = vunpack.c.h.b16 %v1717
        %v2165 = vunpack.c.l.b16 %v1718
        %v2166 = vunpack.c.h.b16 %v1718
        %v2167 = vunpack.c.l.b16 %v1719
        %v2168 = vunpack.c.h.b16 %v1719
        %v2169 = vunpack.c.l.b16 %v1720
        %v2170 = vunpack.c.h.b16 %v1720
        %v2171 = vunpack.c.l.b16 %v1721
        %v2172 = vunpack.c.h.b16 %v1721
        %v2173 = vunpack.c.l.b16 %v1722
        %v2174 = vunpack.c.h.b16 %v1722
        %v2175 = vunpack.c.l.b16 %v1723
        %v2176 = vunpack.c.h.b16 %v1723
        %v2177 = vunpack.c.l.b16 %v1724
        %v2178 = vunpack.c.h.b16 %v1724
        %v2179 = vunpack.c.l.b16 %v1725
        %v2180 = vunpack.c.h.b16 %v1725
        %v2181 = vunpack.c.l.b16 %v1726
        %v2182 = vunpack.c.h.b16 %v1726
        %v2183 = vunpack.c.l.b16 %v1727
        %v2184 = vunpack.c.h.b16 %v1727
        %v2185 = vunpack.c.l.b16 %v1728
        %v2186 = vunpack.c.h.b16 %v1728
        %v2187 = vunpack.c.l.b16 %v1729
        %v2188 = vunpack.c.h.b16 %v1729
        %v2189 = vunpack.c.l.b16 %v1730
        %v2190 = vunpack.c.h.b16 %v1730
        %v2191 = vunpack.c.l.b16 %v1731
        %v2192 = vunpack.c.h.b16 %v1731
        %v2193 = vunpack.c.l.b16 %v1732
        %v2194 = vunpack.c.h.b16 %v1732
        %v2195 = vunpack.c.l.b16 %v1733
        %v2196 = vunpack.c.h.b16 %v1733
        %v2197 = vunpack.c.l.b16 %v1734
        %v2198 = vunpack.c.h.b16 %v1734
        %v2199 = vunpack.c.l.b16 %v1735
        %v2200 = vunpack.c.h.b16 %v1735
        %v2201 = vunpack.c.l.b16 %v1736
        %v2202 = vunpack.c.h.b16 %v1736
        %v2203 = vunpack.c.l.b16 %v1737
        %v2204 = vunpack.c.h.b16 %v1737
        %v2205 = vunpack.c.l.b16 %v1738
        %v2206 = vunpack.c.h.b16 %v1738
        %v2207 = vunpack.c.l.b16 %v1739
        %v2208 = vunpack.c.h.b16 %v1739
        %v2209 = vunpack.c.l.b16 %v1740
        %v2210 = vunpack.c.h.b16 %v1740
        %v2211 = vunpack.c.l.b16 %v1741
        %v2212 = vunpack.c.h.b16 %v1741
        %v2213 = vunpack.c.l.b16 %v1742
        %v2214 = vunpack.c.h.b16 %v1742
        %v2215 = vunpack.c.l.b16 %v1743
        %v2216 = vunpack.c.h.b16 %v1743
        %v2217 = vunpack.c.l.b16 %v1744
        %v2218 = vunpack.c.h.b16 %v1744
        %v2219 = vunpack.c.l.b16 %v1745
        %v2220 = vunpack.c.h.b16 %v1745
        %v2221 = vunpack.c.l.b16 %v1746
        %v2222 = vunpack.c.h.b16 %v1746
        %v2223 = vunpack.c.l.b16 %v1747
        %v2224 = vunpack.c.h.b16 %v1747
        %v2225 = vunpack.c.l.b16 %v1748
        %v2226 = vunpack.c.h.b16 %v1748
        %v2227 = vunpack.c.l.b16 %v1749
        %v2228 = vunpack.c.h.b16 %v1749
        %v2229 = vunpack.c.l.b16 %v1750
        %v2230 = vunpack.c.h.b16 %v1750
        %v2231 = vunpack.c.l.b16 %v1751
        %v2232 = vunpack.c.h.b16 %v1751
        %v2233 = vunpack.c.l.b16 %v1752
        %v2234 = vunpack.c.h.b16 %v1752
        %v2235 = vunpack.c.l.b16 %v1753
        %v2236 = vunpack.c.h.b16 %v1753
        %v2237 = vunpack.c.l.b16 %v1754
        %v2238 = vunpack.c.h.b16 %v1754
        %v2239 = vunpack.c.l.b16 %v1755
        %v2240 = vunpack.c.h.b16 %v1755
        %v2241 = vunpack.c.l.b16 %v1756
        %v2242 = vunpack.c.h.b16 %v1756
        %v2243 = vunpack.c.l.b16 %v1757
        %v2244 = vunpack.c.h.b16 %v1757
        %v2245 = vunpack.c.l.b16 %v1758
        %v2246 = vunpack.c.h.b16 %v1758
        %v2247 = vunpack.c.l.b16 %v1759
        %v2248 = vunpack.c.h.b16 %v1759
        %v2249 = vunpack.c.l.b16 %v1760
        %v2250 = vunpack.c.h.b16 %v1760
        %v2251 = vunpack.c.l.b16 %v1761
        %v2252 = vunpack.c.h.b16 %v1761
        %v2253 = vunpack.c.l.b16 %v1762
        %v2254 = vunpack.c.h.b16 %v1762
        %v2255 = vunpack.c.l.b16 %v1763
        %v2256 = vunpack.c.h.b16 %v1763
        %v2257 = vunpack.c.l.b16 %v1764
        %v2258 = vunpack.c.h.b16 %v1764
        %v2259 = vunpack.c.l.b16 %v1765
        %v2260 = vunpack.c.h.b16 %v1765
        %v2261 = vunpack.c.l.b16 %v1766
        %v2262 = vunpack.c.h.b16 %v1766
        %v2263 = vunpack.c.l.b16 %v1767
        %v2264 = vunpack.c.h.b16 %v1767
        %v2265 = vunpack.c.l.b16 %v1768
        %v2266 = vunpack.c.h.b16 %v1768
        %v2267 = vunpack.c.l.b16 %v1769
        %v2268 = vunpack.c.h.b16 %v1769
        %v2269 = vunpack.c.l.b16 %v1770
        %v2270 = vunpack.c.h.b16 %v1770
        %v2271 = vunpack.c.l.b16 %v1771
        %v2272 = vunpack.c.h.b16 %v1771
        %v2273 = vunpack.c.l.b16 %v1772
        %v2274 = vunpack.c.h.b16 %v1772
        %v2275 = vunpack.c.l.b16 %v1773
        %v2276 = vunpack.c.h.b16 %v1773
        %v2277 = vunpack.c.l.b16 %v1774
        %v2278 = vunpack.c.h.b16 %v1774
        %v2279 = vunpack.c.l.b16 %v1775
        %v2280 = vunpack.c.h.b16 %v1775
        %v2281 = vunpack.c.l.b16 %v1776
        %v2282 = vunpack.c.h.b16 %v1776
        %v2283 = vunpack.c.l.b16 %v1777
        %v2284 = vunpack.c.h.b16 %v1777
        %v2285 = vunpack.c.l.b16 %v1778
        %v2286 = vunpack.c.h.b16 %v1778
        %v2287 = vunpack.c.l.b16 %v1779
        %v2288 = vunpack.c.h.b16 %v1779
        %v2289 = vunpack.c.l.b16 %v1780
        %v2290 = vunpack.c.h.b16 %v1780
        %v2291 = vunpack.c.l.b16 %v1781
        %v2292 = vunpack.c.h.b16 %v1781
        %v2293 = vunpack.c.l.b16 %v1782
        %v2294 = vunpack.c.h.b16 %v1782
        %v2295 = vunpack.c.l.b16 %v1783
        %v2296 = vunpack.c.h.b16 %v1783
        %v2297 = vunpack.c.l.b16 %v1784
        %v2298 = vunpack.c.h.b16 %v1784
        %v2299 = vunpack.c.l.b16 %v1785
        %v2300 = vunpack.c.h.b16 %v1785
        %v2301 = vunpack.c.l.b16 %v1786
        %v2302 = vunpack.c.h.b16 %v1786
        %v2303 = vunpack.c.l.b16 %v1787
        %v2304 = vunpack.c.h.b16 %v1787
        %v2305 = vunpack.c.l.b16 %v1788
        %v2306 = vunpack.c.h.b16 %v1788
        %v2307 = vunpack.c.l.b16 %v1789
        %v2308 = vunpack.c.h.b16 %v1789
        %v2309 = vunpack.c.l.b16 %v1790
        %v2310 = vunpack.c.h.b16 %v1790
        %v2311 = vunpack.c.l.b16 %v1791
        %v2312 = vunpack.c.h.b16 %v1791
        %v2313 = vunpack.c.l.b16 %v1792
        %v2314 = vunpack.c.h.b16 %v1792
        %v2315 = vunpack.c.l.b16 %v1793
        %v2316 = vunpack.c.h.b16 %v1793
        %v2317 = vunpack.c.l.b16 %v1794
        %v2318 = vunpack.c.h.b16 %v1794
        %v2319 = vunpack.c.l.b16 %v1795
        %v2320 = vunpack.c.h.b16 %v1795
        %v2321 = vpack.c.b16 %v1985, %v1971
        %v2322 = vpack.c.b16 %v1986, %v1972
        %v2323 = vpack.c.b16 %v1987, %v1973
        %v2324 = vpack.c.b16 %v1988, %v1974
        %v2325 = vpack.c.b16 %v1989, %v1975
        %v2326 = vpack.c.b16 %v1990, %v1976
        %v2327 = vpack.c.b16 %v1991, %v1977
        %v2328 = vpack.c.b16 %v1992, %v1978
        %v2329 = vpack.c.b16 %v1993, %v1979
        %v2330 = vpack.c.b16 %v1994, %v1980
        %v2331 = vpack.c.b16 %v1995, %v1981
        %v2332 = vpack.c.b16 %v1996, %v1982
        %v2333 = vpack.c.b16 %v1997, %v1983
        %v2334 = vpack.c.b16 %v1998, %v1984
        %v2335 = vpack.c.b16 %v2013, %v1999
        %v2336 = vpack.c.b16 %v2014, %v2000
        %v2337 = vpack.c.b16 %v2015, %v2001
        %v2338 = vpack.c.b16 %v2016, %v2002
        %v2339 = vpack.c.b16 %v2017, %v2003
        %v2340 = vpack.c.b16 %v2018, %v2004
        %v2341 = vpack.c.b16 %v2019, %v2005
        %v2342 = vpack.c.b16 %v2020, %v2006
        %v2343 = vpack.c.b16 %v2021, %v2007
        %v2344 = vpack.c.b16 %v2022, %v2008
        %v2345 = vpack.c.b16 %v2023, %v2009
        %v2346 = vpack.c.b16 %v2024, %v2010
        %v2347 = vpack.c.b16 %v2025, %v2011
        %v2348 = vpack.c.b16 %v2026, %v2012
        %v2349 = vpack.c.b16 %v2041, %v2027
        %v2350 = vpack.c.b16 %v2042, %v2028
        %v2351 = vpack.c.b16 %v2043, %v2029
        %v2352 = vpack.c.b16 %v2044, %v2030
        %v2353 = vpack.c.b16 %v2045, %v2031
        %v2354 = vpack.c.b16 %v2046, %v2032
        %v2355 = vpack.c.b16 %v2047, %v2033
        %v2356 = vpack.c.b16 %v2048, %v2034
        %v2357 = vpack.c.b16 %v2049, %v2035
        %v2358 = vpack.c.b16 %v2050, %v2036
        %v2359 = vpack.c.b16 %v2051, %v2037
        %v2360 = vpack.c.b16 %v2052, %v2038
        %v2361 = vpack.c.b16 %v2053, %v2039
        %v2362 = vpack.c.b16 %v2054, %v2040
        %v2363 = vpack.c.b16 %v2069, %v2055
        %v2364 = vpack.c.b16 %v2070, %v2056
        %v2365 = vpack.c.b16 %v2071, %v2057
        %v2366 = vpack.c.b16 %v2072, %v2058
        %v2367 = vpack.c.b16 %v2073, %v2059
        %v2368 = vpack.c.b16 %v2074, %v2060
        %v2369 = vpack.c.b16 %v2075, %v2061
        %v2370 = vpack.c.b16 %v2076, %v2062
        %v2371 = vpack.c.b16 %v2077, %v2063
        %v2372 = vpack.c.b16 %v2078, %v2064
        %v2373 = vpack.c.b16 %v2079, %v2065
        %v2374 = vpack.c.b16 %v2080, %v2066
        %v2375 = vpack.c.b16 %v2081, %v2067
        %v2376 = vpack.c.b16 %v2082, %v2068
        %v2377 = vpack.c.b16 %v2097, %v2083
        %v2378 = vpack.c.b16 %v2098, %v2084
        %v2379 = vpack.c.b16 %v2099, %v2085
        %v2380 = vpack.c.b16 %v2100, %v2086
        %v2381 = vpack.c.b16 %v2101, %v2087
        %v2382 = vpack.c.b16 %v2102, %v2088
        %v2383 = vpack.c.b16 %v2103, %v2089
        %v2384 = vpack.c.b16 %v2104, %v2090
        %v2385 = vpack.c.b16 %v2105, %v2091
        %v2386 = vpack.c.b16 %v2106, %v2092
        %v2387 = vpack.c.b16 %v2107, %v2093
        %v2388 = vpack.c.b16 %v2108, %v2094
        %v2389 = vpack.c.b16 %v2109, %v2095
        %v2390 = vpack.c.b16 %v2110, %v2096
        %v2391 = vpack.c.b16 %v2125, %v2111
        %v2392 = vpack.c.b16 %v2126, %v2112
        %v2393 = vpack.c.b16 %v2127, %v2113
        %v2394 = vpack.c.b16 %v2128, %v2114
        %v2395 = vpack.c.b16 %v2129, %v2115
        %v2396 = vpack.c.b16 %v2130, %v2116
        %v2397 = vpack.c.b16 %v2131, %v2117
        %v2398 = vpack.c.b16 %v2132, %v2118
        %v2399 = vpack.c.b16 %v2133, %v2119
        %v2400 = vpack.c.b16 %v2134, %v2120
        %v2401 = vpack.c.b16 %v2135, %v2121
        %v2402 = vpack.c.b16 %v2136, %v2122
        %v2403 = vpack.c.b16 %v2137, %v2123
        %v2404 = vpack.c.b16 %v2138, %v2124
        %v2405 = vpack.c.b16 %v2153, %v2139
        %v2406 = vpack.c.b16 %v2154, %v2140
        %v2407 = vpack.c.b16 %v2155, %v2141
        %v2408 = vpack.c.b16 %v2156, %v2142
        %v2409 = vpack.c.b16 %v2157, %v2143
        %v2410 = vpack.c.b16 %v2158, %v2144
        %v2411 = vpack.c.b16 %v2159, %v2145
        %v2412 = vpack.c.b16 %v2160, %v2146
        %v2413 = vpack.c.b16 %v2161, %v2147
        %v2414 = vpack.c.b16 %v2162, %v2148
        %v2415 = vpack.c.b16 %v2163, %v2149
        %v2416 = vpack.c.b16 %v2164, %v2150
        %v2417 = vpack.c.b16 %v2165, %v2151
        %v2418 = vpack.c.b16 %v2166, %v2152
        %v2419 = vpack.c.b16 %v2181, %v2167
        %v2420 = vpack.c.b16 %v2182, %v2168
        %v2421 = vpack.c.b16 %v2183, %v2169
        %v2422 = vpack.c.b16 %v2184, %v2170
        %v2423 = vpack.c.b16 %v2185, %v2171
        %v2424 = vpack.c.b16 %v2186, %v2172
        %v2425 = vpack.c.b16 %v2187, %v2173
        %v2426 = vpack.c.b16 %v2188, %v2174
        %v2427 = vpack.c.b16 %v2189, %v2175
        %v2428 = vpack.c.b16 %v2190, %v2176
        %v2429 = vpack.c.b16 %v2191, %v2177
        %v2430 = vpack.c.b16 %v2192, %v2178
        %v2431 = vpack.c.b16 %v2193, %v2179
        %v2432 = vpack.c.b16 %v2194, %v2180
        %v2433 = vpack.c.b16 %v2209, %v2195
        %v2434 = vpack.c.b16 %v2210, %v2196
        %v2435 = vpack.c.b16 %v2211, %v2197
        %v2436 = vpack.c.b16 %v2212, %v2198
        %v2437 = vpack.c.b16 %v2213, %v2199
        %v2438 = vpack.c.b16 %v2214, %v2200
        %v2439 = vpack.c.b16 %v2215, %v2201
        %v2440 = vpack.c.b16 %v2216, %v2202
        %v2441 = vpack.c.b16 %v2217, %v2203
        %v2442 = vpack.c.b16 %v2218, %v2204
        %v2443 = vpack.c.b16 %v2219, %v2205
        %v2444 = vpack.c.b16 %v2220, %v2206
        %v2445 = vpack.c.b16 %v2221, %v2207
        %v2446 = vpack.c.b16 %v2222, %v2208
        %v2447 = vpack.c.b16 %v2237, %v2223
        %v2448 = vpack.c.b16 %v2238, %v2224
        %v2449 = vpack.c.b16 %v2239, %v2225
        %v2450 = vpack.c.b16 %v2240, %v2226
        %v2451 = vpack.c.b16 %v2241, %v2227
        %v2452 = vpack.c.b16 %v2242, %v2228
        %v2453 = vpack.c.b16 %v2243, %v2229
        %v2454 = vpack.c.b16 %v2244, %v2230
        %v2455 = vpack.c.b16 %v2245, %v2231
        %v2456 = vpack.c.b16 %v2246, %v2232
        %v2457 = vpack.c.b16 %v2247, %v2233
        %v2458 = vpack.c.b16 %v2248, %v2234
        %v2459 = vpack.c.b16 %v2249, %v2235
        %v2460 = vpack.c.b16 %v2250, %v2236
        %v2461 = vpack.c.b16 %v2265, %v2251
        %v2462 = vpack.c.b16 %v2266, %v2252
        %v2463 = vpack.c.b16 %v2267, %v2253
        %v2464 = vpack.c.b16 %v2268, %v2254
        %v2465 = vpack.c.b16 %v2269, %v2255
        %v2466 = vpack.c.b16 %v2270, %v2256
        %v2467 = vpack.c.b16 %v2271, %v2257
        %v2468 = vpack.c.b16 %v2272, %v2258
        %v2469 = vpack.c.b16 %v2273, %v2259
        %v2470 = vpack.c.b16 %v2274, %v2260
        %v2471 = vpack.c.b16 %v2275, %v2261
        %v2472 = vpack.c.b16 %v2276, %v2262
        %v2473 = vpack.c.b16 %v2277, %v2263
        %v2474 = vpack.c.b16 %v2278, %v2264
        %v2475 = vpack.c.b16 %v2293, %v2279
        %v2476 = vpack.c.b16 %v2294, %v2280
        %v2477 = vpack.c.b16 %v2295, %v2281
        %v2478 = vpack.c.b16 %v2296, %v2282
        %v2479 = vpack.c.b16 %v2297, %v2283
        %v2480 = vpack.c.b16 %v2298, %v2284
        %v2481 = vpack.c.b16 %v2299, %v2285
        %v2482 = vpack.c.b16 %v2300, %v2286
        %v2483 = vpack.c.b16 %v2301, %v2287
        %v2484 = vpack.c.b16 %v2302, %v2288
        %v2485 = vpack.c.b16 %v2303, %v2289
        %v2486 = vpack.c.b16 %v2304, %v2290
        %v2487 = vpack.c.b16 %v2305, %v2291
        %v2488 = vpack.c.b16 %v2306, %v2292
        %v2489 = vpack.c.b16 %v2307, %v2307
        %v2490 = vpack.c.b16 %v2308, %v2308
        %v2491 = vpack.c.b16 %v2309, %v2309
        %v2492 = vpack.c.b16 %v2310, %v2310
        %v2493 = vpack.c.b16 %v2311, %v2311
        %v2494 = vpack.c.b16 %v2312, %v2312
        %v2495 = vpack.c.b16 %v2313, %v2313
        %v2496 = vpack.c.b16 %v2314, %v2314
        %v2497 = vpack.c.b16 %v2315, %v2315
        %v2498 = vpack.c.b16 %v2316, %v2316
        %v2499 = vpack.c.b16 %v2317, %v2317
        %v2500 = vpack.c.b16 %v2318, %v2318
        %v2501 = vpack.c.b16 %v2319, %v2319
        %v2502 = vpack.c.b16 %v2320, %v2320
        %vm2671 = vcmask 588800
        %v2673 = vsel %vm2671, %v1602, 0
        %vm2675 = vcmask 1043456
        %v2677 = vsel %vm2675, %v2489, 0
        %v2680 = vsel %vm2675, %v2490, 0
        %v2683 = vsel %vm2675, %v2491, 0
        %v2686 = vsel %vm2675, %v2492, 0
        %v2689 = vsel %vm2675, %v2493, 0
        %v2692 = vsel %vm2675, %v2494, 0
        %v2695 = vsel %vm2675, %v2495, 0
        %v2698 = vsel %vm2675, %v2496, 0
        %v2701 = vsel %vm2675, %v2497, 0
        %v2704 = vsel %vm2675, %v2498, 0
        %v2707 = vsel %vm2675, %v2499, 0
        %v2710 = vsel %vm2675, %v2500, 0
        %v2713 = vsel %vm2675, %v2501, 0
        %v2716 = vsel %vm2675, %v2502, 0
        %2718 = vmatprep.subr.bf16.mxu0 %v2322
        %2719 = vmatpush1.bf16.msra.mxu0 %v2321
        %2720 = vmatprep.subr.bf16.mxu0 %v2336
        %2721 = vmatpush1.bf16.msra.mxu0 %v2335
        %2722 = vmatprep.subr.bf16.mxu0 %v2350
        %2723 = vmatpush1.bf16.msra.mxu0 %v2349
        %2724 = vmatprep.subr.bf16.mxu0 %v2364
        %2725 = vmatpush1.bf16.msra.mxu0 %v2363
        %2726 = vmatprep.subr.bf16.mxu0 %v2378
        %2727 = vmatpush1.bf16.msra.mxu0 %v2377
        %2728 = vmatprep.subr.bf16.mxu0 %v2392
        %2729 = vmatpush1.bf16.msra.mxu0 %v2391
        %2730 = vmatprep.subr.bf16.mxu0 %v2406
        %2731 = vmatpush1.bf16.msra.mxu0 %v2405
        %2732 = vmatprep.subr.bf16.mxu0 %v2420
        %2733 = vmatpush1.bf16.msra.mxu0 %v2419
        %2734 = vmatprep.subr.bf16.mxu0 %v2434
        %2735 = vmatpush1.bf16.msra.mxu0 %v2433
        %2736 = vmatprep.subr.bf16.mxu0 %v2448
        %2737 = vmatpush1.bf16.msra.mxu0 %v2447
        %2738 = vmatprep.subr.bf16.mxu0 %v2462
        %2739 = vmatpush1.bf16.msra.mxu0 %v2461
        %2740 = vmatprep.subr.bf16.mxu0 %v2476
        %2741 = vmatpush1.bf16.msra.mxu0 %v2475
        %2742 = vmatprep.subr.bf16.mxu0 %v2680
        %2743 = vmatpush1.bf16.msra.mxu0 %v2677
        %2744 = vmatprep.subr.bf16.mxu0 0
        %2745 = vmatpush1.bf16.msra.mxu0 0
        %2746 = vmatprep.subr.bf16.mxu0 0
        %2747 = vmatpush1.bf16.msra.mxu0 0
        %2748 = vmatprep.subr.bf16.mxu0 0
        %2749 = vmatpush1.bf16.msra.mxu0 0
        %2750 = vmatprep.mubr.bf16.mxu0 %v2673
        %2751 = vmatmul.mubr.bf16.gmra.mrb[0].mxu0 %v1601
        %v2752 = vpop.f32.mrb[0].mxu0
        %v2753 = vadd.f32 0.0, %v2752
        %v2754 = vpop.f32.mrb[0].mxu0
        %v2755 = vadd.f32 0.0, %v2754
        %v2756 = vpop.f32.mrb[0].mxu0
        %v2757 = vpop.f32.mrb[0].mxu0
        %2758 = vdwg.mxu0
        %2759 = vmatprep.subr.bf16.mxu0 %v2324
        %2760 = vmatpush1.bf16.msra.mxu0 %v2323
        %2761 = vmatprep.subr.bf16.mxu0 %v2338
        %2762 = vmatpush1.bf16.msra.mxu0 %v2337
        %2763 = vmatprep.subr.bf16.mxu0 %v2352
        %2764 = vmatpush1.bf16.msra.mxu0 %v2351
        %2765 = vmatprep.subr.bf16.mxu0 %v2366
        %2766 = vmatpush1.bf16.msra.mxu0 %v2365
        %2767 = vmatprep.subr.bf16.mxu0 %v2380
        %2768 = vmatpush1.bf16.msra.mxu0 %v2379
        %2769 = vmatprep.subr.bf16.mxu0 %v2394
        %2770 = vmatpush1.bf16.msra.mxu0 %v2393
        %2771 = vmatprep.subr.bf16.mxu0 %v2408
        %2772 = vmatpush1.bf16.msra.mxu0 %v2407
        %2773 = vmatprep.subr.bf16.mxu0 %v2422
        %2774 = vmatpush1.bf16.msra.mxu0 %v2421
        %2775 = vmatprep.subr.bf16.mxu0 %v2436
        %2776 = vmatpush1.bf16.msra.mxu0 %v2435
        %2777 = vmatprep.subr.bf16.mxu0 %v2450
        %2778 = vmatpush1.bf16.msra.mxu0 %v2449
        %2779 = vmatprep.subr.bf16.mxu0 %v2464
        %2780 = vmatpush1.bf16.msra.mxu0 %v2463
        %2781 = vmatprep.subr.bf16.mxu0 %v2478
        %2782 = vmatpush1.bf16.msra.mxu0 %v2477
        %2783 = vmatprep.subr.bf16.mxu0 %v2686
        %2784 = vmatpush1.bf16.msra.mxu0 %v2683
        %2785 = vmatprep.subr.bf16.mxu0 0
        %2786 = vmatpush1.bf16.msra.mxu0 0
        %2787 = vmatprep.subr.bf16.mxu0 0
        %2788 = vmatpush1.bf16.msra.mxu0 0
        %2789 = vmatprep.subr.bf16.mxu0 0
        %2790 = vmatpush1.bf16.msra.mxu0 0
        %2791 = vmatprep.mubr.bf16.mxu0 %v2673
        %2792 = vmatmul.mubr.bf16.gmra.mrb[0].mxu0 %v1601
        %v2793 = vpop.f32.mrb[0].mxu0
        %v2794 = vadd.f32 0.0, %v2793
        %v2795 = vpop.f32.mrb[0].mxu0
        %v2796 = vadd.f32 0.0, %v2795
        %v2797 = vpop.f32.mrb[0].mxu0
        %v2798 = vpop.f32.mrb[0].mxu0
        %2799 = vdwg.mxu0
        %2800 = vmatprep.subr.bf16.mxu0 %v2326
        %2801 = vmatpush1.bf16.msra.mxu0 %v2325
        %2802 = vmatprep.subr.bf16.mxu0 %v2340
        %2803 = vmatpush1.bf16.msra.mxu0 %v2339
        %2804 = vmatprep.subr.bf16.mxu0 %v2354
        %2805 = vmatpush1.bf16.msra.mxu0 %v2353
        %2806 = vmatprep.subr.bf16.mxu0 %v2368
        %2807 = vmatpush1.bf16.msra.mxu0 %v2367
        %2808 = vmatprep.subr.bf16.mxu0 %v2382
        %2809 = vmatpush1.bf16.msra.mxu0 %v2381
        %2810 = vmatprep.subr.bf16.mxu0 %v2396
        %2811 = vmatpush1.bf16.msra.mxu0 %v2395
        %2812 = vmatprep.subr.bf16.mxu0 %v2410
        %2813 = vmatpush1.bf16.msra.mxu0 %v2409
        %2814 = vmatprep.subr.bf16.mxu0 %v2424
        %2815 = vmatpush1.bf16.msra.mxu0 %v2423
        %2816 = vmatprep.subr.bf16.mxu0 %v2438
        %2817 = vmatpush1.bf16.msra.mxu0 %v2437
        %2818 = vmatprep.subr.bf16.mxu0 %v2452
        %2819 = vmatpush1.bf16.msra.mxu0 %v2451
        %2820 = vmatprep.subr.bf16.mxu0 %v2466
        %2821 = vmatpush1.bf16.msra.mxu0 %v2465
        %2822 = vmatprep.subr.bf16.mxu0 %v2480
        %2823 = vmatpush1.bf16.msra.mxu0 %v2479
        %2824 = vmatprep.subr.bf16.mxu0 %v2692
        %2825 = vmatpush1.bf16.msra.mxu0 %v2689
        %2826 = vmatprep.subr.bf16.mxu0 0
        %2827 = vmatpush1.bf16.msra.mxu0 0
        %2828 = vmatprep.subr.bf16.mxu0 0
        %2829 = vmatpush1.bf16.msra.mxu0 0
        %2830 = vmatprep.subr.bf16.mxu0 0
        %2831 = vmatpush1.bf16.msra.mxu0 0
        %2832 = vmatprep.mubr.bf16.mxu0 %v2673
        %2833 = vmatmul.mubr.bf16.gmra.mrb[0].mxu0 %v1601
        %v2834 = vpop.f32.mrb[0].mxu0
        %v2835 = vadd.f32 0.0, %v2834
        %v2836 = vpop.f32.mrb[0].mxu0
        %v2837 = vadd.f32 0.0, %v2836
        %v2838 = vpop.f32.mrb[0].mxu0
        %v2839 = vpop.f32.mrb[0].mxu0
        %2840 = vdwg.mxu0
        %2841 = vmatprep.subr.bf16.mxu0 %v2328
        %2842 = vmatpush1.bf16.msra.mxu0 %v2327
        %2843 = vmatprep.subr.bf16.mxu0 %v2342
        %2844 = vmatpush1.bf16.msra.mxu0 %v2341
        %2845 = vmatprep.subr.bf16.mxu0 %v2356
        %2846 = vmatpush1.bf16.msra.mxu0 %v2355
        %2847 = vmatprep.subr.bf16.mxu0 %v2370
        %2848 = vmatpush1.bf16.msra.mxu0 %v2369
        %2849 = vmatprep.subr.bf16.mxu0 %v2384
        %2850 = vmatpush1.bf16.msra.mxu0 %v2383
        %2851 = vmatprep.subr.bf16.mxu0 %v2398
        %2852 = vmatpush1.bf16.msra.mxu0 %v2397
        %2853 = vmatprep.subr.bf16.mxu0 %v2412
        %2854 = vmatpush1.bf16.msra.mxu0 %v2411
        %2855 = vmatprep.subr.bf16.mxu0 %v2426
        %2856 = vmatpush1.bf16.msra.mxu0 %v2425
        %2857 = vmatprep.subr.bf16.mxu0 %v2440
        %2858 = vmatpush1.bf16.msra.mxu0 %v2439
        %2859 = vmatprep.subr.bf16.mxu0 %v2454
        %2860 = vmatpush1.bf16.msra.mxu0 %v2453
        %2861 = vmatprep.subr.bf16.mxu0 %v2468
        %2862 = vmatpush1.bf16.msra.mxu0 %v2467
        %2863 = vmatprep.subr.bf16.mxu0 %v2482
        %2864 = vmatpush1.bf16.msra.mxu0 %v2481
        %2865 = vmatprep.subr.bf16.mxu0 %v2698
        %2866 = vmatpush1.bf16.msra.mxu0 %v2695
        %2867 = vmatprep.subr.bf16.mxu0 0
        %2868 = vmatpush1.bf16.msra.mxu0 0
        %2869 = vmatprep.subr.bf16.mxu0 0
        %2870 = vmatpush1.bf16.msra.mxu0 0
        %2871 = vmatprep.subr.bf16.mxu0 0
        %2872 = vmatpush1.bf16.msra.mxu0 0
        %2873 = vmatprep.mubr.bf16.mxu0 %v2673
        %2874 = vmatmul.mubr.bf16.gmra.mrb[0].mxu0 %v1601
        %v2875 = vpop.f32.mrb[0].mxu0
        %v2876 = vadd.f32 0.0, %v2875
        %v2877 = vpop.f32.mrb[0].mxu0
        %v2878 = vadd.f32 0.0, %v2877
        %v2879 = vpop.f32.mrb[0].mxu0
        %v2880 = vpop.f32.mrb[0].mxu0
        %2881 = vdwg.mxu0
        %2882 = vmatprep.subr.bf16.mxu0 %v2330
        %2883 = vmatpush1.bf16.msra.mxu0 %v2329
        %2884 = vmatprep.subr.bf16.mxu0 %v2344
        %2885 = vmatpush1.bf16.msra.mxu0 %v2343
        %2886 = vmatprep.subr.bf16.mxu0 %v2358
        %2887 = vmatpush1.bf16.msra.mxu0 %v2357
        %2888 = vmatprep.subr.bf16.mxu0 %v2372
        %2889 = vmatpush1.bf16.msra.mxu0 %v2371
        %2890 = vmatprep.subr.bf16.mxu0 %v2386
        %2891 = vmatpush1.bf16.msra.mxu0 %v2385
        %2892 = vmatprep.subr.bf16.mxu0 %v2400
        %2893 = vmatpush1.bf16.msra.mxu0 %v2399
        %2894 = vmatprep.subr.bf16.mxu0 %v2414
        %2895 = vmatpush1.bf16.msra.mxu0 %v2413
        %2896 = vmatprep.subr.bf16.mxu0 %v2428
        %2897 = vmatpush1.bf16.msra.mxu0 %v2427
        %2898 = vmatprep.subr.bf16.mxu0 %v2442
        %2899 = vmatpush1.bf16.msra.mxu0 %v2441
        %2900 = vmatprep.subr.bf16.mxu0 %v2456
        %2901 = vmatpush1.bf16.msra.mxu0 %v2455
        %2902 = vmatprep.subr.bf16.mxu0 %v2470
        %2903 = vmatpush1.bf16.msra.mxu0 %v2469
        %2904 = vmatprep.subr.bf16.mxu0 %v2484
        %2905 = vmatpush1.bf16.msra.mxu0 %v2483
        %2906 = vmatprep.subr.bf16.mxu0 %v2704
        %2907 = vmatpush1.bf16.msra.mxu0 %v2701
        %2908 = vmatprep.subr.bf16.mxu0 0
        %2909 = vmatpush1.bf16.msra.mxu0 0
        %2910 = vmatprep.subr.bf16.mxu0 0
        %2911 = vmatpush1.bf16.msra.mxu0 0
        %2912 = vmatprep.subr.bf16.mxu0 0
        %2913 = vmatpush1.bf16.msra.mxu0 0
        %2914 = vmatprep.mubr.bf16.mxu0 %v2673
        %2915 = vmatmul.mubr.bf16.gmra.mrb[0].mxu0 %v1601
        %v2916 = vpop.f32.mrb[0].mxu0
        %v2917 = vadd.f32 0.0, %v2916
        %v2918 = vpop.f32.mrb[0].mxu0
        %v2919 = vadd.f32 0.0, %v2918
        %v2920 = vpop.f32.mrb[0].mxu0
        %v2921 = vpop.f32.mrb[0].mxu0
        %2922 = vdwg.mxu0
        %2923 = vmatprep.subr.bf16.mxu0 %v2332
        %2924 = vmatpush1.bf16.msra.mxu0 %v2331
        %2925 = vmatprep.subr.bf16.mxu0 %v2346
        %2926 = vmatpush1.bf16.msra.mxu0 %v2345
        %2927 = vmatprep.subr.bf16.mxu0 %v2360
        %2928 = vmatpush1.bf16.msra.mxu0 %v2359
        %2929 = vmatprep.subr.bf16.mxu0 %v2374
        %2930 = vmatpush1.bf16.msra.mxu0 %v2373
        %2931 = vmatprep.subr.bf16.mxu0 %v2388
        %2932 = vmatpush1.bf16.msra.mxu0 %v2387
        %2933 = vmatprep.subr.bf16.mxu0 %v2402
        %2934 = vmatpush1.bf16.msra.mxu0 %v2401
        %2935 = vmatprep.subr.bf16.mxu0 %v2416
        %2936 = vmatpush1.bf16.msra.mxu0 %v2415
        %2937 = vmatprep.subr.bf16.mxu0 %v2430
        %2938 = vmatpush1.bf16.msra.mxu0 %v2429
        %2939 = vmatprep.subr.bf16.mxu0 %v2444
        %2940 = vmatpush1.bf16.msra.mxu0 %v2443
        %2941 = vmatprep.subr.bf16.mxu0 %v2458
        %2942 = vmatpush1.bf16.msra.mxu0 %v2457
        %2943 = vmatprep.subr.bf16.mxu0 %v2472
        %2944 = vmatpush1.bf16.msra.mxu0 %v2471
        %2945 = vmatprep.subr.bf16.mxu0 %v2486
        %2946 = vmatpush1.bf16.msra.mxu0 %v2485
        %2947 = vmatprep.subr.bf16.mxu0 %v2710
        %2948 = vmatpush1.bf16.msra.mxu0 %v2707
        %2949 = vmatprep.subr.bf16.mxu0 0
        %2950 = vmatpush1.bf16.msra.mxu0 0
        %2951 = vmatprep.subr.bf16.mxu0 0
        %2952 = vmatpush1.bf16.msra.mxu0 0
        %2953 = vmatprep.subr.bf16.mxu0 0
        %2954 = vmatpush1.bf16.msra.mxu0 0
        %2955 = vmatprep.mubr.bf16.mxu0 %v2673
        %2956 = vmatmul.mubr.bf16.gmra.mrb[0].mxu0 %v1601
        %v2957 = vpop.f32.mrb[0].mxu0
        %v2958 = vadd.f32 0.0, %v2957
        %v2959 = vpop.f32.mrb[0].mxu0
        %v2960 = vadd.f32 0.0, %v2959
        %v2961 = vpop.f32.mrb[0].mxu0
        %v2962 = vpop.f32.mrb[0].mxu0
        %2963 = vdwg.mxu0
        %2964 = vmatprep.subr.bf16.mxu0 %v2334
        %2965 = vmatpush1.bf16.msra.mxu0 %v2333
        %2966 = vmatprep.subr.bf16.mxu0 %v2348
        %2967 = vmatpush1.bf16.msra.mxu0 %v2347
        %2968 = vmatprep.subr.bf16.mxu0 %v2362
        %2969 = vmatpush1.bf16.msra.mxu0 %v2361
        %2970 = vmatprep.subr.bf16.mxu0 %v2376
        %2971 = vmatpush1.bf16.msra.mxu0 %v2375
        %2972 = vmatprep.subr.bf16.mxu0 %v2390
        %2973 = vmatpush1.bf16.msra.mxu0 %v2389
        %2974 = vmatprep.subr.bf16.mxu0 %v2404
        %2975 = vmatpush1.bf16.msra.mxu0 %v2403
        %2976 = vmatprep.subr.bf16.mxu0 %v2418
        %2977 = vmatpush1.bf16.msra.mxu0 %v2417
        %2978 = vmatprep.subr.bf16.mxu0 %v2432
        %2979 = vmatpush1.bf16.msra.mxu0 %v2431
        %2980 = vmatprep.subr.bf16.mxu0 %v2446
        %2981 = vmatpush1.bf16.msra.mxu0 %v2445
        %2982 = vmatprep.subr.bf16.mxu0 %v2460
        %2983 = vmatpush1.bf16.msra.mxu0 %v2459
        %2984 = vmatprep.subr.bf16.mxu0 %v2474
        %2985 = vmatpush1.bf16.msra.mxu0 %v2473
        %2986 = vmatprep.subr.bf16.mxu0 %v2488
        %2987 = vmatpush1.bf16.msra.mxu0 %v2487
        %2988 = vmatprep.subr.bf16.mxu0 %v2716
        %2989 = vmatpush1.bf16.msra.mxu0 %v2713
        %2990 = vmatprep.subr.bf16.mxu0 0
        %2991 = vmatpush1.bf16.msra.mxu0 0
        %2992 = vmatprep.subr.bf16.mxu0 0
        %2993 = vmatpush1.bf16.msra.mxu0 0
        %2994 = vmatprep.subr.bf16.mxu0 0
        %2995 = vmatpush1.bf16.msra.mxu0 0
        %2996 = vmatprep.mubr.bf16.mxu0 %v2673
        %2997 = vmatmul.mubr.bf16.gmra.mrb[0].mxu0 %v1601
        %v2998 = vpop.f32.mrb[0].mxu0
        %v2999 = vadd.f32 0.0, %v2998
        %v3000 = vpop.f32.mrb[0].mxu0
        %v3001 = vadd.f32 0.0, %v3000
        %v3002 = vpop.f32.mrb[0].mxu0
        %v3003 = vpop.f32.mrb[0].mxu0
        %3004 = vdwg.mxu0
        %v3005 = vrot.slane %v2753, 5
        %v3006 = vrot.slane %v2755, 5
        %v3007 = vsel %vm1506, %v3005, 0.0
        %v3008 = vsel %vm1506, %v3006, 0.0
        %v3009 = vadd.f32 %v2876, %v3007
        %v3010 = vadd.f32 %v2878, %v3008
        %v3011 = vrot.slane %v2794, 6
        %v3012 = vrot.slane %v2796, 6
        %v3013 = vsel %vm1520, %v3011, 0.0
        %v3014 = vsel %vm1520, %v3012, 0.0
        %v3015 = vadd.f32 %v3009, %v3013
        %v3016 = vadd.f32 %v3010, %v3014
        %v3017 = vrot.slane %v2835, 7
        %v3018 = vrot.slane %v2837, 7
        %v3019 = vsel %vm1534, %v3017, 0.0
        %v3020 = vsel %vm1534, %v3018, 0.0
        %v3021 = vadd.f32 %v3015, %v3019
        %v3022 = vadd.f32 %v3016, %v3020
        %v3023 = vrot.slane %v2917, 1
        %v3024 = vrot.slane %v2919, 1
        %v3025 = vsel %vm1548, %v3023, 0.0
        %v3026 = vsel %vm1548, %v3024, 0.0
        %v3027 = vadd.f32 %v3021, %v3025
        %v3028 = vadd.f32 %v3022, %v3026
        %v3029 = vrot.slane %v2958, 2
        %v3030 = vrot.slane %v2960, 2
        %v3031 = vsel %vm1562, %v3029, 0.0
        %v3032 = vsel %vm1562, %v3030, 0.0
        %v3033 = vadd.f32 %v3027, %v3031
        %v3034 = vadd.f32 %v3028, %v3032
        %v3035 = vrot.slane %v2999, 3
        %v3036 = vrot.slane %v3001, 3
        %v3037 = vsel %vm1576, %v3035, 0.0
        %v3038 = vsel %vm1576, %v3036, 0.0
        %v3039 = vadd.f32 %v3033, %v3037
        %v3040 = vadd.f32 %v3034, %v3038
        %v3041 = vld [vmem:[#allocation13] sm:$0x3]
        %v3043 = vlaneseq
        %v3044 = vshrl.u32 %v3043, 7
        %v3045 = vsub.s32 0, %v3044
        %v3046 = vrot.slane %v3041, %v3045
        %v3047 = vlaneseq
        %v3048 = vshrl.u32 %v3047, 7
        %v3049 = vsub.s32 1, %v3048
        %v3050 = vrot.slane %v3041, %v3049
        %v3053 = vadd.f32 %v3039, %v3046
        %v3054 = vadd.f32 %v3040, %v3050
        %v3055 = vld [vmem:[#allocation14] sm:$0xff]
        %v3056 = vld [vmem:[#allocation14 + $0x8] sm:$0xff]
        %v3057 = vld [vmem:[#allocation14 + $0x10] sm:$0xff]
        %v3058 = vld [vmem:[#allocation14 + $0x18] sm:$0xff]
        %v3059 = vld [vmem:[#allocation14 + $0x20] sm:$0xff]
        %v3060 = vld [vmem:[#allocation14 + $0x28] sm:$0xff]
        %v3061 = vld [vmem:[#allocation14 + $0x30] sm:$0xff]
        %v3062 = vld [vmem:[#allocation14 + $0x38] sm:$0xff]
        %v3063 = vld [vmem:[#allocation14 + $0x40] sm:$0xff]
        %v3064 = vld [vmem:[#allocation14 + $0x48] sm:$0xff]
        %v3065 = vld [vmem:[#allocation14 + $0x50] sm:$0xff]
        %v3066 = vld [vmem:[#allocation14 + $0x58] sm:$0xff]
        %v3067 = vld [vmem:[#allocation14 + $0x60] sm:$0xff]
        %v3068 = vld [vmem:[#allocation14 + $0x68] sm:$0xff]
        %v3069 = vld [vmem:[#allocation14 + $0x70] sm:$0xff]
        %v3070 = vld [vmem:[#allocation14 + $0x78] sm:$0xff]
        %v3071 = vld [vmem:[#allocation14 + $0x80] sm:$0xff]
        %v3072 = vld [vmem:[#allocation14 + $0x88] sm:$0xff]
        %v3073 = vld [vmem:[#allocation14 + $0x90] sm:$0xff]
        %v3074 = vld [vmem:[#allocation14 + $0x98] sm:$0xff]
        %v3075 = vld [vmem:[#allocation14 + $0xa0] sm:$0xff]
        %v3076 = vld [vmem:[#allocation14 + $0xa8] sm:$0xff]
        %v3077 = vld [vmem:[#allocation14 + $0xb0] sm:$0xff]
        %v3078 = vld [vmem:[#allocation14 + $0xb8] sm:$0xff]
        %v3079 = vld [vmem:[#allocation14 + $0xc0] sm:$0xff]
        %v3080 = vld [vmem:[#allocation14 + $0xc8] sm:$0xff]
        %v3081 = vld [vmem:[#allocation14 + $0xd0] sm:$0xff]
        %v3082 = vld [vmem:[#allocation14 + $0xd8] sm:$0xff]
        %v3083 = vld [vmem:[#allocation14 + $0xe0] sm:$0xff]
        %v3084 = vld [vmem:[#allocation14 + $0xe8] sm:$0xff]
        %v3085 = vld [vmem:[#allocation14 + $0xf0] sm:$0xff]
        %v3086 = vld [vmem:[#allocation14 + $0xf8] sm:$0xff]
        %v3087 = vld [vmem:[#allocation14 + $0x100] sm:$0xff]
        %v3088 = vld [vmem:[#allocation14 + $0x108] sm:$0xff]
        %v3089 = vld [vmem:[#allocation14 + $0x110] sm:$0xff]
        %v3090 = vld [vmem:[#allocation14 + $0x118] sm:$0xff]
        %v3091 = vld [vmem:[#allocation14 + $0x120] sm:$0xff]
        %v3092 = vld [vmem:[#allocation14 + $0x128] sm:$0xff]
        %v3093 = vld [vmem:[#allocation14 + $0x130] sm:$0xff]
        %v3094 = vld [vmem:[#allocation14 + $0x138] sm:$0xff]
        %v3095 = vld [vmem:[#allocation14 + $0x140] sm:$0xff]
        %v3096 = vld [vmem:[#allocation14 + $0x148] sm:$0xff]
        %v3097 = vld [vmem:[#allocation14 + $0x150] sm:$0xff]
        %v3098 = vld [vmem:[#allocation14 + $0x158] sm:$0xff]
        %v3099 = vld [vmem:[#allocation14 + $0x160] sm:$0xff]
        %v3100 = vld [vmem:[#allocation14 + $0x168] sm:$0xff]
        %v3101 = vld [vmem:[#allocation14 + $0x170] sm:$0xff]
        %v3102 = vld [vmem:[#allocation14 + $0x178] sm:$0xff]
        %v3103 = vld [vmem:[#allocation14 + $0x180] sm:$0xff]
        %v3104 = vld [vmem:[#allocation14 + $0x188] sm:$0xff]
        %v3105 = vld [vmem:[#allocation14 + $0x190] sm:$0xff]
        %v3106 = vld [vmem:[#allocation14 + $0x198] sm:$0xff]
        %v3107 = vld [vmem:[#allocation14 + $0x1a0] sm:$0xff]
        %v3108 = vld [vmem:[#allocation14 + $0x1a8] sm:$0xff]
        %v3109 = vld [vmem:[#allocation14 + $0x1b0] sm:$0xff]
        %v3110 = vld [vmem:[#allocation14 + $0x1b8] sm:$0xff]
        %v3111 = vld [vmem:[#allocation14 + $0x1c0] sm:$0xff]
        %v3112 = vld [vmem:[#allocation14 + $0x1c8] sm:$0xff]
        %v3113 = vld [vmem:[#allocation14 + $0x1d0] sm:$0xff]
        %v3114 = vld [vmem:[#allocation14 + $0x1d8] sm:$0xff]
        %v3115 = vld [vmem:[#allocation14 + $0x1e0] sm:$0xff]
        %v3116 = vld [vmem:[#allocation14 + $0x1e8] sm:$0xff]
        %v3117 = vld [vmem:[#allocation14 + $0x1f0] sm:$0xff]
        %v3118 = vld [vmem:[#allocation14 + $0x1f8] sm:$0xff]
        %v3119 = vld [vmem:[#allocation14 + $0x200] sm:$0xff]
        %v3120 = vld [vmem:[#allocation14 + $0x208] sm:$0xff]
        %v3121 = vld [vmem:[#allocation14 + $0x210] sm:$0xff]
        %v3122 = vld [vmem:[#allocation14 + $0x218] sm:$0xff]
        %v3123 = vld [vmem:[#allocation14 + $0x220] sm:$0xff]
        %v3124 = vld [vmem:[#allocation14 + $0x228] sm:$0xff]
        %v3125 = vld [vmem:[#allocation14 + $0x230] sm:$0xff]
        %v3126 = vld [vmem:[#allocation14 + $0x238] sm:$0xff]
        %v3127 = vld [vmem:[#allocation14 + $0x240] sm:$0xff]
        %v3128 = vld [vmem:[#allocation14 + $0x248] sm:$0xff]
        %v3129 = vld [vmem:[#allocation14 + $0x250] sm:$0xff]
        %v3130 = vld [vmem:[#allocation14 + $0x258] sm:$0xff]
        %v3131 = vld [vmem:[#allocation14 + $0x260] sm:$0xff]
        %v3132 = vld [vmem:[#allocation14 + $0x268] sm:$0xff]
        %v3133 = vld [vmem:[#allocation14 + $0x270] sm:$0xff]
        %v3134 = vld [vmem:[#allocation14 + $0x278] sm:$0xff]
        %v3135 = vld [vmem:[#allocation14 + $0x280] sm:$0xff]
        %v3136 = vld [vmem:[#allocation14 + $0x288] sm:$0xff]
        %v3137 = vld [vmem:[#allocation14 + $0x290] sm:$0xff]
        %v3138 = vld [vmem:[#allocation14 + $0x298] sm:$0xff]
        %v3139 = vld [vmem:[#allocation14 + $0x2a0] sm:$0xff]
        %v3140 = vld [vmem:[#allocation14 + $0x2a8] sm:$0xff]
        %v3141 = vld [vmem:[#allocation14 + $0x2b0] sm:$0xff]
        %v3142 = vld [vmem:[#allocation14 + $0x2b8] sm:$0xff]
        %v3143 = vld [vmem:[#allocation14 + $0x2c0] sm:$0xff]
        %v3144 = vld [vmem:[#allocation14 + $0x2c8] sm:$0xff]
        %v3145 = vld [vmem:[#allocation14 + $0x2d0] sm:$0xff]
        %v3146 = vld [vmem:[#allocation14 + $0x2d8] sm:$0xff]
        %v3147 = vld [vmem:[#allocation14 + $0x2e0] sm:$0xff]
        %v3148 = vld [vmem:[#allocation14 + $0x2e8] sm:$0xff]
        %v3149 = vld [vmem:[#allocation14 + $0x2f0] sm:$0xff]
        %v3150 = vld [vmem:[#allocation14 + $0x2f8] sm:$0xff]
        %v3151 = vld [vmem:[#allocation14 + $0x300] sm:$0xff]
        %v3152 = vld [vmem:[#allocation14 + $0x308] sm:$0xff]
        %v3153 = vld [vmem:[#allocation14 + $0x310] sm:$0xff]
        %v3154 = vld [vmem:[#allocation14 + $0x318] sm:$0xff]
        %v3155 = vld [vmem:[#allocation14 + $0x320] sm:$0xff]
        %v3156 = vld [vmem:[#allocation14 + $0x328] sm:$0xff]
        %v3157 = vld [vmem:[#allocation14 + $0x330] sm:$0xff]
        %v3158 = vld [vmem:[#allocation14 + $0x338] sm:$0xff]
        %v3159 = vld [vmem:[#allocation14 + $0x340] sm:$0xff]
        %v3160 = vld [vmem:[#allocation14 + $0x348] sm:$0xff]
        %v3161 = vld [vmem:[#allocation14 + $0x350] sm:$0xff]
        %v3162 = vld [vmem:[#allocation14 + $0x358] sm:$0xff]
        %v3163 = vld [vmem:[#allocation14 + $0x360] sm:$0xff]
        %v3164 = vld [vmem:[#allocation14 + $0x368] sm:$0xff]
        %v3165 = vld [vmem:[#allocation14 + $0x370] sm:$0xff]
        %v3166 = vld [vmem:[#allocation14 + $0x378] sm:$0xff]
        %v3167 = vld [vmem:[#allocation14 + $0x380] sm:$0xff]
        %v3168 = vld [vmem:[#allocation14 + $0x388] sm:$0xff]
        %v3169 = vld [vmem:[#allocation14 + $0x390] sm:$0xff]
        %v3170 = vld [vmem:[#allocation14 + $0x398] sm:$0xff]
        %v3171 = vld [vmem:[#allocation14 + $0x3a0] sm:$0xff]
        %v3172 = vld [vmem:[#allocation14 + $0x3a8] sm:$0xff]
        %v3173 = vld [vmem:[#allocation14 + $0x3b0] sm:$0xff]
        %v3174 = vld [vmem:[#allocation14 + $0x3b8] sm:$0xff]
        %v3175 = vld [vmem:[#allocation14 + $0x3c0] sm:$0xff]
        %v3176 = vld [vmem:[#allocation14 + $0x3c8] sm:$0xff]
        %v3177 = vld [vmem:[#allocation14 + $0x3d0] sm:$0xff]
        %v3178 = vld [vmem:[#allocation14 + $0x3d8] sm:$0xff]
        %v3179 = vld [vmem:[#allocation14 + $0x3e0] sm:$0xff]
        %v3180 = vld [vmem:[#allocation14 + $0x3e8] sm:$0xff]
        %v3181 = vld [vmem:[#allocation14 + $0x3f0] sm:$0xff]
        %v3182 = vld [vmem:[#allocation14 + $0x3f8] sm:$0xff]
        %v3183 = vld [vmem:[#allocation14 + $0x400] sm:$0xff]
        %v3184 = vld [vmem:[#allocation14 + $0x408] sm:$0xff]
        %v3185 = vld [vmem:[#allocation14 + $0x410] sm:$0xff]
        %v3186 = vld [vmem:[#allocation14 + $0x418] sm:$0xff]
        %v3187 = vld [vmem:[#allocation14 + $0x420] sm:$0xff]
        %v3188 = vld [vmem:[#allocation14 + $0x428] sm:$0xff]
        %v3189 = vld [vmem:[#allocation14 + $0x430] sm:$0xff]
        %v3190 = vld [vmem:[#allocation14 + $0x438] sm:$0xff]
        %v3191 = vld [vmem:[#allocation14 + $0x440] sm:$0xff]
        %v3192 = vld [vmem:[#allocation14 + $0x448] sm:$0xff]
        %v3193 = vld [vmem:[#allocation14 + $0x450] sm:$0xff]
        %v3194 = vld [vmem:[#allocation14 + $0x458] sm:$0xff]
        %v3195 = vld [vmem:[#allocation14 + $0x460] sm:$0xff]
        %v3196 = vld [vmem:[#allocation14 + $0x468] sm:$0xff]
        %v3197 = vld [vmem:[#allocation14 + $0x470] sm:$0xff]
        %v3198 = vld [vmem:[#allocation14 + $0x478] sm:$0xff]
        %v3199 = vld [vmem:[#allocation14 + $0x480] sm:$0xff]
        %v3200 = vld [vmem:[#allocation14 + $0x488] sm:$0xff]
        %v3201 = vld [vmem:[#allocation14 + $0x490] sm:$0xff]
        %v3202 = vld [vmem:[#allocation14 + $0x498] sm:$0xff]
        %v3203 = vld [vmem:[#allocation14 + $0x4a0] sm:$0xff]
        %v3204 = vld [vmem:[#allocation14 + $0x4a8] sm:$0xff]
        %v3205 = vld [vmem:[#allocation14 + $0x4b0] sm:$0xff]
        %v3206 = vld [vmem:[#allocation14 + $0x4b8] sm:$0xff]
        %v3207 = vld [vmem:[#allocation14 + $0x4c0] sm:$0xff]
        %v3208 = vld [vmem:[#allocation14 + $0x4c8] sm:$0xff]
        %v3209 = vld [vmem:[#allocation14 + $0x4d0] sm:$0xff]
        %v3210 = vld [vmem:[#allocation14 + $0x4d8] sm:$0xff]
        %v3211 = vld [vmem:[#allocation14 + $0x4e0] sm:$0xff]
        %v3212 = vld [vmem:[#allocation14 + $0x4e8] sm:$0xff]
        %v3213 = vld [vmem:[#allocation14 + $0x4f0] sm:$0xff]
        %v3214 = vld [vmem:[#allocation14 + $0x4f8] sm:$0xff]
        %v3215 = vld [vmem:[#allocation14 + $0x500] sm:$0xff]
        %v3216 = vld [vmem:[#allocation14 + $0x508] sm:$0xff]
        %v3217 = vld [vmem:[#allocation14 + $0x510] sm:$0xff]
        %v3218 = vld [vmem:[#allocation14 + $0x518] sm:$0xff]
        %v3219 = vld [vmem:[#allocation14 + $0x520] sm:$0xff]
        %v3220 = vld [vmem:[#allocation14 + $0x528] sm:$0xff]
        %v3221 = vld [vmem:[#allocation14 + $0x530] sm:$0xff]
        %v3222 = vld [vmem:[#allocation14 + $0x538] sm:$0xff]
        %v3223 = vld [vmem:[#allocation14 + $0x540] sm:$0xff]
        %v3224 = vld [vmem:[#allocation14 + $0x548] sm:$0xff]
        %v3225 = vld [vmem:[#allocation14 + $0x550] sm:$0xff]
        %v3226 = vld [vmem:[#allocation14 + $0x558] sm:$0xff]
        %v3227 = vld [vmem:[#allocation14 + $0x560] sm:$0xff]
        %v3228 = vld [vmem:[#allocation14 + $0x568] sm:$0xff]
        %v3229 = vld [vmem:[#allocation14 + $0x570] sm:$0xff]
        %v3405 = vunpack.c.l.b16 %v3055
        %v3406 = vunpack.c.h.b16 %v3055
        %v3407 = vunpack.c.l.b16 %v3056
        %v3408 = vunpack.c.h.b16 %v3056
        %v3409 = vunpack.c.l.b16 %v3057
        %v3410 = vunpack.c.h.b16 %v3057
        %v3411 = vunpack.c.l.b16 %v3058
        %v3412 = vunpack.c.h.b16 %v3058
        %v3413 = vunpack.c.l.b16 %v3059
        %v3414 = vunpack.c.h.b16 %v3059
        %v3415 = vunpack.c.l.b16 %v3060
        %v3416 = vunpack.c.h.b16 %v3060
        %v3417 = vunpack.c.l.b16 %v3061
        %v3418 = vunpack.c.h.b16 %v3061
        %v3419 = vunpack.c.l.b16 %v3062
        %v3420 = vunpack.c.h.b16 %v3062
        %v3421 = vunpack.c.l.b16 %v3063
        %v3422 = vunpack.c.h.b16 %v3063
        %v3423 = vunpack.c.l.b16 %v3064
        %v3424 = vunpack.c.h.b16 %v3064
        %v3425 = vunpack.c.l.b16 %v3065
        %v3426 = vunpack.c.h.b16 %v3065
        %v3427 = vunpack.c.l.b16 %v3066
        %v3428 = vunpack.c.h.b16 %v3066
        %v3429 = vunpack.c.l.b16 %v3067
        %v3430 = vunpack.c.h.b16 %v3067
        %v3431 = vunpack.c.l.b16 %v3068
        %v3432 = vunpack.c.h.b16 %v3068
        %v3433 = vunpack.c.l.b16 %v3069
        %v3434 = vunpack.c.h.b16 %v3069
        %v3435 = vunpack.c.l.b16 %v3070
        %v3436 = vunpack.c.h.b16 %v3070
        %v3437 = vunpack.c.l.b16 %v3071
        %v3438 = vunpack.c.h.b16 %v3071
        %v3439 = vunpack.c.l.b16 %v3072
        %v3440 = vunpack.c.h.b16 %v3072
        %v3441 = vunpack.c.l.b16 %v3073
        %v3442 = vunpack.c.h.b16 %v3073
        %v3443 = vunpack.c.l.b16 %v3074
        %v3444 = vunpack.c.h.b16 %v3074
        %v3445 = vunpack.c.l.b16 %v3075
        %v3446 = vunpack.c.h.b16 %v3075
        %v3447 = vunpack.c.l.b16 %v3076
        %v3448 = vunpack.c.h.b16 %v3076
        %v3449 = vunpack.c.l.b16 %v3077
        %v3450 = vunpack.c.h.b16 %v3077
        %v3451 = vunpack.c.l.b16 %v3078
        %v3452 = vunpack.c.h.b16 %v3078
        %v3453 = vunpack.c.l.b16 %v3079
        %v3454 = vunpack.c.h.b16 %v3079
        %v3455 = vunpack.c.l.b16 %v3080
        %v3456 = vunpack.c.h.b16 %v3080
        %v3457 = vunpack.c.l.b16 %v3081
        %v3458 = vunpack.c.h.b16 %v3081
        %v3459 = vunpack.c.l.b16 %v3082
        %v3460 = vunpack.c.h.b16 %v3082
        %v3461 = vunpack.c.l.b16 %v3083
        %v3462 = vunpack.c.h.b16 %v3083
        %v3463 = vunpack.c.l.b16 %v3084
        %v3464 = vunpack.c.h.b16 %v3084
        %v3465 = vunpack.c.l.b16 %v3085
        %v3466 = vunpack.c.h.b16 %v3085
        %v3467 = vunpack.c.l.b16 %v3086
        %v3468 = vunpack.c.h.b16 %v3086
        %v3469 = vunpack.c.l.b16 %v3087
        %v3470 = vunpack.c.h.b16 %v3087
        %v3471 = vunpack.c.l.b16 %v3088
        %v3472 = vunpack.c.h.b16 %v3088
        %v3473 = vunpack.c.l.b16 %v3089
        %v3474 = vunpack.c.h.b16 %v3089
        %v3475 = vunpack.c.l.b16 %v3090
        %v3476 = vunpack.c.h.b16 %v3090
        %v3477 = vunpack.c.l.b16 %v3091
        %v3478 = vunpack.c.h.b16 %v3091
        %v3479 = vunpack.c.l.b16 %v3092
        %v3480 = vunpack.c.h.b16 %v3092
        %v3481 = vunpack.c.l.b16 %v3093
        %v3482 = vunpack.c.h.b16 %v3093
        %v3483 = vunpack.c.l.b16 %v3094
        %v3484 = vunpack.c.h.b16 %v3094
        %v3485 = vunpack.c.l.b16 %v3095
        %v3486 = vunpack.c.h.b16 %v3095
        %v3487 = vunpack.c.l.b16 %v3096
        %v3488 = vunpack.c.h.b16 %v3096
        %v3489 = vunpack.c.l.b16 %v3097
        %v3490 = vunpack.c.h.b16 %v3097
        %v3491 = vunpack.c.l.b16 %v3098
        %v3492 = vunpack.c.h.b16 %v3098
        %v3493 = vunpack.c.l.b16 %v3099
        %v3494 = vunpack.c.h.b16 %v3099
        %v3495 = vunpack.c.l.b16 %v3100
        %v3496 = vunpack.c.h.b16 %v3100
        %v3497 = vunpack.c.l.b16 %v3101
        %v3498 = vunpack.c.h.b16 %v3101
        %v3499 = vunpack.c.l.b16 %v3102
        %v3500 = vunpack.c.h.b16 %v3102
        %v3501 = vunpack.c.l.b16 %v3103
        %v3502 = vunpack.c.h.b16 %v3103
        %v3503 = vunpack.c.l.b16 %v3104
        %v3504 = vunpack.c.h.b16 %v3104
        %v3505 = vunpack.c.l.b16 %v3105
        %v3506 = vunpack.c.h.b16 %v3105
        %v3507 = vunpack.c.l.b16 %v3106
        %v3508 = vunpack.c.h.b16 %v3106
        %v3509 = vunpack.c.l.b16 %v3107
        %v3510 = vunpack.c.h.b16 %v3107
        %v3511 = vunpack.c.l.b16 %v3108
        %v3512 = vunpack.c.h.b16 %v3108
        %v3513 = vunpack.c.l.b16 %v3109
        %v3514 = vunpack.c.h.b16 %v3109
        %v3515 = vunpack.c.l.b16 %v3110
        %v3516 = vunpack.c.h.b16 %v3110
        %v3517 = vunpack.c.l.b16 %v3111
        %v3518 = vunpack.c.h.b16 %v3111
        %v3519 = vunpack.c.l.b16 %v3112
        %v3520 = vunpack.c.h.b16 %v3112
        %v3521 = vunpack.c.l.b16 %v3113
        %v3522 = vunpack.c.h.b16 %v3113
        %v3523 = vunpack.c.l.b16 %v3114
        %v3524 = vunpack.c.h.b16 %v3114
        %v3525 = vunpack.c.l.b16 %v3115
        %v3526 = vunpack.c.h.b16 %v3115
        %v3527 = vunpack.c.l.b16 %v3116
        %v3528 = vunpack.c.h.b16 %v3116
        %v3529 = vunpack.c.l.b16 %v3117
        %v3530 = vunpack.c.h.b16 %v3117
        %v3531 = vunpack.c.l.b16 %v3118
        %v3532 = vunpack.c.h.b16 %v3118
        %v3533 = vunpack.c.l.b16 %v3119
        %v3534 = vunpack.c.h.b16 %v3119
        %v3535 = vunpack.c.l.b16 %v3120
        %v3536 = vunpack.c.h.b16 %v3120
        %v3537 = vunpack.c.l.b16 %v3121
        %v3538 = vunpack.c.h.b16 %v3121
        %v3539 = vunpack.c.l.b16 %v3122
        %v3540 = vunpack.c.h.b16 %v3122
        %v3541 = vunpack.c.l.b16 %v3123
        %v3542 = vunpack.c.h.b16 %v3123
        %v3543 = vunpack.c.l.b16 %v3124
        %v3544 = vunpack.c.h.b16 %v3124
        %v3545 = vunpack.c.l.b16 %v3125
        %v3546 = vunpack.c.h.b16 %v3125
        %v3547 = vunpack.c.l.b16 %v3126
        %v3548 = vunpack.c.h.b16 %v3126
        %v3549 = vunpack.c.l.b16 %v3127
        %v3550 = vunpack.c.h.b16 %v3127
        %v3551 = vunpack.c.l.b16 %v3128
        %v3552 = vunpack.c.h.b16 %v3128
        %v3553 = vunpack.c.l.b16 %v3129
        %v3554 = vunpack.c.h.b16 %v3129
        %v3555 = vunpack.c.l.b16 %v3130
        %v3556 = vunpack.c.h.b16 %v3130
        %v3557 = vunpack.c.l.b16 %v3131
        %v3558 = vunpack.c.h.b16 %v3131
        %v3559 = vunpack.c.l.b16 %v3132
        %v3560 = vunpack.c.h.b16 %v3132
        %v3561 = vunpack.c.l.b16 %v3133
        %v3562 = vunpack.c.h.b16 %v3133
        %v3563 = vunpack.c.l.b16 %v3134
        %v3564 = vunpack.c.h.b16 %v3134
        %v3565 = vunpack.c.l.b16 %v3135
        %v3566 = vunpack.c.h.b16 %v3135
        %v3567 = vunpack.c.l.b16 %v3136
        %v3568 = vunpack.c.h.b16 %v3136
        %v3569 = vunpack.c.l.b16 %v3137
        %v3570 = vunpack.c.h.b16 %v3137
        %v3571 = vunpack.c.l.b16 %v3138
        %v3572 = vunpack.c.h.b16 %v3138
        %v3573 = vunpack.c.l.b16 %v3139
        %v3574 = vunpack.c.h.b16 %v3139
        %v3575 = vunpack.c.l.b16 %v3140
        %v3576 = vunpack.c.h.b16 %v3140
        %v3577 = vunpack.c.l.b16 %v3141
        %v3578 = vunpack.c.h.b16 %v3141
        %v3579 = vunpack.c.l.b16 %v3142
        %v3580 = vunpack.c.h.b16 %v3142
        %v3581 = vunpack.c.l.b16 %v3143
        %v3582 = vunpack.c.h.b16 %v3143
        %v3583 = vunpack.c.l.b16 %v3144
        %v3584 = vunpack.c.h.b16 %v3144
        %v3585 = vunpack.c.l.b16 %v3145
        %v3586 = vunpack.c.h.b16 %v3145
        %v3587 = vunpack.c.l.b16 %v3146
        %v3588 = vunpack.c.h.b16 %v3146
        %v3589 = vunpack.c.l.b16 %v3147
        %v3590 = vunpack.c.h.b16 %v3147
        %v3591 = vunpack.c.l.b16 %v3148
        %v3592 = vunpack.c.h.b16 %v3148
        %v3593 = vunpack.c.l.b16 %v3149
        %v3594 = vunpack.c.h.b16 %v3149
        %v3595 = vunpack.c.l.b16 %v3150
        %v3596 = vunpack.c.h.b16 %v3150
        %v3597 = vunpack.c.l.b16 %v3151
        %v3598 = vunpack.c.h.b16 %v3151
        %v3599 = vunpack.c.l.b16 %v3152
        %v3600 = vunpack.c.h.b16 %v3152
        %v3601 = vunpack.c.l.b16 %v3153
        %v3602 = vunpack.c.h.b16 %v3153
        %v3603 = vunpack.c.l.b16 %v3154
        %v3604 = vunpack.c.h.b16 %v3154
        %v3605 = vunpack.c.l.b16 %v3155
        %v3606 = vunpack.c.h.b16 %v3155
        %v3607 = vunpack.c.l.b16 %v3156
        %v3608 = vunpack.c.h.b16 %v3156
        %v3609 = vunpack.c.l.b16 %v3157
        %v3610 = vunpack.c.h.b16 %v3157
        %v3611 = vunpack.c.l.b16 %v3158
        %v3612 = vunpack.c.h.b16 %v3158
        %v3613 = vunpack.c.l.b16 %v3159
        %v3614 = vunpack.c.h.b16 %v3159
        %v3615 = vunpack.c.l.b16 %v3160
        %v3616 = vunpack.c.h.b16 %v3160
        %v3617 = vunpack.c.l.b16 %v3161
        %v3618 = vunpack.c.h.b16 %v3161
        %v3619 = vunpack.c.l.b16 %v3162
        %v3620 = vunpack.c.h.b16 %v3162
        %v3621 = vunpack.c.l.b16 %v3163
        %v3622 = vunpack.c.h.b16 %v3163
        %v3623 = vunpack.c.l.b16 %v3164
        %v3624 = vunpack.c.h.b16 %v3164
        %v3625 = vunpack.c.l.b16 %v3165
        %v3626 = vunpack.c.h.b16 %v3165
        %v3627 = vunpack.c.l.b16 %v3166
        %v3628 = vunpack.c.h.b16 %v3166
        %v3629 = vunpack.c.l.b16 %v3167
        %v3630 = vunpack.c.h.b16 %v3167
        %v3631 = vunpack.c.l.b16 %v3168
        %v3632 = vunpack.c.h.b16 %v3168
        %v3633 = vunpack.c.l.b16 %v3169
        %v3634 = vunpack.c.h.b16 %v3169
        %v3635 = vunpack.c.l.b16 %v3170
        %v3636 = vunpack.c.h.b16 %v3170
        %v3637 = vunpack.c.l.b16 %v3171
        %v3638 = vunpack.c.h.b16 %v3171
        %v3639 = vunpack.c.l.b16 %v3172
        %v3640 = vunpack.c.h.b16 %v3172
        %v3641 = vunpack.c.l.b16 %v3173
        %v3642 = vunpack.c.h.b16 %v3173
        %v3643 = vunpack.c.l.b16 %v3174
        %v3644 = vunpack.c.h.b16 %v3174
        %v3645 = vunpack.c.l.b16 %v3175
        %v3646 = vunpack.c.h.b16 %v3175
        %v3647 = vunpack.c.l.b16 %v3176
        %v3648 = vunpack.c.h.b16 %v3176
        %v3649 = vunpack.c.l.b16 %v3177
        %v3650 = vunpack.c.h.b16 %v3177
        %v3651 = vunpack.c.l.b16 %v3178
        %v3652 = vunpack.c.h.b16 %v3178
        %v3653 = vunpack.c.l.b16 %v3179
        %v3654 = vunpack.c.h.b16 %v3179
        %v3655 = vunpack.c.l.b16 %v3180
        %v3656 = vunpack.c.h.b16 %v3180
        %v3657 = vunpack.c.l.b16 %v3181
        %v3658 = vunpack.c.h.b16 %v3181
        %v3659 = vunpack.c.l.b16 %v3182
        %v3660 = vunpack.c.h.b16 %v3182
        %v3661 = vunpack.c.l.b16 %v3183
        %v3662 = vunpack.c.h.b16 %v3183
        %v3663 = vunpack.c.l.b16 %v3184
        %v3664 = vunpack.c.h.b16 %v3184
        %v3665 = vunpack.c.l.b16 %v3185
        %v3666 = vunpack.c.h.b16 %v3185
        %v3667 = vunpack.c.l.b16 %v3186
        %v3668 = vunpack.c.h.b16 %v3186
        %v3669 = vunpack.c.l.b16 %v3187
        %v3670 = vunpack.c.h.b16 %v3187
        %v3671 = vunpack.c.l.b16 %v3188
        %v3672 = vunpack.c.h.b16 %v3188
        %v3673 = vunpack.c.l.b16 %v3189
        %v3674 = vunpack.c.h.b16 %v3189
        %v3675 = vunpack.c.l.b16 %v3190
        %v3676 = vunpack.c.h.b16 %v3190
        %v3677 = vunpack.c.l.b16 %v3191
        %v3678 = vunpack.c.h.b16 %v3191
        %v3679 = vunpack.c.l.b16 %v3192
        %v3680 = vunpack.c.h.b16 %v3192
        %v3681 = vunpack.c.l.b16 %v3193
        %v3682 = vunpack.c.h.b16 %v3193
        %v3683 = vunpack.c.l.b16 %v3194
        %v3684 = vunpack.c.h.b16 %v3194
        %v3685 = vunpack.c.l.b16 %v3195
        %v3686 = vunpack.c.h.b16 %v3195
        %v3687 = vunpack.c.l.b16 %v3196
        %v3688 = vunpack.c.h.b16 %v3196
        %v3689 = vunpack.c.l.b16 %v3197
        %v3690 = vunpack.c.h.b16 %v3197
        %v3691 = vunpack.c.l.b16 %v3198
        %v3692 = vunpack.c.h.b16 %v3198
        %v3693 = vunpack.c.l.b16 %v3199
        %v3694 = vunpack.c.h.b16 %v3199
        %v3695 = vunpack.c.l.b16 %v3200
        %v3696 = vunpack.c.h.b16 %v3200
        %v3697 = vunpack.c.l.b16 %v3201
        %v3698 = vunpack.c.h.b16 %v3201
        %v3699 = vunpack.c.l.b16 %v3202
        %v3700 = vunpack.c.h.b16 %v3202
        %v3701 = vunpack.c.l.b16 %v3203
        %v3702 = vunpack.c.h.b16 %v3203
        %v3703 = vunpack.c.l.b16 %v3204
        %v3704 = vunpack.c.h.b16 %v3204
        %v3705 = vunpack.c.l.b16 %v3205
        %v3706 = vunpack.c.h.b16 %v3205
        %v3707 = vunpack.c.l.b16 %v3206
        %v3708 = vunpack.c.h.b16 %v3206
        %v3709 = vunpack.c.l.b16 %v3207
        %v3710 = vunpack.c.h.b16 %v3207
        %v3711 = vunpack.c.l.b16 %v3208
        %v3712 = vunpack.c.h.b16 %v3208
        %v3713 = vunpack.c.l.b16 %v3209
        %v3714 = vunpack.c.h.b16 %v3209
        %v3715 = vunpack.c.l.b16 %v3210
        %v3716 = vunpack.c.h.b16 %v3210
        %v3717 = vunpack.c.l.b16 %v3211
        %v3718 = vunpack.c.h.b16 %v3211
        %v3719 = vunpack.c.l.b16 %v3212
        %v3720 = vunpack.c.h.b16 %v3212
        %v3721 = vunpack.c.l.b16 %v3213
        %v3722 = vunpack.c.h.b16 %v3213
        %v3723 = vunpack.c.l.b16 %v3214
        %v3724 = vunpack.c.h.b16 %v3214
        %v3725 = vunpack.c.l.b16 %v3215
        %v3726 = vunpack.c.h.b16 %v3215
        %v3727 = vunpack.c.l.b16 %v3216
        %v3728 = vunpack.c.h.b16 %v3216
        %v3729 = vunpack.c.l.b16 %v3217
        %v3730 = vunpack.c.h.b16 %v3217
        %v3731 = vunpack.c.l.b16 %v3218
        %v3732 = vunpack.c.h.b16 %v3218
        %v3733 = vunpack.c.l.b16 %v3219
        %v3734 = vunpack.c.h.b16 %v3219
        %v3735 = vunpack.c.l.b16 %v3220
        %v3736 = vunpack.c.h.b16 %v3220
        %v3737 = vunpack.c.l.b16 %v3221
        %v3738 = vunpack.c.h.b16 %v3221
        %v3739 = vunpack.c.l.b16 %v3222
        %v3740 = vunpack.c.h.b16 %v3222
        %v3741 = vunpack.c.l.b16 %v3223
        %v3742 = vunpack.c.h.b16 %v3223
        %v3743 = vunpack.c.l.b16 %v3224
        %v3744 = vunpack.c.h.b16 %v3224
        %v3745 = vunpack.c.l.b16 %v3225
        %v3746 = vunpack.c.h.b16 %v3225
        %v3747 = vunpack.c.l.b16 %v3226
        %v3748 = vunpack.c.h.b16 %v3226
        %v3749 = vunpack.c.l.b16 %v3227
        %v3750 = vunpack.c.h.b16 %v3227
        %v3751 = vunpack.c.l.b16 %v3228
        %v3752 = vunpack.c.h.b16 %v3228
        %v3753 = vunpack.c.l.b16 %v3229
        %v3754 = vunpack.c.h.b16 %v3229
        %v3755 = vpack.c.b16 %v3419, %v3405
        %v3756 = vpack.c.b16 %v3420, %v3406
        %v3757 = vpack.c.b16 %v3421, %v3407
        %v3758 = vpack.c.b16 %v3422, %v3408
        %v3759 = vpack.c.b16 %v3423, %v3409
        %v3760 = vpack.c.b16 %v3424, %v3410
        %v3761 = vpack.c.b16 %v3425, %v3411
        %v3762 = vpack.c.b16 %v3426, %v3412
        %v3763 = vpack.c.b16 %v3427, %v3413
        %v3764 = vpack.c.b16 %v3428, %v3414
        %v3765 = vpack.c.b16 %v3429, %v3415
        %v3766 = vpack.c.b16 %v3430, %v3416
        %v3767 = vpack.c.b16 %v3431, %v3417
        %v3768 = vpack.c.b16 %v3432, %v3418
        %v3769 = vpack.c.b16 %v3447, %v3433
        %v3770 = vpack.c.b16 %v3448, %v3434
        %v3771 = vpack.c.b16 %v3449, %v3435
        %v3772 = vpack.c.b16 %v3450, %v3436
        %v3773 = vpack.c.b16 %v3451, %v3437
        %v3774 = vpack.c.b16 %v3452, %v3438
        %v3775 = vpack.c.b16 %v3453, %v3439
        %v3776 = vpack.c.b16 %v3454, %v3440
        %v3777 = vpack.c.b16 %v3455, %v3441
        %v3778 = vpack.c.b16 %v3456, %v3442
        %v3779 = vpack.c.b16 %v3457, %v3443
        %v3780 = vpack.c.b16 %v3458, %v3444
        %v3781 = vpack.c.b16 %v3459, %v3445
        %v3782 = vpack.c.b16 %v3460, %v3446
        %v3783 = vpack.c.b16 %v3475, %v3461
        %v3784 = vpack.c.b16 %v3476, %v3462
        %v3785 = vpack.c.b16 %v3477, %v3463
        %v3786 = vpack.c.b16 %v3478, %v3464
        %v3787 = vpack.c.b16 %v3479, %v3465
        %v3788 = vpack.c.b16 %v3480, %v3466
        %v3789 = vpack.c.b16 %v3481, %v3467
        %v3790 = vpack.c.b16 %v3482, %v3468
        %v3791 = vpack.c.b16 %v3483, %v3469
        %v3792 = vpack.c.b16 %v3484, %v3470
        %v3793 = vpack.c.b16 %v3485, %v3471
        %v3794 = vpack.c.b16 %v3486, %v3472
        %v3795 = vpack.c.b16 %v3487, %v3473
        %v3796 = vpack.c.b16 %v3488, %v3474
        %v3797 = vpack.c.b16 %v3503, %v3489
        %v3798 = vpack.c.b16 %v3504, %v3490
        %v3799 = vpack.c.b16 %v3505, %v3491
        %v3800 = vpack.c.b16 %v3506, %v3492
        %v3801 = vpack.c.b16 %v3507, %v3493
        %v3802 = vpack.c.b16 %v3508, %v3494
        %v3803 = vpack.c.b16 %v3509, %v3495
        %v3804 = vpack.c.b16 %v3510, %v3496
        %v3805 = vpack.c.b16 %v3511, %v3497
        %v3806 = vpack.c.b16 %v3512, %v3498
        %v3807 = vpack.c.b16 %v3513, %v3499
        %v3808 = vpack.c.b16 %v3514, %v3500
        %v3809 = vpack.c.b16 %v3515, %v3501
        %v3810 = vpack.c.b16 %v3516, %v3502
        %v3811 = vpack.c.b16 %v3531, %v3517
        %v3812 = vpack.c.b16 %v3532, %v3518
        %v3813 = vpack.c.b16 %v3533, %v3519
        %v3814 = vpack.c.b16 %v3534, %v3520
        %v3815 = vpack.c.b16 %v3535, %v3521
        %v3816 = vpack.c.b16 %v3536, %v3522
        %v3817 = vpack.c.b16 %v3537, %v3523
        %v3818 = vpack.c.b16 %v3538, %v3524
        %v3819 = vpack.c.b16 %v3539, %v3525
        %v3820 = vpack.c.b16 %v3540, %v3526
        %v3821 = vpack.c.b16 %v3541, %v3527
        %v3822 = vpack.c.b16 %v3542, %v3528
        %v3823 = vpack.c.b16 %v3543, %v3529
        %v3824 = vpack.c.b16 %v3544, %v3530
        %v3825 = vpack.c.b16 %v3559, %v3545
        %v3826 = vpack.c.b16 %v3560, %v3546
        %v3827 = vpack.c.b16 %v3561, %v3547
        %v3828 = vpack.c.b16 %v3562, %v3548
        %v3829 = vpack.c.b16 %v3563, %v3549
        %v3830 = vpack.c.b16 %v3564, %v3550
        %v3831 = vpack.c.b16 %v3565, %v3551
        %v3832 = vpack.c.b16 %v3566, %v3552
        %v3833 = vpack.c.b16 %v3567, %v3553
        %v3834 = vpack.c.b16 %v3568, %v3554
        %v3835 = vpack.c.b16 %v3569, %v3555
        %v3836 = vpack.c.b16 %v3570, %v3556
        %v3837 = vpack.c.b16 %v3571, %v3557
        %v3838 = vpack.c.b16 %v3572, %v3558
        %v3839 = vpack.c.b16 %v3587, %v3573
        %v3840 = vpack.c.b16 %v3588, %v3574
        %v3841 = vpack.c.b16 %v3589, %v3575
        %v3842 = vpack.c.b16 %v3590, %v3576
        %v3843 = vpack.c.b16 %v3591, %v3577
        %v3844 = vpack.c.b16 %v3592, %v3578
        %v3845 = vpack.c.b16 %v3593, %v3579
        %v3846 = vpack.c.b16 %v3594, %v3580
        %v3847 = vpack.c.b16 %v3595, %v3581
        %v3848 = vpack.c.b16 %v3596, %v3582
        %v3849 = vpack.c.b16 %v3597, %v3583
        %v3850 = vpack.c.b16 %v3598, %v3584
        %v3851 = vpack.c.b16 %v3599, %v3585
        %v3852 = vpack.c.b16 %v3600, %v3586
        %v3853 = vpack.c.b16 %v3615, %v3601
        %v3854 = vpack.c.b16 %v3616, %v3602
        %v3855 = vpack.c.b16 %v3617, %v3603
        %v3856 = vpack.c.b16 %v3618, %v3604
        %v3857 = vpack.c.b16 %v3619, %v3605
        %v3858 = vpack.c.b16 %v3620, %v3606
        %v3859 = vpack.c.b16 %v3621, %v3607
        %v3860 = vpack.c.b16 %v3622, %v3608
        %v3861 = vpack.c.b16 %v3623, %v3609
        %v3862 = vpack.c.b16 %v3624, %v3610
        %v3863 = vpack.c.b16 %v3625, %v3611
        %v3864 = vpack.c.b16 %v3626, %v3612
        %v3865 = vpack.c.b16 %v3627, %v3613
        %v3866 = vpack.c.b16 %v3628, %v3614
        %v3867 = vpack.c.b16 %v3643, %v3629
        %v3868 = vpack.c.b16 %v3644, %v3630
        %v3869 = vpack.c.b16 %v3645, %v3631
        %v3870 = vpack.c.b16 %v3646, %v3632
        %v3871 = vpack.c.b16 %v3647, %v3633
        %v3872 = vpack.c.b16 %v3648, %v3634
        %v3873 = vpack.c.b16 %v3649, %v3635
        %v3874 = vpack.c.b16 %v3650, %v3636
        %v3875 = vpack.c.b16 %v3651, %v3637
        %v3876 = vpack.c.b16 %v3652, %v3638
        %v3877 = vpack.c.b16 %v3653, %v3639
        %v3878 = vpack.c.b16 %v3654, %v3640
        %v3879 = vpack.c.b16 %v3655, %v3641
        %v3880 = vpack.c.b16 %v3656, %v3642
        %v3881 = vpack.c.b16 %v3671, %v3657
        %v3882 = vpack.c.b16 %v3672, %v3658
        %v3883 = vpack.c.b16 %v3673, %v3659
        %v3884 = vpack.c.b16 %v3674, %v3660
        %v3885 = vpack.c.b16 %v3675, %v3661
        %v3886 = vpack.c.b16 %v3676, %v3662
        %v3887 = vpack.c.b16 %v3677, %v3663
        %v3888 = vpack.c.b16 %v3678, %v3664
        %v3889 = vpack.c.b16 %v3679, %v3665
        %v3890 = vpack.c.b16 %v3680, %v3666
        %v3891 = vpack.c.b16 %v3681, %v3667
        %v3892 = vpack.c.b16 %v3682, %v3668
        %v3893 = vpack.c.b16 %v3683, %v3669
        %v3894 = vpack.c.b16 %v3684, %v3670
        %v3895 = vpack.c.b16 %v3699, %v3685
        %v3896 = vpack.c.b16 %v3700, %v3686
        %v3897 = vpack.c.b16 %v3701, %v3687
        %v3898 = vpack.c.b16 %v3702, %v3688
        %v3899 = vpack.c.b16 %v3703, %v3689
        %v3900 = vpack.c.b16 %v3704, %v3690
        %v3901 = vpack.c.b16 %v3705, %v3691
        %v3902 = vpack.c.b16 %v3706, %v3692
        %v3903 = vpack.c.b16 %v3707, %v3693
        %v3904 = vpack.c.b16 %v3708, %v3694
        %v3905 = vpack.c.b16 %v3709, %v3695
        %v3906 = vpack.c.b16 %v3710, %v3696
        %v3907 = vpack.c.b16 %v3711, %v3697
        %v3908 = vpack.c.b16 %v3712, %v3698
        %v3909 = vpack.c.b16 %v3727, %v3713
        %v3910 = vpack.c.b16 %v3728, %v3714
        %v3911 = vpack.c.b16 %v3729, %v3715
        %v3912 = vpack.c.b16 %v3730, %v3716
        %v3913 = vpack.c.b16 %v3731, %v3717
        %v3914 = vpack.c.b16 %v3732, %v3718
        %v3915 = vpack.c.b16 %v3733, %v3719
        %v3916 = vpack.c.b16 %v3734, %v3720
        %v3917 = vpack.c.b16 %v3735, %v3721
        %v3918 = vpack.c.b16 %v3736, %v3722
        %v3919 = vpack.c.b16 %v3737, %v3723
        %v3920 = vpack.c.b16 %v3738, %v3724
        %v3921 = vpack.c.b16 %v3739, %v3725
        %v3922 = vpack.c.b16 %v3740, %v3726
        %v3923 = vpack.c.b16 %v3741, %v3741
        %v3924 = vpack.c.b16 %v3742, %v3742
        %v3925 = vpack.c.b16 %v3743, %v3743
        %v3926 = vpack.c.b16 %v3744, %v3744
        %v3927 = vpack.c.b16 %v3745, %v3745
        %v3928 = vpack.c.b16 %v3746, %v3746
        %v3929 = vpack.c.b16 %v3747, %v3747
        %v3930 = vpack.c.b16 %v3748, %v3748
        %v3931 = vpack.c.b16 %v3749, %v3749
        %v3932 = vpack.c.b16 %v3750, %v3750
        %v3933 = vpack.c.b16 %v3751, %v3751
        %v3934 = vpack.c.b16 %v3752, %v3752
        %v3935 = vpack.c.b16 %v3753, %v3753
        %v3936 = vpack.c.b16 %v3754, %v3754
        %v4106 = vsel %vm2671, %v1620, 0
        %v4109 = vsel %vm2675, %v3923, 0
        %v4112 = vsel %vm2675, %v3924, 0
        %v4115 = vsel %vm2675, %v3925, 0
        %v4118 = vsel %vm2675, %v3926, 0
        %v4121 = vsel %vm2675, %v3927, 0
        %v4124 = vsel %vm2675, %v3928, 0
        %v4127 = vsel %vm2675, %v3929, 0
        %v4130 = vsel %vm2675, %v3930, 0
        %v4133 = vsel %vm2675, %v3931, 0
        %v4136 = vsel %vm2675, %v3932, 0
        %v4139 = vsel %vm2675, %v3933, 0
        %v4142 = vsel %vm2675, %v3934, 0
        %v4145 = vsel %vm2675, %v3935, 0
        %v4148 = vsel %vm2675, %v3936, 0
        %4150 = vmatprep.subr.bf16.mxu0 %v3756
        %4151 = vmatpush1.bf16.msra.mxu0 %v3755
        %4152 = vmatprep.subr.bf16.mxu0 %v3770
        %4153 = vmatpush1.bf16.msra.mxu0 %v3769
        %4154 = vmatprep.subr.bf16.mxu0 %v3784
        %4155 = vmatpush1.bf16.msra.mxu0 %v3783
        %4156 = vmatprep.subr.bf16.mxu0 %v3798
        %4157 = vmatpush1.bf16.msra.mxu0 %v3797
        %4158 = vmatprep.subr.bf16.mxu0 %v3812
        %4159 = vmatpush1.bf16.msra.mxu0 %v3811
        %4160 = vmatprep.subr.bf16.mxu0 %v3826
        %4161 = vmatpush1.bf16.msra.mxu0 %v3825
        %4162 = vmatprep.subr.bf16.mxu0 %v3840
        %4163 = vmatpush1.bf16.msra.mxu0 %v3839
        %4164 = vmatprep.subr.bf16.mxu0 %v3854
        %4165 = vmatpush1.bf16.msra.mxu0 %v3853
        %4166 = vmatprep.subr.bf16.mxu0 %v3868
        %4167 = vmatpush1.bf16.msra.mxu0 %v3867
        %4168 = vmatprep.subr.bf16.mxu0 %v3882
        %4169 = vmatpush1.bf16.msra.mxu0 %v3881
        %4170 = vmatprep.subr.bf16.mxu0 %v3896
        %4171 = vmatpush1.bf16.msra.mxu0 %v3895
        %4172 = vmatprep.subr.bf16.mxu0 %v3910
        %4173 = vmatpush1.bf16.msra.mxu0 %v3909
        %4174 = vmatprep.subr.bf16.mxu0 %v4112
        %4175 = vmatpush1.bf16.msra.mxu0 %v4109
        %4176 = vmatprep.subr.bf16.mxu0 0
        %4177 = vmatpush1.bf16.msra.mxu0 0
        %4178 = vmatprep.subr.bf16.mxu0 0
        %4179 = vmatpush1.bf16.msra.mxu0 0
        %4180 = vmatprep.subr.bf16.mxu0 0
        %4181 = vmatpush1.bf16.msra.mxu0 0
        %4182 = vmatprep.mubr.bf16.mxu0 %v4106
        %4183 = vmatmul.mubr.bf16.gmra.mrb[0].mxu0 %v1619
        %v4184 = vpop.f32.mrb[0].mxu0
        %v4185 = vadd.f32 0.0, %v4184
        %v4186 = vpop.f32.mrb[0].mxu0
        %v4187 = vadd.f32 0.0, %v4186
        %v4188 = vpop.f32.mrb[0].mxu0
        %v4189 = vpop.f32.mrb[0].mxu0
        %4190 = vdwg.mxu0
        %4191 = vmatprep.subr.bf16.mxu0 %v3758
        %4192 = vmatpush1.bf16.msra.mxu0 %v3757
        %4193 = vmatprep.subr.bf16.mxu0 %v3772
        %4194 = vmatpush1.bf16.msra.mxu0 %v3771
        %4195 = vmatprep.subr.bf16.mxu0 %v3786
        %4196 = vmatpush1.bf16.msra.mxu0 %v3785
        %4197 = vmatprep.subr.bf16.mxu0 %v3800
        %4198 = vmatpush1.bf16.msra.mxu0 %v3799
        %4199 = vmatprep.subr.bf16.mxu0 %v3814
        %4200 = vmatpush1.bf16.msra.mxu0 %v3813
        %4201 = vmatprep.subr.bf16.mxu0 %v3828
        %4202 = vmatpush1.bf16.msra.mxu0 %v3827
        %4203 = vmatprep.subr.bf16.mxu0 %v3842
        %4204 = vmatpush1.bf16.msra.mxu0 %v3841
        %4205 = vmatprep.subr.bf16.mxu0 %v3856
        %4206 = vmatpush1.bf16.msra.mxu0 %v3855
        %4207 = vmatprep.subr.bf16.mxu0 %v3870
        %4208 = vmatpush1.bf16.msra.mxu0 %v3869
        %4209 = vmatprep.subr.bf16.mxu0 %v3884
        %4210 = vmatpush1.bf16.msra.mxu0 %v3883
        %4211 = vmatprep.subr.bf16.mxu0 %v3898
        %4212 = vmatpush1.bf16.msra.mxu0 %v3897
        %4213 = vmatprep.subr.bf16.mxu0 %v3912
        %4214 = vmatpush1.bf16.msra.mxu0 %v3911
        %4215 = vmatprep.subr.bf16.mxu0 %v4118
        %4216 = vmatpush1.bf16.msra.mxu0 %v4115
        %4217 = vmatprep.subr.bf16.mxu0 0
        %4218 = vmatpush1.bf16.msra.mxu0 0
        %4219 = vmatprep.subr.bf16.mxu0 0
        %4220 = vmatpush1.bf16.msra.mxu0 0
        %4221 = vmatprep.subr.bf16.mxu0 0
        %4222 = vmatpush1.bf16.msra.mxu0 0
        %4223 = vmatprep.mubr.bf16.mxu0 %v4106
        %4224 = vmatmul.mubr.bf16.gmra.mrb[0].mxu0 %v1619
        %v4225 = vpop.f32.mrb[0].mxu0
        %v4226 = vadd.f32 0.0, %v4225
        %v4227 = vpop.f32.mrb[0].mxu0
        %v4228 = vadd.f32 0.0, %v4227
        %v4229 = vpop.f32.mrb[0].mxu0
        %v4230 = vpop.f32.mrb[0].mxu0
        %4231 = vdwg.mxu0
        %4232 = vmatprep.subr.bf16.mxu0 %v3760
        %4233 = vmatpush1.bf16.msra.mxu0 %v3759
        %4234 = vmatprep.subr.bf16.mxu0 %v3774
        %4235 = vmatpush1.bf16.msra.mxu0 %v3773
        %4236 = vmatprep.subr.bf16.mxu0 %v3788
        %4237 = vmatpush1.bf16.msra.mxu0 %v3787
        %4238 = vmatprep.subr.bf16.mxu0 %v3802
        %4239 = vmatpush1.bf16.msra.mxu0 %v3801
        %4240 = vmatprep.subr.bf16.mxu0 %v3816
        %4241 = vmatpush1.bf16.msra.mxu0 %v3815
        %4242 = vmatprep.subr.bf16.mxu0 %v3830
        %4243 = vmatpush1.bf16.msra.mxu0 %v3829
        %4244 = vmatprep.subr.bf16.mxu0 %v3844
        %4245 = vmatpush1.bf16.msra.mxu0 %v3843
        %4246 = vmatprep.subr.bf16.mxu0 %v3858
        %4247 = vmatpush1.bf16.msra.mxu0 %v3857
        %4248 = vmatprep.subr.bf16.mxu0 %v3872
        %4249 = vmatpush1.bf16.msra.mxu0 %v3871
        %4250 = vmatprep.subr.bf16.mxu0 %v3886
        %4251 = vmatpush1.bf16.msra.mxu0 %v3885
        %4252 = vmatprep.subr.bf16.mxu0 %v3900
        %4253 = vmatpush1.bf16.msra.mxu0 %v3899
        %4254 = vmatprep.subr.bf16.mxu0 %v3914
        %4255 = vmatpush1.bf16.msra.mxu0 %v3913
        %4256 = vmatprep.subr.bf16.mxu0 %v4124
        %4257 = vmatpush1.bf16.msra.mxu0 %v4121
        %4258 = vmatprep.subr.bf16.mxu0 0
        %4259 = vmatpush1.bf16.msra.mxu0 0
        %4260 = vmatprep.subr.bf16.mxu0 0
        %4261 = vmatpush1.bf16.msra.mxu0 0
        %4262 = vmatprep.subr.bf16.mxu0 0
        %4263 = vmatpush1.bf16.msra.mxu0 0
        %4264 = vmatprep.mubr.bf16.mxu0 %v4106
        %4265 = vmatmul.mubr.bf16.gmra.mrb[0].mxu0 %v1619
        %v4266 = vpop.f32.mrb[0].mxu0
        %v4267 = vadd.f32 0.0, %v4266
        %v4268 = vpop.f32.mrb[0].mxu0
        %v4269 = vadd.f32 0.0, %v4268
        %v4270 = vpop.f32.mrb[0].mxu0
        %v4271 = vpop.f32.mrb[0].mxu0
        %4272 = vdwg.mxu0
        %4273 = vmatprep.subr.bf16.mxu0 %v3762
        %4274 = vmatpush1.bf16.msra.mxu0 %v3761
        %4275 = vmatprep.subr.bf16.mxu0 %v3776
        %4276 = vmatpush1.bf16.msra.mxu0 %v3775
        %4277 = vmatprep.subr.bf16.mxu0 %v3790
        %4278 = vmatpush1.bf16.msra.mxu0 %v3789
        %4279 = vmatprep.subr.bf16.mxu0 %v3804
        %4280 = vmatpush1.bf16.msra.mxu0 %v3803
        %4281 = vmatprep.subr.bf16.mxu0 %v3818
        %4282 = vmatpush1.bf16.msra.mxu0 %v3817
        %4283 = vmatprep.subr.bf16.mxu0 %v3832
        %4284 = vmatpush1.bf16.msra.mxu0 %v3831
        %4285 = vmatprep.subr.bf16.mxu0 %v3846
        %4286 = vmatpush1.bf16.msra.mxu0 %v3845
        %4287 = vmatprep.subr.bf16.mxu0 %v3860
        %4288 = vmatpush1.bf16.msra.mxu0 %v3859
        %4289 = vmatprep.subr.bf16.mxu0 %v3874
        %4290 = vmatpush1.bf16.msra.mxu0 %v3873
        %4291 = vmatprep.subr.bf16.mxu0 %v3888
        %4292 = vmatpush1.bf16.msra.mxu0 %v3887
        %4293 = vmatprep.subr.bf16.mxu0 %v3902
        %4294 = vmatpush1.bf16.msra.mxu0 %v3901
        %4295 = vmatprep.subr.bf16.mxu0 %v3916
        %4296 = vmatpush1.bf16.msra.mxu0 %v3915
        %4297 = vmatprep.subr.bf16.mxu0 %v4130
        %4298 = vmatpush1.bf16.msra.mxu0 %v4127
        %4299 = vmatprep.subr.bf16.mxu0 0
        %4300 = vmatpush1.bf16.msra.mxu0 0
        %4301 = vmatprep.subr.bf16.mxu0 0
        %4302 = vmatpush1.bf16.msra.mxu0 0
        %4303 = vmatprep.subr.bf16.mxu0 0
        %4304 = vmatpush1.bf16.msra.mxu0 0
        %4305 = vmatprep.mubr.bf16.mxu0 %v4106
        %4306 = vmatmul.mubr.bf16.gmra.mrb[0].mxu0 %v1619
        %v4307 = vpop.f32.mrb[0].mxu0
        %v4308 = vadd.f32 0.0, %v4307
        %v4309 = vpop.f32.mrb[0].mxu0
        %v4310 = vadd.f32 0.0, %v4309
        %v4311 = vpop.f32.mrb[0].mxu0
        %v4312 = vpop.f32.mrb[0].mxu0
        %4313 = vdwg.mxu0
        %4314 = vmatprep.subr.bf16.mxu0 %v3764
        %4315 = vmatpush1.bf16.msra.mxu0 %v3763
        %4316 = vmatprep.subr.bf16.mxu0 %v3778
        %4317 = vmatpush1.bf16.msra.mxu0 %v3777
        %4318 = vmatprep.subr.bf16.mxu0 %v3792
        %4319 = vmatpush1.bf16.msra.mxu0 %v3791
        %4320 = vmatprep.subr.bf16.mxu0 %v3806
        %4321 = vmatpush1.bf16.msra.mxu0 %v3805
        %4322 = vmatprep.subr.bf16.mxu0 %v3820
        %4323 = vmatpush1.bf16.msra.mxu0 %v3819
        %4324 = vmatprep.subr.bf16.mxu0 %v3834
        %4325 = vmatpush1.bf16.msra.mxu0 %v3833
        %4326 = vmatprep.subr.bf16.mxu0 %v3848
        %4327 = vmatpush1.bf16.msra.mxu0 %v3847
        %4328 = vmatprep.subr.bf16.mxu0 %v3862
        %4329 = vmatpush1.bf16.msra.mxu0 %v3861
        %4330 = vmatprep.subr.bf16.mxu0 %v3876
        %4331 = vmatpush1.bf16.msra.mxu0 %v3875
        %4332 = vmatprep.subr.bf16.mxu0 %v3890
        %4333 = vmatpush1.bf16.msra.mxu0 %v3889
        %4334 = vmatprep.subr.bf16.mxu0 %v3904
        %4335 = vmatpush1.bf16.msra.mxu0 %v3903
        %4336 = vmatprep.subr.bf16.mxu0 %v3918
        %4337 = vmatpush1.bf16.msra.mxu0 %v3917
        %4338 = vmatprep.subr.bf16.mxu0 %v4136
        %4339 = vmatpush1.bf16.msra.mxu0 %v4133
        %4340 = vmatprep.subr.bf16.mxu0 0
        %4341 = vmatpush1.bf16.msra.mxu0 0
        %4342 = vmatprep.subr.bf16.mxu0 0
        %4343 = vmatpush1.bf16.msra.mxu0 0
        %4344 = vmatprep.subr.bf16.mxu0 0
        %4345 = vmatpush1.bf16.msra.mxu0 0
        %4346 = vmatprep.mubr.bf16.mxu0 %v4106
        %4347 = vmatmul.mubr.bf16.gmra.mrb[0].mxu0 %v1619
        %v4348 = vpop.f32.mrb[0].mxu0
        %v4349 = vadd.f32 0.0, %v4348
        %v4350 = vpop.f32.mrb[0].mxu0
        %v4351 = vadd.f32 0.0, %v4350
        %v4352 = vpop.f32.mrb[0].mxu0
        %v4353 = vpop.f32.mrb[0].mxu0
        %4354 = vdwg.mxu0
        %4355 = vmatprep.subr.bf16.mxu0 %v3766
        %4356 = vmatpush1.bf16.msra.mxu0 %v3765
        %4357 = vmatprep.subr.bf16.mxu0 %v3780
        %4358 = vmatpush1.bf16.msra.mxu0 %v3779
        %4359 = vmatprep.subr.bf16.mxu0 %v3794
        %4360 = vmatpush1.bf16.msra.mxu0 %v3793
        %4361 = vmatprep.subr.bf16.mxu0 %v3808
        %4362 = vmatpush1.bf16.msra.mxu0 %v3807
        %4363 = vmatprep.subr.bf16.mxu0 %v3822
        %4364 = vmatpush1.bf16.msra.mxu0 %v3821
        %4365 = vmatprep.subr.bf16.mxu0 %v3836
        %4366 = vmatpush1.bf16.msra.mxu0 %v3835
        %4367 = vmatprep.subr.bf16.mxu0 %v3850
        %4368 = vmatpush1.bf16.msra.mxu0 %v3849
        %4369 = vmatprep.subr.bf16.mxu0 %v3864
        %4370 = vmatpush1.bf16.msra.mxu0 %v3863
        %4371 = vmatprep.subr.bf16.mxu0 %v3878
        %4372 = vmatpush1.bf16.msra.mxu0 %v3877
        %4373 = vmatprep.subr.bf16.mxu0 %v3892
        %4374 = vmatpush1.bf16.msra.mxu0 %v3891
        %4375 = vmatprep.subr.bf16.mxu0 %v3906
        %4376 = vmatpush1.bf16.msra.mxu0 %v3905
        %4377 = vmatprep.subr.bf16.mxu0 %v3920
        %4378 = vmatpush1.bf16.msra.mxu0 %v3919
        %4379 = vmatprep.subr.bf16.mxu0 %v4142
        %4380 = vmatpush1.bf16.msra.mxu0 %v4139
        %4381 = vmatprep.subr.bf16.mxu0 0
        %4382 = vmatpush1.bf16.msra.mxu0 0
        %4383 = vmatprep.subr.bf16.mxu0 0
        %4384 = vmatpush1.bf16.msra.mxu0 0
        %4385 = vmatprep.subr.bf16.mxu0 0
        %4386 = vmatpush1.bf16.msra.mxu0 0
        %4387 = vmatprep.mubr.bf16.mxu0 %v4106
        %4388 = vmatmul.mubr.bf16.gmra.mrb[0].mxu0 %v1619
        %v4389 = vpop.f32.mrb[0].mxu0
        %v4390 = vadd.f32 0.0, %v4389
        %v4391 = vpop.f32.mrb[0].mxu0
        %v4392 = vadd.f32 0.0, %v4391
        %v4393 = vpop.f32.mrb[0].mxu0
        %v4394 = vpop.f32.mrb[0].mxu0
        %4395 = vdwg.mxu0
        %4396 = vmatprep.subr.bf16.mxu0 %v3768
        %4397 = vmatpush1.bf16.msra.mxu0 %v3767
        %4398 = vmatprep.subr.bf16.mxu0 %v3782
        %4399 = vmatpush1.bf16.msra.mxu0 %v3781
        %4400 = vmatprep.subr.bf16.mxu0 %v3796
        %4401 = vmatpush1.bf16.msra.mxu0 %v3795
        %4402 = vmatprep.subr.bf16.mxu0 %v3810
        %4403 = vmatpush1.bf16.msra.mxu0 %v3809
        %4404 = vmatprep.subr.bf16.mxu0 %v3824
        %4405 = vmatpush1.bf16.msra.mxu0 %v3823
        %4406 = vmatprep.subr.bf16.mxu0 %v3838
        %4407 = vmatpush1.bf16.msra.mxu0 %v3837
        %4408 = vmatprep.subr.bf16.mxu0 %v3852
        %4409 = vmatpush1.bf16.msra.mxu0 %v3851
        %4410 = vmatprep.subr.bf16.mxu0 %v3866
        %4411 = vmatpush1.bf16.msra.mxu0 %v3865
        %4412 = vmatprep.subr.bf16.mxu0 %v3880
        %4413 = vmatpush1.bf16.msra.mxu0 %v3879
        %4414 = vmatprep.subr.bf16.mxu0 %v3894
        %4415 = vmatpush1.bf16.msra.mxu0 %v3893
        %4416 = vmatprep.subr.bf16.mxu0 %v3908
        %4417 = vmatpush1.bf16.msra.mxu0 %v3907
        %4418 = vmatprep.subr.bf16.mxu0 %v3922
        %4419 = vmatpush1.bf16.msra.mxu0 %v3921
        %4420 = vmatprep.subr.bf16.mxu0 %v4148
        %4421 = vmatpush1.bf16.msra.mxu0 %v4145
        %4422 = vmatprep.subr.bf16.mxu0 0
        %4423 = vmatpush1.bf16.msra.mxu0 0
        %4424 = vmatprep.subr.bf16.mxu0 0
        %4425 = vmatpush1.bf16.msra.mxu0 0
        %4426 = vmatprep.subr.bf16.mxu0 0
        %4427 = vmatpush1.bf16.msra.mxu0 0
        %4428 = vmatprep.mubr.bf16.mxu0 %v4106
        %4429 = vmatmul.mubr.bf16.gmra.mrb[0].mxu0 %v1619
        %v4430 = vpop.f32.mrb[0].mxu0
        %v4431 = vadd.f32 0.0, %v4430
        %v4432 = vpop.f32.mrb[0].mxu0
        %v4433 = vadd.f32 0.0, %v4432
        %v4434 = vpop.f32.mrb[0].mxu0
        %v4435 = vpop.f32.mrb[0].mxu0
        %4436 = vdwg.mxu0
        %v4437 = vrot.slane %v4185, 5
        %v4438 = vrot.slane %v4187, 5
        %v4439 = vsel %vm1506, %v4437, 0.0
        %v4440 = vsel %vm1506, %v4438, 0.0
        %v4441 = vadd.f32 %v4308, %v4439
        %v4442 = vadd.f32 %v4310, %v4440
        %v4443 = vrot.slane %v4226, 6
        %v4444 = vrot.slane %v4228, 6
        %v4445 = vsel %vm1520, %v4443, 0.0
        %v4446 = vsel %vm1520, %v4444, 0.0
        %v4447 = vadd.f32 %v4441, %v4445
        %v4448 = vadd.f32 %v4442, %v4446
        %v4449 = vrot.slane %v4267, 7
        %v4450 = vrot.slane %v4269, 7
        %v4451 = vsel %vm1534, %v4449, 0.0
        %v4452 = vsel %vm1534, %v4450, 0.0
        %v4453 = vadd.f32 %v4447, %v4451
        %v4454 = vadd.f32 %v4448, %v4452
        %v4455 = vrot.slane %v4349, 1
        %v4456 = vrot.slane %v4351, 1
        %v4457 = vsel %vm1548, %v4455, 0.0
        %v4458 = vsel %vm1548, %v4456, 0.0
        %v4459 = vadd.f32 %v4453, %v4457
        %v4460 = vadd.f32 %v4454, %v4458
        %v4461 = vrot.slane %v4390, 2
        %v4462 = vrot.slane %v4392, 2
        %v4463 = vsel %vm1562, %v4461, 0.0
        %v4464 = vsel %vm1562, %v4462, 0.0
        %v4465 = vadd.f32 %v4459, %v4463
        %v4466 = vadd.f32 %v4460, %v4464
        %v4467 = vrot.slane %v4431, 3
        %v4468 = vrot.slane %v4433, 3
        %v4469 = vsel %vm1576, %v4467, 0.0
        %v4470 = vsel %vm1576, %v4468, 0.0
        %v4471 = vadd.f32 %v4465, %v4469
        %v4472 = vadd.f32 %v4466, %v4470
        %v4473 = vld [vmem:[#allocation16] sm:$0x3]
        %v4475 = vlaneseq
        %v4476 = vshrl.u32 %v4475, 7
        %v4477 = vsub.s32 0, %v4476
        %v4478 = vrot.slane %v4473, %v4477
        %v4479 = vlaneseq
        %v4480 = vshrl.u32 %v4479, 7
        %v4481 = vsub.s32 1, %v4480
        %v4482 = vrot.slane %v4473, %v4481
        %v4485 = vadd.f32 %v4471, %v4478
        %v4486 = vadd.f32 %v4472, %v4482
        %v4487 = vpack.c.bf16 %v3053, %v3053
        %v4488 = vpack.c.bf16 %v3054, %v3054
        %v4489 = vpack.c.bf16 %v4485, %v4485
        %v4490 = vpack.c.bf16 %v4486, %v4486
        %v4491 = vld [vmem:[#allocation17] sm:$0xff]
        %v4492 = vld [vmem:[#allocation17 + $0x8] sm:$0xff]
        %v4493 = vld [vmem:[#allocation17 + $0x10] sm:$0xff]
        %v4494 = vld [vmem:[#allocation17 + $0x18] sm:$0xff]
        %v4495 = vld [vmem:[#allocation17 + $0x20] sm:$0xff]
        %v4496 = vld [vmem:[#allocation17 + $0x28] sm:$0xff]
        %v4497 = vld [vmem:[#allocation17 + $0x30] sm:$0xff]
        %v4498 = vld [vmem:[#allocation17 + $0x38] sm:$0xff]
        %v4499 = vld [vmem:[#allocation17 + $0x40] sm:$0xff]
        %v4500 = vld [vmem:[#allocation17 + $0x48] sm:$0xff]
        %v4501 = vld [vmem:[#allocation17 + $0x50] sm:$0xff]
        %v4502 = vld [vmem:[#allocation17 + $0x58] sm:$0xff]
        %v4503 = vld [vmem:[#allocation17 + $0x60] sm:$0xff]
        %v4504 = vld [vmem:[#allocation17 + $0x68] sm:$0xff]
        %v4505 = vld [vmem:[#allocation17 + $0x70] sm:$0xff]
        %v4506 = vld [vmem:[#allocation17 + $0x78] sm:$0xff]
        %v4507 = vld [vmem:[#allocation17 + $0x80] sm:$0xff]
        %v4508 = vld [vmem:[#allocation17 + $0x88] sm:$0xff]
        %v4509 = vld [vmem:[#allocation17 + $0x90] sm:$0xff]
        %v4510 = vld [vmem:[#allocation17 + $0x98] sm:$0xff]
        %v4511 = vld [vmem:[#allocation17 + $0xa0] sm:$0xff]
        %v4512 = vld [vmem:[#allocation17 + $0xa8] sm:$0xff]
        %v4513 = vld [vmem:[#allocation17 + $0xb0] sm:$0xff]
        %v4514 = vld [vmem:[#allocation17 + $0xb8] sm:$0xff]
        %v4515 = vld [vmem:[#allocation17 + $0xc0] sm:$0xff]
        %v4516 = vld [vmem:[#allocation17 + $0xc8] sm:$0xff]
        %v4517 = vld [vmem:[#allocation17 + $0xd0] sm:$0xff]
        %v4518 = vld [vmem:[#allocation17 + $0xd8] sm:$0xff]
        %v4519 = vld [vmem:[#allocation17 + $0xe0] sm:$0xff]
        %v4520 = vld [vmem:[#allocation17 + $0xe8] sm:$0xff]
        %v4521 = vld [vmem:[#allocation17 + $0xf0] sm:$0xff]
        %v4522 = vld [vmem:[#allocation17 + $0xf8] sm:$0xff]
        %v4523 = vld [vmem:[#allocation17 + $0x100] sm:$0xff]
        %v4524 = vld [vmem:[#allocation17 + $0x108] sm:$0xff]
        %v4525 = vld [vmem:[#allocation17 + $0x110] sm:$0xff]
        %v4526 = vld [vmem:[#allocation17 + $0x118] sm:$0xff]
        %v4527 = vld [vmem:[#allocation17 + $0x120] sm:$0xff]
        %v4528 = vld [vmem:[#allocation17 + $0x128] sm:$0xff]
        %v4529 = vld [vmem:[#allocation17 + $0x130] sm:$0xff]
        %v4530 = vld [vmem:[#allocation17 + $0x138] sm:$0xff]
        %v4531 = vld [vmem:[#allocation17 + $0x140] sm:$0xff]
        %v4532 = vld [vmem:[#allocation17 + $0x148] sm:$0xff]
        %v4533 = vld [vmem:[#allocation17 + $0x150] sm:$0xff]
        %v4534 = vld [vmem:[#allocation17 + $0x158] sm:$0xff]
        %v4535 = vld [vmem:[#allocation17 + $0x160] sm:$0xff]
        %v4536 = vld [vmem:[#allocation17 + $0x168] sm:$0xff]
        %v4537 = vld [vmem:[#allocation17 + $0x170] sm:$0xff]
        %v4538 = vld [vmem:[#allocation17 + $0x178] sm:$0xff]
        %v4539 = vld [vmem:[#allocation17 + $0x180] sm:$0xff]
        %v4540 = vld [vmem:[#allocation17 + $0x188] sm:$0xff]
        %v4541 = vld [vmem:[#allocation17 + $0x190] sm:$0xff]
        %v4542 = vld [vmem:[#allocation17 + $0x198] sm:$0xff]
        %v4543 = vld [vmem:[#allocation17 + $0x1a0] sm:$0xff]
        %v4544 = vld [vmem:[#allocation17 + $0x1a8] sm:$0xff]
        %v4545 = vld [vmem:[#allocation17 + $0x1b0] sm:$0xff]
        %v4546 = vld [vmem:[#allocation17 + $0x1b8] sm:$0xff]
        %v4547 = vld [vmem:[#allocation17 + $0x1c0] sm:$0xff]
        %v4548 = vld [vmem:[#allocation17 + $0x1c8] sm:$0xff]
        %v4549 = vld [vmem:[#allocation17 + $0x1d0] sm:$0xff]
        %v4550 = vld [vmem:[#allocation17 + $0x1d8] sm:$0xff]
        %v4551 = vld [vmem:[#allocation17 + $0x1e0] sm:$0xff]
        %v4552 = vld [vmem:[#allocation17 + $0x1e8] sm:$0xff]
        %v4553 = vld [vmem:[#allocation17 + $0x1f0] sm:$0xff]
        %v4554 = vld [vmem:[#allocation17 + $0x1f8] sm:$0xff]
        %v4555 = vld [vmem:[#allocation17 + $0x200] sm:$0xff]
        %v4556 = vld [vmem:[#allocation17 + $0x208] sm:$0xff]
        %v4557 = vld [vmem:[#allocation17 + $0x210] sm:$0xff]
        %v4558 = vld [vmem:[#allocation17 + $0x218] sm:$0xff]
        %v4559 = vld [vmem:[#allocation17 + $0x220] sm:$0xff]
        %v4560 = vld [vmem:[#allocation17 + $0x228] sm:$0xff]
        %v4561 = vld [vmem:[#allocation17 + $0x230] sm:$0xff]
        %v4562 = vld [vmem:[#allocation17 + $0x238] sm:$0xff]
        %v4563 = vld [vmem:[#allocation17 + $0x240] sm:$0xff]
        %v4564 = vld [vmem:[#allocation17 + $0x248] sm:$0xff]
        %v4565 = vld [vmem:[#allocation17 + $0x250] sm:$0xff]
        %v4566 = vld [vmem:[#allocation17 + $0x258] sm:$0xff]
        %v4567 = vld [vmem:[#allocation17 + $0x260] sm:$0xff]
        %v4568 = vld [vmem:[#allocation17 + $0x268] sm:$0xff]
        %v4569 = vld [vmem:[#allocation17 + $0x270] sm:$0xff]
        %v4570 = vld [vmem:[#allocation17 + $0x278] sm:$0xff]
        %v4571 = vld [vmem:[#allocation17 + $0x280] sm:$0xff]
        %v4572 = vld [vmem:[#allocation17 + $0x288] sm:$0xff]
        %v4573 = vld [vmem:[#allocation17 + $0x290] sm:$0xff]
        %v4574 = vld [vmem:[#allocation17 + $0x298] sm:$0xff]
        %v4575 = vld [vmem:[#allocation17 + $0x2a0] sm:$0xff]
        %v4576 = vld [vmem:[#allocation17 + $0x2a8] sm:$0xff]
        %v4577 = vld [vmem:[#allocation17 + $0x2b0] sm:$0xff]
        %v4578 = vld [vmem:[#allocation17 + $0x2b8] sm:$0xff]
        %v4579 = vld [vmem:[#allocation17 + $0x2c0] sm:$0xff]
        %v4580 = vld [vmem:[#allocation17 + $0x2c8] sm:$0xff]
        %v4581 = vld [vmem:[#allocation17 + $0x2d0] sm:$0xff]
        %v4582 = vld [vmem:[#allocation17 + $0x2d8] sm:$0xff]
        %v4583 = vld [vmem:[#allocation17 + $0x2e0] sm:$0xff]
        %v4584 = vld [vmem:[#allocation17 + $0x2e8] sm:$0xff]
        %v4585 = vld [vmem:[#allocation17 + $0x2f0] sm:$0xff]
        %v4586 = vld [vmem:[#allocation17 + $0x2f8] sm:$0xff]
        %v4587 = vld [vmem:[#allocation17 + $0x300] sm:$0xff]
        %v4588 = vld [vmem:[#allocation17 + $0x308] sm:$0xff]
        %v4589 = vld [vmem:[#allocation17 + $0x310] sm:$0xff]
        %v4590 = vld [vmem:[#allocation17 + $0x318] sm:$0xff]
        %v4691 = vunpack.c.l.b16 %v4491
        %v4692 = vunpack.c.h.b16 %v4491
        %v4693 = vunpack.c.l.b16 %v4492
        %v4694 = vunpack.c.h.b16 %v4492
        %v4695 = vunpack.c.l.b16 %v4493
        %v4696 = vunpack.c.h.b16 %v4493
        %v4697 = vunpack.c.l.b16 %v4494
        %v4698 = vunpack.c.h.b16 %v4494
        %v4699 = vunpack.c.l.b16 %v4495
        %v4700 = vunpack.c.h.b16 %v4495
        %v4701 = vunpack.c.l.b16 %v4496
        %v4702 = vunpack.c.h.b16 %v4496
        %v4703 = vunpack.c.l.b16 %v4497
        %v4704 = vunpack.c.h.b16 %v4497
        %v4705 = vunpack.c.l.b16 %v4498
        %v4706 = vunpack.c.h.b16 %v4498
        %v4707 = vunpack.c.l.b16 %v4499
        %v4708 = vunpack.c.h.b16 %v4499
        %v4709 = vunpack.c.l.b16 %v4500
        %v4710 = vunpack.c.h.b16 %v4500
        %v4711 = vunpack.c.l.b16 %v4501
        %v4712 = vunpack.c.h.b16 %v4501
        %v4713 = vunpack.c.l.b16 %v4502
        %v4714 = vunpack.c.h.b16 %v4502
        %v4715 = vunpack.c.l.b16 %v4503
        %v4716 = vunpack.c.h.b16 %v4503
        %v4717 = vunpack.c.l.b16 %v4504
        %v4718 = vunpack.c.h.b16 %v4504
        %v4719 = vunpack.c.l.b16 %v4505
        %v4720 = vunpack.c.h.b16 %v4505
        %v4721 = vunpack.c.l.b16 %v4506
        %v4722 = vunpack.c.h.b16 %v4506
        %v4723 = vunpack.c.l.b16 %v4507
        %v4724 = vunpack.c.h.b16 %v4507
        %v4725 = vunpack.c.l.b16 %v4508
        %v4726 = vunpack.c.h.b16 %v4508
        %v4727 = vunpack.c.l.b16 %v4509
        %v4728 = vunpack.c.h.b16 %v4509
        %v4729 = vunpack.c.l.b16 %v4510
        %v4730 = vunpack.c.h.b16 %v4510
        %v4731 = vunpack.c.l.b16 %v4511
        %v4732 = vunpack.c.h.b16 %v4511
        %v4733 = vunpack.c.l.b16 %v4512
        %v4734 = vunpack.c.h.b16 %v4512
        %v4735 = vunpack.c.l.b16 %v4513
        %v4736 = vunpack.c.h.b16 %v4513
        %v4737 = vunpack.c.l.b16 %v4514
        %v4738 = vunpack.c.h.b16 %v4514
        %v4739 = vunpack.c.l.b16 %v4515
        %v4740 = vunpack.c.h.b16 %v4515
        %v4741 = vunpack.c.l.b16 %v4516
        %v4742 = vunpack.c.h.b16 %v4516
        %v4743 = vunpack.c.l.b16 %v4517
        %v4744 = vunpack.c.h.b16 %v4517
        %v4745 = vunpack.c.l.b16 %v4518
        %v4746 = vunpack.c.h.b16 %v4518
        %v4747 = vunpack.c.l.b16 %v4519
        %v4748 = vunpack.c.h.b16 %v4519
        %v4749 = vunpack.c.l.b16 %v4520
        %v4750 = vunpack.c.h.b16 %v4520
        %v4751 = vunpack.c.l.b16 %v4521
        %v4752 = vunpack.c.h.b16 %v4521
        %v4753 = vunpack.c.l.b16 %v4522
        %v4754 = vunpack.c.h.b16 %v4522
        %v4755 = vunpack.c.l.b16 %v4523
        %v4756 = vunpack.c.h.b16 %v4523
        %v4757 = vunpack.c.l.b16 %v4524
        %v4758 = vunpack.c.h.b16 %v4524
        %v4759 = vunpack.c.l.b16 %v4525
        %v4760 = vunpack.c.h.b16 %v4525
        %v4761 = vunpack.c.l.b16 %v4526
        %v4762 = vunpack.c.h.b16 %v4526
        %v4763 = vunpack.c.l.b16 %v4527
        %v4764 = vunpack.c.h.b16 %v4527
        %v4765 = vunpack.c.l.b16 %v4528
        %v4766 = vunpack.c.h.b16 %v4528
        %v4767 = vunpack.c.l.b16 %v4529
        %v4768 = vunpack.c.h.b16 %v4529
        %v4769 = vunpack.c.l.b16 %v4530
        %v4770 = vunpack.c.h.b16 %v4530
        %v4771 = vunpack.c.l.b16 %v4531
        %v4772 = vunpack.c.h.b16 %v4531
        %v4773 = vunpack.c.l.b16 %v4532
        %v4774 = vunpack.c.h.b16 %v4532
        %v4775 = vunpack.c.l.b16 %v4533
        %v4776 = vunpack.c.h.b16 %v4533
        %v4777 = vunpack.c.l.b16 %v4534
        %v4778 = vunpack.c.h.b16 %v4534
        %v4779 = vunpack.c.l.b16 %v4535
        %v4780 = vunpack.c.h.b16 %v4535
        %v4781 = vunpack.c.l.b16 %v4536
        %v4782 = vunpack.c.h.b16 %v4536
        %v4783 = vunpack.c.l.b16 %v4537
        %v4784 = vunpack.c.h.b16 %v4537
        %v4785 = vunpack.c.l.b16 %v4538
        %v4786 = vunpack.c.h.b16 %v4538
        %v4787 = vunpack.c.l.b16 %v4539
        %v4788 = vunpack.c.h.b16 %v4539
        %v4789 = vunpack.c.l.b16 %v4540
        %v4790 = vunpack.c.h.b16 %v4540
        %v4791 = vunpack.c.l.b16 %v4541
        %v4792 = vunpack.c.h.b16 %v4541
        %v4793 = vunpack.c.l.b16 %v4542
        %v4794 = vunpack.c.h.b16 %v4542
        %v4795 = vunpack.c.l.b16 %v4543
        %v4796 = vunpack.c.h.b16 %v4543
        %v4797 = vunpack.c.l.b16 %v4544
        %v4798 = vunpack.c.h.b16 %v4544
        %v4799 = vunpack.c.l.b16 %v4545
        %v4800 = vunpack.c.h.b16 %v4545
        %v4801 = vunpack.c.l.b16 %v4546
        %v4802 = vunpack.c.h.b16 %v4546
        %v4803 = vunpack.c.l.b16 %v4547
        %v4804 = vunpack.c.h.b16 %v4547
        %v4805 = vunpack.c.l.b16 %v4548
        %v4806 = vunpack.c.h.b16 %v4548
        %v4807 = vunpack.c.l.b16 %v4549
        %v4808 = vunpack.c.h.b16 %v4549
        %v4809 = vunpack.c.l.b16 %v4550
        %v4810 = vunpack.c.h.b16 %v4550
        %v4811 = vunpack.c.l.b16 %v4551
        %v4812 = vunpack.c.h.b16 %v4551
        %v4813 = vunpack.c.l.b16 %v4552
        %v4814 = vunpack.c.h.b16 %v4552
        %v4815 = vunpack.c.l.b16 %v4553
        %v4816 = vunpack.c.h.b16 %v4553
        %v4817 = vunpack.c.l.b16 %v4554
        %v4818 = vunpack.c.h.b16 %v4554
        %v4819 = vunpack.c.l.b16 %v4555
        %v4820 = vunpack.c.h.b16 %v4555
        %v4821 = vunpack.c.l.b16 %v4556
        %v4822 = vunpack.c.h.b16 %v4556
        %v4823 = vunpack.c.l.b16 %v4557
        %v4824 = vunpack.c.h.b16 %v4557
        %v4825 = vunpack.c.l.b16 %v4558
        %v4826 = vunpack.c.h.b16 %v4558
        %v4827 = vunpack.c.l.b16 %v4559
        %v4828 = vunpack.c.h.b16 %v4559
        %v4829 = vunpack.c.l.b16 %v4560
        %v4830 = vunpack.c.h.b16 %v4560
        %v4831 = vunpack.c.l.b16 %v4561
        %v4832 = vunpack.c.h.b16 %v4561
        %v4833 = vunpack.c.l.b16 %v4562
        %v4834 = vunpack.c.h.b16 %v4562
        %v4835 = vunpack.c.l.b16 %v4563
        %v4836 = vunpack.c.h.b16 %v4563
        %v4837 = vunpack.c.l.b16 %v4564
        %v4838 = vunpack.c.h.b16 %v4564
        %v4839 = vunpack.c.l.b16 %v4565
        %v4840 = vunpack.c.h.b16 %v4565
        %v4841 = vunpack.c.l.b16 %v4566
        %v4842 = vunpack.c.h.b16 %v4566
        %v4843 = vunpack.c.l.b16 %v4567
        %v4844 = vunpack.c.h.b16 %v4567
        %v4845 = vunpack.c.l.b16 %v4568
        %v4846 = vunpack.c.h.b16 %v4568
        %v4847 = vunpack.c.l.b16 %v4569
        %v4848 = vunpack.c.h.b16 %v4569
        %v4849 = vunpack.c.l.b16 %v4570
        %v4850 = vunpack.c.h.b16 %v4570
        %v4851 = vunpack.c.l.b16 %v4571
        %v4852 = vunpack.c.h.b16 %v4571
        %v4853 = vunpack.c.l.b16 %v4572
        %v4854 = vunpack.c.h.b16 %v4572
        %v4855 = vunpack.c.l.b16 %v4573
        %v4856 = vunpack.c.h.b16 %v4573
        %v4857 = vunpack.c.l.b16 %v4574
        %v4858 = vunpack.c.h.b16 %v4574
        %v4859 = vunpack.c.l.b16 %v4575
        %v4860 = vunpack.c.h.b16 %v4575
        %v4861 = vunpack.c.l.b16 %v4576
        %v4862 = vunpack.c.h.b16 %v4576
        %v4863 = vunpack.c.l.b16 %v4577
        %v4864 = vunpack.c.h.b16 %v4577
        %v4865 = vunpack.c.l.b16 %v4578
        %v4866 = vunpack.c.h.b16 %v4578
        %v4867 = vunpack.c.l.b16 %v4579
        %v4868 = vunpack.c.h.b16 %v4579
        %v4869 = vunpack.c.l.b16 %v4580
        %v4870 = vunpack.c.h.b16 %v4580
        %v4871 = vunpack.c.l.b16 %v4581
        %v4872 = vunpack.c.h.b16 %v4581
        %v4873 = vunpack.c.l.b16 %v4582
        %v4874 = vunpack.c.h.b16 %v4582
        %v4875 = vunpack.c.l.b16 %v4583
        %v4876 = vunpack.c.h.b16 %v4583
        %v4877 = vunpack.c.l.b16 %v4584
        %v4878 = vunpack.c.h.b16 %v4584
        %v4879 = vunpack.c.l.b16 %v4585
        %v4880 = vunpack.c.h.b16 %v4585
        %v4881 = vunpack.c.l.b16 %v4586
        %v4882 = vunpack.c.h.b16 %v4586
        %v4883 = vunpack.c.l.b16 %v4587
        %v4884 = vunpack.c.h.b16 %v4587
        %v4885 = vunpack.c.l.b16 %v4588
        %v4886 = vunpack.c.h.b16 %v4588
        %v4887 = vunpack.c.l.b16 %v4589
        %v4888 = vunpack.c.h.b16 %v4589
        %v4889 = vunpack.c.l.b16 %v4590
        %v4890 = vunpack.c.h.b16 %v4590
        %v4891 = vpack.c.b16 %v4693, %v4691
        %v4892 = vpack.c.b16 %v4694, %v4692
        %v4893 = vpack.c.b16 %v4697, %v4695
        %v4894 = vpack.c.b16 %v4698, %v4696
        %v4895 = vpack.c.b16 %v4701, %v4699
        %v4896 = vpack.c.b16 %v4702, %v4700
        %v4897 = vpack.c.b16 %v4705, %v4703
        %v4898 = vpack.c.b16 %v4706, %v4704
        %v4899 = vpack.c.b16 %v4709, %v4707
        %v4900 = vpack.c.b16 %v4710, %v4708
        %v4901 = vpack.c.b16 %v4713, %v4711
        %v4902 = vpack.c.b16 %v4714, %v4712
        %v4903 = vpack.c.b16 %v4717, %v4715
        %v4904 = vpack.c.b16 %v4718, %v4716
        %v4905 = vpack.c.b16 %v4721, %v4719
        %v4906 = vpack.c.b16 %v4722, %v4720
        %v4907 = vpack.c.b16 %v4725, %v4723
        %v4908 = vpack.c.b16 %v4726, %v4724
        %v4909 = vpack.c.b16 %v4729, %v4727
        %v4910 = vpack.c.b16 %v4730, %v4728
        %v4911 = vpack.c.b16 %v4733, %v4731
        %v4912 = vpack.c.b16 %v4734, %v4732
        %v4913 = vpack.c.b16 %v4737, %v4735
        %v4914 = vpack.c.b16 %v4738, %v4736
        %v4915 = vpack.c.b16 %v4741, %v4739
        %v4916 = vpack.c.b16 %v4742, %v4740
        %v4917 = vpack.c.b16 %v4745, %v4743
        %v4918 = vpack.c.b16 %v4746, %v4744
        %v4919 = vpack.c.b16 %v4749, %v4747
        %v4920 = vpack.c.b16 %v4750, %v4748
        %v4921 = vpack.c.b16 %v4753, %v4751
        %v4922 = vpack.c.b16 %v4754, %v4752
        %v4923 = vpack.c.b16 %v4757, %v4755
        %v4924 = vpack.c.b16 %v4758, %v4756
        %v4925 = vpack.c.b16 %v4761, %v4759
        %v4926 = vpack.c.b16 %v4762, %v4760
        %v4927 = vpack.c.b16 %v4765, %v4763
        %v4928 = vpack.c.b16 %v4766, %v4764
        %v4929 = vpack.c.b16 %v4769, %v4767
        %v4930 = vpack.c.b16 %v4770, %v4768
        %v4931 = vpack.c.b16 %v4773, %v4771
        %v4932 = vpack.c.b16 %v4774, %v4772
        %v4933 = vpack.c.b16 %v4777, %v4775
        %v4934 = vpack.c.b16 %v4778, %v4776
        %v4935 = vpack.c.b16 %v4781, %v4779
        %v4936 = vpack.c.b16 %v4782, %v4780
        %v4937 = vpack.c.b16 %v4785, %v4783
        %v4938 = vpack.c.b16 %v4786, %v4784
        %v4939 = vpack.c.b16 %v4789, %v4787
        %v4940 = vpack.c.b16 %v4790, %v4788
        %v4941 = vpack.c.b16 %v4793, %v4791
        %v4942 = vpack.c.b16 %v4794, %v4792
        %v4943 = vpack.c.b16 %v4797, %v4795
        %v4944 = vpack.c.b16 %v4798, %v4796
        %v4945 = vpack.c.b16 %v4801, %v4799
        %v4946 = vpack.c.b16 %v4802, %v4800
        %v4947 = vpack.c.b16 %v4805, %v4803
        %v4948 = vpack.c.b16 %v4806, %v4804
        %v4949 = vpack.c.b16 %v4809, %v4807
        %v4950 = vpack.c.b16 %v4810, %v4808
        %v4951 = vpack.c.b16 %v4813, %v4811
        %v4952 = vpack.c.b16 %v4814, %v4812
        %v4953 = vpack.c.b16 %v4817, %v4815
        %v4954 = vpack.c.b16 %v4818, %v4816
        %v4955 = vpack.c.b16 %v4821, %v4819
        %v4956 = vpack.c.b16 %v4822, %v4820
        %v4957 = vpack.c.b16 %v4825, %v4823
        %v4958 = vpack.c.b16 %v4826, %v4824
        %v4959 = vpack.c.b16 %v4829, %v4827
        %v4960 = vpack.c.b16 %v4830, %v4828
        %v4961 = vpack.c.b16 %v4833, %v4831
        %v4962 = vpack.c.b16 %v4834, %v4832
        %v4963 = vpack.c.b16 %v4837, %v4835
        %v4964 = vpack.c.b16 %v4838, %v4836
        %v4965 = vpack.c.b16 %v4841, %v4839
        %v4966 = vpack.c.b16 %v4842, %v4840
        %v4967 = vpack.c.b16 %v4845, %v4843
        %v4968 = vpack.c.b16 %v4846, %v4844
        %v4969 = vpack.c.b16 %v4849, %v4847
        %v4970 = vpack.c.b16 %v4850, %v4848
        %v4971 = vpack.c.b16 %v4853, %v4851
        %v4972 = vpack.c.b16 %v4854, %v4852
        %v4973 = vpack.c.b16 %v4857, %v4855
        %v4974 = vpack.c.b16 %v4858, %v4856
        %v4975 = vpack.c.b16 %v4861, %v4859
        %v4976 = vpack.c.b16 %v4862, %v4860
        %v4977 = vpack.c.b16 %v4865, %v4863
        %v4978 = vpack.c.b16 %v4866, %v4864
        %v4979 = vpack.c.b16 %v4869, %v4867
        %v4980 = vpack.c.b16 %v4870, %v4868
        %v4981 = vpack.c.b16 %v4873, %v4871
        %v4982 = vpack.c.b16 %v4874, %v4872
        %v4983 = vpack.c.b16 %v4877, %v4875
        %v4984 = vpack.c.b16 %v4878, %v4876
        %v4985 = vpack.c.b16 %v4881, %v4879
        %v4986 = vpack.c.b16 %v4882, %v4880
        %v4987 = vpack.c.b16 %v4885, %v4883
        %v4988 = vpack.c.b16 %v4886, %v4884
        %v4989 = vpack.c.b16 %v4889, %v4887
        %v4990 = vpack.c.b16 %v4890, %v4888
        %v5042 = vsel %vm2671, %v4892, 0
        %v5045 = vsel %vm2671, %v4894, 0
        %v5048 = vsel %vm2671, %v4896, 0
        %v5051 = vsel %vm2671, %v4898, 0
        %v5054 = vsel %vm2671, %v4900, 0
        %v5057 = vsel %vm2671, %v4902, 0
        %v5060 = vsel %vm2671, %v4904, 0
        %v5063 = vsel %vm2671, %v4906, 0
        %v5066 = vsel %vm2671, %v4908, 0
        %v5069 = vsel %vm2671, %v4910, 0
        %v5072 = vsel %vm2671, %v4912, 0
        %v5075 = vsel %vm2671, %v4914, 0
        %v5078 = vsel %vm2671, %v4916, 0
        %v5081 = vsel %vm2671, %v4918, 0
        %v5084 = vsel %vm2671, %v4920, 0
        %v5087 = vsel %vm2671, %v4922, 0
        %v5090 = vsel %vm2671, %v4924, 0
        %v5093 = vsel %vm2671, %v4926, 0
        %v5096 = vsel %vm2671, %v4928, 0
        %v5099 = vsel %vm2671, %v4930, 0
        %v5102 = vsel %vm2671, %v4932, 0
        %v5105 = vsel %vm2671, %v4934, 0
        %v5108 = vsel %vm2671, %v4936, 0
        %v5111 = vsel %vm2671, %v4938, 0
        %v5114 = vsel %vm2671, %v4940, 0
        %v5117 = vsel %vm2671, %v4942, 0
        %v5120 = vsel %vm2671, %v4944, 0
        %v5123 = vsel %vm2671, %v4946, 0
        %v5126 = vsel %vm2671, %v4948, 0
        %v5129 = vsel %vm2671, %v4950, 0
        %v5132 = vsel %vm2671, %v4952, 0
        %v5135 = vsel %vm2671, %v4954, 0
        %v5138 = vsel %vm2671, %v4956, 0
        %v5141 = vsel %vm2671, %v4958, 0
        %v5144 = vsel %vm2671, %v4960, 0
        %v5147 = vsel %vm2671, %v4962, 0
        %v5150 = vsel %vm2671, %v4964, 0
        %v5153 = vsel %vm2671, %v4966, 0
        %v5156 = vsel %vm2671, %v4968, 0
        %v5159 = vsel %vm2671, %v4970, 0
        %v5162 = vsel %vm2671, %v4972, 0
        %v5165 = vsel %vm2671, %v4974, 0
        %v5168 = vsel %vm2671, %v4976, 0
        %v5171 = vsel %vm2671, %v4978, 0
        %v5174 = vsel %vm2671, %v4980, 0
        %v5177 = vsel %vm2671, %v4982, 0
        %v5180 = vsel %vm2671, %v4984, 0
        %v5183 = vsel %vm2671, %v4986, 0
        %v5186 = vsel %vm2671, %v4988, 0
        %v5189 = vsel %vm2671, %v4990, 0
        %v5192 = vsel %vm2671, %v4490, 0
        %5194 = vmatprep.subr.bf16.mxu0 %v5192
        %5195 = vmatpush1.bf16.xpose.msra.mxu0 %v4489
        %5196 = vmatprep.subr.bf16.mxu0 0
        %5197 = vmatpush1.bf16.xpose.msra.mxu0 0
        %5198 = vmatprep.subr.bf16.mxu0 0
        %5199 = vmatpush1.bf16.xpose.msra.mxu0 0
        %5200 = vmatprep.subr.bf16.mxu0 0
        %5201 = vmatpush1.bf16.xpose.msra.mxu0 0
        %5202 = vmatprep.subr.bf16.mxu0 0
        %5203 = vmatpush1.bf16.xpose.msra.mxu0 0
        %5204 = vmatprep.subr.bf16.mxu0 0
        %5205 = vmatpush1.bf16.xpose.msra.mxu0 0
        %5206 = vmatprep.subr.bf16.mxu0 0
        %5207 = vmatpush1.bf16.xpose.msra.mxu0 0
        %5208 = vmatprep.subr.bf16.mxu0 0
        %5209 = vmatpush1.bf16.xpose.msra.mxu0 0
        %5210 = vmatprep.subr.bf16.mxu0 0
        %5211 = vmatpush1.bf16.xpose.msra.mxu0 0
        %5212 = vmatprep.subr.bf16.mxu0 0
        %5213 = vmatpush1.bf16.xpose.msra.mxu0 0
        %5214 = vmatprep.subr.bf16.mxu0 0
        %5215 = vmatpush1.bf16.xpose.msra.mxu0 0
        %5216 = vmatprep.subr.bf16.mxu0 0
        %5217 = vmatpush1.bf16.xpose.msra.mxu0 0
        %5218 = vmatprep.subr.bf16.mxu0 0
        %5219 = vmatpush1.bf16.xpose.msra.mxu0 0
        %5220 = vmatprep.subr.bf16.mxu0 0
        %5221 = vmatpush1.bf16.xpose.msra.mxu0 0
        %5222 = vmatprep.subr.bf16.mxu0 0
        %5223 = vmatpush1.bf16.xpose.msra.mxu0 0
        %5224 = vmatprep.subr.bf16.mxu0 0
        %5225 = vmatpush1.bf16.xpose.msra.mxu0 0
        %5226 = vmatprep.mubr.bf16.mxu0 %v5042
        %5227 = vmatmul.mubr.bf16.gmra.mrb[0].mxu0 %v4891
        %v5228 = vpop.f32.mrb[0].mxu0
        %v5229 = vadd.f32 0.0, %v5228
        %v5230 = vpop.f32.mrb[0].mxu0
        %v5231 = vpop.f32.mrb[0].mxu0
        %v5232 = vadd.f32 0.0, %v5231
        %v5233 = vpop.f32.mrb[0].mxu0
        %5234 = vmatprep.mubr.bf16.mxu0 %v5045
        %5235 = vmatmul.mubr.bf16.gmra.mrb[0].mxu0 %v4893
        %v5236 = vpop.f32.mrb[0].mxu0
        %v5237 = vadd.f32 0.0, %v5236
        %v5238 = vpop.f32.mrb[0].mxu0
        %v5239 = vpop.f32.mrb[0].mxu0
        %v5240 = vadd.f32 0.0, %v5239
        %v5241 = vpop.f32.mrb[0].mxu0
        %5242 = vmatprep.mubr.bf16.mxu0 %v5048
        %5243 = vmatmul.mubr.bf16.gmra.mrb[0].mxu0 %v4895
        %v5244 = vpop.f32.mrb[0].mxu0
        %v5245 = vadd.f32 0.0, %v5244
        %v5246 = vpop.f32.mrb[0].mxu0
        %v5247 = vpop.f32.mrb[0].mxu0
        %v5248 = vadd.f32 0.0, %v5247
        %v5249 = vpop.f32.mrb[0].mxu0
        %5250 = vmatprep.mubr.bf16.mxu0 %v5051
        %5251 = vmatmul.mubr.bf16.gmra.mrb[0].mxu0 %v4897
        %v5252 = vpop.f32.mrb[0].mxu0
        %v5253 = vadd.f32 0.0, %v5252
        %v5254 = vpop.f32.mrb[0].mxu0
        %v5255 = vpop.f32.mrb[0].mxu0
        %v5256 = vadd.f32 0.0, %v5255
        %v5257 = vpop.f32.mrb[0].mxu0
        %5258 = vmatprep.mubr.bf16.mxu0 %v5054
        %5259 = vmatmul.mubr.bf16.gmra.mrb[0].mxu0 %v4899
        %v5260 = vpop.f32.mrb[0].mxu0
        %v5261 = vadd.f32 0.0, %v5260
        %v5262 = vpop.f32.mrb[0].mxu0
        %v5263 = vpop.f32.mrb[0].mxu0
        %v5264 = vadd.f32 0.0, %v5263
        %v5265 = vpop.f32.mrb[0].mxu0
        %5266 = vmatprep.mubr.bf16.mxu0 %v5057
        %5267 = vmatmul.mubr.bf16.gmra.mrb[0].mxu0 %v4901
        %v5268 = vpop.f32.mrb[0].mxu0
        %v5269 = vadd.f32 0.0, %v5268
        %v5270 = vpop.f32.mrb[0].mxu0
        %v5271 = vpop.f32.mrb[0].mxu0
        %v5272 = vadd.f32 0.0, %v5271
        %v5273 = vpop.f32.mrb[0].mxu0
        %5274 = vmatprep.mubr.bf16.mxu0 %v5060
        %5275 = vmatmul.mubr.bf16.gmra.mrb[0].mxu0 %v4903
        %v5276 = vpop.f32.mrb[0].mxu0
        %v5277 = vadd.f32 0.0, %v5276
        %v5278 = vpop.f32.mrb[0].mxu0
        %v5279 = vpop.f32.mrb[0].mxu0
        %v5280 = vadd.f32 0.0, %v5279
        %v5281 = vpop.f32.mrb[0].mxu0
        %5282 = vmatprep.mubr.bf16.mxu0 %v5063
        %5283 = vmatmul.mubr.bf16.gmra.mrb[0].mxu0 %v4905
        %v5284 = vpop.f32.mrb[0].mxu0
        %v5285 = vadd.f32 0.0, %v5284
        %v5286 = vpop.f32.mrb[0].mxu0
        %v5287 = vpop.f32.mrb[0].mxu0
        %v5288 = vadd.f32 0.0, %v5287
        %v5289 = vpop.f32.mrb[0].mxu0
        %5290 = vmatprep.mubr.bf16.mxu0 %v5066
        %5291 = vmatmul.mubr.bf16.gmra.mrb[0].mxu0 %v4907
        %v5292 = vpop.f32.mrb[0].mxu0
        %v5293 = vadd.f32 0.0, %v5292
        %v5294 = vpop.f32.mrb[0].mxu0
        %v5295 = vpop.f32.mrb[0].mxu0
        %v5296 = vadd.f32 0.0, %v5295
        %v5297 = vpop.f32.mrb[0].mxu0
        %5298 = vmatprep.mubr.bf16.mxu0 %v5069
        %5299 = vmatmul.mubr.bf16.gmra.mrb[0].mxu0 %v4909
        %v5300 = vpop.f32.mrb[0].mxu0
        %v5301 = vadd.f32 0.0, %v5300
        %v5302 = vpop.f32.mrb[0].mxu0
        %v5303 = vpop.f32.mrb[0].mxu0
        %v5304 = vadd.f32 0.0, %v5303
        %v5305 = vpop.f32.mrb[0].mxu0
        %5306 = vmatprep.mubr.bf16.mxu0 %v5072
        %5307 = vmatmul.mubr.bf16.gmra.mrb[0].mxu0 %v4911
        %v5308 = vpop.f32.mrb[0].mxu0
        %v5309 = vadd.f32 0.0, %v5308
        %v5310 = vpop.f32.mrb[0].mxu0
        %v5311 = vpop.f32.mrb[0].mxu0
        %v5312 = vadd.f32 0.0, %v5311
        %v5313 = vpop.f32.mrb[0].mxu0
        %5314 = vmatprep.mubr.bf16.mxu0 %v5075
        %5315 = vmatmul.mubr.bf16.gmra.mrb[0].mxu0 %v4913
        %v5316 = vpop.f32.mrb[0].mxu0
        %v5317 = vadd.f32 0.0, %v5316
        %v5318 = vpop.f32.mrb[0].mxu0
        %v5319 = vpop.f32.mrb[0].mxu0
        %v5320 = vadd.f32 0.0, %v5319
        %v5321 = vpop.f32.mrb[0].mxu0
        %5322 = vmatprep.mubr.bf16.mxu0 %v5078
        %5323 = vmatmul.mubr.bf16.gmra.mrb[0].mxu0 %v4915
        %v5324 = vpop.f32.mrb[0].mxu0
        %v5325 = vadd.f32 0.0, %v5324
        %v5326 = vpop.f32.mrb[0].mxu0
        %v5327 = vpop.f32.mrb[0].mxu0
        %v5328 = vadd.f32 0.0, %v5327
        %v5329 = vpop.f32.mrb[0].mxu0
        %5330 = vmatprep.mubr.bf16.mxu0 %v5081
        %5331 = vmatmul.mubr.bf16.gmra.mrb[0].mxu0 %v4917
        %v5332 = vpop.f32.mrb[0].mxu0
        %v5333 = vadd.f32 0.0, %v5332
        %v5334 = vpop.f32.mrb[0].mxu0
        %v5335 = vpop.f32.mrb[0].mxu0
        %v5336 = vadd.f32 0.0, %v5335
        %v5337 = vpop.f32.mrb[0].mxu0
        %5338 = vmatprep.mubr.bf16.mxu0 %v5084
        %5339 = vmatmul.mubr.bf16.gmra.mrb[0].mxu0 %v4919
        %v5340 = vpop.f32.mrb[0].mxu0
        %v5341 = vadd.f32 0.0, %v5340
        %v5342 = vpop.f32.mrb[0].mxu0
        %v5343 = vpop.f32.mrb[0].mxu0
        %v5344 = vadd.f32 0.0, %v5343
        %v5345 = vpop.f32.mrb[0].mxu0
        %5346 = vmatprep.mubr.bf16.mxu0 %v5087
        %5347 = vmatmul.mubr.bf16.gmra.mrb[0].mxu0 %v4921
        %v5348 = vpop.f32.mrb[0].mxu0
        %v5349 = vadd.f32 0.0, %v5348
        %v5350 = vpop.f32.mrb[0].mxu0
        %v5351 = vpop.f32.mrb[0].mxu0
        %v5352 = vadd.f32 0.0, %v5351
        %v5353 = vpop.f32.mrb[0].mxu0
        %5354 = vmatprep.mubr.bf16.mxu0 %v5090
        %5355 = vmatmul.mubr.bf16.gmra.mrb[0].mxu0 %v4923
        %v5356 = vpop.f32.mrb[0].mxu0
        %v5357 = vadd.f32 0.0, %v5356
        %v5358 = vpop.f32.mrb[0].mxu0
        %v5359 = vpop.f32.mrb[0].mxu0
        %v5360 = vadd.f32 0.0, %v5359
        %v5361 = vpop.f32.mrb[0].mxu0
        %5362 = vmatprep.mubr.bf16.mxu0 %v5093
        %5363 = vmatmul.mubr.bf16.gmra.mrb[0].mxu0 %v4925
        %v5364 = vpop.f32.mrb[0].mxu0
        %v5365 = vadd.f32 0.0, %v5364
        %v5366 = vpop.f32.mrb[0].mxu0
        %v5367 = vpop.f32.mrb[0].mxu0
        %v5368 = vadd.f32 0.0, %v5367
        %v5369 = vpop.f32.mrb[0].mxu0
        %5370 = vmatprep.mubr.bf16.mxu0 %v5096
        %5371 = vmatmul.mubr.bf16.gmra.mrb[0].mxu0 %v4927
        %v5372 = vpop.f32.mrb[0].mxu0
        %v5373 = vadd.f32 0.0, %v5372
        %v5374 = vpop.f32.mrb[0].mxu0
        %v5375 = vpop.f32.mrb[0].mxu0
        %v5376 = vadd.f32 0.0, %v5375
        %v5377 = vpop.f32.mrb[0].mxu0
        %5378 = vmatprep.mubr.bf16.mxu0 %v5099
        %5379 = vmatmul.mubr.bf16.gmra.mrb[0].mxu0 %v4929
        %v5380 = vpop.f32.mrb[0].mxu0
        %v5381 = vadd.f32 0.0, %v5380
        %v5382 = vpop.f32.mrb[0].mxu0
        %v5383 = vpop.f32.mrb[0].mxu0
        %v5384 = vadd.f32 0.0, %v5383
        %v5385 = vpop.f32.mrb[0].mxu0
        %5386 = vmatprep.mubr.bf16.mxu0 %v5102
        %5387 = vmatmul.mubr.bf16.gmra.mrb[0].mxu0 %v4931
        %v5388 = vpop.f32.mrb[0].mxu0
        %v5389 = vadd.f32 0.0, %v5388
        %v5390 = vpop.f32.mrb[0].mxu0
        %v5391 = vpop.f32.mrb[0].mxu0
        %v5392 = vadd.f32 0.0, %v5391
        %v5393 = vpop.f32.mrb[0].mxu0
        %5394 = vmatprep.mubr.bf16.mxu0 %v5105
        %5395 = vmatmul.mubr.bf16.gmra.mrb[0].mxu0 %v4933
        %v5396 = vpop.f32.mrb[0].mxu0
        %v5397 = vadd.f32 0.0, %v5396
        %v5398 = vpop.f32.mrb[0].mxu0
        %v5399 = vpop.f32.mrb[0].mxu0
        %v5400 = vadd.f32 0.0, %v5399
        %v5401 = vpop.f32.mrb[0].mxu0
        %5402 = vmatprep.mubr.bf16.mxu0 %v5108
        %5403 = vmatmul.mubr.bf16.gmra.mrb[0].mxu0 %v4935
        %v5404 = vpop.f32.mrb[0].mxu0
        %v5405 = vadd.f32 0.0, %v5404
        %v5406 = vpop.f32.mrb[0].mxu0
        %v5407 = vpop.f32.mrb[0].mxu0
        %v5408 = vadd.f32 0.0, %v5407
        %v5409 = vpop.f32.mrb[0].mxu0
        %5410 = vmatprep.mubr.bf16.mxu0 %v5111
        %5411 = vmatmul.mubr.bf16.gmra.mrb[0].mxu0 %v4937
        %v5412 = vpop.f32.mrb[0].mxu0
        %v5413 = vadd.f32 0.0, %v5412
        %v5414 = vpop.f32.mrb[0].mxu0
        %v5415 = vpop.f32.mrb[0].mxu0
        %v5416 = vadd.f32 0.0, %v5415
        %v5417 = vpop.f32.mrb[0].mxu0
        %5418 = vmatprep.mubr.bf16.mxu0 %v5114
        %5419 = vmatmul.mubr.bf16.gmra.mrb[0].mxu0 %v4939
        %v5420 = vpop.f32.mrb[0].mxu0
        %v5421 = vadd.f32 0.0, %v5420
        %v5422 = vpop.f32.mrb[0].mxu0
        %v5423 = vpop.f32.mrb[0].mxu0
        %v5424 = vadd.f32 0.0, %v5423
        %v5425 = vpop.f32.mrb[0].mxu0
        %5426 = vmatprep.mubr.bf16.mxu0 %v5117
        %5427 = vmatmul.mubr.bf16.gmra.mrb[0].mxu0 %v4941
        %v5428 = vpop.f32.mrb[0].mxu0
        %v5429 = vadd.f32 0.0, %v5428
        %v5430 = vpop.f32.mrb[0].mxu0
        %v5431 = vpop.f32.mrb[0].mxu0
        %v5432 = vadd.f32 0.0, %v5431
        %v5433 = vpop.f32.mrb[0].mxu0
        %5434 = vmatprep.mubr.bf16.mxu0 %v5120
        %5435 = vmatmul.mubr.bf16.gmra.mrb[0].mxu0 %v4943
        %v5436 = vpop.f32.mrb[0].mxu0
        %v5437 = vadd.f32 0.0, %v5436
        %v5438 = vpop.f32.mrb[0].mxu0
        %v5439 = vpop.f32.mrb[0].mxu0
        %v5440 = vadd.f32 0.0, %v5439
        %v5441 = vpop.f32.mrb[0].mxu0
        %5442 = vmatprep.mubr.bf16.mxu0 %v5123
        %5443 = vmatmul.mubr.bf16.gmra.mrb[0].mxu0 %v4945
        %v5444 = vpop.f32.mrb[0].mxu0
        %v5445 = vadd.f32 0.0, %v5444
        %v5446 = vpop.f32.mrb[0].mxu0
        %v5447 = vpop.f32.mrb[0].mxu0
        %v5448 = vadd.f32 0.0, %v5447
        %v5449 = vpop.f32.mrb[0].mxu0
        %5450 = vmatprep.mubr.bf16.mxu0 %v5126
        %5451 = vmatmul.mubr.bf16.gmra.mrb[0].mxu0 %v4947
        %v5452 = vpop.f32.mrb[0].mxu0
        %v5453 = vadd.f32 0.0, %v5452
        %v5454 = vpop.f32.mrb[0].mxu0
        %v5455 = vpop.f32.mrb[0].mxu0
        %v5456 = vadd.f32 0.0, %v5455
        %v5457 = vpop.f32.mrb[0].mxu0
        %5458 = vmatprep.mubr.bf16.mxu0 %v5129
        %5459 = vmatmul.mubr.bf16.gmra.mrb[0].mxu0 %v4949
        %v5460 = vpop.f32.mrb[0].mxu0
        %v5461 = vadd.f32 0.0, %v5460
        %v5462 = vpop.f32.mrb[0].mxu0
        %v5463 = vpop.f32.mrb[0].mxu0
        %v5464 = vadd.f32 0.0, %v5463
        %v5465 = vpop.f32.mrb[0].mxu0
        %5466 = vmatprep.mubr.bf16.mxu0 %v5132
        %5467 = vmatmul.mubr.bf16.gmra.mrb[0].mxu0 %v4951
        %v5468 = vpop.f32.mrb[0].mxu0
        %v5469 = vadd.f32 0.0, %v5468
        %v5470 = vpop.f32.mrb[0].mxu0
        %v5471 = vpop.f32.mrb[0].mxu0
        %v5472 = vadd.f32 0.0, %v5471
        %v5473 = vpop.f32.mrb[0].mxu0
        %5474 = vmatprep.mubr.bf16.mxu0 %v5135
        %5475 = vmatmul.mubr.bf16.gmra.mrb[0].mxu0 %v4953
        %v5476 = vpop.f32.mrb[0].mxu0
        %v5477 = vadd.f32 0.0, %v5476
        %v5478 = vpop.f32.mrb[0].mxu0
        %v5479 = vpop.f32.mrb[0].mxu0
        %v5480 = vadd.f32 0.0, %v5479
        %v5481 = vpop.f32.mrb[0].mxu0
        %5482 = vmatprep.mubr.bf16.mxu0 %v5138
        %5483 = vmatmul.mubr.bf16.gmra.mrb[0].mxu0 %v4955
        %v5484 = vpop.f32.mrb[0].mxu0
        %v5485 = vadd.f32 0.0, %v5484
        %v5486 = vpop.f32.mrb[0].mxu0
        %v5487 = vpop.f32.mrb[0].mxu0
        %v5488 = vadd.f32 0.0, %v5487
        %v5489 = vpop.f32.mrb[0].mxu0
        %5490 = vmatprep.mubr.bf16.mxu0 %v5141
        %5491 = vmatmul.mubr.bf16.gmra.mrb[0].mxu0 %v4957
        %v5492 = vpop.f32.mrb[0].mxu0
        %v5493 = vadd.f32 0.0, %v5492
        %v5494 = vpop.f32.mrb[0].mxu0
        %v5495 = vpop.f32.mrb[0].mxu0
        %v5496 = vadd.f32 0.0, %v5495
        %v5497 = vpop.f32.mrb[0].mxu0
        %5498 = vmatprep.mubr.bf16.mxu0 %v5144
        %5499 = vmatmul.mubr.bf16.gmra.mrb[0].mxu0 %v4959
        %v5500 = vpop.f32.mrb[0].mxu0
        %v5501 = vadd.f32 0.0, %v5500
        %v5502 = vpop.f32.mrb[0].mxu0
        %v5503 = vpop.f32.mrb[0].mxu0
        %v5504 = vadd.f32 0.0, %v5503
        %v5505 = vpop.f32.mrb[0].mxu0
        %5506 = vmatprep.mubr.bf16.mxu0 %v5147
        %5507 = vmatmul.mubr.bf16.gmra.mrb[0].mxu0 %v4961
        %v5508 = vpop.f32.mrb[0].mxu0
        %v5509 = vadd.f32 0.0, %v5508
        %v5510 = vpop.f32.mrb[0].mxu0
        %v5511 = vpop.f32.mrb[0].mxu0
        %v5512 = vadd.f32 0.0, %v5511
        %v5513 = vpop.f32.mrb[0].mxu0
        %5514 = vmatprep.mubr.bf16.mxu0 %v5150
        %5515 = vmatmul.mubr.bf16.gmra.mrb[0].mxu0 %v4963
        %v5516 = vpop.f32.mrb[0].mxu0
        %v5517 = vadd.f32 0.0, %v5516
        %v5518 = vpop.f32.mrb[0].mxu0
        %v5519 = vpop.f32.mrb[0].mxu0
        %v5520 = vadd.f32 0.0, %v5519
        %v5521 = vpop.f32.mrb[0].mxu0
        %5522 = vmatprep.mubr.bf16.mxu0 %v5153
        %5523 = vmatmul.mubr.bf16.gmra.mrb[0].mxu0 %v4965
        %v5524 = vpop.f32.mrb[0].mxu0
        %v5525 = vadd.f32 0.0, %v5524
        %v5526 = vpop.f32.mrb[0].mxu0
        %v5527 = vpop.f32.mrb[0].mxu0
        %v5528 = vadd.f32 0.0, %v5527
        %v5529 = vpop.f32.mrb[0].mxu0
        %5530 = vmatprep.mubr.bf16.mxu0 %v5156
        %5531 = vmatmul.mubr.bf16.gmra.mrb[0].mxu0 %v4967
        %v5532 = vpop.f32.mrb[0].mxu0
        %v5533 = vadd.f32 0.0, %v5532
        %v5534 = vpop.f32.mrb[0].mxu0
        %v5535 = vpop.f32.mrb[0].mxu0
        %v5536 = vadd.f32 0.0, %v5535
        %v5537 = vpop.f32.mrb[0].mxu0
        %5538 = vmatprep.mubr.bf16.mxu0 %v5159
        %5539 = vmatmul.mubr.bf16.gmra.mrb[0].mxu0 %v4969
        %v5540 = vpop.f32.mrb[0].mxu0
        %v5541 = vadd.f32 0.0, %v5540
        %v5542 = vpop.f32.mrb[0].mxu0
        %v5543 = vpop.f32.mrb[0].mxu0
        %v5544 = vadd.f32 0.0, %v5543
        %v5545 = vpop.f32.mrb[0].mxu0
        %5546 = vmatprep.mubr.bf16.mxu0 %v5162
        %5547 = vmatmul.mubr.bf16.gmra.mrb[0].mxu0 %v4971
        %v5548 = vpop.f32.mrb[0].mxu0
        %v5549 = vadd.f32 0.0, %v5548
        %v5550 = vpop.f32.mrb[0].mxu0
        %v5551 = vpop.f32.mrb[0].mxu0
        %v5552 = vadd.f32 0.0, %v5551
        %v5553 = vpop.f32.mrb[0].mxu0
        %5554 = vmatprep.mubr.bf16.mxu0 %v5165
        %5555 = vmatmul.mubr.bf16.gmra.mrb[0].mxu0 %v4973
        %v5556 = vpop.f32.mrb[0].mxu0
        %v5557 = vadd.f32 0.0, %v5556
        %v5558 = vpop.f32.mrb[0].mxu0
        %v5559 = vpop.f32.mrb[0].mxu0
        %v5560 = vadd.f32 0.0, %v5559
        %v5561 = vpop.f32.mrb[0].mxu0
        %5562 = vmatprep.mubr.bf16.mxu0 %v5168
        %5563 = vmatmul.mubr.bf16.gmra.mrb[0].mxu0 %v4975
        %v5564 = vpop.f32.mrb[0].mxu0
        %v5565 = vadd.f32 0.0, %v5564
        %v5566 = vpop.f32.mrb[0].mxu0
        %v5567 = vpop.f32.mrb[0].mxu0
        %v5568 = vadd.f32 0.0, %v5567
        %v5569 = vpop.f32.mrb[0].mxu0
        %5570 = vmatprep.mubr.bf16.mxu0 %v5171
        %5571 = vmatmul.mubr.bf16.gmra.mrb[0].mxu0 %v4977
        %v5572 = vpop.f32.mrb[0].mxu0
        %v5573 = vadd.f32 0.0, %v5572
        %v5574 = vpop.f32.mrb[0].mxu0
        %v5575 = vpop.f32.mrb[0].mxu0
        %v5576 = vadd.f32 0.0, %v5575
        %v5577 = vpop.f32.mrb[0].mxu0
        %5578 = vmatprep.mubr.bf16.mxu0 %v5174
        %5579 = vmatmul.mubr.bf16.gmra.mrb[0].mxu0 %v4979
        %v5580 = vpop.f32.mrb[0].mxu0
        %v5581 = vadd.f32 0.0, %v5580
        %v5582 = vpop.f32.mrb[0].mxu0
        %v5583 = vpop.f32.mrb[0].mxu0
        %v5584 = vadd.f32 0.0, %v5583
        %v5585 = vpop.f32.mrb[0].mxu0
        %5586 = vmatprep.mubr.bf16.mxu0 %v5177
        %5587 = vmatmul.mubr.bf16.gmra.mrb[0].mxu0 %v4981
        %v5588 = vpop.f32.mrb[0].mxu0
        %v5589 = vadd.f32 0.0, %v5588
        %v5590 = vpop.f32.mrb[0].mxu0
        %v5591 = vpop.f32.mrb[0].mxu0
        %v5592 = vadd.f32 0.0, %v5591
        %v5593 = vpop.f32.mrb[0].mxu0
        %5594 = vmatprep.mubr.bf16.mxu0 %v5180
        %5595 = vmatmul.mubr.bf16.gmra.mrb[0].mxu0 %v4983
        %v5596 = vpop.f32.mrb[0].mxu0
        %v5597 = vadd.f32 0.0, %v5596
        %v5598 = vpop.f32.mrb[0].mxu0
        %v5599 = vpop.f32.mrb[0].mxu0
        %v5600 = vadd.f32 0.0, %v5599
        %v5601 = vpop.f32.mrb[0].mxu0
        %5602 = vmatprep.mubr.bf16.mxu0 %v5183
        %5603 = vmatmul.mubr.bf16.gmra.mrb[0].mxu0 %v4985
        %v5604 = vpop.f32.mrb[0].mxu0
        %v5605 = vadd.f32 0.0, %v5604
        %v5606 = vpop.f32.mrb[0].mxu0
        %v5607 = vpop.f32.mrb[0].mxu0
        %v5608 = vadd.f32 0.0, %v5607
        %v5609 = vpop.f32.mrb[0].mxu0
        %5610 = vmatprep.mubr.bf16.mxu0 %v5186
        %5611 = vmatmul.mubr.bf16.gmra.mrb[0].mxu0 %v4987
        %v5612 = vpop.f32.mrb[0].mxu0
        %v5613 = vadd.f32 0.0, %v5612
        %v5614 = vpop.f32.mrb[0].mxu0
        %v5615 = vpop.f32.mrb[0].mxu0
        %v5616 = vadd.f32 0.0, %v5615
        %v5617 = vpop.f32.mrb[0].mxu0
        %5618 = vmatprep.mubr.bf16.mxu0 %v5189
        %5619 = vmatmul.mubr.bf16.gmra.mrb[0].mxu0 %v4989
        %v5620 = vpop.f32.mrb[0].mxu0
        %v5621 = vadd.f32 0.0, %v5620
        %v5622 = vpop.f32.mrb[0].mxu0
        %v5623 = vpop.f32.mrb[0].mxu0
        %v5624 = vadd.f32 0.0, %v5623
        %v5625 = vpop.f32.mrb[0].mxu0
        %5626 = vdwg.mxu0
        %v5627 = vpack.c.bf16 %v5232, %v5229
        %v5628 = vpack.c.bf16 %v5240, %v5237
        %v5629 = vpack.c.bf16 %v5248, %v5245
        %v5630 = vpack.c.bf16 %v5256, %v5253
        %v5631 = vpack.c.bf16 %v5264, %v5261
        %v5632 = vpack.c.bf16 %v5272, %v5269
        %v5633 = vpack.c.bf16 %v5280, %v5277
        %v5634 = vpack.c.bf16 %v5288, %v5285
        %v5635 = vpack.c.bf16 %v5296, %v5293
        %v5636 = vpack.c.bf16 %v5304, %v5301
        %v5637 = vpack.c.bf16 %v5312, %v5309
        %v5638 = vpack.c.bf16 %v5320, %v5317
        %v5639 = vpack.c.bf16 %v5325, %v5325
        %v5640 = vpack.c.bf16 %v5333, %v5328
        %v5641 = vpack.c.bf16 %v5341, %v5336
        %v5642 = vpack.c.bf16 %v5349, %v5344
        %v5643 = vpack.c.bf16 %v5357, %v5352
        %v5644 = vpack.c.bf16 %v5365, %v5360
        %v5645 = vpack.c.bf16 %v5373, %v5368
        %v5646 = vpack.c.bf16 %v5381, %v5376
        %v5647 = vpack.c.bf16 %v5389, %v5384
        %v5648 = vpack.c.bf16 %v5397, %v5392
        %v5649 = vpack.c.bf16 %v5405, %v5400
        %v5650 = vpack.c.bf16 %v5413, %v5408
        %v5651 = vpack.c.bf16 %v5421, %v5416
        %v5652 = vpack.c.bf16 %v5424, %v5424
        %v5653 = vpack.c.bf16 %v5432, %v5429
        %v5654 = vpack.c.bf16 %v5440, %v5437
        %v5655 = vpack.c.bf16 %v5448, %v5445
        %v5656 = vpack.c.bf16 %v5456, %v5453
        %v5657 = vpack.c.bf16 %v5464, %v5461
        %v5658 = vpack.c.bf16 %v5472, %v5469
        %v5659 = vpack.c.bf16 %v5480, %v5477
        %v5660 = vpack.c.bf16 %v5488, %v5485
        %v5661 = vpack.c.bf16 %v5496, %v5493
        %v5662 = vpack.c.bf16 %v5504, %v5501
        %v5663 = vpack.c.bf16 %v5512, %v5509
        %v5664 = vpack.c.bf16 %v5520, %v5517
        %v5665 = vpack.c.bf16 %v5525, %v5525
        %v5666 = vpack.c.bf16 %v5533, %v5528
        %v5667 = vpack.c.bf16 %v5541, %v5536
        %v5668 = vpack.c.bf16 %v5549, %v5544
        %v5669 = vpack.c.bf16 %v5557, %v5552
        %v5670 = vpack.c.bf16 %v5565, %v5560
        %v5671 = vpack.c.bf16 %v5573, %v5568
        %v5672 = vpack.c.bf16 %v5581, %v5576
        %v5673 = vpack.c.bf16 %v5589, %v5584
        %v5674 = vpack.c.bf16 %v5597, %v5592
        %v5675 = vpack.c.bf16 %v5605, %v5600
        %v5676 = vpack.c.bf16 %v5613, %v5608
        %v5677 = vpack.c.bf16 %v5621, %v5616
        %v5678 = vpack.c.bf16 %v5624, %v5624
        %v5680 = vsel %vm2671, %v4488, 0
        %v5683 = vsel %vm2675, %v5639, 0
        %5685 = vmatprep.subr.bf16.mxu0 0
        %5686 = vmatpush1.bf16.msra.mxu0 %v5627
        %5687 = vmatprep.subr.bf16.mxu0 0
        %5688 = vmatpush1.bf16.msra.mxu0 %v5628
        %5689 = vmatprep.subr.bf16.mxu0 0
        %5690 = vmatpush1.bf16.msra.mxu0 %v5629
        %5691 = vmatprep.subr.bf16.mxu0 0
        %5692 = vmatpush1.bf16.msra.mxu0 %v5630
        %5693 = vmatprep.subr.bf16.mxu0 0
        %5694 = vmatpush1.bf16.msra.mxu0 %v5631
        %5695 = vmatprep.subr.bf16.mxu0 0
        %5696 = vmatpush1.bf16.msra.mxu0 %v5632
        %5697 = vmatprep.subr.bf16.mxu0 0
        %5698 = vmatpush1.bf16.msra.mxu0 %v5633
        %5699 = vmatprep.subr.bf16.mxu0 0
        %5700 = vmatpush1.bf16.msra.mxu0 %v5634
        %5701 = vmatprep.subr.bf16.mxu0 0
        %5702 = vmatpush1.bf16.msra.mxu0 %v5635
        %5703 = vmatprep.subr.bf16.mxu0 0
        %5704 = vmatpush1.bf16.msra.mxu0 %v5636
        %5705 = vmatprep.subr.bf16.mxu0 0
        %5706 = vmatpush1.bf16.msra.mxu0 %v5637
        %5707 = vmatprep.subr.bf16.mxu0 0
        %5708 = vmatpush1.bf16.msra.mxu0 %v5638
        %5709 = vmatprep.subr.bf16.mxu0 0
        %5710 = vmatpush1.bf16.msra.mxu0 %v5683
        %5711 = vmatprep.subr.bf16.mxu0 0
        %5712 = vmatpush1.bf16.msra.mxu0 0
        %5713 = vmatprep.subr.bf16.mxu0 0
        %5714 = vmatpush1.bf16.msra.mxu0 0
        %5715 = vmatprep.subr.bf16.mxu0 0
        %5716 = vmatpush1.bf16.msra.mxu0 0
        %5717 = vmatprep.mubr.bf16.mxu0 %v5680
        %5718 = vmatmul.mubr.bf16.gmra.mrb[0].mxu0 %v4487
        %v5719 = vpop.f32.mrb[0].mxu0
        %v5720 = vadd.f32 %v559, %v5719
        %v5721 = vpop.f32.mrb[0].mxu0
        %v5722 = vpop.f32.mrb[0].mxu0
        %v5723 = vpop.f32.mrb[0].mxu0
        %5724 = vdwg.mxu0
        %vm5725 = vcmask 64512
        %5726 = vst.msk [vmem:[%s550] sm:$0xff] %vm5725, %v5720
        %v5727 = vsel %vm5725, %v5720, -inf
        %5728 = vmax.xlane.f32.xlu0 %v5727
        %v5729 = vpop.xlane.xlu0 %5728
        %v5730 = vrot.slane %v5729, 4
        %v5731 = vmax.f32 %v5729, %v5730
        %v5732 = vrot.slane %v5731, 2
        %v5733 = vmax.f32 %v5731, %v5732
        %v5734 = vrot.slane %v5733, 1
        %v5735 = vmax.f32 %v5733, %v5734
        %v5736 = vsub.f32 %v5720, %v5735
        %v5737 = vmul.f32 %v5736, 1.442695
        %v5738 = vpow.pop %v5737
        %v5739 = vsel %vm5725, %v5738, 0.0
        %5740 = vadd.xlane.f32.xlu0 %v5739
        %v5741 = vpop.xlane.xlu0 %5740
        %v5742 = vrot.slane %v5741, 4
        %v5743 = vadd.f32 %v5741, %v5742
        %v5744 = vrot.slane %v5743, 2
        %v5745 = vadd.f32 %v5743, %v5744
        %v5746 = vrot.slane %v5745, 1
        %v5747 = vadd.f32 %v5745, %v5746
        %v5748 = vlog2.pop %v5747
        %v5749 = vmul.f32 %v5748, 0.6931472
        %v5750 = vadd.f32 %v5735, %v5749
        %v5752 = vsel %vm2675, %v5652, 0
        %5754 = vmatprep.subr.bf16.mxu0 0
        %5755 = vmatpush1.bf16.msra.mxu0 %v5640
        %5756 = vmatprep.subr.bf16.mxu0 0
        %5757 = vmatpush1.bf16.msra.mxu0 %v5641
        %5758 = vmatprep.subr.bf16.mxu0 0
        %5759 = vmatpush1.bf16.msra.mxu0 %v5642
        %5760 = vmatprep.subr.bf16.mxu0 0
        %5761 = vmatpush1.bf16.msra.mxu0 %v5643
        %5762 = vmatprep.subr.bf16.mxu0 0
        %5763 = vmatpush1.bf16.msra.mxu0 %v5644
        %5764 = vmatprep.subr.bf16.mxu0 0
        %5765 = vmatpush1.bf16.msra.mxu0 %v5645
        %5766 = vmatprep.subr.bf16.mxu0 0
        %5767 = vmatpush1.bf16.msra.mxu0 %v5646
        %5768 = vmatprep.subr.bf16.mxu0 0
        %5769 = vmatpush1.bf16.msra.mxu0 %v5647
        %5770 = vmatprep.subr.bf16.mxu0 0
        %5771 = vmatpush1.bf16.msra.mxu0 %v5648
        %5772 = vmatprep.subr.bf16.mxu0 0
        %5773 = vmatpush1.bf16.msra.mxu0 %v5649
        %5774 = vmatprep.subr.bf16.mxu0 0
        %5775 = vmatpush1.bf16.msra.mxu0 %v5650
        %5776 = vmatprep.subr.bf16.mxu0 0
        %5777 = vmatpush1.bf16.msra.mxu0 %v5651
        %5778 = vmatprep.subr.bf16.mxu0 0
        %5779 = vmatpush1.bf16.msra.mxu0 %v5752
        %5780 = vmatprep.subr.bf16.mxu0 0
        %5781 = vmatpush1.bf16.msra.mxu0 0
        %5782 = vmatprep.subr.bf16.mxu0 0
        %5783 = vmatpush1.bf16.msra.mxu0 0
        %5784 = vmatprep.subr.bf16.mxu0 0
        %5785 = vmatpush1.bf16.msra.mxu0 0
        %5786 = vmatprep.mubr.bf16.mxu0 %v5680
        %5787 = vmatmul.mubr.bf16.gmra.mrb[0].mxu0 %v4487
        %v5788 = vpop.f32.mrb[0].mxu0
        %v5789 = vadd.f32 %v559, %v5788
        %v5790 = vpop.f32.mrb[0].mxu0
        %v5791 = vpop.f32.mrb[0].mxu0
        %v5792 = vpop.f32.mrb[0].mxu0
        %5793 = vdwg.mxu0
        %s5794 = scalar_lea.vmem %s550, 8 [#allocation19]
        %5795 = vst.msk [vmem:[%s5794] sm:$0xff] %vm5725, %v5789
        %v5796 = vsel %vm5725, %v5789, -inf
        %5797 = vmax.xlane.f32.xlu0 %v5796
        %v5798 = vpop.xlane.xlu0 %5797
        %v5799 = vrot.slane %v5798, 4
        %v5800 = vmax.f32 %v5798, %v5799
        %v5801 = vrot.slane %v5800, 2
        %v5802 = vmax.f32 %v5800, %v5801
        %v5803 = vrot.slane %v5802, 1
        %v5804 = vmax.f32 %v5802, %v5803
        %v5805 = vsub.f32 %v5789, %v5804
        %v5806 = vmul.f32 %v5805, 1.442695
        %v5807 = vpow.pop %v5806
        %v5808 = vsel %vm5725, %v5807, 0.0
        %5809 = vadd.xlane.f32.xlu0 %v5808
        %v5810 = vpop.xlane.xlu0 %5809
        %v5811 = vrot.slane %v5810, 4
        %v5812 = vadd.f32 %v5810, %v5811
        %v5813 = vrot.slane %v5812, 2
        %v5814 = vadd.f32 %v5812, %v5813
        %v5815 = vrot.slane %v5814, 1
        %v5816 = vadd.f32 %v5814, %v5815
        %v5817 = vlog2.pop %v5816
        %v5818 = vmul.f32 %v5817, 0.6931472
        %v5819 = vadd.f32 %v5804, %v5818
        %v5821 = vsel %vm2675, %v5665, 0
        %5823 = vmatprep.subr.bf16.mxu0 0
        %5824 = vmatpush1.bf16.msra.mxu0 %v5653
        %5825 = vmatprep.subr.bf16.mxu0 0
        %5826 = vmatpush1.bf16.msra.mxu0 %v5654
        %5827 = vmatprep.subr.bf16.mxu0 0
        %5828 = vmatpush1.bf16.msra.mxu0 %v5655
        %5829 = vmatprep.subr.bf16.mxu0 0
        %5830 = vmatpush1.bf16.msra.mxu0 %v5656
        %5831 = vmatprep.subr.bf16.mxu0 0
        %5832 = vmatpush1.bf16.msra.mxu0 %v5657
        %5833 = vmatprep.subr.bf16.mxu0 0
        %5834 = vmatpush1.bf16.msra.mxu0 %v5658
        %5835 = vmatprep.subr.bf16.mxu0 0
        %5836 = vmatpush1.bf16.msra.mxu0 %v5659
        %5837 = vmatprep.subr.bf16.mxu0 0
        %5838 = vmatpush1.bf16.msra.mxu0 %v5660
        %5839 = vmatprep.subr.bf16.mxu0 0
        %5840 = vmatpush1.bf16.msra.mxu0 %v5661
        %5841 = vmatprep.subr.bf16.mxu0 0
        %5842 = vmatpush1.bf16.msra.mxu0 %v5662
        %5843 = vmatprep.subr.bf16.mxu0 0
        %5844 = vmatpush1.bf16.msra.mxu0 %v5663
        %5845 = vmatprep.subr.bf16.mxu0 0
        %5846 = vmatpush1.bf16.msra.mxu0 %v5664
        %5847 = vmatprep.subr.bf16.mxu0 0
        %5848 = vmatpush1.bf16.msra.mxu0 %v5821
        %5849 = vmatprep.subr.bf16.mxu0 0
        %5850 = vmatpush1.bf16.msra.mxu0 0
        %5851 = vmatprep.subr.bf16.mxu0 0
        %5852 = vmatpush1.bf16.msra.mxu0 0
        %5853 = vmatprep.subr.bf16.mxu0 0
        %5854 = vmatpush1.bf16.msra.mxu0 0
        %5855 = vmatprep.mubr.bf16.mxu0 %v5680
        %5856 = vmatmul.mubr.bf16.gmra.mrb[0].mxu0 %v4487
        %v5857 = vpop.f32.mrb[0].mxu0
        %v5858 = vadd.f32 %v559, %v5857
        %v5859 = vpop.f32.mrb[0].mxu0
        %v5860 = vpop.f32.mrb[0].mxu0
        %v5861 = vpop.f32.mrb[0].mxu0
        %5862 = vdwg.mxu0
        %s5863 = scalar_lea.vmem %s550, 16 [#allocation19]
        %5864 = vst.msk [vmem:[%s5863] sm:$0xff] %vm5725, %v5858
        %v5865 = vsel %vm5725, %v5858, -inf
        %5866 = vmax.xlane.f32.xlu0 %v5865
        %v5867 = vpop.xlane.xlu0 %5866
        %v5868 = vrot.slane %v5867, 4
        %v5869 = vmax.f32 %v5867, %v5868
        %v5870 = vrot.slane %v5869, 2
        %v5871 = vmax.f32 %v5869, %v5870
        %v5872 = vrot.slane %v5871, 1
        %v5873 = vmax.f32 %v5871, %v5872
        %v5874 = vsub.f32 %v5858, %v5873
        %v5875 = vmul.f32 %v5874, 1.442695
        %v5876 = vpow.pop %v5875
        %v5877 = vsel %vm5725, %v5876, 0.0
        %5878 = vadd.xlane.f32.xlu0 %v5877
        %v5879 = vpop.xlane.xlu0 %5878
        %v5880 = vrot.slane %v5879, 4
        %v5881 = vadd.f32 %v5879, %v5880
        %v5882 = vrot.slane %v5881, 2
        %v5883 = vadd.f32 %v5881, %v5882
        %v5884 = vrot.slane %v5883, 1
        %v5885 = vadd.f32 %v5883, %v5884
        %v5886 = vlog2.pop %v5885
        %v5887 = vmul.f32 %v5886, 0.6931472
        %v5888 = vadd.f32 %v5873, %v5887
        %v5890 = vsel %vm2675, %v5678, 0
        %5892 = vmatprep.subr.bf16.mxu0 0
        %5893 = vmatpush1.bf16.msra.mxu0 %v5666
        %5894 = vmatprep.subr.bf16.mxu0 0
        %5895 = vmatpush1.bf16.msra.mxu0 %v5667
        %5896 = vmatprep.subr.bf16.mxu0 0
        %5897 = vmatpush1.bf16.msra.mxu0 %v5668
        %5898 = vmatprep.subr.bf16.mxu0 0
        %5899 = vmatpush1.bf16.msra.mxu0 %v5669
        %5900 = vmatprep.subr.bf16.mxu0 0
        %5901 = vmatpush1.bf16.msra.mxu0 %v5670
        %5902 = vmatprep.subr.bf16.mxu0 0
        %5903 = vmatpush1.bf16.msra.mxu0 %v5671
        %5904 = vmatprep.subr.bf16.mxu0 0
        %5905 = vmatpush1.bf16.msra.mxu0 %v5672
        %5906 = vmatprep.subr.bf16.mxu0 0
        %5907 = vmatpush1.bf16.msra.mxu0 %v5673
        %5908 = vmatprep.subr.bf16.mxu0 0
        %5909 = vmatpush1.bf16.msra.mxu0 %v5674
        %5910 = vmatprep.subr.bf16.mxu0 0
        %5911 = vmatpush1.bf16.msra.mxu0 %v5675
        %5912 = vmatprep.subr.bf16.mxu0 0
        %5913 = vmatpush1.bf16.msra.mxu0 %v5676
        %5914 = vmatprep.subr.bf16.mxu0 0
        %5915 = vmatpush1.bf16.msra.mxu0 %v5677
        %5916 = vmatprep.subr.bf16.mxu0 0
        %5917 = vmatpush1.bf16.msra.mxu0 %v5890
        %5918 = vmatprep.subr.bf16.mxu0 0
        %5919 = vmatpush1.bf16.msra.mxu0 0
        %5920 = vmatprep.subr.bf16.mxu0 0
        %5921 = vmatpush1.bf16.msra.mxu0 0
        %5922 = vmatprep.subr.bf16.mxu0 0
        %5923 = vmatpush1.bf16.msra.mxu0 0
        %5924 = vmatprep.mubr.bf16.mxu0 %v5680
        %5925 = vmatmul.mubr.bf16.gmra.mrb[0].mxu0 %v4487
        %v5926 = vpop.f32.mrb[0].mxu0
        %v5927 = vadd.f32 %v559, %v5926
        %v5928 = vpop.f32.mrb[0].mxu0
        %v5929 = vpop.f32.mrb[0].mxu0
        %v5930 = vpop.f32.mrb[0].mxu0
        %5931 = vdwg.mxu0
        %s5932 = scalar_lea.vmem %s550, 24 [#allocation19]
        %5933 = vst.msk [vmem:[%s5932] sm:$0xff] %vm5725, %v5927
        %v5934 = vsel %vm5725, %v5927, -inf
        %5935 = vmax.xlane.f32.xlu0 %v5934
        %v5936 = vpop.xlane.xlu0 %5935
        %v5937 = vrot.slane %v5936, 4
        %v5938 = vmax.f32 %v5936, %v5937
        %v5939 = vrot.slane %v5938, 2
        %v5940 = vmax.f32 %v5938, %v5939
        %v5941 = vrot.slane %v5940, 1
        %v5942 = vmax.f32 %v5940, %v5941
        %v5943 = vsub.f32 %v5927, %v5942
        %v5944 = vmul.f32 %v5943, 1.442695
        %v5945 = vpow.pop %v5944
        %v5946 = vsel %vm5725, %v5945, 0.0
        %5947 = vadd.xlane.f32.xlu0 %v5946
        %v5948 = vpop.xlane.xlu0 %5947
        %v5949 = vrot.slane %v5948, 4
        %v5950 = vadd.f32 %v5948, %v5949
        %v5951 = vrot.slane %v5950, 2
        %v5952 = vadd.f32 %v5950, %v5951
        %v5953 = vrot.slane %v5952, 1
        %v5954 = vadd.f32 %v5952, %v5953
        %v5955 = vlog2.pop %v5954
        %v5956 = vmul.f32 %v5955, 0.6931472
        %v5957 = vadd.f32 %v5942, %v5956
        %vm5958 = vcmask 7168
        %v5959 = vsel %vm5958, %v5750, %v5819
        %vm5960 = vcmask 15360
        %v5961 = vsel %vm5960, %v5959, %v5888
        %vm5962 = vcmask 23552
        %v5963 = vsel %vm5962, %v5961, %v5957
        %vm5964 = vcmask 24576
        %5965 = vst.msk [vmem:[%s556] sm:$0x1] %vm5964, %v5963
        %s5966 = sand.u32 %s267, 1
        %s5967 = scalar_lea.sflag [#allocation4], %s5966
        %s5968 = sand.u32 %s267, 1
        %s5969 = smul.addr %s5968, 32
        %s5970 = scalar_lea.vmem [#allocation19], %s5969
        %s5971 = sand.u32 %s293, 1
        %s5972 = scalar_lea.sflag [#allocation21], %s5971
        %s5973 = sand.u32 %s293, 1
        %s5974 = scalar_lea.vmem [#allocation20], %s5973
        // Predicated region
        $region101: #{biaffine_pairwise_forward.2} parent=59 // pred_check
          %p5975 = pneg %p277
        $region102: #{biaffine_pairwise_forward.2} parent=59 // pred_check_branch
          %5977 = sbr.rel (%p5975) target = $region104
        $region103: #{biaffine_pairwise_forward.2} parent=59 // pred_region
          %s5979 = ssub.s32 512, 512
          %5980 = vsyncadd %s5967, %s5979
          %s5981 = smul.addr %s39, 4
          %s5982 = smul.addr %s5981, 128
          %s5983 = scalar_lea.hbm %s10, %s5982
          %s5984 = sshll.u32 %s5970, 4
          %s5985 = int_to_ptr.vmem [resolvable:$true] %s5984
          %5990 = dma.vmem_to_hbm [thread:$0]  %s5985, 512, %s5983, %s5967, 128, 128, 8
        $region104: #{biaffine_pairwise_forward.2} parent=59 // pred_fallthru
          _
        // Predicated region
        $region105: #{biaffine_pairwise_forward.2} parent=59 // pred_check
          %p5991 = pneg %p303
        $region106: #{biaffine_pairwise_forward.2} parent=59 // pred_check_branch
          %5993 = sbr.rel (%p5991) target = $region108
        $region107: #{biaffine_pairwise_forward.2} parent=59 // pred_region
          %s5995 = ssub.s32 16, 16
          %5996 = vsyncadd %s5972, %s5995
          %s5997 = smul.addr %s39, 16
          %s5998 = scalar_lea.hbm %s11, %s5997
          %s6000 = sshll.u32 %s5974, 4
          %s6001 = int_to_ptr.vmem [resolvable:$true] %s6000
          %6003 = dma.vmem_to_hbm [thread:$0]  %s6001, 16, %s5998, %s5972
        $region108: #{biaffine_pairwise_forward.2} parent=59 // pred_fallthru
          _
      $region60: #{biaffine_pairwise_forward.2} parent=5 // pred_fallthru
        _
      %p6004 = scmp.le.s32.totalorder 2, %s34
      // Predicated region
      $region109: #{biaffine_pairwise_forward.2} parent=5 // pred_check
        %p6005 = pneg %p6004
      $region110: #{biaffine_pairwise_forward.2} parent=5 // pred_check_branch
        %6007 = sbr.rel (%p6005) target = $region112
      $region111: #{biaffine_pairwise_forward.2} parent=5 // pred_region
        %s6008 = ssub.s32 %s34, 2
        // Predicated region
        $region113: #{biaffine_pairwise_forward.2} parent=111 // pred_check
          %p6009 = pneg %p283
        $region114: #{biaffine_pairwise_forward.2} parent=111 // pred_check_branch
          %6011 = sbr.rel (%p6009) target = $region116
        $region115: #{biaffine_pairwise_forward.2} parent=111 // pred_region
          %s6012 = sand.u32 %s268, 1
          %s6013 = scalar_lea.sflag [#allocation4], %s6012
          %s6014 = sand.u32 %s268, 1
          %s6015 = smul.addr %s6014, 32
          %s6016 = scalar_lea.vmem [#allocation19], %s6015
          %6017 = dma.done %s6013, 512
        $region116: #{biaffine_pairwise_forward.2} parent=111 // pred_fallthru
          _
        // Predicated region
        $region117: #{biaffine_pairwise_forward.2} parent=111 // pred_check
          %p6018 = pneg %p309
        $region118: #{biaffine_pairwise_forward.2} parent=111 // pred_check_branch
          %6020 = sbr.rel (%p6018) target = $region120
        $region119: #{biaffine_pairwise_forward.2} parent=111 // pred_region
          %s6021 = sand.u32 %s294, 1
          %s6022 = scalar_lea.sflag [#allocation21], %s6021
          %s6023 = sand.u32 %s294, 1
          %s6024 = scalar_lea.vmem [#allocation20], %s6023
          %6025 = dma.done %s6022, 16
        $region120: #{biaffine_pairwise_forward.2} parent=111 // pred_fallthru
          _
      $region112: #{biaffine_pairwise_forward.2} parent=5 // pred_fallthru
        _
    $region6: #{biaffine_pairwise_forward.2} parent=1 // loop_footer
      %s38 = sadd.s32 1, %s34
    $region7: #{biaffine_pairwise_forward.2} parent=1 // loop_footer_branch
      %33 = sbr.rel target = $region3
    $region8: #{biaffine_pairwise_forward.2} parent=1 // loop_exit
      _
    %6026 = vsyncpa [#allocation3], 1
    %s6027 = scalar_lea.sflag [#allocation3], 1
    %6028 = vsyncpa %s6027, 1
    %6029 = vsyncpa [#allocation6], 1
    %s6030 = scalar_lea.sflag [#allocation6], 1
    %6031 = vsyncpa %s6030, 1
    %6032 = vsyncpa [#allocation9], 1
    %6033 = vsyncpa [#allocation12], 1
    %6034 = vsyncpa [#allocation15], 1
    %6035 = vsyncpa [#allocation18], 1
    %6036 = vsyncpa [#allocation4], 1
    %s6037 = scalar_lea.sflag [#allocation4], 1
    %6038 = vsyncpa %s6037, 1
    %6039 = vsyncpa [#allocation21], 1
    %s6040 = scalar_lea.sflag [#allocation21], 1
    %6041 = vsyncpa %s6040, 1

</llo_original>
